<compile_context>
chip_gen: v7x
topology: tpu7x:2x2x1
jax: 0.10.0
libtpu: 0.0.40
codegen_flags: <defaults>
</compile_context>

<pallas_src>
from functools import partial

import jax
import jax.numpy as jnp
import numpy as np
from jax.experimental import pallas as pl
from jax.experimental.pallas import tpu as pltpu


def _device_kind() -> str:
    try:
        return jax.devices()[0].device_kind.lower()
    except Exception:
        return ""


def attention_kernel(x_ref, wqkv_ref, wout_ref, bout_ref, o_ref, *,
                     heads, dim_head, exp_dtype):
    # x_ref:    (bb, C, N)      bb batch elements, N (=H*W) on lanes
    # wqkv_ref: (3*hidden, C)   qkv projection (1x1 conv, no bias), q rows pre-scaled
    # wout_ref: (C, hidden)     output projection (1x1 conv)
    # bout_ref: (C, 1)          output projection bias
    # o_ref:    (bb, C, N)
    bb, _, n = x_ref.shape
    hidden = heads * dim_head

    # Static unroll over the batch elements in this block (bb == 1 on v7x where
    # the grid is over batch, bb == B on single-TC chips with a collapsed grid).
    for bi in range(bb):
        x = x_ref[bi]                                          # (C, N) f32

        # qkv projection: (3*hidden, C) @ (C, N).  Contraction dim C is tiny,
        # negligible on MXU or VPU -> keep the simple f32 dot.
        qkv = jnp.dot(wqkv_ref[...], x,
                      preferred_element_type=jnp.float32)      # (3*hidden, N)

        # Head split: sublane-axis slices at multiples of hidden (128) and a
        # 128 -> (heads, 32) sublane-dim reshape; no (8,128) tile boundary is
        # crossed, so no VMEM copies.
        q = qkv[0 * hidden:1 * hidden].reshape(heads, dim_head, n)   # pre-scaled
        k = qkv[1 * hidden:2 * hidden].reshape(heads, dim_head, n)
        v = qkv[2 * hidden:3 * hidden].reshape(heads, dim_head, n)

        # Keys-on-sublanes: transpose the narrow k (never q.T of sim, never NxN).
        k_t = jnp.swapaxes(k, 1, 2)                            # (heads, N, dim_head)

        # sim_T[h, j, i] = sum_d k[h, d, j] * q[h, d, i]  (== sim[h, i, j]).
        # bf16 MXU operands, f32 accumulation; contraction on LHS lanes / RHS
        # sublanes -> MXU-native, no hidden transpose.
        sim_t = jnp.einsum(
            "hjd,hdi->hji",
            k_t.astype(jnp.bfloat16), q.astype(jnp.bfloat16),
            preferred_element_type=jnp.float32,
        )                                                      # (heads, Nk, Nq) f32

        # Numerically-stable softmax over keys (now the sublane axis).
        m = jnp.max(sim_t, axis=-2, keepdims=True)             # (heads, 1, Nq) f32
        p = jnp.exp((sim_t - m).astype(exp_dtype))             # bf16 exp on v6e/v7x
        l = jnp.sum(p, axis=-2, keepdims=True,
                    dtype=jnp.float32)                         # (heads, 1, Nq) f32

        # PV matmul on the *unnormalized* p: out[h,d,i] = sum_j v[h,d,j]*p[h,j,i].
        acc = jnp.einsum(
            "hdj,hji->hdi",
            v.astype(jnp.bfloat16), p.astype(jnp.bfloat16),
            preferred_element_type=jnp.float32,
        )                                                      # (heads, dim_head, Nq)

        # Deferred normalization: scale the small (heads, dim_head, N) result
        # (EUP reciprocal + VPU multiply; sublane-broadcast of l is free).
        acc = acc * pl.reciprocal(l, approx=True)

        out_hidden = acc.reshape(hidden, n)                    # head-major channels

        # Output projection + bias; the (C, N) store is lane-dense.
        y = jnp.dot(wout_ref[...], out_hidden,
                    preferred_element_type=jnp.float32)        # (C, N)
        o_ref[bi] = y + bout_ref[...]


def attention_forward(x_nchw, wqkv, wout, bout, *, heads, dim_head):
    b, c, h, w = x_nchw.shape
    n = h * w
    hidden = heads * dim_head
    scale = dim_head ** (-0.5)

    # Tile-boundary safety for the in-kernel head-split reshapes / slices.
    assert dim_head % 8 == 0, "dim_head must be a multiple of 8 (sublane tile)"
    assert n % 128 == 0, "H*W must be a multiple of 128 (lane tile)"

    # NCHW -> (B, C, N): pure reshape, no HBM transpose (spatial stays on lanes).
    x = x_nchw.reshape(b, c, n).astype(jnp.float32)

    # Conv 1x1 weights -> (out, in) matmul matrices; fold q scaling into the
    # q rows of the projection (constant-folded at trace time).
    wqkv_m = wqkv.reshape(3 * hidden, c).astype(jnp.float32)
    wqkv_m = jnp.concatenate([wqkv_m[:hidden] * scale, wqkv_m[hidden:]], axis=0)
    wout_m = wout.reshape(c, hidden).astype(jnp.float32)
    bout_m = bout.reshape(c, 1).astype(jnp.float32)

    # Generation dispatch (trace-time, from the device kind string):
    #   * bf16 exp only where the EUP/VPU are bf16-capable (v6e / v7x).
    #   * grid over batch only where there are 2 TensorCores to feed (v7x);
    #     single-TC chips take the whole batch in one grid step.
    kind = _device_kind()
    use_bf16_exp = ("v6" in kind) or ("v7" in kind)
    two_tensorcores = "v7" in kind
    exp_dtype = jnp.bfloat16 if use_bf16_exp else jnp.float32

    if two_tensorcores and b >= 2:
        grid = (b,)
        blk_b = 1
        dim_sem = ("parallel",)
    else:
        grid = (1,)
        blk_b = b
        dim_sem = ("arbitrary",)

    kernel = partial(attention_kernel, heads=heads, dim_head=dim_head,
                     exp_dtype=exp_dtype)

    out = pl.pallas_call(
        kernel,
        out_shape=jax.ShapeDtypeStruct((b, c, n), jnp.float32),
        grid=grid,
        in_specs=[
            pl.BlockSpec((blk_b, c, n), lambda i: (i, 0, 0)),
            pl.BlockSpec((3 * hidden, c), lambda i: (0, 0)),
            pl.BlockSpec((c, hidden), lambda i: (0, 0)),
            pl.BlockSpec((c, 1), lambda i: (0, 0)),
        ],
        out_specs=pl.BlockSpec((blk_b, c, n), lambda i: (i, 0, 0)),
        compiler_params=pltpu.CompilerParams(
            dimension_semantics=dim_sem,
            # Working set (qkv + sim_T + p + acc + weights) is a few MiB at
            # N=256 even with the whole batch in one block; 32 MiB leaves
            # headroom and fits every TPU generation.
            vmem_limit_bytes=32 * 1024 * 1024,
        ),
    )(x, wqkv_m, wout_m, bout_m)

    # (B, C, N) -> NCHW: pure reshape.
    return out.reshape(b, c, h, w)


def attention_reference(x_nchw, wqkv, wout, bout, *, heads, dim_head):
    # Pure-JAX f32 reference mirroring the PyTorch forward.
    b, c, h, w = x_nchw.shape
    hidden = heads * dim_head
    scale = dim_head ** (-0.5)
    x = x_nchw.reshape(b, c, h * w)
    qkv = jnp.einsum('oc,bcn->bon', wqkv.reshape(3 * hidden, c), x)
    q, k, v = jnp.split(qkv, 3, axis=1)
    q = q.reshape(b, heads, dim_head, -1) * scale
    k = k.reshape(b, heads, dim_head, -1)
    v = v.reshape(b, heads, dim_head, -1)
    sim = jnp.einsum('bhdi,bhdj->bhij', q, k)
    attn = jax.nn.softmax(sim, axis=-1)
    out = jnp.einsum('bhij,bhdj->bhid', attn, v)          # (b, h, n, d)
    out = jnp.transpose(out, (0, 1, 3, 2)).reshape(b, hidden, h * w)
    y = jnp.einsum('oc,bcn->bon', wout.reshape(c, hidden), out) + bout.reshape(1, c, 1)
    return y.reshape(b, c, h, w)


if __name__ == "__main__":
    B, DIM, H, W = 2, 4, 16, 16
    HEADS, DIM_HEAD = 4, 32
    HIDDEN = HEADS * DIM_HEAD

    key = jax.random.PRNGKey(0)
    kx, kqkv, kwo, kbo = jax.random.split(key, 4)

    x = jax.random.normal(kx, (B, DIM, H, W), dtype=jnp.float32)
    # conv2d 1x1 weight layouts: (O, C, 1, 1)
    wqkv = jax.random.normal(kqkv, (3 * HIDDEN, DIM, 1, 1), dtype=jnp.float32) * 0.1
    wout = jax.random.normal(kwo, (DIM, HIDDEN, 1, 1), dtype=jnp.float32) * 0.1
    bout = jax.random.normal(kbo, (DIM,), dtype=jnp.float32) * 0.1

    y = attention_forward(x, wqkv, wout, bout, heads=HEADS, dim_head=DIM_HEAD)
    y = jax.block_until_ready(y)

    y_ref = attention_reference(x, wqkv, wout, bout, heads=HEADS, dim_head=DIM_HEAD)
    # Tolerance covers bf16 MXU operands, bf16 exp (v6e/v7x only) and the
    # approx EUP reciprocal; softmax max/sum statistics are always f32.
    np.testing.assert_allclose(np.asarray(y), np.asarray(y_ref), atol=2e-3, rtol=2e-3)

    print("KERNEL_OK")
</pallas_src>

<mosaic_0001>
module attributes {stable_mosaic.version = 11 : i64} {
  func.func @attention_kernel(%arg0: i32, %arg1: memref<2x4x256xf32, #tpu.memory_space<vmem>>, %arg2: memref<384x4xf32, #tpu.memory_space<vmem>>, %arg3: memref<4x128xf32, #tpu.memory_space<vmem>>, %arg4: memref<4x1xf32, #tpu.memory_space<vmem>>, %arg5: memref<2x4x256xf32, #tpu.memory_space<vmem>>) attributes {dimension_semantics = [#tpu.dimension_semantics<arbitrary>], iteration_bounds = array<i64: 1>, scalar_prefetch = 0 : i64, scratch_operands = 0 : i64, tpu.core_type = #tpu.core_type<tc>, window_params = [{transform_indices = @transform_0, window_bounds = array<i64: 2, 4, 256>}, {pipeline_mode = #tpu.pipeline_mode<synchronous>, transform_indices = @transform_1, window_bounds = array<i64: 384, 4>}, {pipeline_mode = #tpu.pipeline_mode<synchronous>, transform_indices = @transform_2, window_bounds = array<i64: 4, 128>}, {pipeline_mode = #tpu.pipeline_mode<synchronous>, transform_indices = @transform_3, window_bounds = array<i64: 4, 1>}, {transform_indices = @transform_4, window_bounds = array<i64: 2, 4, 256>}]} {
    %c0 = arith.constant 0 : index
    %c0_0 = arith.constant 0 : index
    %c0_1 = arith.constant 0 : index
    %0 = vector.load %arg1[%c0, %c0_0, %c0_1] : memref<2x4x256xf32, #tpu.memory_space<vmem>>, vector<1x4x256xf32>
    %1 = vector.shape_cast %0 : vector<1x4x256xf32> to vector<4x256xf32>
    %c0_2 = arith.constant 0 : index
    %c0_3 = arith.constant 0 : index
    %2 = vector.load %arg2[%c0_2, %c0_3] : memref<384x4xf32, #tpu.memory_space<vmem>>, vector<384x4xf32>
    %cst = arith.constant dense<0.000000e+00> : vector<384x256xf32>
    %3 = tpu.matmul %2, %1, %cst {dimension_numbers = #tpu.dot_dimension_numbers<[1], [0], [0], [1], [0, 0, 1, 1], [], []>} : vector<384x4xf32>, vector<4x256xf32>, vector<384x256xf32> -> vector<384x256xf32>
    %4 = vector.extract_strided_slice %3 {offsets = [0, 0], sizes = [128, 256], strides = [1, 1]} : vector<384x256xf32> to vector<128x256xf32>
    %5 = vector.shape_cast %4 : vector<128x256xf32> to vector<4x32x256xf32>
    %6 = vector.extract_strided_slice %3 {offsets = [128, 0], sizes = [128, 256], strides = [1, 1]} : vector<384x256xf32> to vector<128x256xf32>
    %7 = vector.shape_cast %6 : vector<128x256xf32> to vector<4x32x256xf32>
    %8 = vector.extract_strided_slice %3 {offsets = [256, 0], sizes = [128, 256], strides = [1, 1]} : vector<384x256xf32> to vector<128x256xf32>
    %9 = vector.shape_cast %8 : vector<128x256xf32> to vector<4x32x256xf32>
    %10 = tpu.transpose %7, [0, 2, 1] : vector<4x32x256xf32> -> vector<4x256x32xf32>
    %11 = arith.truncf %10 : vector<4x256x32xf32> to vector<4x256x32xbf16>
    %12 = arith.truncf %5 : vector<4x32x256xf32> to vector<4x32x256xbf16>
    "tpu.trace_start"() <{level = 10 : i32, message = "hjd,hdi->hji"}> : () -> ()
    %cst_4 = arith.constant dense<0.000000e+00> : vector<4x256x256xf32>
    %13 = tpu.matmul %11, %12, %cst_4 {dimension_numbers = #tpu.dot_dimension_numbers<[2], [1], [1], [2], [0, 0, 0, 1, 1, 2], [0], [0]>} : vector<4x256x32xbf16>, vector<4x32x256xbf16>, vector<4x256x256xf32> -> vector<4x256x256xf32>
    "tpu.trace_stop"() : () -> ()
    %cst_5 = arith.constant dense<0xFF800000> : vector<4x256xf32>
    %14 = vector.multi_reduction <maximumf>, %13, %cst_5 [1] : vector<4x256x256xf32> to vector<4x256xf32>
    %15 = vector.shape_cast %14 : vector<4x256xf32> to vector<4x1x256xf32>
    %16 = vector.broadcast %15 : vector<4x1x256xf32> to vector<4x256x256xf32>
    %17 = arith.subf %13, %16 : vector<4x256x256xf32>
    %18 = math.exp %17 : vector<4x256x256xf32>
    %cst_6 = arith.constant dense<0.000000e+00> : vector<4x256xf32>
    %19 = vector.multi_reduction <add>, %18, %cst_6 [1] : vector<4x256x256xf32> to vector<4x256xf32>
    %20 = vector.shape_cast %19 : vector<4x256xf32> to vector<4x1x256xf32>
    %21 = arith.truncf %9 : vector<4x32x256xf32> to vector<4x32x256xbf16>
    %22 = arith.truncf %18 : vector<4x256x256xf32> to vector<4x256x256xbf16>
    "tpu.trace_start"() <{level = 10 : i32, message = "hdj,hji->hdi"}> : () -> ()
    %cst_7 = arith.constant dense<0.000000e+00> : vector<4x32x256xf32>
    %23 = tpu.matmul %21, %22, %cst_7 {dimension_numbers = #tpu.dot_dimension_numbers<[2], [1], [1], [2], [0, 0, 0, 1, 1, 2], [0], [0]>} : vector<4x32x256xbf16>, vector<4x256x256xbf16>, vector<4x32x256xf32> -> vector<4x32x256xf32>
    "tpu.trace_stop"() : () -> ()
    %24 = tpu.reciprocal %20 {approx = true} : vector<4x1x256xf32> -> vector<4x1x256xf32>
    %25 = vector.broadcast %24 : vector<4x1x256xf32> to vector<4x32x256xf32>
    %26 = arith.mulf %23, %25 : vector<4x32x256xf32>
    %27 = vector.shape_cast %26 : vector<4x32x256xf32> to vector<128x256xf32>
    %c0_8 = arith.constant 0 : index
    %c0_9 = arith.constant 0 : index
    %28 = vector.load %arg3[%c0_8, %c0_9] : memref<4x128xf32, #tpu.memory_space<vmem>>, vector<4x128xf32>
    %cst_10 = arith.constant dense<0.000000e+00> : vector<4x256xf32>
    %29 = tpu.matmul %28, %27, %cst_10 {dimension_numbers = #tpu.dot_dimension_numbers<[1], [0], [0], [1], [0, 0, 1, 1], [], []>} : vector<4x128xf32>, vector<128x256xf32>, vector<4x256xf32> -> vector<4x256xf32>
    %c0_11 = arith.constant 0 : index
    %c0_12 = arith.constant 0 : index
    %30 = vector.load %arg4[%c0_11, %c0_12] : memref<4x1xf32, #tpu.memory_space<vmem>>, vector<4x1xf32>
    %31 = vector.broadcast %30 : vector<4x1xf32> to vector<4x256xf32>
    %32 = arith.addf %29, %31 : vector<4x256xf32>
    %c0_13 = arith.constant 0 : index
    %c0_14 = arith.constant 0 : index
    %c0_15 = arith.constant 0 : index
    %33 = vector.load %arg5[%c0_13, %c0_14, %c0_15] : memref<2x4x256xf32, #tpu.memory_space<vmem>>, vector<1x4x256xf32>
    %34 = vector.shape_cast %33 : vector<1x4x256xf32> to vector<4x256xf32>
    %35 = vector.shape_cast %32 : vector<4x256xf32> to vector<1x4x256xf32>
    tpu.vector_store %arg5[%c0_13, %c0_14, %c0_15], %35 {strides = array<i32>} : memref<2x4x256xf32, #tpu.memory_space<vmem>>, vector<1x4x256xf32>,
    %c1 = arith.constant 1 : index
    %c0_16 = arith.constant 0 : index
    %c0_17 = arith.constant 0 : index
    %36 = vector.load %arg1[%c1, %c0_16, %c0_17] : memref<2x4x256xf32, #tpu.memory_space<vmem>>, vector<1x4x256xf32>
    %37 = vector.shape_cast %36 : vector<1x4x256xf32> to vector<4x256xf32>
    %c0_18 = arith.constant 0 : index
    %c0_19 = arith.constant 0 : index
    %38 = vector.load %arg2[%c0_18, %c0_19] : memref<384x4xf32, #tpu.memory_space<vmem>>, vector<384x4xf32>
    %cst_20 = arith.constant dense<0.000000e+00> : vector<384x256xf32>
    %39 = tpu.matmul %38, %37, %cst_20 {dimension_numbers = #tpu.dot_dimension_numbers<[1], [0], [0], [1], [0, 0, 1, 1], [], []>} : vector<384x4xf32>, vector<4x256xf32>, vector<384x256xf32> -> vector<384x256xf32>
    %40 = vector.extract_strided_slice %39 {offsets = [0, 0], sizes = [128, 256], strides = [1, 1]} : vector<384x256xf32> to vector<128x256xf32>
    %41 = vector.shape_cast %40 : vector<128x256xf32> to vector<4x32x256xf32>
    %42 = vector.extract_strided_slice %39 {offsets = [128, 0], sizes = [128, 256], strides = [1, 1]} : vector<384x256xf32> to vector<128x256xf32>
    %43 = vector.shape_cast %42 : vector<128x256xf32> to vector<4x32x256xf32>
    %44 = vector.extract_strided_slice %39 {offsets = [256, 0], sizes = [128, 256], strides = [1, 1]} : vector<384x256xf32> to vector<128x256xf32>
    %45 = vector.shape_cast %44 : vector<128x256xf32> to vector<4x32x256xf32>
    %46 = tpu.transpose %43, [0, 2, 1] : vector<4x32x256xf32> -> vector<4x256x32xf32>
    %47 = arith.truncf %46 : vector<4x256x32xf32> to vector<4x256x32xbf16>
    %48 = arith.truncf %41 : vector<4x32x256xf32> to vector<4x32x256xbf16>
    "tpu.trace_start"() <{level = 10 : i32, message = "hjd,hdi->hji"}> : () -> ()
    %cst_21 = arith.constant dense<0.000000e+00> : vector<4x256x256xf32>
    %49 = tpu.matmul %47, %48, %cst_21 {dimension_numbers = #tpu.dot_dimension_numbers<[2], [1], [1], [2], [0, 0, 0, 1, 1, 2], [0], [0]>} : vector<4x256x32xbf16>, vector<4x32x256xbf16>, vector<4x256x256xf32> -> vector<4x256x256xf32>
    "tpu.trace_stop"() : () -> ()
    %cst_22 = arith.constant dense<0xFF800000> : vector<4x256xf32>
    %50 = vector.multi_reduction <maximumf>, %49, %cst_22 [1] : vector<4x256x256xf32> to vector<4x256xf32>
    %51 = vector.shape_cast %50 : vector<4x256xf32> to vector<4x1x256xf32>
    %52 = vector.broadcast %51 : vector<4x1x256xf32> to vector<4x256x256xf32>
    %53 = arith.subf %49, %52 : vector<4x256x256xf32>
    %54 = math.exp %53 : vector<4x256x256xf32>
    %cst_23 = arith.constant dense<0.000000e+00> : vector<4x256xf32>
    %55 = vector.multi_reduction <add>, %54, %cst_23 [1] : vector<4x256x256xf32> to vector<4x256xf32>
    %56 = vector.shape_cast %55 : vector<4x256xf32> to vector<4x1x256xf32>
    %57 = arith.truncf %45 : vector<4x32x256xf32> to vector<4x32x256xbf16>
    %58 = arith.truncf %54 : vector<4x256x256xf32> to vector<4x256x256xbf16>
    "tpu.trace_start"() <{level = 10 : i32, message = "hdj,hji->hdi"}> : () -> ()
    %cst_24 = arith.constant dense<0.000000e+00> : vector<4x32x256xf32>
    %59 = tpu.matmul %57, %58, %cst_24 {dimension_numbers = #tpu.dot_dimension_numbers<[2], [1], [1], [2], [0, 0, 0, 1, 1, 2], [0], [0]>} : vector<4x32x256xbf16>, vector<4x256x256xbf16>, vector<4x32x256xf32> -> vector<4x32x256xf32>
    "tpu.trace_stop"() : () -> ()
    %60 = tpu.reciprocal %56 {approx = true} : vector<4x1x256xf32> -> vector<4x1x256xf32>
    %61 = vector.broadcast %60 : vector<4x1x256xf32> to vector<4x32x256xf32>
    %62 = arith.mulf %59, %61 : vector<4x32x256xf32>
    %63 = vector.shape_cast %62 : vector<4x32x256xf32> to vector<128x256xf32>
    %c0_25 = arith.constant 0 : index
    %c0_26 = arith.constant 0 : index
    %64 = vector.load %arg3[%c0_25, %c0_26] : memref<4x128xf32, #tpu.memory_space<vmem>>, vector<4x128xf32>
    %cst_27 = arith.constant dense<0.000000e+00> : vector<4x256xf32>
    %65 = tpu.matmul %64, %63, %cst_27 {dimension_numbers = #tpu.dot_dimension_numbers<[1], [0], [0], [1], [0, 0, 1, 1], [], []>} : vector<4x128xf32>, vector<128x256xf32>, vector<4x256xf32> -> vector<4x256xf32>
    %c0_28 = arith.constant 0 : index
    %c0_29 = arith.constant 0 : index
    %66 = vector.load %arg4[%c0_28, %c0_29] : memref<4x1xf32, #tpu.memory_space<vmem>>, vector<4x1xf32>
    %67 = vector.broadcast %66 : vector<4x1xf32> to vector<4x256xf32>
    %68 = arith.addf %65, %67 : vector<4x256xf32>
    %c1_30 = arith.constant 1 : index
    %c0_31 = arith.constant 0 : index
    %c0_32 = arith.constant 0 : index
    %69 = vector.load %arg5[%c1_30, %c0_31, %c0_32] : memref<2x4x256xf32, #tpu.memory_space<vmem>>, vector<1x4x256xf32>
    %70 = vector.shape_cast %69 : vector<1x4x256xf32> to vector<4x256xf32>
    %71 = vector.shape_cast %68 : vector<4x256xf32> to vector<1x4x256xf32>
    tpu.vector_store %arg5[%c1_30, %c0_31, %c0_32], %71 {strides = array<i32>} : memref<2x4x256xf32, #tpu.memory_space<vmem>>, vector<1x4x256xf32>,
    return
  }
  func.func @transform_0(%arg0: i32) -> (i32, i32, i32) {
    %c0_i32 = arith.constant 0 : i32
    %c0_i32_0 = arith.constant 0 : i32
    %c0_i32_1 = arith.constant 0 : i32
    return %arg0, %c0_i32, %c0_i32_0 : i32, i32, i32
  }
  func.func @transform_1(%arg0: i32) -> (i32, i32) {
    %c0_i32 = arith.constant 0 : i32
    %c0_i32_0 = arith.constant 0 : i32
    %c0_i32_1 = arith.constant 0 : i32
    return %c0_i32, %c0_i32_0 : i32, i32
  }
  func.func @transform_2(%arg0: i32) -> (i32, i32) {
    %c0_i32 = arith.constant 0 : i32
    %c0_i32_0 = arith.constant 0 : i32
    %c0_i32_1 = arith.constant 0 : i32
    return %c0_i32, %c0_i32_0 : i32, i32
  }
  func.func @transform_3(%arg0: i32) -> (i32, i32) {
    %c0_i32 = arith.constant 0 : i32
    %c0_i32_0 = arith.constant 0 : i32
    %c0_i32_1 = arith.constant 0 : i32
    return %c0_i32, %c0_i32_0 : i32, i32
  }
  func.func @transform_4(%arg0: i32) -> (i32, i32, i32) {
    %c0_i32 = arith.constant 0 : i32
    %c0_i32_0 = arith.constant 0 : i32
    %c0_i32_1 = arith.constant 0 : i32
    return %arg0, %c0_i32, %c0_i32_0 : i32, i32, i32
  }
}

</mosaic_0001>

<llo_original>
// kernel: tpu_custom_call.1
$region0: #{tpu_custom_call.1}
  #allocation0 [shape = 'u32[]', space=smem, size = 0x4, offset = 0x4, fixed_abs, tag = 'smem constant byte address 0x4 - core index']
  #allocation1 [shape = 'u32[144,128]{1,0:T(1,128)}', space=vmem, size = 0x12000, scoped, tag = 'internal scratch']
  %s0 = inlined_call_operand.vmem [shape: f32[2,4,256], index: 0, kind: input, shape index: {}]
  %s1 = inlined_call_operand.vmem [shape: f32[384,4], index: 1, kind: input, shape index: {}]
  %s2 = inlined_call_operand.vmem [shape: f32[4,128], index: 2, kind: input, shape index: {}]
  %s3 = inlined_call_operand.vmem [shape: f32[4,1], index: 3, kind: input, shape index: {}]
  %s4 = inlined_call_operand.hbm [shape: f32[2,4,256], index: 4, kind: output, shape index: {}]
  %s5 = sld [smem:[#allocation0]]
  $region26: #{tpu_custom_call.1} parent=0
    _
  %s7 = ssub.s32 1, %s5
  %s8 = scalar_select 0, %s7, %s5
  $region1: #{tpu_custom_call.1} parent=0
    #allocation2 [shape = 'u8[8192]{0}', space=vmem, size = 0x2000, scoped, tag = 'output window, operand 0, single buffered']
    #allocation3 [shape = 's32[1]{0}', space=sflag, size = 0x4, scoped, tag = 'scoped memory for tpu_custom_call.1']
    %9 = vsyncpa [#allocation3], 0
    // Predicated region
    $region2: #{tpu_custom_call.1} parent=1 // pred_check
      _
    $region3: #{tpu_custom_call.1} parent=1 // pred_check_branch
      %11 = sbr.rel (0) target = $region5
    $region4: #{tpu_custom_call.1} parent=1 // pred_region
      _
    $region5: #{tpu_custom_call.1} parent=1 // pred_fallthru
      _
    // Predicated region
    $region6: #{tpu_custom_call.1} parent=1 // pred_check
      _
    $region7: #{tpu_custom_call.1} parent=1 // pred_check_branch
      %13 = sbr.rel (0) target = $region9
    $region8: #{tpu_custom_call.1} parent=1 // pred_region
      _
    $region9: #{tpu_custom_call.1} parent=1 // pred_fallthru
      _
    // Predicated region
    $region10: #{tpu_custom_call.1} parent=1 // pred_check
      _
    $region11: #{tpu_custom_call.1} parent=1 // pred_check_branch
      %15 = sbr.rel (0) target = $region13
    $region12: #{tpu_custom_call.1} parent=1 // pred_region
      _
    $region13: #{tpu_custom_call.1} parent=1 // pred_fallthru
      _
    // Predicated region
    $region14: #{tpu_custom_call.1} parent=1 // pred_check
      _
    $region15: #{tpu_custom_call.1} parent=1 // pred_check_branch
      %17 = sbr.rel (0) target = $region17
    $region16: #{tpu_custom_call.1} parent=1 // pred_region
      _
    $region17: #{tpu_custom_call.1} parent=1 // pred_fallthru
      _
    %v19 = vld [vmem:[%s0] sm:$0xff]
    %v20 = vld [vmem:[%s1] sm:$0xff]
    %v21 = vld [vmem:[%s1 + $0x8] sm:$0xff]
    %v22 = vld [vmem:[%s1 + $0x10] sm:$0xff]
    %v23 = vld [vmem:[%s1 + $0x18] sm:$0xff]
    %v24 = vld [vmem:[%s1 + $0x20] sm:$0xff]
    %v25 = vld [vmem:[%s1 + $0x28] sm:$0xff]
    %v26 = vld [vmem:[%s1 + $0x30] sm:$0xff]
    %v27 = vld [vmem:[%s1 + $0x38] sm:$0xff]
    %v28 = vld [vmem:[%s1 + $0x40] sm:$0xff]
    %v29 = vld [vmem:[%s1 + $0x48] sm:$0xff]
    %v30 = vld [vmem:[%s1 + $0x50] sm:$0xff]
    %v31 = vld [vmem:[%s1 + $0x58] sm:$0xff]
    %v32 = vld [vmem:[%s1 + $0x60] sm:$0xff]
    %v33 = vld [vmem:[%s1 + $0x68] sm:$0xff]
    %v34 = vld [vmem:[%s1 + $0x70] sm:$0xff]
    %v35 = vld [vmem:[%s1 + $0x78] sm:$0xff]
    %v36 = vld [vmem:[%s1 + $0x80] sm:$0xff]
    %v37 = vld [vmem:[%s1 + $0x88] sm:$0xff]
    %v38 = vld [vmem:[%s1 + $0x90] sm:$0xff]
    %v39 = vld [vmem:[%s1 + $0x98] sm:$0xff]
    %v40 = vld [vmem:[%s1 + $0xa0] sm:$0xff]
    %v41 = vld [vmem:[%s1 + $0xa8] sm:$0xff]
    %v42 = vld [vmem:[%s1 + $0xb0] sm:$0xff]
    %v43 = vld [vmem:[%s1 + $0xb8] sm:$0xff]
    %v44 = vld [vmem:[%s1 + $0xc0] sm:$0xff]
    %v45 = vld [vmem:[%s1 + $0xc8] sm:$0xff]
    %v46 = vld [vmem:[%s1 + $0xd0] sm:$0xff]
    %v47 = vld [vmem:[%s1 + $0xd8] sm:$0xff]
    %v48 = vld [vmem:[%s1 + $0xe0] sm:$0xff]
    %v49 = vld [vmem:[%s1 + $0xe8] sm:$0xff]
    %v50 = vld [vmem:[%s1 + $0xf0] sm:$0xff]
    %v51 = vld [vmem:[%s1 + $0xf8] sm:$0xff]
    %v52 = vld [vmem:[%s1 + $0x100] sm:$0xff]
    %v53 = vld [vmem:[%s1 + $0x108] sm:$0xff]
    %v54 = vld [vmem:[%s1 + $0x110] sm:$0xff]
    %v55 = vld [vmem:[%s1 + $0x118] sm:$0xff]
    %v56 = vld [vmem:[%s1 + $0x120] sm:$0xff]
    %v57 = vld [vmem:[%s1 + $0x128] sm:$0xff]
    %v58 = vld [vmem:[%s1 + $0x130] sm:$0xff]
    %v59 = vld [vmem:[%s1 + $0x138] sm:$0xff]
    %v60 = vld [vmem:[%s1 + $0x140] sm:$0xff]
    %v61 = vld [vmem:[%s1 + $0x148] sm:$0xff]
    %v62 = vld [vmem:[%s1 + $0x150] sm:$0xff]
    %v63 = vld [vmem:[%s1 + $0x158] sm:$0xff]
    %v64 = vld [vmem:[%s1 + $0x160] sm:$0xff]
    %v65 = vld [vmem:[%s1 + $0x168] sm:$0xff]
    %v66 = vld [vmem:[%s1 + $0x170] sm:$0xff]
    %v67 = vld [vmem:[%s1 + $0x178] sm:$0xff]
    %v69 = vcombine.high %v19, %v19
    %vm70 = vcmask 31744
    %v72 = vsel %vm70, %v20, 0
    %v75 = vsel %vm70, %v21, 0
    %v78 = vsel %vm70, %v22, 0
    %v81 = vsel %vm70, %v23, 0
    %v84 = vsel %vm70, %v24, 0
    %v87 = vsel %vm70, %v25, 0
    %v90 = vsel %vm70, %v26, 0
    %v93 = vsel %vm70, %v27, 0
    %v96 = vsel %vm70, %v28, 0
    %v99 = vsel %vm70, %v29, 0
    %v102 = vsel %vm70, %v30, 0
    %v105 = vsel %vm70, %v31, 0
    %v108 = vsel %vm70, %v32, 0
    %v111 = vsel %vm70, %v33, 0
    %v114 = vsel %vm70, %v34, 0
    %v117 = vsel %vm70, %v35, 0
    %v120 = vsel %vm70, %v36, 0
    %v123 = vsel %vm70, %v37, 0
    %v126 = vsel %vm70, %v38, 0
    %v129 = vsel %vm70, %v39, 0
    %v132 = vsel %vm70, %v40, 0
    %v135 = vsel %vm70, %v41, 0
    %v138 = vsel %vm70, %v42, 0
    %v141 = vsel %vm70, %v43, 0
    %v144 = vsel %vm70, %v44, 0
    %v147 = vsel %vm70, %v45, 0
    %v150 = vsel %vm70, %v46, 0
    %v153 = vsel %vm70, %v47, 0
    %v156 = vsel %vm70, %v48, 0
    %v159 = vsel %vm70, %v49, 0
    %v162 = vsel %vm70, %v50, 0
    %v165 = vsel %vm70, %v51, 0
    %v168 = vsel %vm70, %v52, 0
    %v171 = vsel %vm70, %v53, 0
    %v174 = vsel %vm70, %v54, 0
    %v177 = vsel %vm70, %v55, 0
    %v180 = vsel %vm70, %v56, 0
    %v183 = vsel %vm70, %v57, 0
    %v186 = vsel %vm70, %v58, 0
    %v189 = vsel %vm70, %v59, 0
    %v192 = vsel %vm70, %v60, 0
    %v195 = vsel %vm70, %v61, 0
    %v198 = vsel %vm70, %v62, 0
    %v201 = vsel %vm70, %v63, 0
    %v204 = vsel %vm70, %v64, 0
    %v207 = vsel %vm70, %v65, 0
    %v210 = vsel %vm70, %v66, 0
    %v213 = vsel %vm70, %v67, 0
    %vm215 = vcmask 1043456
    %v216 = vsel %vm215, %v19, 0
    %v218 = vsel %vm215, %v69, 0
    %220 = vmatprep.subr.mxu0 %v218
    %221 = vmatpush1.msra.mxu0 %v216
    %222 = vmatprep.subr.mxu0 0.0
    %223 = vmatpush1.msra.mxu0 0.0
    %224 = vmatprep.subr.mxu0 0.0
    %225 = vmatpush1.msra.mxu0 0.0
    %226 = vmatprep.subr.mxu0 0.0
    %227 = vmatpush1.msra.mxu0 0.0
    %228 = vmatprep.subr.mxu0 0.0
    %229 = vmatpush1.msra.mxu0 0.0
    %230 = vmatprep.subr.mxu0 0.0
    %231 = vmatpush1.msra.mxu0 0.0
    %232 = vmatprep.subr.mxu0 0.0
    %233 = vmatpush1.msra.mxu0 0.0
    %234 = vmatprep.subr.mxu0 0.0
    %235 = vmatpush1.msra.mxu0 0.0
    %236 = vmatprep.subr.mxu0 0.0
    %237 = vmatpush1.msra.mxu0 0.0
    %238 = vmatprep.subr.mxu0 0.0
    %239 = vmatpush1.msra.mxu0 0.0
    %240 = vmatprep.subr.mxu0 0.0
    %241 = vmatpush1.msra.mxu0 0.0
    %242 = vmatprep.subr.mxu0 0.0
    %243 = vmatpush1.msra.mxu0 0.0
    %244 = vmatprep.subr.mxu0 0.0
    %245 = vmatpush1.msra.mxu0 0.0
    %246 = vmatprep.subr.mxu0 0.0
    %247 = vmatpush1.msra.mxu0 0.0
    %248 = vmatprep.subr.mxu0 0.0
    %249 = vmatpush1.msra.mxu0 0.0
    %250 = vmatprep.subr.mxu0 0.0
    %251 = vmatpush1.msra.mxu0 0.0
    %252 = vmatprep.subr.mxu0 0.0
    %253 = vmatpush1.msra.mxu0 0.0
    %254 = vmatprep.subr.mxu0 0.0
    %255 = vmatpush1.msra.mxu0 0.0
    %256 = vmatprep.subr.mxu0 0.0
    %257 = vmatpush1.msra.mxu0 0.0
    %258 = vmatprep.subr.mxu0 0.0
    %259 = vmatpush1.msra.mxu0 0.0
    %260 = vmatprep.subr.mxu0 0.0
    %261 = vmatpush1.msra.mxu0 0.0
    %262 = vmatprep.subr.mxu0 0.0
    %263 = vmatpush1.msra.mxu0 0.0
    %264 = vmatprep.subr.mxu0 0.0
    %265 = vmatpush1.msra.mxu0 0.0
    %266 = vmatprep.subr.mxu0 0.0
    %267 = vmatpush1.msra.mxu0 0.0
    %268 = vmatprep.subr.mxu0 0.0
    %269 = vmatpush1.msra.mxu0 0.0
    %270 = vmatprep.subr.mxu0 0.0
    %271 = vmatpush1.msra.mxu0 0.0
    %272 = vmatprep.subr.mxu0 0.0
    %273 = vmatpush1.msra.mxu0 0.0
    %274 = vmatprep.subr.mxu0 0.0
    %275 = vmatpush1.msra.mxu0 0.0
    %276 = vmatprep.subr.mxu0 0.0
    %277 = vmatpush1.msra.mxu0 0.0
    %278 = vmatprep.subr.mxu0 0.0
    %279 = vmatpush1.msra.mxu0 0.0
    %280 = vmatprep.subr.mxu0 0.0
    %281 = vmatpush1.msra.mxu0 0.0
    %282 = vmatprep.subr.mxu0 0.0
    %283 = vmatpush1.msra.mxu0 0.0
    %284 = vmatprep.mubr.f32.mxu0 0.0
    %285 = vmatmul.mubr.f32.gmra.mrb[0].mxu0 %v72
    %v286 = vpop.f32.mrb[0].mxu0
    %v287 = vadd.f32 0.0, %v286
    %v288 = vpop.f32.mrb[0].mxu0
    %v289 = vadd.f32 0.0, %v288
    %290 = vmatprep.mubr.f32.mxu0 0.0
    %291 = vmatmul.mubr.f32.gmra.mrb[0].mxu0 %v75
    %v292 = vpop.f32.mrb[0].mxu0
    %v293 = vadd.f32 0.0, %v292
    %v294 = vpop.f32.mrb[0].mxu0
    %v295 = vadd.f32 0.0, %v294
    %296 = vmatprep.mubr.f32.mxu0 0.0
    %297 = vmatmul.mubr.f32.gmra.mrb[0].mxu0 %v78
    %v298 = vpop.f32.mrb[0].mxu0
    %v299 = vadd.f32 0.0, %v298
    %v300 = vpop.f32.mrb[0].mxu0
    %v301 = vadd.f32 0.0, %v300
    %302 = vmatprep.mubr.f32.mxu0 0.0
    %303 = vmatmul.mubr.f32.gmra.mrb[0].mxu0 %v81
    %v304 = vpop.f32.mrb[0].mxu0
    %v305 = vadd.f32 0.0, %v304
    %v306 = vpop.f32.mrb[0].mxu0
    %v307 = vadd.f32 0.0, %v306
    %308 = vmatprep.mubr.f32.mxu0 0.0
    %309 = vmatmul.mubr.f32.gmra.mrb[0].mxu0 %v84
    %v310 = vpop.f32.mrb[0].mxu0
    %v311 = vadd.f32 0.0, %v310
    %v312 = vpop.f32.mrb[0].mxu0
    %v313 = vadd.f32 0.0, %v312
    %314 = vmatprep.mubr.f32.mxu0 0.0
    %315 = vmatmul.mubr.f32.gmra.mrb[0].mxu0 %v87
    %v316 = vpop.f32.mrb[0].mxu0
    %v317 = vadd.f32 0.0, %v316
    %v318 = vpop.f32.mrb[0].mxu0
    %v319 = vadd.f32 0.0, %v318
    %320 = vmatprep.mubr.f32.mxu0 0.0
    %321 = vmatmul.mubr.f32.gmra.mrb[0].mxu0 %v90
    %v322 = vpop.f32.mrb[0].mxu0
    %v323 = vadd.f32 0.0, %v322
    %v324 = vpop.f32.mrb[0].mxu0
    %v325 = vadd.f32 0.0, %v324
    %326 = vmatprep.mubr.f32.mxu0 0.0
    %327 = vmatmul.mubr.f32.gmra.mrb[0].mxu0 %v93
    %v328 = vpop.f32.mrb[0].mxu0
    %v329 = vadd.f32 0.0, %v328
    %v330 = vpop.f32.mrb[0].mxu0
    %v331 = vadd.f32 0.0, %v330
    %332 = vmatprep.mubr.f32.mxu0 0.0
    %333 = vmatmul.mubr.f32.gmra.mrb[0].mxu0 %v96
    %v334 = vpop.f32.mrb[0].mxu0
    %v335 = vadd.f32 0.0, %v334
    %v336 = vpop.f32.mrb[0].mxu0
    %v337 = vadd.f32 0.0, %v336
    %338 = vmatprep.mubr.f32.mxu0 0.0
    %339 = vmatmul.mubr.f32.gmra.mrb[0].mxu0 %v99
    %v340 = vpop.f32.mrb[0].mxu0
    %v341 = vadd.f32 0.0, %v340
    %v342 = vpop.f32.mrb[0].mxu0
    %v343 = vadd.f32 0.0, %v342
    %344 = vmatprep.mubr.f32.mxu0 0.0
    %345 = vmatmul.mubr.f32.gmra.mrb[0].mxu0 %v102
    %v346 = vpop.f32.mrb[0].mxu0
    %v347 = vadd.f32 0.0, %v346
    %v348 = vpop.f32.mrb[0].mxu0
    %v349 = vadd.f32 0.0, %v348
    %350 = vmatprep.mubr.f32.mxu0 0.0
    %351 = vmatmul.mubr.f32.gmra.mrb[0].mxu0 %v105
    %v352 = vpop.f32.mrb[0].mxu0
    %v353 = vadd.f32 0.0, %v352
    %v354 = vpop.f32.mrb[0].mxu0
    %v355 = vadd.f32 0.0, %v354
    %356 = vmatprep.mubr.f32.mxu0 0.0
    %357 = vmatmul.mubr.f32.gmra.mrb[0].mxu0 %v108
    %v358 = vpop.f32.mrb[0].mxu0
    %v359 = vadd.f32 0.0, %v358
    %v360 = vpop.f32.mrb[0].mxu0
    %v361 = vadd.f32 0.0, %v360
    %362 = vmatprep.mubr.f32.mxu0 0.0
    %363 = vmatmul.mubr.f32.gmra.mrb[0].mxu0 %v111
    %v364 = vpop.f32.mrb[0].mxu0
    %v365 = vadd.f32 0.0, %v364
    %v366 = vpop.f32.mrb[0].mxu0
    %v367 = vadd.f32 0.0, %v366
    %368 = vmatprep.mubr.f32.mxu0 0.0
    %369 = vmatmul.mubr.f32.gmra.mrb[0].mxu0 %v114
    %v370 = vpop.f32.mrb[0].mxu0
    %v371 = vadd.f32 0.0, %v370
    %v372 = vpop.f32.mrb[0].mxu0
    %v373 = vadd.f32 0.0, %v372
    %374 = vmatprep.mubr.f32.mxu0 0.0
    %375 = vmatmul.mubr.f32.gmra.mrb[0].mxu0 %v117
    %v376 = vpop.f32.mrb[0].mxu0
    %v377 = vadd.f32 0.0, %v376
    %v378 = vpop.f32.mrb[0].mxu0
    %v379 = vadd.f32 0.0, %v378
    %380 = vmatprep.mubr.f32.mxu0 0.0
    %381 = vmatmul.mubr.f32.gmra.mrb[0].mxu0 %v120
    %v382 = vpop.f32.mrb[0].mxu0
    %v383 = vadd.f32 0.0, %v382
    %v384 = vpop.f32.mrb[0].mxu0
    %v385 = vadd.f32 0.0, %v384
    %386 = vmatprep.mubr.f32.mxu0 0.0
    %387 = vmatmul.mubr.f32.gmra.mrb[0].mxu0 %v123
    %v388 = vpop.f32.mrb[0].mxu0
    %v389 = vadd.f32 0.0, %v388
    %v390 = vpop.f32.mrb[0].mxu0
    %v391 = vadd.f32 0.0, %v390
    %392 = vmatprep.mubr.f32.mxu0 0.0
    %393 = vmatmul.mubr.f32.gmra.mrb[0].mxu0 %v126
    %v394 = vpop.f32.mrb[0].mxu0
    %v395 = vadd.f32 0.0, %v394
    %v396 = vpop.f32.mrb[0].mxu0
    %v397 = vadd.f32 0.0, %v396
    %398 = vmatprep.mubr.f32.mxu0 0.0
    %399 = vmatmul.mubr.f32.gmra.mrb[0].mxu0 %v129
    %v400 = vpop.f32.mrb[0].mxu0
    %v401 = vadd.f32 0.0, %v400
    %v402 = vpop.f32.mrb[0].mxu0
    %v403 = vadd.f32 0.0, %v402
    %404 = vmatprep.mubr.f32.mxu0 0.0
    %405 = vmatmul.mubr.f32.gmra.mrb[0].mxu0 %v132
    %v406 = vpop.f32.mrb[0].mxu0
    %v407 = vadd.f32 0.0, %v406
    %v408 = vpop.f32.mrb[0].mxu0
    %v409 = vadd.f32 0.0, %v408
    %410 = vmatprep.mubr.f32.mxu0 0.0
    %411 = vmatmul.mubr.f32.gmra.mrb[0].mxu0 %v135
    %v412 = vpop.f32.mrb[0].mxu0
    %v413 = vadd.f32 0.0, %v412
    %v414 = vpop.f32.mrb[0].mxu0
    %v415 = vadd.f32 0.0, %v414
    %416 = vmatprep.mubr.f32.mxu0 0.0
    %417 = vmatmul.mubr.f32.gmra.mrb[0].mxu0 %v138
    %v418 = vpop.f32.mrb[0].mxu0
    %v419 = vadd.f32 0.0, %v418
    %v420 = vpop.f32.mrb[0].mxu0
    %v421 = vadd.f32 0.0, %v420
    %422 = vmatprep.mubr.f32.mxu0 0.0
    %423 = vmatmul.mubr.f32.gmra.mrb[0].mxu0 %v141
    %v424 = vpop.f32.mrb[0].mxu0
    %v425 = vadd.f32 0.0, %v424
    %v426 = vpop.f32.mrb[0].mxu0
    %v427 = vadd.f32 0.0, %v426
    %428 = vmatprep.mubr.f32.mxu0 0.0
    %429 = vmatmul.mubr.f32.gmra.mrb[0].mxu0 %v144
    %v430 = vpop.f32.mrb[0].mxu0
    %v431 = vadd.f32 0.0, %v430
    %v432 = vpop.f32.mrb[0].mxu0
    %v433 = vadd.f32 0.0, %v432
    %434 = vmatprep.mubr.f32.mxu0 0.0
    %435 = vmatmul.mubr.f32.gmra.mrb[0].mxu0 %v147
    %v436 = vpop.f32.mrb[0].mxu0
    %v437 = vadd.f32 0.0, %v436
    %v438 = vpop.f32.mrb[0].mxu0
    %v439 = vadd.f32 0.0, %v438
    %440 = vmatprep.mubr.f32.mxu0 0.0
    %441 = vmatmul.mubr.f32.gmra.mrb[0].mxu0 %v150
    %v442 = vpop.f32.mrb[0].mxu0
    %v443 = vadd.f32 0.0, %v442
    %v444 = vpop.f32.mrb[0].mxu0
    %v445 = vadd.f32 0.0, %v444
    %446 = vmatprep.mubr.f32.mxu0 0.0
    %447 = vmatmul.mubr.f32.gmra.mrb[0].mxu0 %v153
    %v448 = vpop.f32.mrb[0].mxu0
    %v449 = vadd.f32 0.0, %v448
    %v450 = vpop.f32.mrb[0].mxu0
    %v451 = vadd.f32 0.0, %v450
    %452 = vmatprep.mubr.f32.mxu0 0.0
    %453 = vmatmul.mubr.f32.gmra.mrb[0].mxu0 %v156
    %v454 = vpop.f32.mrb[0].mxu0
    %v455 = vadd.f32 0.0, %v454
    %v456 = vpop.f32.mrb[0].mxu0
    %v457 = vadd.f32 0.0, %v456
    %458 = vmatprep.mubr.f32.mxu0 0.0
    %459 = vmatmul.mubr.f32.gmra.mrb[0].mxu0 %v159
    %v460 = vpop.f32.mrb[0].mxu0
    %v461 = vadd.f32 0.0, %v460
    %v462 = vpop.f32.mrb[0].mxu0
    %v463 = vadd.f32 0.0, %v462
    %464 = vmatprep.mubr.f32.mxu0 0.0
    %465 = vmatmul.mubr.f32.gmra.mrb[0].mxu0 %v162
    %v466 = vpop.f32.mrb[0].mxu0
    %v467 = vadd.f32 0.0, %v466
    %v468 = vpop.f32.mrb[0].mxu0
    %v469 = vadd.f32 0.0, %v468
    %470 = vmatprep.mubr.f32.mxu0 0.0
    %471 = vmatmul.mubr.f32.gmra.mrb[0].mxu0 %v165
    %v472 = vpop.f32.mrb[0].mxu0
    %v473 = vadd.f32 0.0, %v472
    %v474 = vpop.f32.mrb[0].mxu0
    %v475 = vadd.f32 0.0, %v474
    %476 = vmatprep.mubr.f32.mxu0 0.0
    %477 = vmatmul.mubr.f32.gmra.mrb[0].mxu0 %v168
    %v478 = vpop.f32.mrb[0].mxu0
    %v479 = vadd.f32 0.0, %v478
    %v480 = vpop.f32.mrb[0].mxu0
    %v481 = vadd.f32 0.0, %v480
    %482 = vmatprep.mubr.f32.mxu0 0.0
    %483 = vmatmul.mubr.f32.gmra.mrb[0].mxu0 %v171
    %v484 = vpop.f32.mrb[0].mxu0
    %v485 = vadd.f32 0.0, %v484
    %v486 = vpop.f32.mrb[0].mxu0
    %v487 = vadd.f32 0.0, %v486
    %488 = vmatprep.mubr.f32.mxu0 0.0
    %489 = vmatmul.mubr.f32.gmra.mrb[0].mxu0 %v174
    %v490 = vpop.f32.mrb[0].mxu0
    %v491 = vadd.f32 0.0, %v490
    %v492 = vpop.f32.mrb[0].mxu0
    %v493 = vadd.f32 0.0, %v492
    %494 = vmatprep.mubr.f32.mxu0 0.0
    %495 = vmatmul.mubr.f32.gmra.mrb[0].mxu0 %v177
    %v496 = vpop.f32.mrb[0].mxu0
    %v497 = vadd.f32 0.0, %v496
    %v498 = vpop.f32.mrb[0].mxu0
    %v499 = vadd.f32 0.0, %v498
    %500 = vmatprep.mubr.f32.mxu0 0.0
    %501 = vmatmul.mubr.f32.gmra.mrb[0].mxu0 %v180
    %v502 = vpop.f32.mrb[0].mxu0
    %v503 = vadd.f32 0.0, %v502
    %v504 = vpop.f32.mrb[0].mxu0
    %v505 = vadd.f32 0.0, %v504
    %506 = vmatprep.mubr.f32.mxu0 0.0
    %507 = vmatmul.mubr.f32.gmra.mrb[0].mxu0 %v183
    %v508 = vpop.f32.mrb[0].mxu0
    %v509 = vadd.f32 0.0, %v508
    %v510 = vpop.f32.mrb[0].mxu0
    %v511 = vadd.f32 0.0, %v510
    %512 = vmatprep.mubr.f32.mxu0 0.0
    %513 = vmatmul.mubr.f32.gmra.mrb[0].mxu0 %v186
    %v514 = vpop.f32.mrb[0].mxu0
    %v515 = vadd.f32 0.0, %v514
    %v516 = vpop.f32.mrb[0].mxu0
    %v517 = vadd.f32 0.0, %v516
    %518 = vmatprep.mubr.f32.mxu0 0.0
    %519 = vmatmul.mubr.f32.gmra.mrb[0].mxu0 %v189
    %v520 = vpop.f32.mrb[0].mxu0
    %v521 = vadd.f32 0.0, %v520
    %v522 = vpop.f32.mrb[0].mxu0
    %v523 = vadd.f32 0.0, %v522
    %524 = vmatprep.mubr.f32.mxu0 0.0
    %525 = vmatmul.mubr.f32.gmra.mrb[0].mxu0 %v192
    %v526 = vpop.f32.mrb[0].mxu0
    %v527 = vadd.f32 0.0, %v526
    %v528 = vpop.f32.mrb[0].mxu0
    %v529 = vadd.f32 0.0, %v528
    %530 = vmatprep.mubr.f32.mxu0 0.0
    %531 = vmatmul.mubr.f32.gmra.mrb[0].mxu0 %v195
    %v532 = vpop.f32.mrb[0].mxu0
    %v533 = vadd.f32 0.0, %v532
    %v534 = vpop.f32.mrb[0].mxu0
    %v535 = vadd.f32 0.0, %v534
    %536 = vmatprep.mubr.f32.mxu0 0.0
    %537 = vmatmul.mubr.f32.gmra.mrb[0].mxu0 %v198
    %v538 = vpop.f32.mrb[0].mxu0
    %v539 = vadd.f32 0.0, %v538
    %v540 = vpop.f32.mrb[0].mxu0
    %v541 = vadd.f32 0.0, %v540
    %542 = vmatprep.mubr.f32.mxu0 0.0
    %543 = vmatmul.mubr.f32.gmra.mrb[0].mxu0 %v201
    %v544 = vpop.f32.mrb[0].mxu0
    %v545 = vadd.f32 0.0, %v544
    %v546 = vpop.f32.mrb[0].mxu0
    %v547 = vadd.f32 0.0, %v546
    %548 = vmatprep.mubr.f32.mxu0 0.0
    %549 = vmatmul.mubr.f32.gmra.mrb[0].mxu0 %v204
    %v550 = vpop.f32.mrb[0].mxu0
    %v551 = vadd.f32 0.0, %v550
    %v552 = vpop.f32.mrb[0].mxu0
    %v553 = vadd.f32 0.0, %v552
    %554 = vmatprep.mubr.f32.mxu0 0.0
    %555 = vmatmul.mubr.f32.gmra.mrb[0].mxu0 %v207
    %v556 = vpop.f32.mrb[0].mxu0
    %v557 = vadd.f32 0.0, %v556
    %v558 = vpop.f32.mrb[0].mxu0
    %v559 = vadd.f32 0.0, %v558
    %560 = vmatprep.mubr.f32.mxu0 0.0
    %561 = vmatmul.mubr.f32.gmra.mrb[0].mxu0 %v210
    %v562 = vpop.f32.mrb[0].mxu0
    %v563 = vadd.f32 0.0, %v562
    %v564 = vpop.f32.mrb[0].mxu0
    %v565 = vadd.f32 0.0, %v564
    %566 = vmatprep.mubr.f32.mxu0 0.0
    %567 = vmatmul.mubr.f32.gmra.mrb[0].mxu0 %v213
    %v568 = vpop.f32.mrb[0].mxu0
    %v569 = vadd.f32 0.0, %v568
    %v570 = vpop.f32.mrb[0].mxu0
    %v571 = vadd.f32 0.0, %v570
    %572 = vdwg.mxu0
    %573 = vxpose.xlu0.b32.start [1/16] %v383, 128
    %574 = vxpose.xlu0.b32.cont [2/16] %v389, 128
    %575 = vxpose.xlu0.b32.cont [3/16] %v395, 128
    %576 = vxpose.xlu0.b32.cont [4/16] %v401, 128
    %577 = vxpose.xlu0.b32.cont [5/16] 0.0, 128
    %578 = vxpose.xlu0.b32.cont [6/16] 0.0, 128
    %579 = vxpose.xlu0.b32.cont [7/16] 0.0, 128
    %580 = vxpose.xlu0.b32.cont [8/16] 0.0, 128
    %581 = vxpose.xlu0.b32.cont [9/16] 0.0, 128
    %582 = vxpose.xlu0.b32.cont [10/16] 0.0, 128
    %583 = vxpose.xlu0.b32.cont [11/16] 0.0, 128
    %584 = vxpose.xlu0.b32.cont [12/16] 0.0, 128
    %585 = vxpose.xlu0.b32.cont [13/16] 0.0, 128
    %586 = vxpose.xlu0.b32.cont [14/16] 0.0, 128
    %587 = vxpose.xlu0.b32.cont [15/16] 0.0, 128
    %588 = vxpose.xlu0.b32.end [16/16] 0.0, 128
    %v589 = vpop.trf.xlu0
    %v590 = vpop.trf.xlu0
    %v591 = vpop.trf.xlu0
    %v592 = vpop.trf.xlu0
    %v593 = vpop.trf.xlu0
    %v594 = vpop.trf.xlu0
    %v595 = vpop.trf.xlu0
    %v596 = vpop.trf.xlu0
    %v597 = vpop.trf.xlu0
    %v598 = vpop.trf.xlu0
    %v599 = vpop.trf.xlu0
    %v600 = vpop.trf.xlu0
    %v601 = vpop.trf.xlu0
    %v602 = vpop.trf.xlu0
    %v603 = vpop.trf.xlu0
    %v604 = vpop.trf.xlu0
    %605 = vxpose.xlu0.b32.start [1/16] %v385, 128
    %606 = vxpose.xlu0.b32.cont [2/16] %v391, 128
    %607 = vxpose.xlu0.b32.cont [3/16] %v397, 128
    %608 = vxpose.xlu0.b32.cont [4/16] %v403, 128
    %609 = vxpose.xlu0.b32.cont [5/16] 0.0, 128
    %610 = vxpose.xlu0.b32.cont [6/16] 0.0, 128
    %611 = vxpose.xlu0.b32.cont [7/16] 0.0, 128
    %612 = vxpose.xlu0.b32.cont [8/16] 0.0, 128
    %613 = vxpose.xlu0.b32.cont [9/16] 0.0, 128
    %614 = vxpose.xlu0.b32.cont [10/16] 0.0, 128
    %615 = vxpose.xlu0.b32.cont [11/16] 0.0, 128
    %616 = vxpose.xlu0.b32.cont [12/16] 0.0, 128
    %617 = vxpose.xlu0.b32.cont [13/16] 0.0, 128
    %618 = vxpose.xlu0.b32.cont [14/16] 0.0, 128
    %619 = vxpose.xlu0.b32.cont [15/16] 0.0, 128
    %620 = vxpose.xlu0.b32.end [16/16] 0.0, 128
    %v621 = vpop.trf.xlu0
    %v622 = vpop.trf.xlu0
    %v623 = vpop.trf.xlu0
    %v624 = vpop.trf.xlu0
    %v625 = vpop.trf.xlu0
    %v626 = vpop.trf.xlu0
    %v627 = vpop.trf.xlu0
    %v628 = vpop.trf.xlu0
    %v629 = vpop.trf.xlu0
    %v630 = vpop.trf.xlu0
    %v631 = vpop.trf.xlu0
    %v632 = vpop.trf.xlu0
    %v633 = vpop.trf.xlu0
    %v634 = vpop.trf.xlu0
    %v635 = vpop.trf.xlu0
    %v636 = vpop.trf.xlu0
    %637 = vxpose.xlu0.b32.start [1/16] %v407, 128
    %638 = vxpose.xlu0.b32.cont [2/16] %v413, 128
    %639 = vxpose.xlu0.b32.cont [3/16] %v419, 128
    %640 = vxpose.xlu0.b32.cont [4/16] %v425, 128
    %641 = vxpose.xlu0.b32.cont [5/16] 0.0, 128
    %642 = vxpose.xlu0.b32.cont [6/16] 0.0, 128
    %643 = vxpose.xlu0.b32.cont [7/16] 0.0, 128
    %644 = vxpose.xlu0.b32.cont [8/16] 0.0, 128
    %645 = vxpose.xlu0.b32.cont [9/16] 0.0, 128
    %646 = vxpose.xlu0.b32.cont [10/16] 0.0, 128
    %647 = vxpose.xlu0.b32.cont [11/16] 0.0, 128
    %648 = vxpose.xlu0.b32.cont [12/16] 0.0, 128
    %649 = vxpose.xlu0.b32.cont [13/16] 0.0, 128
    %650 = vxpose.xlu0.b32.cont [14/16] 0.0, 128
    %651 = vxpose.xlu0.b32.cont [15/16] 0.0, 128
    %652 = vxpose.xlu0.b32.end [16/16] 0.0, 128
    %v653 = vpop.trf.xlu0
    %v654 = vpop.trf.xlu0
    %v655 = vpop.trf.xlu0
    %v656 = vpop.trf.xlu0
    %v657 = vpop.trf.xlu0
    %v658 = vpop.trf.xlu0
    %v659 = vpop.trf.xlu0
    %v660 = vpop.trf.xlu0
    %v661 = vpop.trf.xlu0
    %v662 = vpop.trf.xlu0
    %v663 = vpop.trf.xlu0
    %v664 = vpop.trf.xlu0
    %v665 = vpop.trf.xlu0
    %v666 = vpop.trf.xlu0
    %v667 = vpop.trf.xlu0
    %v668 = vpop.trf.xlu0
    %669 = vxpose.xlu0.b32.start [1/16] %v409, 128
    %670 = vxpose.xlu0.b32.cont [2/16] %v415, 128
    %671 = vxpose.xlu0.b32.cont [3/16] %v421, 128
    %672 = vxpose.xlu0.b32.cont [4/16] %v427, 128
    %673 = vxpose.xlu0.b32.cont [5/16] 0.0, 128
    %674 = vxpose.xlu0.b32.cont [6/16] 0.0, 128
    %675 = vxpose.xlu0.b32.cont [7/16] 0.0, 128
    %676 = vxpose.xlu0.b32.cont [8/16] 0.0, 128
    %677 = vxpose.xlu0.b32.cont [9/16] 0.0, 128
    %678 = vxpose.xlu0.b32.cont [10/16] 0.0, 128
    %679 = vxpose.xlu0.b32.cont [11/16] 0.0, 128
    %680 = vxpose.xlu0.b32.cont [12/16] 0.0, 128
    %681 = vxpose.xlu0.b32.cont [13/16] 0.0, 128
    %682 = vxpose.xlu0.b32.cont [14/16] 0.0, 128
    %683 = vxpose.xlu0.b32.cont [15/16] 0.0, 128
    %684 = vxpose.xlu0.b32.end [16/16] 0.0, 128
    %v685 = vpop.trf.xlu0
    %v686 = vpop.trf.xlu0
    %v687 = vpop.trf.xlu0
    %v688 = vpop.trf.xlu0
    %v689 = vpop.trf.xlu0
    %v690 = vpop.trf.xlu0
    %v691 = vpop.trf.xlu0
    %v692 = vpop.trf.xlu0
    %v693 = vpop.trf.xlu0
    %v694 = vpop.trf.xlu0
    %v695 = vpop.trf.xlu0
    %v696 = vpop.trf.xlu0
    %v697 = vpop.trf.xlu0
    %v698 = vpop.trf.xlu0
    %v699 = vpop.trf.xlu0
    %v700 = vpop.trf.xlu0
    %701 = vxpose.xlu0.b32.start [1/16] %v431, 128
    %702 = vxpose.xlu0.b32.cont [2/16] %v437, 128
    %703 = vxpose.xlu0.b32.cont [3/16] %v443, 128
    %704 = vxpose.xlu0.b32.cont [4/16] %v449, 128
    %705 = vxpose.xlu0.b32.cont [5/16] 0.0, 128
    %706 = vxpose.xlu0.b32.cont [6/16] 0.0, 128
    %707 = vxpose.xlu0.b32.cont [7/16] 0.0, 128
    %708 = vxpose.xlu0.b32.cont [8/16] 0.0, 128
    %709 = vxpose.xlu0.b32.cont [9/16] 0.0, 128
    %710 = vxpose.xlu0.b32.cont [10/16] 0.0, 128
    %711 = vxpose.xlu0.b32.cont [11/16] 0.0, 128
    %712 = vxpose.xlu0.b32.cont [12/16] 0.0, 128
    %713 = vxpose.xlu0.b32.cont [13/16] 0.0, 128
    %714 = vxpose.xlu0.b32.cont [14/16] 0.0, 128
    %715 = vxpose.xlu0.b32.cont [15/16] 0.0, 128
    %716 = vxpose.xlu0.b32.end [16/16] 0.0, 128
    %v717 = vpop.trf.xlu0
    %v718 = vpop.trf.xlu0
    %v719 = vpop.trf.xlu0
    %v720 = vpop.trf.xlu0
    %v721 = vpop.trf.xlu0
    %v722 = vpop.trf.xlu0
    %v723 = vpop.trf.xlu0
    %v724 = vpop.trf.xlu0
    %v725 = vpop.trf.xlu0
    %v726 = vpop.trf.xlu0
    %v727 = vpop.trf.xlu0
    %v728 = vpop.trf.xlu0
    %v729 = vpop.trf.xlu0
    %v730 = vpop.trf.xlu0
    %v731 = vpop.trf.xlu0
    %v732 = vpop.trf.xlu0
    %733 = vxpose.xlu0.b32.start [1/16] %v433, 128
    %734 = vxpose.xlu0.b32.cont [2/16] %v439, 128
    %735 = vxpose.xlu0.b32.cont [3/16] %v445, 128
    %736 = vxpose.xlu0.b32.cont [4/16] %v451, 128
    %737 = vxpose.xlu0.b32.cont [5/16] 0.0, 128
    %738 = vxpose.xlu0.b32.cont [6/16] 0.0, 128
    %739 = vxpose.xlu0.b32.cont [7/16] 0.0, 128
    %740 = vxpose.xlu0.b32.cont [8/16] 0.0, 128
    %741 = vxpose.xlu0.b32.cont [9/16] 0.0, 128
    %742 = vxpose.xlu0.b32.cont [10/16] 0.0, 128
    %743 = vxpose.xlu0.b32.cont [11/16] 0.0, 128
    %744 = vxpose.xlu0.b32.cont [12/16] 0.0, 128
    %745 = vxpose.xlu0.b32.cont [13/16] 0.0, 128
    %746 = vxpose.xlu0.b32.cont [14/16] 0.0, 128
    %747 = vxpose.xlu0.b32.cont [15/16] 0.0, 128
    %748 = vxpose.xlu0.b32.end [16/16] 0.0, 128
    %v749 = vpop.trf.xlu0
    %v750 = vpop.trf.xlu0
    %v751 = vpop.trf.xlu0
    %v752 = vpop.trf.xlu0
    %v753 = vpop.trf.xlu0
    %v754 = vpop.trf.xlu0
    %v755 = vpop.trf.xlu0
    %v756 = vpop.trf.xlu0
    %v757 = vpop.trf.xlu0
    %v758 = vpop.trf.xlu0
    %v759 = vpop.trf.xlu0
    %v760 = vpop.trf.xlu0
    %v761 = vpop.trf.xlu0
    %v762 = vpop.trf.xlu0
    %v763 = vpop.trf.xlu0
    %v764 = vpop.trf.xlu0
    %765 = vxpose.xlu0.b32.start [1/16] %v455, 128
    %766 = vxpose.xlu0.b32.cont [2/16] %v461, 128
    %767 = vxpose.xlu0.b32.cont [3/16] %v467, 128
    %768 = vxpose.xlu0.b32.cont [4/16] %v473, 128
    %769 = vxpose.xlu0.b32.cont [5/16] 0.0, 128
    %770 = vxpose.xlu0.b32.cont [6/16] 0.0, 128
    %771 = vxpose.xlu0.b32.cont [7/16] 0.0, 128
    %772 = vxpose.xlu0.b32.cont [8/16] 0.0, 128
    %773 = vxpose.xlu0.b32.cont [9/16] 0.0, 128
    %774 = vxpose.xlu0.b32.cont [10/16] 0.0, 128
    %775 = vxpose.xlu0.b32.cont [11/16] 0.0, 128
    %776 = vxpose.xlu0.b32.cont [12/16] 0.0, 128
    %777 = vxpose.xlu0.b32.cont [13/16] 0.0, 128
    %778 = vxpose.xlu0.b32.cont [14/16] 0.0, 128
    %779 = vxpose.xlu0.b32.cont [15/16] 0.0, 128
    %780 = vxpose.xlu0.b32.end [16/16] 0.0, 128
    %v781 = vpop.trf.xlu0
    %v782 = vpop.trf.xlu0
    %v783 = vpop.trf.xlu0
    %v784 = vpop.trf.xlu0
    %v785 = vpop.trf.xlu0
    %v786 = vpop.trf.xlu0
    %v787 = vpop.trf.xlu0
    %v788 = vpop.trf.xlu0
    %v789 = vpop.trf.xlu0
    %v790 = vpop.trf.xlu0
    %v791 = vpop.trf.xlu0
    %v792 = vpop.trf.xlu0
    %v793 = vpop.trf.xlu0
    %v794 = vpop.trf.xlu0
    %v795 = vpop.trf.xlu0
    %v796 = vpop.trf.xlu0
    %797 = vxpose.xlu0.b32.start [1/16] %v457, 128
    %798 = vxpose.xlu0.b32.cont [2/16] %v463, 128
    %799 = vxpose.xlu0.b32.cont [3/16] %v469, 128
    %800 = vxpose.xlu0.b32.cont [4/16] %v475, 128
    %801 = vxpose.xlu0.b32.cont [5/16] 0.0, 128
    %802 = vxpose.xlu0.b32.cont [6/16] 0.0, 128
    %803 = vxpose.xlu0.b32.cont [7/16] 0.0, 128
    %804 = vxpose.xlu0.b32.cont [8/16] 0.0, 128
    %805 = vxpose.xlu0.b32.cont [9/16] 0.0, 128
    %806 = vxpose.xlu0.b32.cont [10/16] 0.0, 128
    %807 = vxpose.xlu0.b32.cont [11/16] 0.0, 128
    %808 = vxpose.xlu0.b32.cont [12/16] 0.0, 128
    %809 = vxpose.xlu0.b32.cont [13/16] 0.0, 128
    %810 = vxpose.xlu0.b32.cont [14/16] 0.0, 128
    %811 = vxpose.xlu0.b32.cont [15/16] 0.0, 128
    %812 = vxpose.xlu0.b32.end [16/16] 0.0, 128
    %v813 = vpop.trf.xlu0
    %v814 = vpop.trf.xlu0
    %v815 = vpop.trf.xlu0
    %v816 = vpop.trf.xlu0
    %v817 = vpop.trf.xlu0
    %v818 = vpop.trf.xlu0
    %v819 = vpop.trf.xlu0
    %v820 = vpop.trf.xlu0
    %v821 = vpop.trf.xlu0
    %v822 = vpop.trf.xlu0
    %v823 = vpop.trf.xlu0
    %v824 = vpop.trf.xlu0
    %v825 = vpop.trf.xlu0
    %v826 = vpop.trf.xlu0
    %v827 = vpop.trf.xlu0
    %v828 = vpop.trf.xlu0
    %v829 = vpack.c.bf16 %v590, %v589
    %v830 = vpack.c.bf16 %v592, %v591
    %v831 = vpack.c.bf16 %v594, %v593
    %v832 = vpack.c.bf16 %v596, %v595
    %v833 = vpack.c.bf16 %v598, %v597
    %v834 = vpack.c.bf16 %v600, %v599
    %v835 = vpack.c.bf16 %v602, %v601
    %v836 = vpack.c.bf16 %v604, %v603
    %v837 = vpack.c.bf16 %v622, %v621
    %v838 = vpack.c.bf16 %v624, %v623
    %v839 = vpack.c.bf16 %v626, %v625
    %v840 = vpack.c.bf16 %v628, %v627
    %v841 = vpack.c.bf16 %v630, %v629
    %v842 = vpack.c.bf16 %v632, %v631
    %v843 = vpack.c.bf16 %v634, %v633
    %v844 = vpack.c.bf16 %v636, %v635
    %v845 = vpack.c.bf16 %v654, %v653
    %v846 = vpack.c.bf16 %v656, %v655
    %v847 = vpack.c.bf16 %v658, %v657
    %v848 = vpack.c.bf16 %v660, %v659
    %v849 = vpack.c.bf16 %v662, %v661
    %v850 = vpack.c.bf16 %v664, %v663
    %v851 = vpack.c.bf16 %v666, %v665
    %v852 = vpack.c.bf16 %v668, %v667
    %v853 = vpack.c.bf16 %v686, %v685
    %v854 = vpack.c.bf16 %v688, %v687
    %v855 = vpack.c.bf16 %v690, %v689
    %v856 = vpack.c.bf16 %v692, %v691
    %v857 = vpack.c.bf16 %v694, %v693
    %v858 = vpack.c.bf16 %v696, %v695
    %v859 = vpack.c.bf16 %v698, %v697
    %v860 = vpack.c.bf16 %v700, %v699
    %v861 = vpack.c.bf16 %v718, %v717
    %v862 = vpack.c.bf16 %v720, %v719
    %v863 = vpack.c.bf16 %v722, %v721
    %v864 = vpack.c.bf16 %v724, %v723
    %v865 = vpack.c.bf16 %v726, %v725
    %v866 = vpack.c.bf16 %v728, %v727
    %v867 = vpack.c.bf16 %v730, %v729
    %v868 = vpack.c.bf16 %v732, %v731
    %v869 = vpack.c.bf16 %v750, %v749
    %v870 = vpack.c.bf16 %v752, %v751
    %v871 = vpack.c.bf16 %v754, %v753
    %v872 = vpack.c.bf16 %v756, %v755
    %v873 = vpack.c.bf16 %v758, %v757
    %v874 = vpack.c.bf16 %v760, %v759
    %v875 = vpack.c.bf16 %v762, %v761
    %v876 = vpack.c.bf16 %v764, %v763
    %v877 = vpack.c.bf16 %v782, %v781
    %v878 = vpack.c.bf16 %v784, %v783
    %v879 = vpack.c.bf16 %v786, %v785
    %v880 = vpack.c.bf16 %v788, %v787
    %v881 = vpack.c.bf16 %v790, %v789
    %v882 = vpack.c.bf16 %v792, %v791
    %v883 = vpack.c.bf16 %v794, %v793
    %v884 = vpack.c.bf16 %v796, %v795
    %v885 = vpack.c.bf16 %v814, %v813
    %v886 = vpack.c.bf16 %v816, %v815
    %v887 = vpack.c.bf16 %v818, %v817
    %v888 = vpack.c.bf16 %v820, %v819
    %v889 = vpack.c.bf16 %v822, %v821
    %v890 = vpack.c.bf16 %v824, %v823
    %v891 = vpack.c.bf16 %v826, %v825
    %v892 = vpack.c.bf16 %v828, %v827
    %v893 = vpack.c.bf16 %v293, %v287
    %v894 = vpack.c.bf16 %v295, %v289
    %v895 = vpack.c.bf16 %v305, %v299
    %v896 = vpack.c.bf16 %v307, %v301
    %v897 = vpack.c.bf16 %v317, %v311
    %v898 = vpack.c.bf16 %v319, %v313
    %v899 = vpack.c.bf16 %v329, %v323
    %v900 = vpack.c.bf16 %v331, %v325
    %v901 = vpack.c.bf16 %v341, %v335
    %v902 = vpack.c.bf16 %v343, %v337
    %v903 = vpack.c.bf16 %v353, %v347
    %v904 = vpack.c.bf16 %v355, %v349
    %v905 = vpack.c.bf16 %v365, %v359
    %v906 = vpack.c.bf16 %v367, %v361
    %v907 = vpack.c.bf16 %v377, %v371
    %v908 = vpack.c.bf16 %v379, %v373
    %vm909 = vcmask 261120
    %v911 = vsel %vm909, %v829, 0
    %v914 = vsel %vm909, %v830, 0
    %v917 = vsel %vm909, %v831, 0
    %v920 = vsel %vm909, %v832, 0
    %v923 = vsel %vm909, %v833, 0
    %v926 = vsel %vm909, %v834, 0
    %v929 = vsel %vm909, %v835, 0
    %v932 = vsel %vm909, %v836, 0
    %v935 = vsel %vm909, %v837, 0
    %v938 = vsel %vm909, %v838, 0
    %v941 = vsel %vm909, %v839, 0
    %v944 = vsel %vm909, %v840, 0
    %v947 = vsel %vm909, %v841, 0
    %v950 = vsel %vm909, %v842, 0
    %v953 = vsel %vm909, %v843, 0
    %v956 = vsel %vm909, %v844, 0
    %958 = vmatprep.subr.bf16.mxu0 %v894
    %959 = vmatpush1.bf16.msra.mxu0 %v893
    %960 = vmatprep.subr.bf16.mxu0 %v896
    %961 = vmatpush1.bf16.msra.mxu0 %v895
    %962 = vmatprep.subr.bf16.mxu0 0
    %963 = vmatpush1.bf16.msra.mxu0 0
    %964 = vmatprep.subr.bf16.mxu0 0
    %965 = vmatpush1.bf16.msra.mxu0 0
    %966 = vmatprep.subr.bf16.mxu0 0
    %967 = vmatpush1.bf16.msra.mxu0 0
    %968 = vmatprep.subr.bf16.mxu0 0
    %969 = vmatpush1.bf16.msra.mxu0 0
    %970 = vmatprep.subr.bf16.mxu0 0
    %971 = vmatpush1.bf16.msra.mxu0 0
    %972 = vmatprep.subr.bf16.mxu0 0
    %973 = vmatpush1.bf16.msra.mxu0 0
    %974 = vmatprep.subr.bf16.mxu0 0
    %975 = vmatpush1.bf16.msra.mxu0 0
    %976 = vmatprep.subr.bf16.mxu0 0
    %977 = vmatpush1.bf16.msra.mxu0 0
    %978 = vmatprep.subr.bf16.mxu0 0
    %979 = vmatpush1.bf16.msra.mxu0 0
    %980 = vmatprep.subr.bf16.mxu0 0
    %981 = vmatpush1.bf16.msra.mxu0 0
    %982 = vmatprep.subr.bf16.mxu0 0
    %983 = vmatpush1.bf16.msra.mxu0 0
    %984 = vmatprep.subr.bf16.mxu0 0
    %985 = vmatpush1.bf16.msra.mxu0 0
    %986 = vmatprep.subr.bf16.mxu0 0
    %987 = vmatpush1.bf16.msra.mxu0 0
    %988 = vmatprep.subr.bf16.mxu0 0
    %989 = vmatpush1.bf16.msra.mxu0 0
    %990 = vmatprep.mubr.bf16.mxu0 0
    %991 = vmatmul.mubr.bf16.gmra.mrb[0].mxu0 %v911
    %v992 = vpop.f32.mrb[0].mxu0
    %v993 = vadd.f32 0.0, %v992
    %v994 = vpop.f32.mrb[0].mxu0
    %v995 = vadd.f32 0.0, %v994
    %v996 = vpop.f32.mrb[0].mxu0
    %v997 = vadd.f32 0.0, %v996
    %v998 = vpop.f32.mrb[0].mxu0
    %v999 = vadd.f32 0.0, %v998
    %1000 = vmatprep.mubr.bf16.mxu0 0
    %1001 = vmatmul.mubr.bf16.gmra.mrb[0].mxu0 %v914
    %v1002 = vpop.f32.mrb[0].mxu0
    %v1003 = vadd.f32 0.0, %v1002
    %v1004 = vpop.f32.mrb[0].mxu0
    %v1005 = vadd.f32 0.0, %v1004
    %v1006 = vpop.f32.mrb[0].mxu0
    %v1007 = vadd.f32 0.0, %v1006
    %v1008 = vpop.f32.mrb[0].mxu0
    %v1009 = vadd.f32 0.0, %v1008
    %1010 = vmatprep.mubr.bf16.mxu0 0
    %1011 = vmatmul.mubr.bf16.gmra.mrb[0].mxu0 %v917
    %v1012 = vpop.f32.mrb[0].mxu0
    %v1013 = vadd.f32 0.0, %v1012
    %v1014 = vpop.f32.mrb[0].mxu0
    %v1015 = vadd.f32 0.0, %v1014
    %v1016 = vpop.f32.mrb[0].mxu0
    %v1017 = vadd.f32 0.0, %v1016
    %v1018 = vpop.f32.mrb[0].mxu0
    %v1019 = vadd.f32 0.0, %v1018
    %1020 = vmatprep.mubr.bf16.mxu0 0
    %1021 = vmatmul.mubr.bf16.gmra.mrb[0].mxu0 %v920
    %v1022 = vpop.f32.mrb[0].mxu0
    %v1023 = vadd.f32 0.0, %v1022
    %v1024 = vpop.f32.mrb[0].mxu0
    %v1025 = vadd.f32 0.0, %v1024
    %v1026 = vpop.f32.mrb[0].mxu0
    %v1027 = vadd.f32 0.0, %v1026
    %v1028 = vpop.f32.mrb[0].mxu0
    %v1029 = vadd.f32 0.0, %v1028
    %1030 = vmatprep.mubr.bf16.mxu0 0
    %1031 = vmatmul.mubr.bf16.gmra.mrb[0].mxu0 %v923
    %v1032 = vpop.f32.mrb[0].mxu0
    %v1033 = vadd.f32 0.0, %v1032
    %v1034 = vpop.f32.mrb[0].mxu0
    %v1035 = vadd.f32 0.0, %v1034
    %v1036 = vpop.f32.mrb[0].mxu0
    %v1037 = vadd.f32 0.0, %v1036
    %v1038 = vpop.f32.mrb[0].mxu0
    %v1039 = vadd.f32 0.0, %v1038
    %1040 = vmatprep.mubr.bf16.mxu0 0
    %1041 = vmatmul.mubr.bf16.gmra.mrb[0].mxu0 %v926
    %v1042 = vpop.f32.mrb[0].mxu0
    %v1043 = vadd.f32 0.0, %v1042
    %v1044 = vpop.f32.mrb[0].mxu0
    %v1045 = vadd.f32 0.0, %v1044
    %v1046 = vpop.f32.mrb[0].mxu0
    %v1047 = vadd.f32 0.0, %v1046
    %v1048 = vpop.f32.mrb[0].mxu0
    %v1049 = vadd.f32 0.0, %v1048
    %1050 = vmatprep.mubr.bf16.mxu0 0
    %1051 = vmatmul.mubr.bf16.gmra.mrb[0].mxu0 %v929
    %v1052 = vpop.f32.mrb[0].mxu0
    %v1053 = vadd.f32 0.0, %v1052
    %v1054 = vpop.f32.mrb[0].mxu0
    %v1055 = vadd.f32 0.0, %v1054
    %v1056 = vpop.f32.mrb[0].mxu0
    %v1057 = vadd.f32 0.0, %v1056
    %v1058 = vpop.f32.mrb[0].mxu0
    %v1059 = vadd.f32 0.0, %v1058
    %1060 = vmatprep.mubr.bf16.mxu0 0
    %1061 = vmatmul.mubr.bf16.gmra.mrb[0].mxu0 %v932
    %v1062 = vpop.f32.mrb[0].mxu0
    %v1063 = vadd.f32 0.0, %v1062
    %v1064 = vpop.f32.mrb[0].mxu0
    %v1065 = vadd.f32 0.0, %v1064
    %v1066 = vpop.f32.mrb[0].mxu0
    %v1067 = vadd.f32 0.0, %v1066
    %v1068 = vpop.f32.mrb[0].mxu0
    %v1069 = vadd.f32 0.0, %v1068
    %1070 = vmatprep.mubr.bf16.mxu0 0
    %1071 = vmatmul.mubr.bf16.gmra.mrb[0].mxu0 %v935
    %v1072 = vpop.f32.mrb[0].mxu0
    %v1073 = vadd.f32 0.0, %v1072
    %v1074 = vpop.f32.mrb[0].mxu0
    %v1075 = vadd.f32 0.0, %v1074
    %v1076 = vpop.f32.mrb[0].mxu0
    %v1077 = vadd.f32 0.0, %v1076
    %v1078 = vpop.f32.mrb[0].mxu0
    %v1079 = vadd.f32 0.0, %v1078
    %1080 = vmatprep.mubr.bf16.mxu0 0
    %1081 = vmatmul.mubr.bf16.gmra.mrb[0].mxu0 %v938
    %v1082 = vpop.f32.mrb[0].mxu0
    %v1083 = vadd.f32 0.0, %v1082
    %v1084 = vpop.f32.mrb[0].mxu0
    %v1085 = vadd.f32 0.0, %v1084
    %v1086 = vpop.f32.mrb[0].mxu0
    %v1087 = vadd.f32 0.0, %v1086
    %v1088 = vpop.f32.mrb[0].mxu0
    %v1089 = vadd.f32 0.0, %v1088
    %1090 = vmatprep.mubr.bf16.mxu0 0
    %1091 = vmatmul.mubr.bf16.gmra.mrb[0].mxu0 %v941
    %v1092 = vpop.f32.mrb[0].mxu0
    %v1093 = vadd.f32 0.0, %v1092
    %v1094 = vpop.f32.mrb[0].mxu0
    %v1095 = vadd.f32 0.0, %v1094
    %v1096 = vpop.f32.mrb[0].mxu0
    %v1097 = vadd.f32 0.0, %v1096
    %v1098 = vpop.f32.mrb[0].mxu0
    %v1099 = vadd.f32 0.0, %v1098
    %1100 = vmatprep.mubr.bf16.mxu0 0
    %1101 = vmatmul.mubr.bf16.gmra.mrb[0].mxu0 %v944
    %v1102 = vpop.f32.mrb[0].mxu0
    %v1103 = vadd.f32 0.0, %v1102
    %v1104 = vpop.f32.mrb[0].mxu0
    %v1105 = vadd.f32 0.0, %v1104
    %v1106 = vpop.f32.mrb[0].mxu0
    %v1107 = vadd.f32 0.0, %v1106
    %v1108 = vpop.f32.mrb[0].mxu0
    %v1109 = vadd.f32 0.0, %v1108
    %1110 = vmatprep.mubr.bf16.mxu0 0
    %1111 = vmatmul.mubr.bf16.gmra.mrb[0].mxu0 %v947
    %v1112 = vpop.f32.mrb[0].mxu0
    %v1113 = vadd.f32 0.0, %v1112
    %v1114 = vpop.f32.mrb[0].mxu0
    %v1115 = vadd.f32 0.0, %v1114
    %v1116 = vpop.f32.mrb[0].mxu0
    %v1117 = vadd.f32 0.0, %v1116
    %v1118 = vpop.f32.mrb[0].mxu0
    %v1119 = vadd.f32 0.0, %v1118
    %1120 = vmatprep.mubr.bf16.mxu0 0
    %1121 = vmatmul.mubr.bf16.gmra.mrb[0].mxu0 %v950
    %v1122 = vpop.f32.mrb[0].mxu0
    %v1123 = vadd.f32 0.0, %v1122
    %v1124 = vpop.f32.mrb[0].mxu0
    %v1125 = vadd.f32 0.0, %v1124
    %v1126 = vpop.f32.mrb[0].mxu0
    %v1127 = vadd.f32 0.0, %v1126
    %v1128 = vpop.f32.mrb[0].mxu0
    %v1129 = vadd.f32 0.0, %v1128
    %1130 = vmatprep.mubr.bf16.mxu0 0
    %1131 = vmatmul.mubr.bf16.gmra.mrb[0].mxu0 %v953
    %v1132 = vpop.f32.mrb[0].mxu0
    %v1133 = vadd.f32 0.0, %v1132
    %v1134 = vpop.f32.mrb[0].mxu0
    %v1135 = vadd.f32 0.0, %v1134
    %v1136 = vpop.f32.mrb[0].mxu0
    %v1137 = vadd.f32 0.0, %v1136
    %v1138 = vpop.f32.mrb[0].mxu0
    %v1139 = vadd.f32 0.0, %v1138
    %1140 = vmatprep.mubr.bf16.mxu0 0
    %1141 = vmatmul.mubr.bf16.gmra.mrb[0].mxu0 %v956
    %v1142 = vpop.f32.mrb[0].mxu0
    %v1143 = vadd.f32 0.0, %v1142
    %v1144 = vpop.f32.mrb[0].mxu0
    %v1145 = vadd.f32 0.0, %v1144
    %v1146 = vpop.f32.mrb[0].mxu0
    %v1147 = vadd.f32 0.0, %v1146
    %v1148 = vpop.f32.mrb[0].mxu0
    %v1149 = vadd.f32 0.0, %v1148
    %1150 = vdwg.mxu0
    %v1152 = vsel %vm909, %v845, 0
    %v1155 = vsel %vm909, %v846, 0
    %v1158 = vsel %vm909, %v847, 0
    %v1161 = vsel %vm909, %v848, 0
    %v1164 = vsel %vm909, %v849, 0
    %v1167 = vsel %vm909, %v850, 0
    %v1170 = vsel %vm909, %v851, 0
    %v1173 = vsel %vm909, %v852, 0
    %v1176 = vsel %vm909, %v853, 0
    %v1179 = vsel %vm909, %v854, 0
    %v1182 = vsel %vm909, %v855, 0
    %v1185 = vsel %vm909, %v856, 0
    %v1188 = vsel %vm909, %v857, 0
    %v1191 = vsel %vm909, %v858, 0
    %v1194 = vsel %vm909, %v859, 0
    %v1197 = vsel %vm909, %v860, 0
    %1199 = vmatprep.subr.bf16.mxu0 %v898
    %1200 = vmatpush1.bf16.msra.mxu0 %v897
    %1201 = vmatprep.subr.bf16.mxu0 %v900
    %1202 = vmatpush1.bf16.msra.mxu0 %v899
    %1203 = vmatprep.subr.bf16.mxu0 0
    %1204 = vmatpush1.bf16.msra.mxu0 0
    %1205 = vmatprep.subr.bf16.mxu0 0
    %1206 = vmatpush1.bf16.msra.mxu0 0
    %1207 = vmatprep.subr.bf16.mxu0 0
    %1208 = vmatpush1.bf16.msra.mxu0 0
    %1209 = vmatprep.subr.bf16.mxu0 0
    %1210 = vmatpush1.bf16.msra.mxu0 0
    %1211 = vmatprep.subr.bf16.mxu0 0
    %1212 = vmatpush1.bf16.msra.mxu0 0
    %1213 = vmatprep.subr.bf16.mxu0 0
    %1214 = vmatpush1.bf16.msra.mxu0 0
    %1215 = vmatprep.subr.bf16.mxu0 0
    %1216 = vmatpush1.bf16.msra.mxu0 0
    %1217 = vmatprep.subr.bf16.mxu0 0
    %1218 = vmatpush1.bf16.msra.mxu0 0
    %1219 = vmatprep.subr.bf16.mxu0 0
    %1220 = vmatpush1.bf16.msra.mxu0 0
    %1221 = vmatprep.subr.bf16.mxu0 0
    %1222 = vmatpush1.bf16.msra.mxu0 0
    %1223 = vmatprep.subr.bf16.mxu0 0
    %1224 = vmatpush1.bf16.msra.mxu0 0
    %1225 = vmatprep.subr.bf16.mxu0 0
    %1226 = vmatpush1.bf16.msra.mxu0 0
    %1227 = vmatprep.subr.bf16.mxu0 0
    %1228 = vmatpush1.bf16.msra.mxu0 0
    %1229 = vmatprep.subr.bf16.mxu0 0
    %1230 = vmatpush1.bf16.msra.mxu0 0
    %1231 = vmatprep.mubr.bf16.mxu0 0
    %1232 = vmatmul.mubr.bf16.gmra.mrb[0].mxu0 %v1152
    %v1233 = vpop.f32.mrb[0].mxu0
    %v1234 = vadd.f32 0.0, %v1233
    %v1235 = vpop.f32.mrb[0].mxu0
    %v1236 = vadd.f32 0.0, %v1235
    %v1237 = vpop.f32.mrb[0].mxu0
    %v1238 = vadd.f32 0.0, %v1237
    %v1239 = vpop.f32.mrb[0].mxu0
    %v1240 = vadd.f32 0.0, %v1239
    %1241 = vmatprep.mubr.bf16.mxu0 0
    %1242 = vmatmul.mubr.bf16.gmra.mrb[0].mxu0 %v1155
    %v1243 = vpop.f32.mrb[0].mxu0
    %v1244 = vadd.f32 0.0, %v1243
    %v1245 = vpop.f32.mrb[0].mxu0
    %v1246 = vadd.f32 0.0, %v1245
    %v1247 = vpop.f32.mrb[0].mxu0
    %v1248 = vadd.f32 0.0, %v1247
    %v1249 = vpop.f32.mrb[0].mxu0
    %v1250 = vadd.f32 0.0, %v1249
    %1251 = vmatprep.mubr.bf16.mxu0 0
    %1252 = vmatmul.mubr.bf16.gmra.mrb[0].mxu0 %v1158
    %v1253 = vpop.f32.mrb[0].mxu0
    %v1254 = vadd.f32 0.0, %v1253
    %v1255 = vpop.f32.mrb[0].mxu0
    %v1256 = vadd.f32 0.0, %v1255
    %v1257 = vpop.f32.mrb[0].mxu0
    %v1258 = vadd.f32 0.0, %v1257
    %v1259 = vpop.f32.mrb[0].mxu0
    %v1260 = vadd.f32 0.0, %v1259
    %1261 = vmatprep.mubr.bf16.mxu0 0
    %1262 = vmatmul.mubr.bf16.gmra.mrb[0].mxu0 %v1161
    %v1263 = vpop.f32.mrb[0].mxu0
    %v1264 = vadd.f32 0.0, %v1263
    %v1265 = vpop.f32.mrb[0].mxu0
    %v1266 = vadd.f32 0.0, %v1265
    %v1267 = vpop.f32.mrb[0].mxu0
    %v1268 = vadd.f32 0.0, %v1267
    %v1269 = vpop.f32.mrb[0].mxu0
    %v1270 = vadd.f32 0.0, %v1269
    %1271 = vmatprep.mubr.bf16.mxu0 0
    %1272 = vmatmul.mubr.bf16.gmra.mrb[0].mxu0 %v1164
    %v1273 = vpop.f32.mrb[0].mxu0
    %v1274 = vadd.f32 0.0, %v1273
    %v1275 = vpop.f32.mrb[0].mxu0
    %v1276 = vadd.f32 0.0, %v1275
    %v1277 = vpop.f32.mrb[0].mxu0
    %v1278 = vadd.f32 0.0, %v1277
    %v1279 = vpop.f32.mrb[0].mxu0
    %v1280 = vadd.f32 0.0, %v1279
    %1281 = vmatprep.mubr.bf16.mxu0 0
    %1282 = vmatmul.mubr.bf16.gmra.mrb[0].mxu0 %v1167
    %v1283 = vpop.f32.mrb[0].mxu0
    %v1284 = vadd.f32 0.0, %v1283
    %v1285 = vpop.f32.mrb[0].mxu0
    %v1286 = vadd.f32 0.0, %v1285
    %v1287 = vpop.f32.mrb[0].mxu0
    %v1288 = vadd.f32 0.0, %v1287
    %v1289 = vpop.f32.mrb[0].mxu0
    %v1290 = vadd.f32 0.0, %v1289
    %1291 = vmatprep.mubr.bf16.mxu0 0
    %1292 = vmatmul.mubr.bf16.gmra.mrb[0].mxu0 %v1170
    %v1293 = vpop.f32.mrb[0].mxu0
    %v1294 = vadd.f32 0.0, %v1293
    %v1295 = vpop.f32.mrb[0].mxu0
    %v1296 = vadd.f32 0.0, %v1295
    %v1297 = vpop.f32.mrb[0].mxu0
    %v1298 = vadd.f32 0.0, %v1297
    %v1299 = vpop.f32.mrb[0].mxu0
    %v1300 = vadd.f32 0.0, %v1299
    %1301 = vmatprep.mubr.bf16.mxu0 0
    %1302 = vmatmul.mubr.bf16.gmra.mrb[0].mxu0 %v1173
    %v1303 = vpop.f32.mrb[0].mxu0
    %v1304 = vadd.f32 0.0, %v1303
    %v1305 = vpop.f32.mrb[0].mxu0
    %v1306 = vadd.f32 0.0, %v1305
    %v1307 = vpop.f32.mrb[0].mxu0
    %v1308 = vadd.f32 0.0, %v1307
    %v1309 = vpop.f32.mrb[0].mxu0
    %v1310 = vadd.f32 0.0, %v1309
    %1311 = vmatprep.mubr.bf16.mxu0 0
    %1312 = vmatmul.mubr.bf16.gmra.mrb[0].mxu0 %v1176
    %v1313 = vpop.f32.mrb[0].mxu0
    %v1314 = vadd.f32 0.0, %v1313
    %v1315 = vpop.f32.mrb[0].mxu0
    %v1316 = vadd.f32 0.0, %v1315
    %v1317 = vpop.f32.mrb[0].mxu0
    %v1318 = vadd.f32 0.0, %v1317
    %v1319 = vpop.f32.mrb[0].mxu0
    %v1320 = vadd.f32 0.0, %v1319
    %1321 = vmatprep.mubr.bf16.mxu0 0
    %1322 = vmatmul.mubr.bf16.gmra.mrb[0].mxu0 %v1179
    %v1323 = vpop.f32.mrb[0].mxu0
    %v1324 = vadd.f32 0.0, %v1323
    %v1325 = vpop.f32.mrb[0].mxu0
    %v1326 = vadd.f32 0.0, %v1325
    %v1327 = vpop.f32.mrb[0].mxu0
    %v1328 = vadd.f32 0.0, %v1327
    %v1329 = vpop.f32.mrb[0].mxu0
    %v1330 = vadd.f32 0.0, %v1329
    %1331 = vmatprep.mubr.bf16.mxu0 0
    %1332 = vmatmul.mubr.bf16.gmra.mrb[0].mxu0 %v1182
    %v1333 = vpop.f32.mrb[0].mxu0
    %v1334 = vadd.f32 0.0, %v1333
    %v1335 = vpop.f32.mrb[0].mxu0
    %v1336 = vadd.f32 0.0, %v1335
    %v1337 = vpop.f32.mrb[0].mxu0
    %v1338 = vadd.f32 0.0, %v1337
    %v1339 = vpop.f32.mrb[0].mxu0
    %v1340 = vadd.f32 0.0, %v1339
    %1341 = vmatprep.mubr.bf16.mxu0 0
    %1342 = vmatmul.mubr.bf16.gmra.mrb[0].mxu0 %v1185
    %v1343 = vpop.f32.mrb[0].mxu0
    %v1344 = vadd.f32 0.0, %v1343
    %v1345 = vpop.f32.mrb[0].mxu0
    %v1346 = vadd.f32 0.0, %v1345
    %v1347 = vpop.f32.mrb[0].mxu0
    %v1348 = vadd.f32 0.0, %v1347
    %v1349 = vpop.f32.mrb[0].mxu0
    %v1350 = vadd.f32 0.0, %v1349
    %1351 = vmatprep.mubr.bf16.mxu0 0
    %1352 = vmatmul.mubr.bf16.gmra.mrb[0].mxu0 %v1188
    %v1353 = vpop.f32.mrb[0].mxu0
    %v1354 = vadd.f32 0.0, %v1353
    %v1355 = vpop.f32.mrb[0].mxu0
    %v1356 = vadd.f32 0.0, %v1355
    %v1357 = vpop.f32.mrb[0].mxu0
    %v1358 = vadd.f32 0.0, %v1357
    %v1359 = vpop.f32.mrb[0].mxu0
    %v1360 = vadd.f32 0.0, %v1359
    %1361 = vmatprep.mubr.bf16.mxu0 0
    %1362 = vmatmul.mubr.bf16.gmra.mrb[0].mxu0 %v1191
    %v1363 = vpop.f32.mrb[0].mxu0
    %v1364 = vadd.f32 0.0, %v1363
    %v1365 = vpop.f32.mrb[0].mxu0
    %v1366 = vadd.f32 0.0, %v1365
    %v1367 = vpop.f32.mrb[0].mxu0
    %v1368 = vadd.f32 0.0, %v1367
    %v1369 = vpop.f32.mrb[0].mxu0
    %v1370 = vadd.f32 0.0, %v1369
    %1371 = vmatprep.mubr.bf16.mxu0 0
    %1372 = vmatmul.mubr.bf16.gmra.mrb[0].mxu0 %v1194
    %v1373 = vpop.f32.mrb[0].mxu0
    %v1374 = vadd.f32 0.0, %v1373
    %v1375 = vpop.f32.mrb[0].mxu0
    %v1376 = vadd.f32 0.0, %v1375
    %v1377 = vpop.f32.mrb[0].mxu0
    %v1378 = vadd.f32 0.0, %v1377
    %v1379 = vpop.f32.mrb[0].mxu0
    %v1380 = vadd.f32 0.0, %v1379
    %1381 = vmatprep.mubr.bf16.mxu0 0
    %1382 = vmatmul.mubr.bf16.gmra.mrb[0].mxu0 %v1197
    %v1383 = vpop.f32.mrb[0].mxu0
    %v1384 = vadd.f32 0.0, %v1383
    %v1385 = vpop.f32.mrb[0].mxu0
    %v1386 = vadd.f32 0.0, %v1385
    %v1387 = vpop.f32.mrb[0].mxu0
    %v1388 = vadd.f32 0.0, %v1387
    %v1389 = vpop.f32.mrb[0].mxu0
    %v1390 = vadd.f32 0.0, %v1389
    %1391 = vdwg.mxu0
    %v1393 = vsel %vm909, %v861, 0
    %v1396 = vsel %vm909, %v862, 0
    %v1399 = vsel %vm909, %v863, 0
    %v1402 = vsel %vm909, %v864, 0
    %v1405 = vsel %vm909, %v865, 0
    %v1408 = vsel %vm909, %v866, 0
    %v1411 = vsel %vm909, %v867, 0
    %v1414 = vsel %vm909, %v868, 0
    %v1417 = vsel %vm909, %v869, 0
    %v1420 = vsel %vm909, %v870, 0
    %v1423 = vsel %vm909, %v871, 0
    %v1426 = vsel %vm909, %v872, 0
    %v1429 = vsel %vm909, %v873, 0
    %v1432 = vsel %vm909, %v874, 0
    %v1435 = vsel %vm909, %v875, 0
    %v1438 = vsel %vm909, %v876, 0
    %1440 = vmatprep.subr.bf16.mxu0 %v902
    %1441 = vmatpush1.bf16.msra.mxu0 %v901
    %1442 = vmatprep.subr.bf16.mxu0 %v904
    %1443 = vmatpush1.bf16.msra.mxu0 %v903
    %1444 = vmatprep.subr.bf16.mxu0 0
    %1445 = vmatpush1.bf16.msra.mxu0 0
    %1446 = vmatprep.subr.bf16.mxu0 0
    %1447 = vmatpush1.bf16.msra.mxu0 0
    %1448 = vmatprep.subr.bf16.mxu0 0
    %1449 = vmatpush1.bf16.msra.mxu0 0
    %1450 = vmatprep.subr.bf16.mxu0 0
    %1451 = vmatpush1.bf16.msra.mxu0 0
    %1452 = vmatprep.subr.bf16.mxu0 0
    %1453 = vmatpush1.bf16.msra.mxu0 0
    %1454 = vmatprep.subr.bf16.mxu0 0
    %1455 = vmatpush1.bf16.msra.mxu0 0
    %1456 = vmatprep.subr.bf16.mxu0 0
    %1457 = vmatpush1.bf16.msra.mxu0 0
    %1458 = vmatprep.subr.bf16.mxu0 0
    %1459 = vmatpush1.bf16.msra.mxu0 0
    %1460 = vmatprep.subr.bf16.mxu0 0
    %1461 = vmatpush1.bf16.msra.mxu0 0
    %1462 = vmatprep.subr.bf16.mxu0 0
    %1463 = vmatpush1.bf16.msra.mxu0 0
    %1464 = vmatprep.subr.bf16.mxu0 0
    %1465 = vmatpush1.bf16.msra.mxu0 0
    %1466 = vmatprep.subr.bf16.mxu0 0
    %1467 = vmatpush1.bf16.msra.mxu0 0
    %1468 = vmatprep.subr.bf16.mxu0 0
    %1469 = vmatpush1.bf16.msra.mxu0 0
    %1470 = vmatprep.subr.bf16.mxu0 0
    %1471 = vmatpush1.bf16.msra.mxu0 0
    %1472 = vmatprep.mubr.bf16.mxu0 0
    %1473 = vmatmul.mubr.bf16.gmra.mrb[0].mxu0 %v1393
    %v1474 = vpop.f32.mrb[0].mxu0
    %v1475 = vadd.f32 0.0, %v1474
    %v1476 = vpop.f32.mrb[0].mxu0
    %v1477 = vadd.f32 0.0, %v1476
    %v1478 = vpop.f32.mrb[0].mxu0
    %v1479 = vadd.f32 0.0, %v1478
    %v1480 = vpop.f32.mrb[0].mxu0
    %v1481 = vadd.f32 0.0, %v1480
    %1482 = vmatprep.mubr.bf16.mxu0 0
    %1483 = vmatmul.mubr.bf16.gmra.mrb[0].mxu0 %v1396
    %v1484 = vpop.f32.mrb[0].mxu0
    %v1485 = vadd.f32 0.0, %v1484
    %v1486 = vpop.f32.mrb[0].mxu0
    %v1487 = vadd.f32 0.0, %v1486
    %v1488 = vpop.f32.mrb[0].mxu0
    %v1489 = vadd.f32 0.0, %v1488
    %v1490 = vpop.f32.mrb[0].mxu0
    %v1491 = vadd.f32 0.0, %v1490
    %1492 = vmatprep.mubr.bf16.mxu0 0
    %1493 = vmatmul.mubr.bf16.gmra.mrb[0].mxu0 %v1399
    %v1494 = vpop.f32.mrb[0].mxu0
    %v1495 = vadd.f32 0.0, %v1494
    %v1496 = vpop.f32.mrb[0].mxu0
    %v1497 = vadd.f32 0.0, %v1496
    %v1498 = vpop.f32.mrb[0].mxu0
    %v1499 = vadd.f32 0.0, %v1498
    %v1500 = vpop.f32.mrb[0].mxu0
    %v1501 = vadd.f32 0.0, %v1500
    %1502 = vmatprep.mubr.bf16.mxu0 0
    %1503 = vmatmul.mubr.bf16.gmra.mrb[0].mxu0 %v1402
    %v1504 = vpop.f32.mrb[0].mxu0
    %v1505 = vadd.f32 0.0, %v1504
    %v1506 = vpop.f32.mrb[0].mxu0
    %v1507 = vadd.f32 0.0, %v1506
    %v1508 = vpop.f32.mrb[0].mxu0
    %v1509 = vadd.f32 0.0, %v1508
    %v1510 = vpop.f32.mrb[0].mxu0
    %v1511 = vadd.f32 0.0, %v1510
    %1512 = vmatprep.mubr.bf16.mxu0 0
    %1513 = vmatmul.mubr.bf16.gmra.mrb[0].mxu0 %v1405
    %v1514 = vpop.f32.mrb[0].mxu0
    %v1515 = vadd.f32 0.0, %v1514
    %v1516 = vpop.f32.mrb[0].mxu0
    %v1517 = vadd.f32 0.0, %v1516
    %v1518 = vpop.f32.mrb[0].mxu0
    %v1519 = vadd.f32 0.0, %v1518
    %v1520 = vpop.f32.mrb[0].mxu0
    %v1521 = vadd.f32 0.0, %v1520
    %1522 = vmatprep.mubr.bf16.mxu0 0
    %1523 = vmatmul.mubr.bf16.gmra.mrb[0].mxu0 %v1408
    %v1524 = vpop.f32.mrb[0].mxu0
    %v1525 = vadd.f32 0.0, %v1524
    %v1526 = vpop.f32.mrb[0].mxu0
    %v1527 = vadd.f32 0.0, %v1526
    %v1528 = vpop.f32.mrb[0].mxu0
    %v1529 = vadd.f32 0.0, %v1528
    %v1530 = vpop.f32.mrb[0].mxu0
    %v1531 = vadd.f32 0.0, %v1530
    %1532 = vmatprep.mubr.bf16.mxu0 0
    %1533 = vmatmul.mubr.bf16.gmra.mrb[0].mxu0 %v1411
    %v1534 = vpop.f32.mrb[0].mxu0
    %v1535 = vadd.f32 0.0, %v1534
    %v1536 = vpop.f32.mrb[0].mxu0
    %v1537 = vadd.f32 0.0, %v1536
    %v1538 = vpop.f32.mrb[0].mxu0
    %v1539 = vadd.f32 0.0, %v1538
    %v1540 = vpop.f32.mrb[0].mxu0
    %v1541 = vadd.f32 0.0, %v1540
    %1542 = vmatprep.mubr.bf16.mxu0 0
    %1543 = vmatmul.mubr.bf16.gmra.mrb[0].mxu0 %v1414
    %v1544 = vpop.f32.mrb[0].mxu0
    %v1545 = vadd.f32 0.0, %v1544
    %v1546 = vpop.f32.mrb[0].mxu0
    %v1547 = vadd.f32 0.0, %v1546
    %v1548 = vpop.f32.mrb[0].mxu0
    %v1549 = vadd.f32 0.0, %v1548
    %v1550 = vpop.f32.mrb[0].mxu0
    %v1551 = vadd.f32 0.0, %v1550
    %1552 = vmatprep.mubr.bf16.mxu0 0
    %1553 = vmatmul.mubr.bf16.gmra.mrb[0].mxu0 %v1417
    %v1554 = vpop.f32.mrb[0].mxu0
    %v1555 = vadd.f32 0.0, %v1554
    %v1556 = vpop.f32.mrb[0].mxu0
    %v1557 = vadd.f32 0.0, %v1556
    %v1558 = vpop.f32.mrb[0].mxu0
    %v1559 = vadd.f32 0.0, %v1558
    %v1560 = vpop.f32.mrb[0].mxu0
    %v1561 = vadd.f32 0.0, %v1560
    %1562 = vmatprep.mubr.bf16.mxu0 0
    %1563 = vmatmul.mubr.bf16.gmra.mrb[0].mxu0 %v1420
    %v1564 = vpop.f32.mrb[0].mxu0
    %v1565 = vadd.f32 0.0, %v1564
    %v1566 = vpop.f32.mrb[0].mxu0
    %v1567 = vadd.f32 0.0, %v1566
    %v1568 = vpop.f32.mrb[0].mxu0
    %v1569 = vadd.f32 0.0, %v1568
    %v1570 = vpop.f32.mrb[0].mxu0
    %v1571 = vadd.f32 0.0, %v1570
    %1572 = vmatprep.mubr.bf16.mxu0 0
    %1573 = vmatmul.mubr.bf16.gmra.mrb[0].mxu0 %v1423
    %v1574 = vpop.f32.mrb[0].mxu0
    %v1575 = vadd.f32 0.0, %v1574
    %v1576 = vpop.f32.mrb[0].mxu0
    %v1577 = vadd.f32 0.0, %v1576
    %v1578 = vpop.f32.mrb[0].mxu0
    %v1579 = vadd.f32 0.0, %v1578
    %v1580 = vpop.f32.mrb[0].mxu0
    %v1581 = vadd.f32 0.0, %v1580
    %1582 = vmatprep.mubr.bf16.mxu0 0
    %1583 = vmatmul.mubr.bf16.gmra.mrb[0].mxu0 %v1426
    %v1584 = vpop.f32.mrb[0].mxu0
    %v1585 = vadd.f32 0.0, %v1584
    %v1586 = vpop.f32.mrb[0].mxu0
    %v1587 = vadd.f32 0.0, %v1586
    %v1588 = vpop.f32.mrb[0].mxu0
    %v1589 = vadd.f32 0.0, %v1588
    %v1590 = vpop.f32.mrb[0].mxu0
    %v1591 = vadd.f32 0.0, %v1590
    %1592 = vmatprep.mubr.bf16.mxu0 0
    %1593 = vmatmul.mubr.bf16.gmra.mrb[0].mxu0 %v1429
    %v1594 = vpop.f32.mrb[0].mxu0
    %v1595 = vadd.f32 0.0, %v1594
    %v1596 = vpop.f32.mrb[0].mxu0
    %v1597 = vadd.f32 0.0, %v1596
    %v1598 = vpop.f32.mrb[0].mxu0
    %v1599 = vadd.f32 0.0, %v1598
    %v1600 = vpop.f32.mrb[0].mxu0
    %v1601 = vadd.f32 0.0, %v1600
    %1602 = vmatprep.mubr.bf16.mxu0 0
    %1603 = vmatmul.mubr.bf16.gmra.mrb[0].mxu0 %v1432
    %v1604 = vpop.f32.mrb[0].mxu0
    %v1605 = vadd.f32 0.0, %v1604
    %v1606 = vpop.f32.mrb[0].mxu0
    %v1607 = vadd.f32 0.0, %v1606
    %v1608 = vpop.f32.mrb[0].mxu0
    %v1609 = vadd.f32 0.0, %v1608
    %v1610 = vpop.f32.mrb[0].mxu0
    %v1611 = vadd.f32 0.0, %v1610
    %1612 = vmatprep.mubr.bf16.mxu0 0
    %1613 = vmatmul.mubr.bf16.gmra.mrb[0].mxu0 %v1435
    %v1614 = vpop.f32.mrb[0].mxu0
    %v1615 = vadd.f32 0.0, %v1614
    %v1616 = vpop.f32.mrb[0].mxu0
    %v1617 = vadd.f32 0.0, %v1616
    %v1618 = vpop.f32.mrb[0].mxu0
    %v1619 = vadd.f32 0.0, %v1618
    %v1620 = vpop.f32.mrb[0].mxu0
    %v1621 = vadd.f32 0.0, %v1620
    %1622 = vmatprep.mubr.bf16.mxu0 0
    %1623 = vmatmul.mubr.bf16.gmra.mrb[0].mxu0 %v1438
    %v1624 = vpop.f32.mrb[0].mxu0
    %v1625 = vadd.f32 0.0, %v1624
    %v1626 = vpop.f32.mrb[0].mxu0
    %v1627 = vadd.f32 0.0, %v1626
    %v1628 = vpop.f32.mrb[0].mxu0
    %v1629 = vadd.f32 0.0, %v1628
    %v1630 = vpop.f32.mrb[0].mxu0
    %v1631 = vadd.f32 0.0, %v1630
    %1632 = vdwg.mxu0
    %v1634 = vsel %vm909, %v877, 0
    %v1637 = vsel %vm909, %v878, 0
    %v1640 = vsel %vm909, %v879, 0
    %v1643 = vsel %vm909, %v880, 0
    %v1646 = vsel %vm909, %v881, 0
    %v1649 = vsel %vm909, %v882, 0
    %v1652 = vsel %vm909, %v883, 0
    %v1655 = vsel %vm909, %v884, 0
    %v1658 = vsel %vm909, %v885, 0
    %v1661 = vsel %vm909, %v886, 0
    %v1664 = vsel %vm909, %v887, 0
    %v1667 = vsel %vm909, %v888, 0
    %v1670 = vsel %vm909, %v889, 0
    %v1673 = vsel %vm909, %v890, 0
    %v1676 = vsel %vm909, %v891, 0
    %v1679 = vsel %vm909, %v892, 0
    %1681 = vmatprep.subr.bf16.mxu0 %v906
    %1682 = vmatpush1.bf16.msra.mxu0 %v905
    %1683 = vmatprep.subr.bf16.mxu0 %v908
    %1684 = vmatpush1.bf16.msra.mxu0 %v907
    %1685 = vmatprep.subr.bf16.mxu0 0
    %1686 = vmatpush1.bf16.msra.mxu0 0
    %1687 = vmatprep.subr.bf16.mxu0 0
    %1688 = vmatpush1.bf16.msra.mxu0 0
    %1689 = vmatprep.subr.bf16.mxu0 0
    %1690 = vmatpush1.bf16.msra.mxu0 0
    %1691 = vmatprep.subr.bf16.mxu0 0
    %1692 = vmatpush1.bf16.msra.mxu0 0
    %1693 = vmatprep.subr.bf16.mxu0 0
    %1694 = vmatpush1.bf16.msra.mxu0 0
    %1695 = vmatprep.subr.bf16.mxu0 0
    %1696 = vmatpush1.bf16.msra.mxu0 0
    %1697 = vmatprep.subr.bf16.mxu0 0
    %1698 = vmatpush1.bf16.msra.mxu0 0
    %1699 = vmatprep.subr.bf16.mxu0 0
    %1700 = vmatpush1.bf16.msra.mxu0 0
    %1701 = vmatprep.subr.bf16.mxu0 0
    %1702 = vmatpush1.bf16.msra.mxu0 0
    %1703 = vmatprep.subr.bf16.mxu0 0
    %1704 = vmatpush1.bf16.msra.mxu0 0
    %1705 = vmatprep.subr.bf16.mxu0 0
    %1706 = vmatpush1.bf16.msra.mxu0 0
    %1707 = vmatprep.subr.bf16.mxu0 0
    %1708 = vmatpush1.bf16.msra.mxu0 0
    %1709 = vmatprep.subr.bf16.mxu0 0
    %1710 = vmatpush1.bf16.msra.mxu0 0
    %1711 = vmatprep.subr.bf16.mxu0 0
    %1712 = vmatpush1.bf16.msra.mxu0 0
    %1713 = vmatprep.mubr.bf16.mxu0 0
    %1714 = vmatmul.mubr.bf16.gmra.mrb[0].mxu0 %v1634
    %v1715 = vpop.f32.mrb[0].mxu0
    %v1716 = vadd.f32 0.0, %v1715
    %v1717 = vpop.f32.mrb[0].mxu0
    %v1718 = vadd.f32 0.0, %v1717
    %v1719 = vpop.f32.mrb[0].mxu0
    %v1720 = vadd.f32 0.0, %v1719
    %v1721 = vpop.f32.mrb[0].mxu0
    %v1722 = vadd.f32 0.0, %v1721
    %1723 = vmatprep.mubr.bf16.mxu0 0
    %1724 = vmatmul.mubr.bf16.gmra.mrb[0].mxu0 %v1637
    %v1725 = vpop.f32.mrb[0].mxu0
    %v1726 = vadd.f32 0.0, %v1725
    %v1727 = vpop.f32.mrb[0].mxu0
    %v1728 = vadd.f32 0.0, %v1727
    %v1729 = vpop.f32.mrb[0].mxu0
    %v1730 = vadd.f32 0.0, %v1729
    %v1731 = vpop.f32.mrb[0].mxu0
    %v1732 = vadd.f32 0.0, %v1731
    %1733 = vmatprep.mubr.bf16.mxu0 0
    %1734 = vmatmul.mubr.bf16.gmra.mrb[0].mxu0 %v1640
    %v1735 = vpop.f32.mrb[0].mxu0
    %v1736 = vadd.f32 0.0, %v1735
    %v1737 = vpop.f32.mrb[0].mxu0
    %v1738 = vadd.f32 0.0, %v1737
    %v1739 = vpop.f32.mrb[0].mxu0
    %v1740 = vadd.f32 0.0, %v1739
    %v1741 = vpop.f32.mrb[0].mxu0
    %v1742 = vadd.f32 0.0, %v1741
    %1743 = vmatprep.mubr.bf16.mxu0 0
    %1744 = vmatmul.mubr.bf16.gmra.mrb[0].mxu0 %v1643
    %v1745 = vpop.f32.mrb[0].mxu0
    %v1746 = vadd.f32 0.0, %v1745
    %v1747 = vpop.f32.mrb[0].mxu0
    %v1748 = vadd.f32 0.0, %v1747
    %v1749 = vpop.f32.mrb[0].mxu0
    %v1750 = vadd.f32 0.0, %v1749
    %v1751 = vpop.f32.mrb[0].mxu0
    %v1752 = vadd.f32 0.0, %v1751
    %1753 = vmatprep.mubr.bf16.mxu0 0
    %1754 = vmatmul.mubr.bf16.gmra.mrb[0].mxu0 %v1646
    %v1755 = vpop.f32.mrb[0].mxu0
    %v1756 = vadd.f32 0.0, %v1755
    %v1757 = vpop.f32.mrb[0].mxu0
    %v1758 = vadd.f32 0.0, %v1757
    %v1759 = vpop.f32.mrb[0].mxu0
    %v1760 = vadd.f32 0.0, %v1759
    %v1761 = vpop.f32.mrb[0].mxu0
    %v1762 = vadd.f32 0.0, %v1761
    %1763 = vmatprep.mubr.bf16.mxu0 0
    %1764 = vmatmul.mubr.bf16.gmra.mrb[0].mxu0 %v1649
    %v1765 = vpop.f32.mrb[0].mxu0
    %v1766 = vadd.f32 0.0, %v1765
    %v1767 = vpop.f32.mrb[0].mxu0
    %v1768 = vadd.f32 0.0, %v1767
    %v1769 = vpop.f32.mrb[0].mxu0
    %v1770 = vadd.f32 0.0, %v1769
    %v1771 = vpop.f32.mrb[0].mxu0
    %v1772 = vadd.f32 0.0, %v1771
    %1773 = vmatprep.mubr.bf16.mxu0 0
    %1774 = vmatmul.mubr.bf16.gmra.mrb[0].mxu0 %v1652
    %v1775 = vpop.f32.mrb[0].mxu0
    %v1776 = vadd.f32 0.0, %v1775
    %v1777 = vpop.f32.mrb[0].mxu0
    %v1778 = vadd.f32 0.0, %v1777
    %v1779 = vpop.f32.mrb[0].mxu0
    %v1780 = vadd.f32 0.0, %v1779
    %v1781 = vpop.f32.mrb[0].mxu0
    %v1782 = vadd.f32 0.0, %v1781
    %1783 = vmatprep.mubr.bf16.mxu0 0
    %1784 = vmatmul.mubr.bf16.gmra.mrb[0].mxu0 %v1655
    %v1785 = vpop.f32.mrb[0].mxu0
    %v1786 = vadd.f32 0.0, %v1785
    %v1787 = vpop.f32.mrb[0].mxu0
    %v1788 = vadd.f32 0.0, %v1787
    %v1789 = vpop.f32.mrb[0].mxu0
    %v1790 = vadd.f32 0.0, %v1789
    %v1791 = vpop.f32.mrb[0].mxu0
    %v1792 = vadd.f32 0.0, %v1791
    %1793 = vmatprep.mubr.bf16.mxu0 0
    %1794 = vmatmul.mubr.bf16.gmra.mrb[0].mxu0 %v1658
    %v1795 = vpop.f32.mrb[0].mxu0
    %v1796 = vadd.f32 0.0, %v1795
    %v1797 = vpop.f32.mrb[0].mxu0
    %v1798 = vadd.f32 0.0, %v1797
    %v1799 = vpop.f32.mrb[0].mxu0
    %v1800 = vadd.f32 0.0, %v1799
    %v1801 = vpop.f32.mrb[0].mxu0
    %v1802 = vadd.f32 0.0, %v1801
    %1803 = vmatprep.mubr.bf16.mxu0 0
    %1804 = vmatmul.mubr.bf16.gmra.mrb[0].mxu0 %v1661
    %v1805 = vpop.f32.mrb[0].mxu0
    %v1806 = vadd.f32 0.0, %v1805
    %v1807 = vpop.f32.mrb[0].mxu0
    %v1808 = vadd.f32 0.0, %v1807
    %v1809 = vpop.f32.mrb[0].mxu0
    %v1810 = vadd.f32 0.0, %v1809
    %v1811 = vpop.f32.mrb[0].mxu0
    %v1812 = vadd.f32 0.0, %v1811
    %1813 = vmatprep.mubr.bf16.mxu0 0
    %1814 = vmatmul.mubr.bf16.gmra.mrb[0].mxu0 %v1664
    %v1815 = vpop.f32.mrb[0].mxu0
    %v1816 = vadd.f32 0.0, %v1815
    %v1817 = vpop.f32.mrb[0].mxu0
    %v1818 = vadd.f32 0.0, %v1817
    %v1819 = vpop.f32.mrb[0].mxu0
    %v1820 = vadd.f32 0.0, %v1819
    %v1821 = vpop.f32.mrb[0].mxu0
    %v1822 = vadd.f32 0.0, %v1821
    %1823 = vmatprep.mubr.bf16.mxu0 0
    %1824 = vmatmul.mubr.bf16.gmra.mrb[0].mxu0 %v1667
    %v1825 = vpop.f32.mrb[0].mxu0
    %v1826 = vadd.f32 0.0, %v1825
    %v1827 = vpop.f32.mrb[0].mxu0
    %v1828 = vadd.f32 0.0, %v1827
    %v1829 = vpop.f32.mrb[0].mxu0
    %v1830 = vadd.f32 0.0, %v1829
    %v1831 = vpop.f32.mrb[0].mxu0
    %v1832 = vadd.f32 0.0, %v1831
    %1833 = vmatprep.mubr.bf16.mxu0 0
    %1834 = vmatmul.mubr.bf16.gmra.mrb[0].mxu0 %v1670
    %v1835 = vpop.f32.mrb[0].mxu0
    %v1836 = vadd.f32 0.0, %v1835
    %v1837 = vpop.f32.mrb[0].mxu0
    %v1838 = vadd.f32 0.0, %v1837
    %v1839 = vpop.f32.mrb[0].mxu0
    %v1840 = vadd.f32 0.0, %v1839
    %v1841 = vpop.f32.mrb[0].mxu0
    %v1842 = vadd.f32 0.0, %v1841
    %1843 = vmatprep.mubr.bf16.mxu0 0
    %1844 = vmatmul.mubr.bf16.gmra.mrb[0].mxu0 %v1673
    %v1845 = vpop.f32.mrb[0].mxu0
    %v1846 = vadd.f32 0.0, %v1845
    %v1847 = vpop.f32.mrb[0].mxu0
    %v1848 = vadd.f32 0.0, %v1847
    %v1849 = vpop.f32.mrb[0].mxu0
    %v1850 = vadd.f32 0.0, %v1849
    %v1851 = vpop.f32.mrb[0].mxu0
    %v1852 = vadd.f32 0.0, %v1851
    %1853 = vmatprep.mubr.bf16.mxu0 0
    %1854 = vmatmul.mubr.bf16.gmra.mrb[0].mxu0 %v1676
    %v1855 = vpop.f32.mrb[0].mxu0
    %v1856 = vadd.f32 0.0, %v1855
    %v1857 = vpop.f32.mrb[0].mxu0
    %v1858 = vadd.f32 0.0, %v1857
    %v1859 = vpop.f32.mrb[0].mxu0
    %v1860 = vadd.f32 0.0, %v1859
    %v1861 = vpop.f32.mrb[0].mxu0
    %v1862 = vadd.f32 0.0, %v1861
    %1863 = vmatprep.mubr.bf16.mxu0 0
    %1864 = vmatmul.mubr.bf16.gmra.mrb[0].mxu0 %v1679
    %v1865 = vpop.f32.mrb[0].mxu0
    %v1866 = vadd.f32 0.0, %v1865
    %v1867 = vpop.f32.mrb[0].mxu0
    %v1868 = vadd.f32 0.0, %v1867
    %v1869 = vpop.f32.mrb[0].mxu0
    %v1870 = vadd.f32 0.0, %v1869
    %v1871 = vpop.f32.mrb[0].mxu0
    %v1872 = vadd.f32 0.0, %v1871
    %1873 = vdwg.mxu0
    %v1874 = vmax.f32 %v993, %v997
    %v1875 = vmax.f32 %v1874, %v1003
    %v1876 = vmax.f32 %v1875, %v1007
    %v1877 = vmax.f32 %v1876, %v1013
    %v1878 = vmax.f32 %v1877, %v1017
    %v1879 = vmax.f32 %v1878, %v1023
    %v1880 = vmax.f32 %v1879, %v1027
    %v1881 = vmax.f32 %v1880, %v1033
    %v1882 = vmax.f32 %v1881, %v1037
    %v1883 = vmax.f32 %v1882, %v1043
    %v1884 = vmax.f32 %v1883, %v1047
    %v1885 = vmax.f32 %v1884, %v1053
    %v1886 = vmax.f32 %v1885, %v1057
    %v1887 = vmax.f32 %v1886, %v1063
    %v1888 = vmax.f32 %v1887, %v1067
    %v1889 = vmax.f32 %v1888, %v1073
    %v1890 = vmax.f32 %v1889, %v1077
    %v1891 = vmax.f32 %v1890, %v1083
    %v1892 = vmax.f32 %v1891, %v1087
    %v1893 = vmax.f32 %v1892, %v1093
    %v1894 = vmax.f32 %v1893, %v1097
    %v1895 = vmax.f32 %v1894, %v1103
    %v1896 = vmax.f32 %v1895, %v1107
    %v1897 = vmax.f32 %v1896, %v1113
    %v1898 = vmax.f32 %v1897, %v1117
    %v1899 = vmax.f32 %v1898, %v1123
    %v1900 = vmax.f32 %v1899, %v1127
    %v1901 = vmax.f32 %v1900, %v1133
    %v1902 = vmax.f32 %v1901, %v1137
    %v1903 = vmax.f32 %v1902, %v1143
    %v1904 = vmax.f32 %v1903, %v1147
    %v1905 = vrot.slane %v1904, 4
    %v1906 = vmax.f32 %v1904, %v1905
    %v1907 = vrot.slane %v1906, 2
    %v1908 = vmax.f32 %v1906, %v1907
    %v1909 = vrot.slane %v1908, 1
    %v1910 = vmax.f32 %v1908, %v1909
    %v1911 = vmax.f32 %v995, %v999
    %v1912 = vmax.f32 %v1911, %v1005
    %v1913 = vmax.f32 %v1912, %v1009
    %v1914 = vmax.f32 %v1913, %v1015
    %v1915 = vmax.f32 %v1914, %v1019
    %v1916 = vmax.f32 %v1915, %v1025
    %v1917 = vmax.f32 %v1916, %v1029
    %v1918 = vmax.f32 %v1917, %v1035
    %v1919 = vmax.f32 %v1918, %v1039
    %v1920 = vmax.f32 %v1919, %v1045
    %v1921 = vmax.f32 %v1920, %v1049
    %v1922 = vmax.f32 %v1921, %v1055
    %v1923 = vmax.f32 %v1922, %v1059
    %v1924 = vmax.f32 %v1923, %v1065
    %v1925 = vmax.f32 %v1924, %v1069
    %v1926 = vmax.f32 %v1925, %v1075
    %v1927 = vmax.f32 %v1926, %v1079
    %v1928 = vmax.f32 %v1927, %v1085
    %v1929 = vmax.f32 %v1928, %v1089
    %v1930 = vmax.f32 %v1929, %v1095
    %v1931 = vmax.f32 %v1930, %v1099
    %v1932 = vmax.f32 %v1931, %v1105
    %v1933 = vmax.f32 %v1932, %v1109
    %v1934 = vmax.f32 %v1933, %v1115
    %v1935 = vmax.f32 %v1934, %v1119
    %v1936 = vmax.f32 %v1935, %v1125
    %v1937 = vmax.f32 %v1936, %v1129
    %v1938 = vmax.f32 %v1937, %v1135
    %v1939 = vmax.f32 %v1938, %v1139
    %v1940 = vmax.f32 %v1939, %v1145
    %v1941 = vmax.f32 %v1940, %v1149
    %v1942 = vrot.slane %v1941, 4
    %v1943 = vmax.f32 %v1941, %v1942
    %v1944 = vrot.slane %v1943, 2
    %v1945 = vmax.f32 %v1943, %v1944
    %v1946 = vrot.slane %v1945, 1
    %v1947 = vmax.f32 %v1945, %v1946
    %v1948 = vmax.f32 %v1234, %v1238
    %v1949 = vmax.f32 %v1948, %v1244
    %v1950 = vmax.f32 %v1949, %v1248
    %v1951 = vmax.f32 %v1950, %v1254
    %v1952 = vmax.f32 %v1951, %v1258
    %v1953 = vmax.f32 %v1952, %v1264
    %v1954 = vmax.f32 %v1953, %v1268
    %v1955 = vmax.f32 %v1954, %v1274
    %v1956 = vmax.f32 %v1955, %v1278
    %v1957 = vmax.f32 %v1956, %v1284
    %v1958 = vmax.f32 %v1957, %v1288
    %v1959 = vmax.f32 %v1958, %v1294
    %v1960 = vmax.f32 %v1959, %v1298
    %v1961 = vmax.f32 %v1960, %v1304
    %v1962 = vmax.f32 %v1961, %v1308
    %v1963 = vmax.f32 %v1962, %v1314
    %v1964 = vmax.f32 %v1963, %v1318
    %v1965 = vmax.f32 %v1964, %v1324
    %v1966 = vmax.f32 %v1965, %v1328
    %v1967 = vmax.f32 %v1966, %v1334
    %v1968 = vmax.f32 %v1967, %v1338
    %v1969 = vmax.f32 %v1968, %v1344
    %v1970 = vmax.f32 %v1969, %v1348
    %v1971 = vmax.f32 %v1970, %v1354
    %v1972 = vmax.f32 %v1971, %v1358
    %v1973 = vmax.f32 %v1972, %v1364
    %v1974 = vmax.f32 %v1973, %v1368
    %v1975 = vmax.f32 %v1974, %v1374
    %v1976 = vmax.f32 %v1975, %v1378
    %v1977 = vmax.f32 %v1976, %v1384
    %v1978 = vmax.f32 %v1977, %v1388
    %v1979 = vrot.slane %v1978, 4
    %v1980 = vmax.f32 %v1978, %v1979
    %v1981 = vrot.slane %v1980, 2
    %v1982 = vmax.f32 %v1980, %v1981
    %v1983 = vrot.slane %v1982, 1
    %v1984 = vmax.f32 %v1982, %v1983
    %v1985 = vmax.f32 %v1236, %v1240
    %v1986 = vmax.f32 %v1985, %v1246
    %v1987 = vmax.f32 %v1986, %v1250
    %v1988 = vmax.f32 %v1987, %v1256
    %v1989 = vmax.f32 %v1988, %v1260
    %v1990 = vmax.f32 %v1989, %v1266
    %v1991 = vmax.f32 %v1990, %v1270
    %v1992 = vmax.f32 %v1991, %v1276
    %v1993 = vmax.f32 %v1992, %v1280
    %v1994 = vmax.f32 %v1993, %v1286
    %v1995 = vmax.f32 %v1994, %v1290
    %v1996 = vmax.f32 %v1995, %v1296
    %v1997 = vmax.f32 %v1996, %v1300
    %v1998 = vmax.f32 %v1997, %v1306
    %v1999 = vmax.f32 %v1998, %v1310
    %v2000 = vmax.f32 %v1999, %v1316
    %v2001 = vmax.f32 %v2000, %v1320
    %v2002 = vmax.f32 %v2001, %v1326
    %v2003 = vmax.f32 %v2002, %v1330
    %v2004 = vmax.f32 %v2003, %v1336
    %v2005 = vmax.f32 %v2004, %v1340
    %v2006 = vmax.f32 %v2005, %v1346
    %v2007 = vmax.f32 %v2006, %v1350
    %v2008 = vmax.f32 %v2007, %v1356
    %v2009 = vmax.f32 %v2008, %v1360
    %v2010 = vmax.f32 %v2009, %v1366
    %v2011 = vmax.f32 %v2010, %v1370
    %v2012 = vmax.f32 %v2011, %v1376
    %v2013 = vmax.f32 %v2012, %v1380
    %v2014 = vmax.f32 %v2013, %v1386
    %v2015 = vmax.f32 %v2014, %v1390
    %v2016 = vrot.slane %v2015, 4
    %v2017 = vmax.f32 %v2015, %v2016
    %v2018 = vrot.slane %v2017, 2
    %v2019 = vmax.f32 %v2017, %v2018
    %v2020 = vrot.slane %v2019, 1
    %v2021 = vmax.f32 %v2019, %v2020
    %v2022 = vmax.f32 %v1475, %v1479
    %v2023 = vmax.f32 %v2022, %v1485
    %v2024 = vmax.f32 %v2023, %v1489
    %v2025 = vmax.f32 %v2024, %v1495
    %v2026 = vmax.f32 %v2025, %v1499
    %v2027 = vmax.f32 %v2026, %v1505
    %v2028 = vmax.f32 %v2027, %v1509
    %v2029 = vmax.f32 %v2028, %v1515
    %v2030 = vmax.f32 %v2029, %v1519
    %v2031 = vmax.f32 %v2030, %v1525
    %v2032 = vmax.f32 %v2031, %v1529
    %v2033 = vmax.f32 %v2032, %v1535
    %v2034 = vmax.f32 %v2033, %v1539
    %v2035 = vmax.f32 %v2034, %v1545
    %v2036 = vmax.f32 %v2035, %v1549
    %v2037 = vmax.f32 %v2036, %v1555
    %v2038 = vmax.f32 %v2037, %v1559
    %v2039 = vmax.f32 %v2038, %v1565
    %v2040 = vmax.f32 %v2039, %v1569
    %v2041 = vmax.f32 %v2040, %v1575
    %v2042 = vmax.f32 %v2041, %v1579
    %v2043 = vmax.f32 %v2042, %v1585
    %v2044 = vmax.f32 %v2043, %v1589
    %v2045 = vmax.f32 %v2044, %v1595
    %v2046 = vmax.f32 %v2045, %v1599
    %v2047 = vmax.f32 %v2046, %v1605
    %v2048 = vmax.f32 %v2047, %v1609
    %v2049 = vmax.f32 %v2048, %v1615
    %v2050 = vmax.f32 %v2049, %v1619
    %v2051 = vmax.f32 %v2050, %v1625
    %v2052 = vmax.f32 %v2051, %v1629
    %v2053 = vrot.slane %v2052, 4
    %v2054 = vmax.f32 %v2052, %v2053
    %v2055 = vrot.slane %v2054, 2
    %v2056 = vmax.f32 %v2054, %v2055
    %v2057 = vrot.slane %v2056, 1
    %v2058 = vmax.f32 %v2056, %v2057
    %v2059 = vmax.f32 %v1477, %v1481
    %v2060 = vmax.f32 %v2059, %v1487
    %v2061 = vmax.f32 %v2060, %v1491
    %v2062 = vmax.f32 %v2061, %v1497
    %v2063 = vmax.f32 %v2062, %v1501
    %v2064 = vmax.f32 %v2063, %v1507
    %v2065 = vmax.f32 %v2064, %v1511
    %v2066 = vmax.f32 %v2065, %v1517
    %v2067 = vmax.f32 %v2066, %v1521
    %v2068 = vmax.f32 %v2067, %v1527
    %v2069 = vmax.f32 %v2068, %v1531
    %v2070 = vmax.f32 %v2069, %v1537
    %v2071 = vmax.f32 %v2070, %v1541
    %v2072 = vmax.f32 %v2071, %v1547
    %v2073 = vmax.f32 %v2072, %v1551
    %v2074 = vmax.f32 %v2073, %v1557
    %v2075 = vmax.f32 %v2074, %v1561
    %v2076 = vmax.f32 %v2075, %v1567
    %v2077 = vmax.f32 %v2076, %v1571
    %v2078 = vmax.f32 %v2077, %v1577
    %v2079 = vmax.f32 %v2078, %v1581
    %v2080 = vmax.f32 %v2079, %v1587
    %v2081 = vmax.f32 %v2080, %v1591
    %v2082 = vmax.f32 %v2081, %v1597
    %v2083 = vmax.f32 %v2082, %v1601
    %v2084 = vmax.f32 %v2083, %v1607
    %v2085 = vmax.f32 %v2084, %v1611
    %v2086 = vmax.f32 %v2085, %v1617
    %v2087 = vmax.f32 %v2086, %v1621
    %v2088 = vmax.f32 %v2087, %v1627
    %v2089 = vmax.f32 %v2088, %v1631
    %v2090 = vrot.slane %v2089, 4
    %v2091 = vmax.f32 %v2089, %v2090
    %v2092 = vrot.slane %v2091, 2
    %v2093 = vmax.f32 %v2091, %v2092
    %v2094 = vrot.slane %v2093, 1
    %v2095 = vmax.f32 %v2093, %v2094
    %v2096 = vmax.f32 %v1716, %v1720
    %v2097 = vmax.f32 %v2096, %v1726
    %v2098 = vmax.f32 %v2097, %v1730
    %v2099 = vmax.f32 %v2098, %v1736
    %v2100 = vmax.f32 %v2099, %v1740
    %v2101 = vmax.f32 %v2100, %v1746
    %v2102 = vmax.f32 %v2101, %v1750
    %v2103 = vmax.f32 %v2102, %v1756
    %v2104 = vmax.f32 %v2103, %v1760
    %v2105 = vmax.f32 %v2104, %v1766
    %v2106 = vmax.f32 %v2105, %v1770
    %v2107 = vmax.f32 %v2106, %v1776
    %v2108 = vmax.f32 %v2107, %v1780
    %v2109 = vmax.f32 %v2108, %v1786
    %v2110 = vmax.f32 %v2109, %v1790
    %v2111 = vmax.f32 %v2110, %v1796
    %v2112 = vmax.f32 %v2111, %v1800
    %v2113 = vmax.f32 %v2112, %v1806
    %v2114 = vmax.f32 %v2113, %v1810
    %v2115 = vmax.f32 %v2114, %v1816
    %v2116 = vmax.f32 %v2115, %v1820
    %v2117 = vmax.f32 %v2116, %v1826
    %v2118 = vmax.f32 %v2117, %v1830
    %v2119 = vmax.f32 %v2118, %v1836
    %v2120 = vmax.f32 %v2119, %v1840
    %v2121 = vmax.f32 %v2120, %v1846
    %v2122 = vmax.f32 %v2121, %v1850
    %v2123 = vmax.f32 %v2122, %v1856
    %v2124 = vmax.f32 %v2123, %v1860
    %v2125 = vmax.f32 %v2124, %v1866
    %v2126 = vmax.f32 %v2125, %v1870
    %v2127 = vrot.slane %v2126, 4
    %v2128 = vmax.f32 %v2126, %v2127
    %v2129 = vrot.slane %v2128, 2
    %v2130 = vmax.f32 %v2128, %v2129
    %v2131 = vrot.slane %v2130, 1
    %v2132 = vmax.f32 %v2130, %v2131
    %v2133 = vmax.f32 %v1718, %v1722
    %v2134 = vmax.f32 %v2133, %v1728
    %v2135 = vmax.f32 %v2134, %v1732
    %v2136 = vmax.f32 %v2135, %v1738
    %v2137 = vmax.f32 %v2136, %v1742
    %v2138 = vmax.f32 %v2137, %v1748
    %v2139 = vmax.f32 %v2138, %v1752
    %v2140 = vmax.f32 %v2139, %v1758
    %v2141 = vmax.f32 %v2140, %v1762
    %v2142 = vmax.f32 %v2141, %v1768
    %v2143 = vmax.f32 %v2142, %v1772
    %v2144 = vmax.f32 %v2143, %v1778
    %v2145 = vmax.f32 %v2144, %v1782
    %v2146 = vmax.f32 %v2145, %v1788
    %v2147 = vmax.f32 %v2146, %v1792
    %v2148 = vmax.f32 %v2147, %v1798
    %v2149 = vmax.f32 %v2148, %v1802
    %v2150 = vmax.f32 %v2149, %v1808
    %v2151 = vmax.f32 %v2150, %v1812
    %v2152 = vmax.f32 %v2151, %v1818
    %v2153 = vmax.f32 %v2152, %v1822
    %v2154 = vmax.f32 %v2153, %v1828
    %v2155 = vmax.f32 %v2154, %v1832
    %v2156 = vmax.f32 %v2155, %v1838
    %v2157 = vmax.f32 %v2156, %v1842
    %v2158 = vmax.f32 %v2157, %v1848
    %v2159 = vmax.f32 %v2158, %v1852
    %v2160 = vmax.f32 %v2159, %v1858
    %v2161 = vmax.f32 %v2160, %v1862
    %v2162 = vmax.f32 %v2161, %v1868
    %v2163 = vmax.f32 %v2162, %v1872
    %v2164 = vrot.slane %v2163, 4
    %v2165 = vmax.f32 %v2163, %v2164
    %v2166 = vrot.slane %v2165, 2
    %v2167 = vmax.f32 %v2165, %v2166
    %v2168 = vrot.slane %v2167, 1
    %v2169 = vmax.f32 %v2167, %v2168
    %v2170 = vsub.f32 %v993, %v1910
    %v2171 = vsub.f32 %v995, %v1947
    %v2172 = vsub.f32 %v997, %v1910
    %v2173 = vsub.f32 %v999, %v1947
    %v2174 = vsub.f32 %v1003, %v1910
    %v2175 = vsub.f32 %v1005, %v1947
    %v2176 = vsub.f32 %v1007, %v1910
    %v2177 = vsub.f32 %v1009, %v1947
    %v2178 = vsub.f32 %v1013, %v1910
    %v2179 = vsub.f32 %v1015, %v1947
    %v2180 = vsub.f32 %v1017, %v1910
    %v2181 = vsub.f32 %v1019, %v1947
    %v2182 = vsub.f32 %v1023, %v1910
    %v2183 = vsub.f32 %v1025, %v1947
    %v2184 = vsub.f32 %v1027, %v1910
    %v2185 = vsub.f32 %v1029, %v1947
    %v2186 = vsub.f32 %v1033, %v1910
    %v2187 = vsub.f32 %v1035, %v1947
    %v2188 = vsub.f32 %v1037, %v1910
    %v2189 = vsub.f32 %v1039, %v1947
    %v2190 = vsub.f32 %v1043, %v1910
    %v2191 = vsub.f32 %v1045, %v1947
    %v2192 = vsub.f32 %v1047, %v1910
    %v2193 = vsub.f32 %v1049, %v1947
    %v2194 = vsub.f32 %v1053, %v1910
    %v2195 = vsub.f32 %v1055, %v1947
    %v2196 = vsub.f32 %v1057, %v1910
    %v2197 = vsub.f32 %v1059, %v1947
    %v2198 = vsub.f32 %v1063, %v1910
    %v2199 = vsub.f32 %v1065, %v1947
    %v2200 = vsub.f32 %v1067, %v1910
    %v2201 = vsub.f32 %v1069, %v1947
    %v2202 = vsub.f32 %v1073, %v1910
    %v2203 = vsub.f32 %v1075, %v1947
    %v2204 = vsub.f32 %v1077, %v1910
    %v2205 = vsub.f32 %v1079, %v1947
    %v2206 = vsub.f32 %v1083, %v1910
    %v2207 = vsub.f32 %v1085, %v1947
    %v2208 = vsub.f32 %v1087, %v1910
    %v2209 = vsub.f32 %v1089, %v1947
    %v2210 = vsub.f32 %v1093, %v1910
    %v2211 = vsub.f32 %v1095, %v1947
    %v2212 = vsub.f32 %v1097, %v1910
    %v2213 = vsub.f32 %v1099, %v1947
    %v2214 = vsub.f32 %v1103, %v1910
    %v2215 = vsub.f32 %v1105, %v1947
    %v2216 = vsub.f32 %v1107, %v1910
    %v2217 = vsub.f32 %v1109, %v1947
    %v2218 = vsub.f32 %v1113, %v1910
    %v2219 = vsub.f32 %v1115, %v1947
    %v2220 = vsub.f32 %v1117, %v1910
    %v2221 = vsub.f32 %v1119, %v1947
    %v2222 = vsub.f32 %v1123, %v1910
    %v2223 = vsub.f32 %v1125, %v1947
    %v2224 = vsub.f32 %v1127, %v1910
    %v2225 = vsub.f32 %v1129, %v1947
    %v2226 = vsub.f32 %v1133, %v1910
    %v2227 = vsub.f32 %v1135, %v1947
    %v2228 = vsub.f32 %v1137, %v1910
    %v2229 = vsub.f32 %v1139, %v1947
    %v2230 = vsub.f32 %v1143, %v1910
    %v2231 = vsub.f32 %v1145, %v1947
    %v2232 = vsub.f32 %v1147, %v1910
    %v2233 = vsub.f32 %v1149, %v1947
    %v2234 = vsub.f32 %v1234, %v1984
    %v2235 = vsub.f32 %v1236, %v2021
    %v2236 = vsub.f32 %v1238, %v1984
    %v2237 = vsub.f32 %v1240, %v2021
    %v2238 = vsub.f32 %v1244, %v1984
    %v2239 = vsub.f32 %v1246, %v2021
    %v2240 = vsub.f32 %v1248, %v1984
    %v2241 = vsub.f32 %v1250, %v2021
    %v2242 = vsub.f32 %v1254, %v1984
    %v2243 = vsub.f32 %v1256, %v2021
    %v2244 = vsub.f32 %v1258, %v1984
    %v2245 = vsub.f32 %v1260, %v2021
    %v2246 = vsub.f32 %v1264, %v1984
    %v2247 = vsub.f32 %v1266, %v2021
    %v2248 = vsub.f32 %v1268, %v1984
    %v2249 = vsub.f32 %v1270, %v2021
    %v2250 = vsub.f32 %v1274, %v1984
    %v2251 = vsub.f32 %v1276, %v2021
    %v2252 = vsub.f32 %v1278, %v1984
    %v2253 = vsub.f32 %v1280, %v2021
    %v2254 = vsub.f32 %v1284, %v1984
    %v2255 = vsub.f32 %v1286, %v2021
    %v2256 = vsub.f32 %v1288, %v1984
    %v2257 = vsub.f32 %v1290, %v2021
    %v2258 = vsub.f32 %v1294, %v1984
    %v2259 = vsub.f32 %v1296, %v2021
    %v2260 = vsub.f32 %v1298, %v1984
    %v2261 = vsub.f32 %v1300, %v2021
    %v2262 = vsub.f32 %v1304, %v1984
    %v2263 = vsub.f32 %v1306, %v2021
    %v2264 = vsub.f32 %v1308, %v1984
    %v2265 = vsub.f32 %v1310, %v2021
    %v2266 = vsub.f32 %v1314, %v1984
    %v2267 = vsub.f32 %v1316, %v2021
    %v2268 = vsub.f32 %v1318, %v1984
    %v2269 = vsub.f32 %v1320, %v2021
    %v2270 = vsub.f32 %v1324, %v1984
    %v2271 = vsub.f32 %v1326, %v2021
    %v2272 = vsub.f32 %v1328, %v1984
    %v2273 = vsub.f32 %v1330, %v2021
    %v2274 = vsub.f32 %v1334, %v1984
    %v2275 = vsub.f32 %v1336, %v2021
    %v2276 = vsub.f32 %v1338, %v1984
    %v2277 = vsub.f32 %v1340, %v2021
    %v2278 = vsub.f32 %v1344, %v1984
    %v2279 = vsub.f32 %v1346, %v2021
    %v2280 = vsub.f32 %v1348, %v1984
    %v2281 = vsub.f32 %v1350, %v2021
    %v2282 = vsub.f32 %v1354, %v1984
    %v2283 = vsub.f32 %v1356, %v2021
    %v2284 = vsub.f32 %v1358, %v1984
    %v2285 = vsub.f32 %v1360, %v2021
    %v2286 = vsub.f32 %v1364, %v1984
    %v2287 = vsub.f32 %v1366, %v2021
    %v2288 = vsub.f32 %v1368, %v1984
    %v2289 = vsub.f32 %v1370, %v2021
    %v2290 = vsub.f32 %v1374, %v1984
    %v2291 = vsub.f32 %v1376, %v2021
    %v2292 = vsub.f32 %v1378, %v1984
    %v2293 = vsub.f32 %v1380, %v2021
    %v2294 = vsub.f32 %v1384, %v1984
    %v2295 = vsub.f32 %v1386, %v2021
    %v2296 = vsub.f32 %v1388, %v1984
    %v2297 = vsub.f32 %v1390, %v2021
    %v2298 = vsub.f32 %v1475, %v2058
    %v2299 = vsub.f32 %v1477, %v2095
    %v2300 = vsub.f32 %v1479, %v2058
    %v2301 = vsub.f32 %v1481, %v2095
    %v2302 = vsub.f32 %v1485, %v2058
    %v2303 = vsub.f32 %v1487, %v2095
    %v2304 = vsub.f32 %v1489, %v2058
    %v2305 = vsub.f32 %v1491, %v2095
    %v2306 = vsub.f32 %v1495, %v2058
    %v2307 = vsub.f32 %v1497, %v2095
    %v2308 = vsub.f32 %v1499, %v2058
    %v2309 = vsub.f32 %v1501, %v2095
    %v2310 = vsub.f32 %v1505, %v2058
    %v2311 = vsub.f32 %v1507, %v2095
    %v2312 = vsub.f32 %v1509, %v2058
    %v2313 = vsub.f32 %v1511, %v2095
    %v2314 = vsub.f32 %v1515, %v2058
    %v2315 = vsub.f32 %v1517, %v2095
    %v2316 = vsub.f32 %v1519, %v2058
    %v2317 = vsub.f32 %v1521, %v2095
    %v2318 = vsub.f32 %v1525, %v2058
    %v2319 = vsub.f32 %v1527, %v2095
    %v2320 = vsub.f32 %v1529, %v2058
    %v2321 = vsub.f32 %v1531, %v2095
    %v2322 = vsub.f32 %v1535, %v2058
    %v2323 = vsub.f32 %v1537, %v2095
    %v2324 = vsub.f32 %v1539, %v2058
    %v2325 = vsub.f32 %v1541, %v2095
    %v2326 = vsub.f32 %v1545, %v2058
    %v2327 = vsub.f32 %v1547, %v2095
    %v2328 = vsub.f32 %v1549, %v2058
    %v2329 = vsub.f32 %v1551, %v2095
    %v2330 = vsub.f32 %v1555, %v2058
    %v2331 = vsub.f32 %v1557, %v2095
    %v2332 = vsub.f32 %v1559, %v2058
    %v2333 = vsub.f32 %v1561, %v2095
    %v2334 = vsub.f32 %v1565, %v2058
    %v2335 = vsub.f32 %v1567, %v2095
    %v2336 = vsub.f32 %v1569, %v2058
    %v2337 = vsub.f32 %v1571, %v2095
    %v2338 = vsub.f32 %v1575, %v2058
    %v2339 = vsub.f32 %v1577, %v2095
    %v2340 = vsub.f32 %v1579, %v2058
    %v2341 = vsub.f32 %v1581, %v2095
    %v2342 = vsub.f32 %v1585, %v2058
    %v2343 = vsub.f32 %v1587, %v2095
    %v2344 = vsub.f32 %v1589, %v2058
    %v2345 = vsub.f32 %v1591, %v2095
    %v2346 = vsub.f32 %v1595, %v2058
    %v2347 = vsub.f32 %v1597, %v2095
    %v2348 = vsub.f32 %v1599, %v2058
    %v2349 = vsub.f32 %v1601, %v2095
    %v2350 = vsub.f32 %v1605, %v2058
    %v2351 = vsub.f32 %v1607, %v2095
    %v2352 = vsub.f32 %v1609, %v2058
    %v2353 = vsub.f32 %v1611, %v2095
    %v2354 = vsub.f32 %v1615, %v2058
    %v2355 = vsub.f32 %v1617, %v2095
    %v2356 = vsub.f32 %v1619, %v2058
    %v2357 = vsub.f32 %v1621, %v2095
    %v2358 = vsub.f32 %v1625, %v2058
    %v2359 = vsub.f32 %v1627, %v2095
    %v2360 = vsub.f32 %v1629, %v2058
    %v2361 = vsub.f32 %v1631, %v2095
    %v2362 = vsub.f32 %v1716, %v2132
    %v2363 = vsub.f32 %v1718, %v2169
    %v2364 = vsub.f32 %v1720, %v2132
    %v2365 = vsub.f32 %v1722, %v2169
    %v2366 = vsub.f32 %v1726, %v2132
    %v2367 = vsub.f32 %v1728, %v2169
    %v2368 = vsub.f32 %v1730, %v2132
    %v2369 = vsub.f32 %v1732, %v2169
    %v2370 = vsub.f32 %v1736, %v2132
    %v2371 = vsub.f32 %v1738, %v2169
    %v2372 = vsub.f32 %v1740, %v2132
    %v2373 = vsub.f32 %v1742, %v2169
    %v2374 = vsub.f32 %v1746, %v2132
    %v2375 = vsub.f32 %v1748, %v2169
    %v2376 = vsub.f32 %v1750, %v2132
    %v2377 = vsub.f32 %v1752, %v2169
    %v2378 = vsub.f32 %v1756, %v2132
    %v2379 = vsub.f32 %v1758, %v2169
    %v2380 = vsub.f32 %v1760, %v2132
    %v2381 = vsub.f32 %v1762, %v2169
    %v2382 = vsub.f32 %v1766, %v2132
    %v2383 = vsub.f32 %v1768, %v2169
    %v2384 = vsub.f32 %v1770, %v2132
    %v2385 = vsub.f32 %v1772, %v2169
    %v2386 = vsub.f32 %v1776, %v2132
    %v2387 = vsub.f32 %v1778, %v2169
    %v2388 = vsub.f32 %v1780, %v2132
    %v2389 = vsub.f32 %v1782, %v2169
    %v2390 = vsub.f32 %v1786, %v2132
    %v2391 = vsub.f32 %v1788, %v2169
    %v2392 = vsub.f32 %v1790, %v2132
    %v2393 = vsub.f32 %v1792, %v2169
    %v2394 = vsub.f32 %v1796, %v2132
    %v2395 = vsub.f32 %v1798, %v2169
    %v2396 = vsub.f32 %v1800, %v2132
    %v2397 = vsub.f32 %v1802, %v2169
    %v2398 = vsub.f32 %v1806, %v2132
    %v2399 = vsub.f32 %v1808, %v2169
    %v2400 = vsub.f32 %v1810, %v2132
    %v2401 = vsub.f32 %v1812, %v2169
    %v2402 = vsub.f32 %v1816, %v2132
    %v2403 = vsub.f32 %v1818, %v2169
    %v2404 = vsub.f32 %v1820, %v2132
    %v2405 = vsub.f32 %v1822, %v2169
    %v2406 = vsub.f32 %v1826, %v2132
    %v2407 = vsub.f32 %v1828, %v2169
    %v2408 = vsub.f32 %v1830, %v2132
    %v2409 = vsub.f32 %v1832, %v2169
    %v2410 = vsub.f32 %v1836, %v2132
    %v2411 = vsub.f32 %v1838, %v2169
    %v2412 = vsub.f32 %v1840, %v2132
    %v2413 = vsub.f32 %v1842, %v2169
    %v2414 = vsub.f32 %v1846, %v2132
    %v2415 = vsub.f32 %v1848, %v2169
    %v2416 = vsub.f32 %v1850, %v2132
    %v2417 = vsub.f32 %v1852, %v2169
    %v2418 = vsub.f32 %v1856, %v2132
    %v2419 = vsub.f32 %v1858, %v2169
    %v2420 = vsub.f32 %v1860, %v2132
    %v2421 = vsub.f32 %v1862, %v2169
    %v2422 = vsub.f32 %v1866, %v2132
    %v2423 = vsub.f32 %v1868, %v2169
    %v2424 = vsub.f32 %v1870, %v2132
    %v2425 = vsub.f32 %v1872, %v2169
    %v2426 = vmul.f32 %v2170, 1.442695
    %v2427 = vpow.pop %v2426
    %v2428 = vmul.f32 %v2171, 1.442695
    %v2429 = vpow.pop %v2428
    %v2430 = vmul.f32 %v2172, 1.442695
    %v2431 = vpow.pop %v2430
    %v2432 = vmul.f32 %v2173, 1.442695
    %v2433 = vpow.pop %v2432
    %v2434 = vmul.f32 %v2174, 1.442695
    %v2435 = vpow.pop %v2434
    %v2436 = vmul.f32 %v2175, 1.442695
    %v2437 = vpow.pop %v2436
    %v2438 = vmul.f32 %v2176, 1.442695
    %v2439 = vpow.pop %v2438
    %v2440 = vmul.f32 %v2177, 1.442695
    %v2441 = vpow.pop %v2440
    %v2442 = vmul.f32 %v2178, 1.442695
    %v2443 = vpow.pop %v2442
    %v2444 = vmul.f32 %v2179, 1.442695
    %v2445 = vpow.pop %v2444
    %v2446 = vmul.f32 %v2180, 1.442695
    %v2447 = vpow.pop %v2446
    %v2448 = vmul.f32 %v2181, 1.442695
    %v2449 = vpow.pop %v2448
    %v2450 = vmul.f32 %v2182, 1.442695
    %v2451 = vpow.pop %v2450
    %v2452 = vmul.f32 %v2183, 1.442695
    %v2453 = vpow.pop %v2452
    %v2454 = vmul.f32 %v2184, 1.442695
    %v2455 = vpow.pop %v2454
    %v2456 = vmul.f32 %v2185, 1.442695
    %v2457 = vpow.pop %v2456
    %v2458 = vmul.f32 %v2186, 1.442695
    %v2459 = vpow.pop %v2458
    %v2460 = vmul.f32 %v2187, 1.442695
    %v2461 = vpow.pop %v2460
    %v2462 = vmul.f32 %v2188, 1.442695
    %v2463 = vpow.pop %v2462
    %v2464 = vmul.f32 %v2189, 1.442695
    %v2465 = vpow.pop %v2464
    %v2466 = vmul.f32 %v2190, 1.442695
    %v2467 = vpow.pop %v2466
    %v2468 = vmul.f32 %v2191, 1.442695
    %v2469 = vpow.pop %v2468
    %v2470 = vmul.f32 %v2192, 1.442695
    %v2471 = vpow.pop %v2470
    %v2472 = vmul.f32 %v2193, 1.442695
    %v2473 = vpow.pop %v2472
    %v2474 = vmul.f32 %v2194, 1.442695
    %v2475 = vpow.pop %v2474
    %v2476 = vmul.f32 %v2195, 1.442695
    %v2477 = vpow.pop %v2476
    %v2478 = vmul.f32 %v2196, 1.442695
    %v2479 = vpow.pop %v2478
    %v2480 = vmul.f32 %v2197, 1.442695
    %v2481 = vpow.pop %v2480
    %v2482 = vmul.f32 %v2198, 1.442695
    %v2483 = vpow.pop %v2482
    %v2484 = vmul.f32 %v2199, 1.442695
    %v2485 = vpow.pop %v2484
    %v2486 = vmul.f32 %v2200, 1.442695
    %v2487 = vpow.pop %v2486
    %v2488 = vmul.f32 %v2201, 1.442695
    %v2489 = vpow.pop %v2488
    %v2490 = vmul.f32 %v2202, 1.442695
    %v2491 = vpow.pop %v2490
    %v2492 = vmul.f32 %v2203, 1.442695
    %v2493 = vpow.pop %v2492
    %v2494 = vmul.f32 %v2204, 1.442695
    %v2495 = vpow.pop %v2494
    %v2496 = vmul.f32 %v2205, 1.442695
    %v2497 = vpow.pop %v2496
    %v2498 = vmul.f32 %v2206, 1.442695
    %v2499 = vpow.pop %v2498
    %v2500 = vmul.f32 %v2207, 1.442695
    %v2501 = vpow.pop %v2500
    %v2502 = vmul.f32 %v2208, 1.442695
    %v2503 = vpow.pop %v2502
    %v2504 = vmul.f32 %v2209, 1.442695
    %v2505 = vpow.pop %v2504
    %v2506 = vmul.f32 %v2210, 1.442695
    %v2507 = vpow.pop %v2506
    %v2508 = vmul.f32 %v2211, 1.442695
    %v2509 = vpow.pop %v2508
    %v2510 = vmul.f32 %v2212, 1.442695
    %v2511 = vpow.pop %v2510
    %v2512 = vmul.f32 %v2213, 1.442695
    %v2513 = vpow.pop %v2512
    %v2514 = vmul.f32 %v2214, 1.442695
    %v2515 = vpow.pop %v2514
    %v2516 = vmul.f32 %v2215, 1.442695
    %v2517 = vpow.pop %v2516
    %v2518 = vmul.f32 %v2216, 1.442695
    %v2519 = vpow.pop %v2518
    %v2520 = vmul.f32 %v2217, 1.442695
    %v2521 = vpow.pop %v2520
    %v2522 = vmul.f32 %v2218, 1.442695
    %v2523 = vpow.pop %v2522
    %v2524 = vmul.f32 %v2219, 1.442695
    %v2525 = vpow.pop %v2524
    %v2526 = vmul.f32 %v2220, 1.442695
    %v2527 = vpow.pop %v2526
    %v2528 = vmul.f32 %v2221, 1.442695
    %v2529 = vpow.pop %v2528
    %v2530 = vmul.f32 %v2222, 1.442695
    %v2531 = vpow.pop %v2530
    %v2532 = vmul.f32 %v2223, 1.442695
    %v2533 = vpow.pop %v2532
    %v2534 = vmul.f32 %v2224, 1.442695
    %v2535 = vpow.pop %v2534
    %v2536 = vmul.f32 %v2225, 1.442695
    %v2537 = vpow.pop %v2536
    %v2538 = vmul.f32 %v2226, 1.442695
    %v2539 = vpow.pop %v2538
    %v2540 = vmul.f32 %v2227, 1.442695
    %v2541 = vpow.pop %v2540
    %v2542 = vmul.f32 %v2228, 1.442695
    %v2543 = vpow.pop %v2542
    %v2544 = vmul.f32 %v2229, 1.442695
    %v2545 = vpow.pop %v2544
    %v2546 = vmul.f32 %v2230, 1.442695
    %v2547 = vpow.pop %v2546
    %v2548 = vmul.f32 %v2231, 1.442695
    %v2549 = vpow.pop %v2548
    %v2550 = vmul.f32 %v2232, 1.442695
    %v2551 = vpow.pop %v2550
    %v2552 = vmul.f32 %v2233, 1.442695
    %v2553 = vpow.pop %v2552
    %v2554 = vmul.f32 %v2234, 1.442695
    %v2555 = vpow.pop %v2554
    %v2556 = vmul.f32 %v2235, 1.442695
    %v2557 = vpow.pop %v2556
    %v2558 = vmul.f32 %v2236, 1.442695
    %v2559 = vpow.pop %v2558
    %v2560 = vmul.f32 %v2237, 1.442695
    %v2561 = vpow.pop %v2560
    %v2562 = vmul.f32 %v2238, 1.442695
    %v2563 = vpow.pop %v2562
    %v2564 = vmul.f32 %v2239, 1.442695
    %v2565 = vpow.pop %v2564
    %v2566 = vmul.f32 %v2240, 1.442695
    %v2567 = vpow.pop %v2566
    %v2568 = vmul.f32 %v2241, 1.442695
    %v2569 = vpow.pop %v2568
    %v2570 = vmul.f32 %v2242, 1.442695
    %v2571 = vpow.pop %v2570
    %v2572 = vmul.f32 %v2243, 1.442695
    %v2573 = vpow.pop %v2572
    %v2574 = vmul.f32 %v2244, 1.442695
    %v2575 = vpow.pop %v2574
    %v2576 = vmul.f32 %v2245, 1.442695
    %v2577 = vpow.pop %v2576
    %v2578 = vmul.f32 %v2246, 1.442695
    %v2579 = vpow.pop %v2578
    %v2580 = vmul.f32 %v2247, 1.442695
    %v2581 = vpow.pop %v2580
    %v2582 = vmul.f32 %v2248, 1.442695
    %v2583 = vpow.pop %v2582
    %v2584 = vmul.f32 %v2249, 1.442695
    %v2585 = vpow.pop %v2584
    %v2586 = vmul.f32 %v2250, 1.442695
    %v2587 = vpow.pop %v2586
    %v2588 = vmul.f32 %v2251, 1.442695
    %v2589 = vpow.pop %v2588
    %v2590 = vmul.f32 %v2252, 1.442695
    %v2591 = vpow.pop %v2590
    %v2592 = vmul.f32 %v2253, 1.442695
    %v2593 = vpow.pop %v2592
    %v2594 = vmul.f32 %v2254, 1.442695
    %v2595 = vpow.pop %v2594
    %v2596 = vmul.f32 %v2255, 1.442695
    %v2597 = vpow.pop %v2596
    %v2598 = vmul.f32 %v2256, 1.442695
    %v2599 = vpow.pop %v2598
    %v2600 = vmul.f32 %v2257, 1.442695
    %v2601 = vpow.pop %v2600
    %v2602 = vmul.f32 %v2258, 1.442695
    %v2603 = vpow.pop %v2602
    %v2604 = vmul.f32 %v2259, 1.442695
    %v2605 = vpow.pop %v2604
    %v2606 = vmul.f32 %v2260, 1.442695
    %v2607 = vpow.pop %v2606
    %v2608 = vmul.f32 %v2261, 1.442695
    %v2609 = vpow.pop %v2608
    %v2610 = vmul.f32 %v2262, 1.442695
    %v2611 = vpow.pop %v2610
    %v2612 = vmul.f32 %v2263, 1.442695
    %v2613 = vpow.pop %v2612
    %v2614 = vmul.f32 %v2264, 1.442695
    %v2615 = vpow.pop %v2614
    %v2616 = vmul.f32 %v2265, 1.442695
    %v2617 = vpow.pop %v2616
    %v2618 = vmul.f32 %v2266, 1.442695
    %v2619 = vpow.pop %v2618
    %v2620 = vmul.f32 %v2267, 1.442695
    %v2621 = vpow.pop %v2620
    %v2622 = vmul.f32 %v2268, 1.442695
    %v2623 = vpow.pop %v2622
    %v2624 = vmul.f32 %v2269, 1.442695
    %v2625 = vpow.pop %v2624
    %v2626 = vmul.f32 %v2270, 1.442695
    %v2627 = vpow.pop %v2626
    %v2628 = vmul.f32 %v2271, 1.442695
    %v2629 = vpow.pop %v2628
    %v2630 = vmul.f32 %v2272, 1.442695
    %v2631 = vpow.pop %v2630
    %v2632 = vmul.f32 %v2273, 1.442695
    %v2633 = vpow.pop %v2632
    %v2634 = vmul.f32 %v2274, 1.442695
    %v2635 = vpow.pop %v2634
    %v2636 = vmul.f32 %v2275, 1.442695
    %v2637 = vpow.pop %v2636
    %v2638 = vmul.f32 %v2276, 1.442695
    %v2639 = vpow.pop %v2638
    %v2640 = vmul.f32 %v2277, 1.442695
    %v2641 = vpow.pop %v2640
    %v2642 = vmul.f32 %v2278, 1.442695
    %v2643 = vpow.pop %v2642
    %v2644 = vmul.f32 %v2279, 1.442695
    %v2645 = vpow.pop %v2644
    %v2646 = vmul.f32 %v2280, 1.442695
    %v2647 = vpow.pop %v2646
    %v2648 = vmul.f32 %v2281, 1.442695
    %v2649 = vpow.pop %v2648
    %v2650 = vmul.f32 %v2282, 1.442695
    %v2651 = vpow.pop %v2650
    %v2652 = vmul.f32 %v2283, 1.442695
    %v2653 = vpow.pop %v2652
    %v2654 = vmul.f32 %v2284, 1.442695
    %v2655 = vpow.pop %v2654
    %v2656 = vmul.f32 %v2285, 1.442695
    %v2657 = vpow.pop %v2656
    %v2658 = vmul.f32 %v2286, 1.442695
    %v2659 = vpow.pop %v2658
    %v2660 = vmul.f32 %v2287, 1.442695
    %v2661 = vpow.pop %v2660
    %v2662 = vmul.f32 %v2288, 1.442695
    %v2663 = vpow.pop %v2662
    %v2664 = vmul.f32 %v2289, 1.442695
    %v2665 = vpow.pop %v2664
    %v2666 = vmul.f32 %v2290, 1.442695
    %v2667 = vpow.pop %v2666
    %v2668 = vmul.f32 %v2291, 1.442695
    %v2669 = vpow.pop %v2668
    %v2670 = vmul.f32 %v2292, 1.442695
    %v2671 = vpow.pop %v2670
    %v2672 = vmul.f32 %v2293, 1.442695
    %v2673 = vpow.pop %v2672
    %v2674 = vmul.f32 %v2294, 1.442695
    %v2675 = vpow.pop %v2674
    %v2676 = vmul.f32 %v2295, 1.442695
    %v2677 = vpow.pop %v2676
    %v2678 = vmul.f32 %v2296, 1.442695
    %v2679 = vpow.pop %v2678
    %v2680 = vmul.f32 %v2297, 1.442695
    %v2681 = vpow.pop %v2680
    %v2682 = vmul.f32 %v2298, 1.442695
    %v2683 = vpow.pop %v2682
    %v2684 = vmul.f32 %v2299, 1.442695
    %v2685 = vpow.pop %v2684
    %v2686 = vmul.f32 %v2300, 1.442695
    %v2687 = vpow.pop %v2686
    %v2688 = vmul.f32 %v2301, 1.442695
    %v2689 = vpow.pop %v2688
    %v2690 = vmul.f32 %v2302, 1.442695
    %v2691 = vpow.pop %v2690
    %v2692 = vmul.f32 %v2303, 1.442695
    %v2693 = vpow.pop %v2692
    %v2694 = vmul.f32 %v2304, 1.442695
    %v2695 = vpow.pop %v2694
    %v2696 = vmul.f32 %v2305, 1.442695
    %v2697 = vpow.pop %v2696
    %v2698 = vmul.f32 %v2306, 1.442695
    %v2699 = vpow.pop %v2698
    %v2700 = vmul.f32 %v2307, 1.442695
    %v2701 = vpow.pop %v2700
    %v2702 = vmul.f32 %v2308, 1.442695
    %v2703 = vpow.pop %v2702
    %v2704 = vmul.f32 %v2309, 1.442695
    %v2705 = vpow.pop %v2704
    %v2706 = vmul.f32 %v2310, 1.442695
    %v2707 = vpow.pop %v2706
    %v2708 = vmul.f32 %v2311, 1.442695
    %v2709 = vpow.pop %v2708
    %v2710 = vmul.f32 %v2312, 1.442695
    %v2711 = vpow.pop %v2710
    %v2712 = vmul.f32 %v2313, 1.442695
    %v2713 = vpow.pop %v2712
    %v2714 = vmul.f32 %v2314, 1.442695
    %v2715 = vpow.pop %v2714
    %v2716 = vmul.f32 %v2315, 1.442695
    %v2717 = vpow.pop %v2716
    %v2718 = vmul.f32 %v2316, 1.442695
    %v2719 = vpow.pop %v2718
    %v2720 = vmul.f32 %v2317, 1.442695
    %v2721 = vpow.pop %v2720
    %v2722 = vmul.f32 %v2318, 1.442695
    %v2723 = vpow.pop %v2722
    %v2724 = vmul.f32 %v2319, 1.442695
    %v2725 = vpow.pop %v2724
    %v2726 = vmul.f32 %v2320, 1.442695
    %v2727 = vpow.pop %v2726
    %v2728 = vmul.f32 %v2321, 1.442695
    %v2729 = vpow.pop %v2728
    %v2730 = vmul.f32 %v2322, 1.442695
    %v2731 = vpow.pop %v2730
    %v2732 = vmul.f32 %v2323, 1.442695
    %v2733 = vpow.pop %v2732
    %v2734 = vmul.f32 %v2324, 1.442695
    %v2735 = vpow.pop %v2734
    %v2736 = vmul.f32 %v2325, 1.442695
    %v2737 = vpow.pop %v2736
    %v2738 = vmul.f32 %v2326, 1.442695
    %v2739 = vpow.pop %v2738
    %v2740 = vmul.f32 %v2327, 1.442695
    %v2741 = vpow.pop %v2740
    %v2742 = vmul.f32 %v2328, 1.442695
    %v2743 = vpow.pop %v2742
    %v2744 = vmul.f32 %v2329, 1.442695
    %v2745 = vpow.pop %v2744
    %v2746 = vmul.f32 %v2330, 1.442695
    %v2747 = vpow.pop %v2746
    %v2748 = vmul.f32 %v2331, 1.442695
    %v2749 = vpow.pop %v2748
    %v2750 = vmul.f32 %v2332, 1.442695
    %v2751 = vpow.pop %v2750
    %v2752 = vmul.f32 %v2333, 1.442695
    %v2753 = vpow.pop %v2752
    %v2754 = vmul.f32 %v2334, 1.442695
    %v2755 = vpow.pop %v2754
    %v2756 = vmul.f32 %v2335, 1.442695
    %v2757 = vpow.pop %v2756
    %v2758 = vmul.f32 %v2336, 1.442695
    %v2759 = vpow.pop %v2758
    %v2760 = vmul.f32 %v2337, 1.442695
    %v2761 = vpow.pop %v2760
    %v2762 = vmul.f32 %v2338, 1.442695
    %v2763 = vpow.pop %v2762
    %v2764 = vmul.f32 %v2339, 1.442695
    %v2765 = vpow.pop %v2764
    %v2766 = vmul.f32 %v2340, 1.442695
    %v2767 = vpow.pop %v2766
    %v2768 = vmul.f32 %v2341, 1.442695
    %v2769 = vpow.pop %v2768
    %v2770 = vmul.f32 %v2342, 1.442695
    %v2771 = vpow.pop %v2770
    %v2772 = vmul.f32 %v2343, 1.442695
    %v2773 = vpow.pop %v2772
    %v2774 = vmul.f32 %v2344, 1.442695
    %v2775 = vpow.pop %v2774
    %v2776 = vmul.f32 %v2345, 1.442695
    %v2777 = vpow.pop %v2776
    %v2778 = vmul.f32 %v2346, 1.442695
    %v2779 = vpow.pop %v2778
    %v2780 = vmul.f32 %v2347, 1.442695
    %v2781 = vpow.pop %v2780
    %v2782 = vmul.f32 %v2348, 1.442695
    %v2783 = vpow.pop %v2782
    %v2784 = vmul.f32 %v2349, 1.442695
    %v2785 = vpow.pop %v2784
    %v2786 = vmul.f32 %v2350, 1.442695
    %v2787 = vpow.pop %v2786
    %v2788 = vmul.f32 %v2351, 1.442695
    %v2789 = vpow.pop %v2788
    %v2790 = vmul.f32 %v2352, 1.442695
    %v2791 = vpow.pop %v2790
    %v2792 = vmul.f32 %v2353, 1.442695
    %v2793 = vpow.pop %v2792
    %v2794 = vmul.f32 %v2354, 1.442695
    %v2795 = vpow.pop %v2794
    %v2796 = vmul.f32 %v2355, 1.442695
    %v2797 = vpow.pop %v2796
    %v2798 = vmul.f32 %v2356, 1.442695
    %v2799 = vpow.pop %v2798
    %v2800 = vmul.f32 %v2357, 1.442695
    %v2801 = vpow.pop %v2800
    %v2802 = vmul.f32 %v2358, 1.442695
    %v2803 = vpow.pop %v2802
    %v2804 = vmul.f32 %v2359, 1.442695
    %v2805 = vpow.pop %v2804
    %v2806 = vmul.f32 %v2360, 1.442695
    %v2807 = vpow.pop %v2806
    %v2808 = vmul.f32 %v2361, 1.442695
    %v2809 = vpow.pop %v2808
    %v2810 = vmul.f32 %v2362, 1.442695
    %v2811 = vpow.pop %v2810
    %v2812 = vmul.f32 %v2363, 1.442695
    %v2813 = vpow.pop %v2812
    %v2814 = vmul.f32 %v2364, 1.442695
    %v2815 = vpow.pop %v2814
    %v2816 = vmul.f32 %v2365, 1.442695
    %v2817 = vpow.pop %v2816
    %v2818 = vmul.f32 %v2366, 1.442695
    %v2819 = vpow.pop %v2818
    %v2820 = vmul.f32 %v2367, 1.442695
    %v2821 = vpow.pop %v2820
    %v2822 = vmul.f32 %v2368, 1.442695
    %v2823 = vpow.pop %v2822
    %v2824 = vmul.f32 %v2369, 1.442695
    %v2825 = vpow.pop %v2824
    %v2826 = vmul.f32 %v2370, 1.442695
    %v2827 = vpow.pop %v2826
    %v2828 = vmul.f32 %v2371, 1.442695
    %v2829 = vpow.pop %v2828
    %v2830 = vmul.f32 %v2372, 1.442695
    %v2831 = vpow.pop %v2830
    %v2832 = vmul.f32 %v2373, 1.442695
    %v2833 = vpow.pop %v2832
    %v2834 = vmul.f32 %v2374, 1.442695
    %v2835 = vpow.pop %v2834
    %v2836 = vmul.f32 %v2375, 1.442695
    %v2837 = vpow.pop %v2836
    %v2838 = vmul.f32 %v2376, 1.442695
    %v2839 = vpow.pop %v2838
    %v2840 = vmul.f32 %v2377, 1.442695
    %v2841 = vpow.pop %v2840
    %v2842 = vmul.f32 %v2378, 1.442695
    %v2843 = vpow.pop %v2842
    %v2844 = vmul.f32 %v2379, 1.442695
    %v2845 = vpow.pop %v2844
    %v2846 = vmul.f32 %v2380, 1.442695
    %v2847 = vpow.pop %v2846
    %v2848 = vmul.f32 %v2381, 1.442695
    %v2849 = vpow.pop %v2848
    %v2850 = vmul.f32 %v2382, 1.442695
    %v2851 = vpow.pop %v2850
    %v2852 = vmul.f32 %v2383, 1.442695
    %v2853 = vpow.pop %v2852
    %v2854 = vmul.f32 %v2384, 1.442695
    %v2855 = vpow.pop %v2854
    %v2856 = vmul.f32 %v2385, 1.442695
    %v2857 = vpow.pop %v2856
    %v2858 = vmul.f32 %v2386, 1.442695
    %v2859 = vpow.pop %v2858
    %v2860 = vmul.f32 %v2387, 1.442695
    %v2861 = vpow.pop %v2860
    %v2862 = vmul.f32 %v2388, 1.442695
    %v2863 = vpow.pop %v2862
    %v2864 = vmul.f32 %v2389, 1.442695
    %v2865 = vpow.pop %v2864
    %v2866 = vmul.f32 %v2390, 1.442695
    %v2867 = vpow.pop %v2866
    %v2868 = vmul.f32 %v2391, 1.442695
    %v2869 = vpow.pop %v2868
    %v2870 = vmul.f32 %v2392, 1.442695
    %v2871 = vpow.pop %v2870
    %v2872 = vmul.f32 %v2393, 1.442695
    %v2873 = vpow.pop %v2872
    %v2874 = vmul.f32 %v2394, 1.442695
    %v2875 = vpow.pop %v2874
    %v2876 = vmul.f32 %v2395, 1.442695
    %v2877 = vpow.pop %v2876
    %v2878 = vmul.f32 %v2396, 1.442695
    %v2879 = vpow.pop %v2878
    %v2880 = vmul.f32 %v2397, 1.442695
    %v2881 = vpow.pop %v2880
    %v2882 = vmul.f32 %v2398, 1.442695
    %v2883 = vpow.pop %v2882
    %v2884 = vmul.f32 %v2399, 1.442695
    %v2885 = vpow.pop %v2884
    %v2886 = vmul.f32 %v2400, 1.442695
    %v2887 = vpow.pop %v2886
    %v2888 = vmul.f32 %v2401, 1.442695
    %v2889 = vpow.pop %v2888
    %v2890 = vmul.f32 %v2402, 1.442695
    %v2891 = vpow.pop %v2890
    %v2892 = vmul.f32 %v2403, 1.442695
    %v2893 = vpow.pop %v2892
    %v2894 = vmul.f32 %v2404, 1.442695
    %v2895 = vpow.pop %v2894
    %v2896 = vmul.f32 %v2405, 1.442695
    %v2897 = vpow.pop %v2896
    %v2898 = vmul.f32 %v2406, 1.442695
    %v2899 = vpow.pop %v2898
    %v2900 = vmul.f32 %v2407, 1.442695
    %v2901 = vpow.pop %v2900
    %v2902 = vmul.f32 %v2408, 1.442695
    %v2903 = vpow.pop %v2902
    %v2904 = vmul.f32 %v2409, 1.442695
    %v2905 = vpow.pop %v2904
    %v2906 = vmul.f32 %v2410, 1.442695
    %v2907 = vpow.pop %v2906
    %v2908 = vmul.f32 %v2411, 1.442695
    %v2909 = vpow.pop %v2908
    %v2910 = vmul.f32 %v2412, 1.442695
    %v2911 = vpow.pop %v2910
    %v2912 = vmul.f32 %v2413, 1.442695
    %v2913 = vpow.pop %v2912
    %v2914 = vmul.f32 %v2414, 1.442695
    %v2915 = vpow.pop %v2914
    %v2916 = vmul.f32 %v2415, 1.442695
    %v2917 = vpow.pop %v2916
    %v2918 = vmul.f32 %v2416, 1.442695
    %v2919 = vpow.pop %v2918
    %v2920 = vmul.f32 %v2417, 1.442695
    %v2921 = vpow.pop %v2920
    %v2922 = vmul.f32 %v2418, 1.442695
    %v2923 = vpow.pop %v2922
    %v2924 = vmul.f32 %v2419, 1.442695
    %v2925 = vpow.pop %v2924
    %v2926 = vmul.f32 %v2420, 1.442695
    %v2927 = vpow.pop %v2926
    %v2928 = vmul.f32 %v2421, 1.442695
    %v2929 = vpow.pop %v2928
    %v2930 = vmul.f32 %v2422, 1.442695
    %v2931 = vpow.pop %v2930
    %v2932 = vmul.f32 %v2423, 1.442695
    %v2933 = vpow.pop %v2932
    %v2934 = vmul.f32 %v2424, 1.442695
    %v2935 = vpow.pop %v2934
    %v2936 = vmul.f32 %v2425, 1.442695
    %v2937 = vpow.pop %v2936
    %v2938 = vadd.f32 %v2427, %v2431
    %v2939 = vadd.f32 %v2938, %v2435
    %v2940 = vadd.f32 %v2939, %v2439
    %v2941 = vadd.f32 %v2940, %v2443
    %v2942 = vadd.f32 %v2941, %v2447
    %v2943 = vadd.f32 %v2942, %v2451
    %v2944 = vadd.f32 %v2943, %v2455
    %v2945 = vadd.f32 %v2944, %v2459
    %v2946 = vadd.f32 %v2945, %v2463
    %v2947 = vadd.f32 %v2946, %v2467
    %v2948 = vadd.f32 %v2947, %v2471
    %v2949 = vadd.f32 %v2948, %v2475
    %v2950 = vadd.f32 %v2949, %v2479
    %v2951 = vadd.f32 %v2950, %v2483
    %v2952 = vadd.f32 %v2951, %v2487
    %v2953 = vadd.f32 %v2952, %v2491
    %v2954 = vadd.f32 %v2953, %v2495
    %v2955 = vadd.f32 %v2954, %v2499
    %v2956 = vadd.f32 %v2955, %v2503
    %v2957 = vadd.f32 %v2956, %v2507
    %v2958 = vadd.f32 %v2957, %v2511
    %v2959 = vadd.f32 %v2958, %v2515
    %v2960 = vadd.f32 %v2959, %v2519
    %v2961 = vadd.f32 %v2960, %v2523
    %v2962 = vadd.f32 %v2961, %v2527
    %v2963 = vadd.f32 %v2962, %v2531
    %v2964 = vadd.f32 %v2963, %v2535
    %v2965 = vadd.f32 %v2964, %v2539
    %v2966 = vadd.f32 %v2965, %v2543
    %v2967 = vadd.f32 %v2966, %v2547
    %v2968 = vadd.f32 %v2967, %v2551
    %v2969 = vrot.slane %v2968, 4
    %v2970 = vadd.f32 %v2968, %v2969
    %v2971 = vrot.slane %v2970, 2
    %v2972 = vadd.f32 %v2970, %v2971
    %v2973 = vrot.slane %v2972, 1
    %v2974 = vadd.f32 %v2972, %v2973
    %v2975 = vadd.f32 %v2429, %v2433
    %v2976 = vadd.f32 %v2975, %v2437
    %v2977 = vadd.f32 %v2976, %v2441
    %v2978 = vadd.f32 %v2977, %v2445
    %v2979 = vadd.f32 %v2978, %v2449
    %v2980 = vadd.f32 %v2979, %v2453
    %v2981 = vadd.f32 %v2980, %v2457
    %v2982 = vadd.f32 %v2981, %v2461
    %v2983 = vadd.f32 %v2982, %v2465
    %v2984 = vadd.f32 %v2983, %v2469
    %v2985 = vadd.f32 %v2984, %v2473
    %v2986 = vadd.f32 %v2985, %v2477
    %v2987 = vadd.f32 %v2986, %v2481
    %v2988 = vadd.f32 %v2987, %v2485
    %v2989 = vadd.f32 %v2988, %v2489
    %v2990 = vadd.f32 %v2989, %v2493
    %v2991 = vadd.f32 %v2990, %v2497
    %v2992 = vadd.f32 %v2991, %v2501
    %v2993 = vadd.f32 %v2992, %v2505
    %v2994 = vadd.f32 %v2993, %v2509
    %v2995 = vadd.f32 %v2994, %v2513
    %v2996 = vadd.f32 %v2995, %v2517
    %v2997 = vadd.f32 %v2996, %v2521
    %v2998 = vadd.f32 %v2997, %v2525
    %v2999 = vadd.f32 %v2998, %v2529
    %v3000 = vadd.f32 %v2999, %v2533
    %v3001 = vadd.f32 %v3000, %v2537
    %v3002 = vadd.f32 %v3001, %v2541
    %v3003 = vadd.f32 %v3002, %v2545
    %v3004 = vadd.f32 %v3003, %v2549
    %v3005 = vadd.f32 %v3004, %v2553
    %v3006 = vrot.slane %v3005, 4
    %v3007 = vadd.f32 %v3005, %v3006
    %v3008 = vrot.slane %v3007, 2
    %v3009 = vadd.f32 %v3007, %v3008
    %v3010 = vrot.slane %v3009, 1
    %v3011 = vadd.f32 %v3009, %v3010
    %v3012 = vadd.f32 %v2555, %v2559
    %v3013 = vadd.f32 %v3012, %v2563
    %v3014 = vadd.f32 %v3013, %v2567
    %v3015 = vadd.f32 %v3014, %v2571
    %v3016 = vadd.f32 %v3015, %v2575
    %v3017 = vadd.f32 %v3016, %v2579
    %v3018 = vadd.f32 %v3017, %v2583
    %v3019 = vadd.f32 %v3018, %v2587
    %v3020 = vadd.f32 %v3019, %v2591
    %v3021 = vadd.f32 %v3020, %v2595
    %v3022 = vadd.f32 %v3021, %v2599
    %v3023 = vadd.f32 %v3022, %v2603
    %v3024 = vadd.f32 %v3023, %v2607
    %v3025 = vadd.f32 %v3024, %v2611
    %v3026 = vadd.f32 %v3025, %v2615
    %v3027 = vadd.f32 %v3026, %v2619
    %v3028 = vadd.f32 %v3027, %v2623
    %v3029 = vadd.f32 %v3028, %v2627
    %v3030 = vadd.f32 %v3029, %v2631
    %v3031 = vadd.f32 %v3030, %v2635
    %v3032 = vadd.f32 %v3031, %v2639
    %v3033 = vadd.f32 %v3032, %v2643
    %v3034 = vadd.f32 %v3033, %v2647
    %v3035 = vadd.f32 %v3034, %v2651
    %v3036 = vadd.f32 %v3035, %v2655
    %v3037 = vadd.f32 %v3036, %v2659
    %v3038 = vadd.f32 %v3037, %v2663
    %v3039 = vadd.f32 %v3038, %v2667
    %v3040 = vadd.f32 %v3039, %v2671
    %v3041 = vadd.f32 %v3040, %v2675
    %v3042 = vadd.f32 %v3041, %v2679
    %v3043 = vrot.slane %v3042, 4
    %v3044 = vadd.f32 %v3042, %v3043
    %v3045 = vrot.slane %v3044, 2
    %v3046 = vadd.f32 %v3044, %v3045
    %v3047 = vrot.slane %v3046, 1
    %v3048 = vadd.f32 %v3046, %v3047
    %v3049 = vadd.f32 %v2557, %v2561
    %v3050 = vadd.f32 %v3049, %v2565
    %v3051 = vadd.f32 %v3050, %v2569
    %v3052 = vadd.f32 %v3051, %v2573
    %v3053 = vadd.f32 %v3052, %v2577
    %v3054 = vadd.f32 %v3053, %v2581
    %v3055 = vadd.f32 %v3054, %v2585
    %v3056 = vadd.f32 %v3055, %v2589
    %v3057 = vadd.f32 %v3056, %v2593
    %v3058 = vadd.f32 %v3057, %v2597
    %v3059 = vadd.f32 %v3058, %v2601
    %v3060 = vadd.f32 %v3059, %v2605
    %v3061 = vadd.f32 %v3060, %v2609
    %v3062 = vadd.f32 %v3061, %v2613
    %v3063 = vadd.f32 %v3062, %v2617
    %v3064 = vadd.f32 %v3063, %v2621
    %v3065 = vadd.f32 %v3064, %v2625
    %v3066 = vadd.f32 %v3065, %v2629
    %v3067 = vadd.f32 %v3066, %v2633
    %v3068 = vadd.f32 %v3067, %v2637
    %v3069 = vadd.f32 %v3068, %v2641
    %v3070 = vadd.f32 %v3069, %v2645
    %v3071 = vadd.f32 %v3070, %v2649
    %v3072 = vadd.f32 %v3071, %v2653
    %v3073 = vadd.f32 %v3072, %v2657
    %v3074 = vadd.f32 %v3073, %v2661
    %v3075 = vadd.f32 %v3074, %v2665
    %v3076 = vadd.f32 %v3075, %v2669
    %v3077 = vadd.f32 %v3076, %v2673
    %v3078 = vadd.f32 %v3077, %v2677
    %v3079 = vadd.f32 %v3078, %v2681
    %v3080 = vrot.slane %v3079, 4
    %v3081 = vadd.f32 %v3079, %v3080
    %v3082 = vrot.slane %v3081, 2
    %v3083 = vadd.f32 %v3081, %v3082
    %v3084 = vrot.slane %v3083, 1
    %v3085 = vadd.f32 %v3083, %v3084
    %v3086 = vadd.f32 %v2683, %v2687
    %v3087 = vadd.f32 %v3086, %v2691
    %v3088 = vadd.f32 %v3087, %v2695
    %v3089 = vadd.f32 %v3088, %v2699
    %v3090 = vadd.f32 %v3089, %v2703
    %v3091 = vadd.f32 %v3090, %v2707
    %v3092 = vadd.f32 %v3091, %v2711
    %v3093 = vadd.f32 %v3092, %v2715
    %v3094 = vadd.f32 %v3093, %v2719
    %v3095 = vadd.f32 %v3094, %v2723
    %v3096 = vadd.f32 %v3095, %v2727
    %v3097 = vadd.f32 %v3096, %v2731
    %v3098 = vadd.f32 %v3097, %v2735
    %v3099 = vadd.f32 %v3098, %v2739
    %v3100 = vadd.f32 %v3099, %v2743
    %v3101 = vadd.f32 %v3100, %v2747
    %v3102 = vadd.f32 %v3101, %v2751
    %v3103 = vadd.f32 %v3102, %v2755
    %v3104 = vadd.f32 %v3103, %v2759
    %v3105 = vadd.f32 %v3104, %v2763
    %v3106 = vadd.f32 %v3105, %v2767
    %v3107 = vadd.f32 %v3106, %v2771
    %v3108 = vadd.f32 %v3107, %v2775
    %v3109 = vadd.f32 %v3108, %v2779
    %v3110 = vadd.f32 %v3109, %v2783
    %v3111 = vadd.f32 %v3110, %v2787
    %v3112 = vadd.f32 %v3111, %v2791
    %v3113 = vadd.f32 %v3112, %v2795
    %v3114 = vadd.f32 %v3113, %v2799
    %v3115 = vadd.f32 %v3114, %v2803
    %v3116 = vadd.f32 %v3115, %v2807
    %v3117 = vrot.slane %v3116, 4
    %v3118 = vadd.f32 %v3116, %v3117
    %v3119 = vrot.slane %v3118, 2
    %v3120 = vadd.f32 %v3118, %v3119
    %v3121 = vrot.slane %v3120, 1
    %v3122 = vadd.f32 %v3120, %v3121
    %v3123 = vadd.f32 %v2685, %v2689
    %v3124 = vadd.f32 %v3123, %v2693
    %v3125 = vadd.f32 %v3124, %v2697
    %v3126 = vadd.f32 %v3125, %v2701
    %v3127 = vadd.f32 %v3126, %v2705
    %v3128 = vadd.f32 %v3127, %v2709
    %v3129 = vadd.f32 %v3128, %v2713
    %v3130 = vadd.f32 %v3129, %v2717
    %v3131 = vadd.f32 %v3130, %v2721
    %v3132 = vadd.f32 %v3131, %v2725
    %v3133 = vadd.f32 %v3132, %v2729
    %v3134 = vadd.f32 %v3133, %v2733
    %v3135 = vadd.f32 %v3134, %v2737
    %v3136 = vadd.f32 %v3135, %v2741
    %v3137 = vadd.f32 %v3136, %v2745
    %v3138 = vadd.f32 %v3137, %v2749
    %v3139 = vadd.f32 %v3138, %v2753
    %v3140 = vadd.f32 %v3139, %v2757
    %v3141 = vadd.f32 %v3140, %v2761
    %v3142 = vadd.f32 %v3141, %v2765
    %v3143 = vadd.f32 %v3142, %v2769
    %v3144 = vadd.f32 %v3143, %v2773
    %v3145 = vadd.f32 %v3144, %v2777
    %v3146 = vadd.f32 %v3145, %v2781
    %v3147 = vadd.f32 %v3146, %v2785
    %v3148 = vadd.f32 %v3147, %v2789
    %v3149 = vadd.f32 %v3148, %v2793
    %v3150 = vadd.f32 %v3149, %v2797
    %v3151 = vadd.f32 %v3150, %v2801
    %v3152 = vadd.f32 %v3151, %v2805
    %v3153 = vadd.f32 %v3152, %v2809
    %v3154 = vrot.slane %v3153, 4
    %v3155 = vadd.f32 %v3153, %v3154
    %v3156 = vrot.slane %v3155, 2
    %v3157 = vadd.f32 %v3155, %v3156
    %v3158 = vrot.slane %v3157, 1
    %v3159 = vadd.f32 %v3157, %v3158
    %v3160 = vadd.f32 %v2811, %v2815
    %v3161 = vadd.f32 %v3160, %v2819
    %v3162 = vadd.f32 %v3161, %v2823
    %v3163 = vadd.f32 %v3162, %v2827
    %v3164 = vadd.f32 %v3163, %v2831
    %v3165 = vadd.f32 %v3164, %v2835
    %v3166 = vadd.f32 %v3165, %v2839
    %v3167 = vadd.f32 %v3166, %v2843
    %v3168 = vadd.f32 %v3167, %v2847
    %v3169 = vadd.f32 %v3168, %v2851
    %v3170 = vadd.f32 %v3169, %v2855
    %v3171 = vadd.f32 %v3170, %v2859
    %v3172 = vadd.f32 %v3171, %v2863
    %v3173 = vadd.f32 %v3172, %v2867
    %v3174 = vadd.f32 %v3173, %v2871
    %v3175 = vadd.f32 %v3174, %v2875
    %v3176 = vadd.f32 %v3175, %v2879
    %v3177 = vadd.f32 %v3176, %v2883
    %v3178 = vadd.f32 %v3177, %v2887
    %v3179 = vadd.f32 %v3178, %v2891
    %v3180 = vadd.f32 %v3179, %v2895
    %v3181 = vadd.f32 %v3180, %v2899
    %v3182 = vadd.f32 %v3181, %v2903
    %v3183 = vadd.f32 %v3182, %v2907
    %v3184 = vadd.f32 %v3183, %v2911
    %v3185 = vadd.f32 %v3184, %v2915
    %v3186 = vadd.f32 %v3185, %v2919
    %v3187 = vadd.f32 %v3186, %v2923
    %v3188 = vadd.f32 %v3187, %v2927
    %v3189 = vadd.f32 %v3188, %v2931
    %v3190 = vadd.f32 %v3189, %v2935
    %v3191 = vrot.slane %v3190, 4
    %v3192 = vadd.f32 %v3190, %v3191
    %v3193 = vrot.slane %v3192, 2
    %v3194 = vadd.f32 %v3192, %v3193
    %v3195 = vrot.slane %v3194, 1
    %v3196 = vadd.f32 %v3194, %v3195
    %v3197 = vadd.f32 %v2813, %v2817
    %v3198 = vadd.f32 %v3197, %v2821
    %v3199 = vadd.f32 %v3198, %v2825
    %v3200 = vadd.f32 %v3199, %v2829
    %v3201 = vadd.f32 %v3200, %v2833
    %v3202 = vadd.f32 %v3201, %v2837
    %v3203 = vadd.f32 %v3202, %v2841
    %v3204 = vadd.f32 %v3203, %v2845
    %v3205 = vadd.f32 %v3204, %v2849
    %v3206 = vadd.f32 %v3205, %v2853
    %v3207 = vadd.f32 %v3206, %v2857
    %v3208 = vadd.f32 %v3207, %v2861
    %v3209 = vadd.f32 %v3208, %v2865
    %v3210 = vadd.f32 %v3209, %v2869
    %v3211 = vadd.f32 %v3210, %v2873
    %v3212 = vadd.f32 %v3211, %v2877
    %v3213 = vadd.f32 %v3212, %v2881
    %v3214 = vadd.f32 %v3213, %v2885
    %v3215 = vadd.f32 %v3214, %v2889
    %v3216 = vadd.f32 %v3215, %v2893
    %v3217 = vadd.f32 %v3216, %v2897
    %v3218 = vadd.f32 %v3217, %v2901
    %v3219 = vadd.f32 %v3218, %v2905
    %v3220 = vadd.f32 %v3219, %v2909
    %v3221 = vadd.f32 %v3220, %v2913
    %v3222 = vadd.f32 %v3221, %v2917
    %v3223 = vadd.f32 %v3222, %v2921
    %v3224 = vadd.f32 %v3223, %v2925
    %v3225 = vadd.f32 %v3224, %v2929
    %v3226 = vadd.f32 %v3225, %v2933
    %v3227 = vadd.f32 %v3226, %v2937
    %v3228 = vrot.slane %v3227, 4
    %v3229 = vadd.f32 %v3227, %v3228
    %v3230 = vrot.slane %v3229, 2
    %v3231 = vadd.f32 %v3229, %v3230
    %v3232 = vrot.slane %v3231, 1
    %v3233 = vadd.f32 %v3231, %v3232
    %v3234 = vpack.c.bf16 %v485, %v479
    %v3235 = vpack.c.bf16 %v487, %v481
    %v3236 = vpack.c.bf16 %v497, %v491
    %v3237 = vpack.c.bf16 %v499, %v493
    %v3238 = vpack.c.bf16 %v509, %v503
    %v3239 = vpack.c.bf16 %v511, %v505
    %v3240 = vpack.c.bf16 %v521, %v515
    %v3241 = vpack.c.bf16 %v523, %v517
    %v3242 = vpack.c.bf16 %v533, %v527
    %v3243 = vpack.c.bf16 %v535, %v529
    %v3244 = vpack.c.bf16 %v545, %v539
    %v3245 = vpack.c.bf16 %v547, %v541
    %v3246 = vpack.c.bf16 %v557, %v551
    %v3247 = vpack.c.bf16 %v559, %v553
    %v3248 = vpack.c.bf16 %v569, %v563
    %v3249 = vpack.c.bf16 %v571, %v565
    %v3250 = vpack.c.bf16 %v2431, %v2427
    %v3251 = vpack.c.bf16 %v2433, %v2429
    %v3252 = vpack.c.bf16 %v2439, %v2435
    %v3253 = vpack.c.bf16 %v2441, %v2437
    %v3254 = vpack.c.bf16 %v2447, %v2443
    %v3255 = vpack.c.bf16 %v2449, %v2445
    %v3256 = vpack.c.bf16 %v2455, %v2451
    %v3257 = vpack.c.bf16 %v2457, %v2453
    %v3258 = vpack.c.bf16 %v2463, %v2459
    %v3259 = vpack.c.bf16 %v2465, %v2461
    %v3260 = vpack.c.bf16 %v2471, %v2467
    %v3261 = vpack.c.bf16 %v2473, %v2469
    %v3262 = vpack.c.bf16 %v2479, %v2475
    %v3263 = vpack.c.bf16 %v2481, %v2477
    %v3264 = vpack.c.bf16 %v2487, %v2483
    %v3265 = vpack.c.bf16 %v2489, %v2485
    %v3266 = vpack.c.bf16 %v2495, %v2491
    %v3267 = vpack.c.bf16 %v2497, %v2493
    %v3268 = vpack.c.bf16 %v2503, %v2499
    %v3269 = vpack.c.bf16 %v2505, %v2501
    %v3270 = vpack.c.bf16 %v2511, %v2507
    %v3271 = vpack.c.bf16 %v2513, %v2509
    %v3272 = vpack.c.bf16 %v2519, %v2515
    %v3273 = vpack.c.bf16 %v2521, %v2517
    %v3274 = vpack.c.bf16 %v2527, %v2523
    %v3275 = vpack.c.bf16 %v2529, %v2525
    %v3276 = vpack.c.bf16 %v2535, %v2531
    %v3277 = vpack.c.bf16 %v2537, %v2533
    %v3278 = vpack.c.bf16 %v2543, %v2539
    %v3279 = vpack.c.bf16 %v2545, %v2541
    %v3280 = vpack.c.bf16 %v2551, %v2547
    %v3281 = vpack.c.bf16 %v2553, %v2549
    %v3282 = vpack.c.bf16 %v2559, %v2555
    %v3283 = vpack.c.bf16 %v2561, %v2557
    %v3284 = vpack.c.bf16 %v2567, %v2563
    %v3285 = vpack.c.bf16 %v2569, %v2565
    %v3286 = vpack.c.bf16 %v2575, %v2571
    %v3287 = vpack.c.bf16 %v2577, %v2573
    %v3288 = vpack.c.bf16 %v2583, %v2579
    %v3289 = vpack.c.bf16 %v2585, %v2581
    %v3290 = vpack.c.bf16 %v2591, %v2587
    %v3291 = vpack.c.bf16 %v2593, %v2589
    %v3292 = vpack.c.bf16 %v2599, %v2595
    %v3293 = vpack.c.bf16 %v2601, %v2597
    %v3294 = vpack.c.bf16 %v2607, %v2603
    %v3295 = vpack.c.bf16 %v2609, %v2605
    %v3296 = vpack.c.bf16 %v2615, %v2611
    %v3297 = vpack.c.bf16 %v2617, %v2613
    %v3298 = vpack.c.bf16 %v2623, %v2619
    %v3299 = vpack.c.bf16 %v2625, %v2621
    %v3300 = vpack.c.bf16 %v2631, %v2627
    %v3301 = vpack.c.bf16 %v2633, %v2629
    %v3302 = vpack.c.bf16 %v2639, %v2635
    %v3303 = vpack.c.bf16 %v2641, %v2637
    %v3304 = vpack.c.bf16 %v2647, %v2643
    %v3305 = vpack.c.bf16 %v2649, %v2645
    %v3306 = vpack.c.bf16 %v2655, %v2651
    %v3307 = vpack.c.bf16 %v2657, %v2653
    %v3308 = vpack.c.bf16 %v2663, %v2659
    %v3309 = vpack.c.bf16 %v2665, %v2661
    %v3310 = vpack.c.bf16 %v2671, %v2667
    %v3311 = vpack.c.bf16 %v2673, %v2669
    %v3312 = vpack.c.bf16 %v2679, %v2675
    %v3313 = vpack.c.bf16 %v2681, %v2677
    %v3314 = vpack.c.bf16 %v2687, %v2683
    %v3315 = vpack.c.bf16 %v2689, %v2685
    %v3316 = vpack.c.bf16 %v2695, %v2691
    %v3317 = vpack.c.bf16 %v2697, %v2693
    %v3318 = vpack.c.bf16 %v2703, %v2699
    %v3319 = vpack.c.bf16 %v2705, %v2701
    %v3320 = vpack.c.bf16 %v2711, %v2707
    %v3321 = vpack.c.bf16 %v2713, %v2709
    %v3322 = vpack.c.bf16 %v2719, %v2715
    %v3323 = vpack.c.bf16 %v2721, %v2717
    %v3324 = vpack.c.bf16 %v2727, %v2723
    %v3325 = vpack.c.bf16 %v2729, %v2725
    %v3326 = vpack.c.bf16 %v2735, %v2731
    %v3327 = vpack.c.bf16 %v2737, %v2733
    %v3328 = vpack.c.bf16 %v2743, %v2739
    %v3329 = vpack.c.bf16 %v2745, %v2741
    %v3330 = vpack.c.bf16 %v2751, %v2747
    %v3331 = vpack.c.bf16 %v2753, %v2749
    %v3332 = vpack.c.bf16 %v2759, %v2755
    %v3333 = vpack.c.bf16 %v2761, %v2757
    %v3334 = vpack.c.bf16 %v2767, %v2763
    %v3335 = vpack.c.bf16 %v2769, %v2765
    %v3336 = vpack.c.bf16 %v2775, %v2771
    %v3337 = vpack.c.bf16 %v2777, %v2773
    %v3338 = vpack.c.bf16 %v2783, %v2779
    %v3339 = vpack.c.bf16 %v2785, %v2781
    %v3340 = vpack.c.bf16 %v2791, %v2787
    %v3341 = vpack.c.bf16 %v2793, %v2789
    %v3342 = vpack.c.bf16 %v2799, %v2795
    %v3343 = vpack.c.bf16 %v2801, %v2797
    %v3344 = vpack.c.bf16 %v2807, %v2803
    %v3345 = vpack.c.bf16 %v2809, %v2805
    %v3346 = vpack.c.bf16 %v2815, %v2811
    %v3347 = vpack.c.bf16 %v2817, %v2813
    %v3348 = vpack.c.bf16 %v2823, %v2819
    %v3349 = vpack.c.bf16 %v2825, %v2821
    %v3350 = vpack.c.bf16 %v2831, %v2827
    %v3351 = vpack.c.bf16 %v2833, %v2829
    %v3352 = vpack.c.bf16 %v2839, %v2835
    %v3353 = vpack.c.bf16 %v2841, %v2837
    %v3354 = vpack.c.bf16 %v2847, %v2843
    %v3355 = vpack.c.bf16 %v2849, %v2845
    %v3356 = vpack.c.bf16 %v2855, %v2851
    %v3357 = vpack.c.bf16 %v2857, %v2853
    %v3358 = vpack.c.bf16 %v2863, %v2859
    %v3359 = vpack.c.bf16 %v2865, %v2861
    %v3360 = vpack.c.bf16 %v2871, %v2867
    %v3361 = vpack.c.bf16 %v2873, %v2869
    %v3362 = vpack.c.bf16 %v2879, %v2875
    %v3363 = vpack.c.bf16 %v2881, %v2877
    %v3364 = vpack.c.bf16 %v2887, %v2883
    %v3365 = vpack.c.bf16 %v2889, %v2885
    %v3366 = vpack.c.bf16 %v2895, %v2891
    %v3367 = vpack.c.bf16 %v2897, %v2893
    %v3368 = vpack.c.bf16 %v2903, %v2899
    %v3369 = vpack.c.bf16 %v2905, %v2901
    %v3370 = vpack.c.bf16 %v2911, %v2907
    %v3371 = vpack.c.bf16 %v2913, %v2909
    %v3372 = vpack.c.bf16 %v2919, %v2915
    %v3373 = vpack.c.bf16 %v2921, %v2917
    %v3374 = vpack.c.bf16 %v2927, %v2923
    %v3375 = vpack.c.bf16 %v2929, %v2925
    %v3376 = vpack.c.bf16 %v2935, %v2931
    %v3377 = vpack.c.bf16 %v2937, %v2933
    %3378 = vmatprep.subr.bf16.mxu0 %v3251
    %3379 = vmatpush1.bf16.msra.mxu0 %v3250
    %3380 = vmatprep.subr.bf16.mxu0 %v3253
    %3381 = vmatpush1.bf16.msra.mxu0 %v3252
    %3382 = vmatprep.subr.bf16.mxu0 %v3255
    %3383 = vmatpush1.bf16.msra.mxu0 %v3254
    %3384 = vmatprep.subr.bf16.mxu0 %v3257
    %3385 = vmatpush1.bf16.msra.mxu0 %v3256
    %3386 = vmatprep.subr.bf16.mxu0 %v3259
    %3387 = vmatpush1.bf16.msra.mxu0 %v3258
    %3388 = vmatprep.subr.bf16.mxu0 %v3261
    %3389 = vmatpush1.bf16.msra.mxu0 %v3260
    %3390 = vmatprep.subr.bf16.mxu0 %v3263
    %3391 = vmatpush1.bf16.msra.mxu0 %v3262
    %3392 = vmatprep.subr.bf16.mxu0 %v3265
    %3393 = vmatpush1.bf16.msra.mxu0 %v3264
    %3394 = vmatprep.subr.bf16.mxu0 %v3267
    %3395 = vmatpush1.bf16.msra.mxu0 %v3266
    %3396 = vmatprep.subr.bf16.mxu0 %v3269
    %3397 = vmatpush1.bf16.msra.mxu0 %v3268
    %3398 = vmatprep.subr.bf16.mxu0 %v3271
    %3399 = vmatpush1.bf16.msra.mxu0 %v3270
    %3400 = vmatprep.subr.bf16.mxu0 %v3273
    %3401 = vmatpush1.bf16.msra.mxu0 %v3272
    %3402 = vmatprep.subr.bf16.mxu0 %v3275
    %3403 = vmatpush1.bf16.msra.mxu0 %v3274
    %3404 = vmatprep.subr.bf16.mxu0 %v3277
    %3405 = vmatpush1.bf16.msra.mxu0 %v3276
    %3406 = vmatprep.subr.bf16.mxu0 %v3279
    %3407 = vmatpush1.bf16.msra.mxu0 %v3278
    %3408 = vmatprep.subr.bf16.mxu0 %v3281
    %3409 = vmatpush1.bf16.msra.mxu0 %v3280
    %3410 = vmatprep.mubr.bf16.mxu0 %v3235
    %3411 = vmatmul.mubr.bf16.gmra.mrb[0].mxu0 %v3234
    %v3412 = vpop.f32.mrb[0].mxu0
    %v3413 = vadd.f32 0.0, %v3412
    %v3414 = vpop.f32.mrb[0].mxu0
    %v3415 = vadd.f32 0.0, %v3414
    %v3416 = vpop.f32.mrb[0].mxu0
    %v3417 = vadd.f32 0.0, %v3416
    %v3418 = vpop.f32.mrb[0].mxu0
    %v3419 = vadd.f32 0.0, %v3418
    %3420 = vmatprep.mubr.bf16.mxu0 %v3237
    %3421 = vmatmul.mubr.bf16.gmra.mrb[0].mxu0 %v3236
    %v3422 = vpop.f32.mrb[0].mxu0
    %v3423 = vadd.f32 0.0, %v3422
    %v3424 = vpop.f32.mrb[0].mxu0
    %v3425 = vadd.f32 0.0, %v3424
    %v3426 = vpop.f32.mrb[0].mxu0
    %v3427 = vadd.f32 0.0, %v3426
    %v3428 = vpop.f32.mrb[0].mxu0
    %v3429 = vadd.f32 0.0, %v3428
    %3430 = vdwg.mxu0
    %3431 = vmatprep.subr.bf16.mxu0 %v3283
    %3432 = vmatpush1.bf16.msra.mxu0 %v3282
    %3433 = vmatprep.subr.bf16.mxu0 %v3285
    %3434 = vmatpush1.bf16.msra.mxu0 %v3284
    %3435 = vmatprep.subr.bf16.mxu0 %v3287
    %3436 = vmatpush1.bf16.msra.mxu0 %v3286
    %3437 = vmatprep.subr.bf16.mxu0 %v3289
    %3438 = vmatpush1.bf16.msra.mxu0 %v3288
    %3439 = vmatprep.subr.bf16.mxu0 %v3291
    %3440 = vmatpush1.bf16.msra.mxu0 %v3290
    %3441 = vmatprep.subr.bf16.mxu0 %v3293
    %3442 = vmatpush1.bf16.msra.mxu0 %v3292
    %3443 = vmatprep.subr.bf16.mxu0 %v3295
    %3444 = vmatpush1.bf16.msra.mxu0 %v3294
    %3445 = vmatprep.subr.bf16.mxu0 %v3297
    %3446 = vmatpush1.bf16.msra.mxu0 %v3296
    %3447 = vmatprep.subr.bf16.mxu0 %v3299
    %3448 = vmatpush1.bf16.msra.mxu0 %v3298
    %3449 = vmatprep.subr.bf16.mxu0 %v3301
    %3450 = vmatpush1.bf16.msra.mxu0 %v3300
    %3451 = vmatprep.subr.bf16.mxu0 %v3303
    %3452 = vmatpush1.bf16.msra.mxu0 %v3302
    %3453 = vmatprep.subr.bf16.mxu0 %v3305
    %3454 = vmatpush1.bf16.msra.mxu0 %v3304
    %3455 = vmatprep.subr.bf16.mxu0 %v3307
    %3456 = vmatpush1.bf16.msra.mxu0 %v3306
    %3457 = vmatprep.subr.bf16.mxu0 %v3309
    %3458 = vmatpush1.bf16.msra.mxu0 %v3308
    %3459 = vmatprep.subr.bf16.mxu0 %v3311
    %3460 = vmatpush1.bf16.msra.mxu0 %v3310
    %3461 = vmatprep.subr.bf16.mxu0 %v3313
    %3462 = vmatpush1.bf16.msra.mxu0 %v3312
    %3463 = vmatprep.mubr.bf16.mxu0 %v3239
    %3464 = vmatmul.mubr.bf16.gmra.mrb[0].mxu0 %v3238
    %v3465 = vpop.f32.mrb[0].mxu0
    %v3466 = vadd.f32 0.0, %v3465
    %v3467 = vpop.f32.mrb[0].mxu0
    %v3468 = vadd.f32 0.0, %v3467
    %v3469 = vpop.f32.mrb[0].mxu0
    %v3470 = vadd.f32 0.0, %v3469
    %v3471 = vpop.f32.mrb[0].mxu0
    %v3472 = vadd.f32 0.0, %v3471
    %3473 = vmatprep.mubr.bf16.mxu0 %v3241
    %3474 = vmatmul.mubr.bf16.gmra.mrb[0].mxu0 %v3240
    %v3475 = vpop.f32.mrb[0].mxu0
    %v3476 = vadd.f32 0.0, %v3475
    %v3477 = vpop.f32.mrb[0].mxu0
    %v3478 = vadd.f32 0.0, %v3477
    %v3479 = vpop.f32.mrb[0].mxu0
    %v3480 = vadd.f32 0.0, %v3479
    %v3481 = vpop.f32.mrb[0].mxu0
    %v3482 = vadd.f32 0.0, %v3481
    %3483 = vdwg.mxu0
    %3484 = vmatprep.subr.bf16.mxu0 %v3315
    %3485 = vmatpush1.bf16.msra.mxu0 %v3314
    %3486 = vmatprep.subr.bf16.mxu0 %v3317
    %3487 = vmatpush1.bf16.msra.mxu0 %v3316
    %3488 = vmatprep.subr.bf16.mxu0 %v3319
    %3489 = vmatpush1.bf16.msra.mxu0 %v3318
    %3490 = vmatprep.subr.bf16.mxu0 %v3321
    %3491 = vmatpush1.bf16.msra.mxu0 %v3320
    %3492 = vmatprep.subr.bf16.mxu0 %v3323
    %3493 = vmatpush1.bf16.msra.mxu0 %v3322
    %3494 = vmatprep.subr.bf16.mxu0 %v3325
    %3495 = vmatpush1.bf16.msra.mxu0 %v3324
    %3496 = vmatprep.subr.bf16.mxu0 %v3327
    %3497 = vmatpush1.bf16.msra.mxu0 %v3326
    %3498 = vmatprep.subr.bf16.mxu0 %v3329
    %3499 = vmatpush1.bf16.msra.mxu0 %v3328
    %3500 = vmatprep.subr.bf16.mxu0 %v3331
    %3501 = vmatpush1.bf16.msra.mxu0 %v3330
    %3502 = vmatprep.subr.bf16.mxu0 %v3333
    %3503 = vmatpush1.bf16.msra.mxu0 %v3332
    %3504 = vmatprep.subr.bf16.mxu0 %v3335
    %3505 = vmatpush1.bf16.msra.mxu0 %v3334
    %3506 = vmatprep.subr.bf16.mxu0 %v3337
    %3507 = vmatpush1.bf16.msra.mxu0 %v3336
    %3508 = vmatprep.subr.bf16.mxu0 %v3339
    %3509 = vmatpush1.bf16.msra.mxu0 %v3338
    %3510 = vmatprep.subr.bf16.mxu0 %v3341
    %3511 = vmatpush1.bf16.msra.mxu0 %v3340
    %3512 = vmatprep.subr.bf16.mxu0 %v3343
    %3513 = vmatpush1.bf16.msra.mxu0 %v3342
    %3514 = vmatprep.subr.bf16.mxu0 %v3345
    %3515 = vmatpush1.bf16.msra.mxu0 %v3344
    %3516 = vmatprep.mubr.bf16.mxu0 %v3243
    %3517 = vmatmul.mubr.bf16.gmra.mrb[0].mxu0 %v3242
    %v3518 = vpop.f32.mrb[0].mxu0
    %v3519 = vadd.f32 0.0, %v3518
    %v3520 = vpop.f32.mrb[0].mxu0
    %v3521 = vadd.f32 0.0, %v3520
    %v3522 = vpop.f32.mrb[0].mxu0
    %v3523 = vadd.f32 0.0, %v3522
    %v3524 = vpop.f32.mrb[0].mxu0
    %v3525 = vadd.f32 0.0, %v3524
    %3526 = vmatprep.mubr.bf16.mxu0 %v3245
    %3527 = vmatmul.mubr.bf16.gmra.mrb[0].mxu0 %v3244
    %v3528 = vpop.f32.mrb[0].mxu0
    %v3529 = vadd.f32 0.0, %v3528
    %v3530 = vpop.f32.mrb[0].mxu0
    %v3531 = vadd.f32 0.0, %v3530
    %v3532 = vpop.f32.mrb[0].mxu0
    %v3533 = vadd.f32 0.0, %v3532
    %v3534 = vpop.f32.mrb[0].mxu0
    %v3535 = vadd.f32 0.0, %v3534
    %3536 = vdwg.mxu0
    %3537 = vmatprep.subr.bf16.mxu0 %v3347
    %3538 = vmatpush1.bf16.msra.mxu0 %v3346
    %3539 = vmatprep.subr.bf16.mxu0 %v3349
    %3540 = vmatpush1.bf16.msra.mxu0 %v3348
    %3541 = vmatprep.subr.bf16.mxu0 %v3351
    %3542 = vmatpush1.bf16.msra.mxu0 %v3350
    %3543 = vmatprep.subr.bf16.mxu0 %v3353
    %3544 = vmatpush1.bf16.msra.mxu0 %v3352
    %3545 = vmatprep.subr.bf16.mxu0 %v3355
    %3546 = vmatpush1.bf16.msra.mxu0 %v3354
    %3547 = vmatprep.subr.bf16.mxu0 %v3357
    %3548 = vmatpush1.bf16.msra.mxu0 %v3356
    %3549 = vmatprep.subr.bf16.mxu0 %v3359
    %3550 = vmatpush1.bf16.msra.mxu0 %v3358
    %3551 = vmatprep.subr.bf16.mxu0 %v3361
    %3552 = vmatpush1.bf16.msra.mxu0 %v3360
    %3553 = vmatprep.subr.bf16.mxu0 %v3363
    %3554 = vmatpush1.bf16.msra.mxu0 %v3362
    %3555 = vmatprep.subr.bf16.mxu0 %v3365
    %3556 = vmatpush1.bf16.msra.mxu0 %v3364
    %3557 = vmatprep.subr.bf16.mxu0 %v3367
    %3558 = vmatpush1.bf16.msra.mxu0 %v3366
    %3559 = vmatprep.subr.bf16.mxu0 %v3369
    %3560 = vmatpush1.bf16.msra.mxu0 %v3368
    %3561 = vmatprep.subr.bf16.mxu0 %v3371
    %3562 = vmatpush1.bf16.msra.mxu0 %v3370
    %3563 = vmatprep.subr.bf16.mxu0 %v3373
    %3564 = vmatpush1.bf16.msra.mxu0 %v3372
    %3565 = vmatprep.subr.bf16.mxu0 %v3375
    %3566 = vmatpush1.bf16.msra.mxu0 %v3374
    %3567 = vmatprep.subr.bf16.mxu0 %v3377
    %3568 = vmatpush1.bf16.msra.mxu0 %v3376
    %3569 = vmatprep.mubr.bf16.mxu0 %v3247
    %3570 = vmatmul.mubr.bf16.gmra.mrb[0].mxu0 %v3246
    %v3571 = vpop.f32.mrb[0].mxu0
    %v3572 = vadd.f32 0.0, %v3571
    %v3573 = vpop.f32.mrb[0].mxu0
    %v3574 = vadd.f32 0.0, %v3573
    %v3575 = vpop.f32.mrb[0].mxu0
    %v3576 = vadd.f32 0.0, %v3575
    %v3577 = vpop.f32.mrb[0].mxu0
    %v3578 = vadd.f32 0.0, %v3577
    %3579 = vmatprep.mubr.bf16.mxu0 %v3249
    %3580 = vmatmul.mubr.bf16.gmra.mrb[0].mxu0 %v3248
    %v3581 = vpop.f32.mrb[0].mxu0
    %v3582 = vadd.f32 0.0, %v3581
    %v3583 = vpop.f32.mrb[0].mxu0
    %v3584 = vadd.f32 0.0, %v3583
    %v3585 = vpop.f32.mrb[0].mxu0
    %v3586 = vadd.f32 0.0, %v3585
    %v3587 = vpop.f32.mrb[0].mxu0
    %v3588 = vadd.f32 0.0, %v3587
    %3589 = vdwg.mxu0
    %v3590 = vrcp.pop %v2974
    %v3591 = vrcp.pop %v3011
    %v3592 = vrcp.pop %v3048
    %v3593 = vrcp.pop %v3085
    %v3594 = vrcp.pop %v3122
    %v3595 = vrcp.pop %v3159
    %v3596 = vrcp.pop %v3196
    %v3597 = vrcp.pop %v3233
    %v3598 = vmul.f32 %v3413, %v3590
    %v3599 = vmul.f32 %v3415, %v3591
    %v3600 = vmul.f32 %v3417, %v3590
    %v3601 = vmul.f32 %v3419, %v3591
    %v3602 = vmul.f32 %v3423, %v3590
    %v3603 = vmul.f32 %v3425, %v3591
    %v3604 = vmul.f32 %v3427, %v3590
    %v3605 = vmul.f32 %v3429, %v3591
    %v3606 = vmul.f32 %v3466, %v3592
    %v3607 = vmul.f32 %v3468, %v3593
    %v3608 = vmul.f32 %v3470, %v3592
    %v3609 = vmul.f32 %v3472, %v3593
    %v3610 = vmul.f32 %v3476, %v3592
    %v3611 = vmul.f32 %v3478, %v3593
    %v3612 = vmul.f32 %v3480, %v3592
    %v3613 = vmul.f32 %v3482, %v3593
    %v3614 = vmul.f32 %v3519, %v3594
    %v3615 = vmul.f32 %v3521, %v3595
    %v3616 = vmul.f32 %v3523, %v3594
    %v3617 = vmul.f32 %v3525, %v3595
    %v3618 = vmul.f32 %v3529, %v3594
    %v3619 = vmul.f32 %v3531, %v3595
    %v3620 = vmul.f32 %v3533, %v3594
    %v3621 = vmul.f32 %v3535, %v3595
    %v3622 = vmul.f32 %v3572, %v3596
    %v3623 = vmul.f32 %v3574, %v3597
    %v3624 = vmul.f32 %v3576, %v3596
    %v3625 = vmul.f32 %v3578, %v3597
    %v3626 = vmul.f32 %v3582, %v3596
    %v3627 = vmul.f32 %v3584, %v3597
    %v3628 = vmul.f32 %v3586, %v3596
    %v3629 = vmul.f32 %v3588, %v3597
    %v3630 = vld [vmem:[%s2] sm:$0xf]
    %v3631 = vld [vmem:[%s3] sm:$0xf]
    %3633 = vset.pattern.permute.xlu0 0
    %3634 = vperm.xlu0 %3633, %v3631
    %v3635 = vpop.permute.xlu0 %3634
    %3637 = vmatprep.subr.mxu0 %v3599
    %3638 = vmatpush1.msra.mxu0 %v3598
    %3639 = vmatprep.subr.mxu0 %v3601
    %3640 = vmatpush1.msra.mxu0 %v3600
    %3641 = vmatprep.subr.mxu0 %v3603
    %3642 = vmatpush1.msra.mxu0 %v3602
    %3643 = vmatprep.subr.mxu0 %v3605
    %3644 = vmatpush1.msra.mxu0 %v3604
    %3645 = vmatprep.subr.mxu0 %v3607
    %3646 = vmatpush1.msra.mxu0 %v3606
    %3647 = vmatprep.subr.mxu0 %v3609
    %3648 = vmatpush1.msra.mxu0 %v3608
    %3649 = vmatprep.subr.mxu0 %v3611
    %3650 = vmatpush1.msra.mxu0 %v3610
    %3651 = vmatprep.subr.mxu0 %v3613
    %3652 = vmatpush1.msra.mxu0 %v3612
    %3653 = vmatprep.subr.mxu0 %v3615
    %3654 = vmatpush1.msra.mxu0 %v3614
    %3655 = vmatprep.subr.mxu0 %v3617
    %3656 = vmatpush1.msra.mxu0 %v3616
    %3657 = vmatprep.subr.mxu0 %v3619
    %3658 = vmatpush1.msra.mxu0 %v3618
    %3659 = vmatprep.subr.mxu0 %v3621
    %3660 = vmatpush1.msra.mxu0 %v3620
    %3661 = vmatprep.subr.mxu0 %v3623
    %3662 = vmatpush1.msra.mxu0 %v3622
    %3663 = vmatprep.subr.mxu0 %v3625
    %3664 = vmatpush1.msra.mxu0 %v3624
    %3665 = vmatprep.subr.mxu0 %v3627
    %3666 = vmatpush1.msra.mxu0 %v3626
    %3667 = vmatprep.subr.mxu0 %v3629
    %3668 = vmatpush1.msra.mxu0 %v3628
    %3669 = vmatprep.subr.mxu0 0.0
    %3670 = vmatpush1.msra.mxu0 0.0
    %3671 = vmatprep.subr.mxu0 0.0
    %3672 = vmatpush1.msra.mxu0 0.0
    %3673 = vmatprep.subr.mxu0 0.0
    %3674 = vmatpush1.msra.mxu0 0.0
    %3675 = vmatprep.subr.mxu0 0.0
    %3676 = vmatpush1.msra.mxu0 0.0
    %3677 = vmatprep.subr.mxu0 0.0
    %3678 = vmatpush1.msra.mxu0 0.0
    %3679 = vmatprep.subr.mxu0 0.0
    %3680 = vmatpush1.msra.mxu0 0.0
    %3681 = vmatprep.subr.mxu0 0.0
    %3682 = vmatpush1.msra.mxu0 0.0
    %3683 = vmatprep.subr.mxu0 0.0
    %3684 = vmatpush1.msra.mxu0 0.0
    %3685 = vmatprep.subr.mxu0 0.0
    %3686 = vmatpush1.msra.mxu0 0.0
    %3687 = vmatprep.subr.mxu0 0.0
    %3688 = vmatpush1.msra.mxu0 0.0
    %3689 = vmatprep.subr.mxu0 0.0
    %3690 = vmatpush1.msra.mxu0 0.0
    %3691 = vmatprep.subr.mxu0 0.0
    %3692 = vmatpush1.msra.mxu0 0.0
    %3693 = vmatprep.subr.mxu0 0.0
    %3694 = vmatpush1.msra.mxu0 0.0
    %3695 = vmatprep.subr.mxu0 0.0
    %3696 = vmatpush1.msra.mxu0 0.0
    %3697 = vmatprep.subr.mxu0 0.0
    %3698 = vmatpush1.msra.mxu0 0.0
    %3699 = vmatprep.subr.mxu0 0.0
    %3700 = vmatpush1.msra.mxu0 0.0
    %3701 = vmatprep.mubr.f32.mxu0 0.0
    %3702 = vmatmul.mubr.f32.gmra.mrb[0].mxu0 %v3630
    %v3703 = vpop.f32.mrb[0].mxu0
    %v3704 = vadd.f32 %v3635, %v3703
    %v3705 = vpop.f32.mrb[0].mxu0
    %v3706 = vadd.f32 %v3635, %v3705
    %3707 = vdwg.mxu0
    %v3710 = vcombine.low %v3704, %v3706
    %3712 = vst [vmem:[#allocation2] sm:$0xff] %v3710
    %s3713 = scalar_lea.vmem %s0, 8
    %v3714 = vld [vmem:[%s3713] sm:$0xff]
    %v3715 = vld [vmem:[%s1] sm:$0xff]
    %v3716 = vld [vmem:[%s1 + $0x8] sm:$0xff]
    %v3717 = vld [vmem:[%s1 + $0x10] sm:$0xff]
    %v3718 = vld [vmem:[%s1 + $0x18] sm:$0xff]
    %v3719 = vld [vmem:[%s1 + $0x20] sm:$0xff]
    %v3720 = vld [vmem:[%s1 + $0x28] sm:$0xff]
    %v3721 = vld [vmem:[%s1 + $0x30] sm:$0xff]
    %v3722 = vld [vmem:[%s1 + $0x38] sm:$0xff]
    %v3723 = vld [vmem:[%s1 + $0x40] sm:$0xff]
    %v3724 = vld [vmem:[%s1 + $0x48] sm:$0xff]
    %v3725 = vld [vmem:[%s1 + $0x50] sm:$0xff]
    %v3726 = vld [vmem:[%s1 + $0x58] sm:$0xff]
    %v3727 = vld [vmem:[%s1 + $0x60] sm:$0xff]
    %v3728 = vld [vmem:[%s1 + $0x68] sm:$0xff]
    %v3729 = vld [vmem:[%s1 + $0x70] sm:$0xff]
    %v3730 = vld [vmem:[%s1 + $0x78] sm:$0xff]
    %v3731 = vld [vmem:[%s1 + $0x80] sm:$0xff]
    %v3732 = vld [vmem:[%s1 + $0x88] sm:$0xff]
    %v3733 = vld [vmem:[%s1 + $0x90] sm:$0xff]
    %v3734 = vld [vmem:[%s1 + $0x98] sm:$0xff]
    %v3735 = vld [vmem:[%s1 + $0xa0] sm:$0xff]
    %v3736 = vld [vmem:[%s1 + $0xa8] sm:$0xff]
    %v3737 = vld [vmem:[%s1 + $0xb0] sm:$0xff]
    %v3738 = vld [vmem:[%s1 + $0xb8] sm:$0xff]
    %v3739 = vld [vmem:[%s1 + $0xc0] sm:$0xff]
    %v3740 = vld [vmem:[%s1 + $0xc8] sm:$0xff]
    %v3741 = vld [vmem:[%s1 + $0xd0] sm:$0xff]
    %v3742 = vld [vmem:[%s1 + $0xd8] sm:$0xff]
    %v3743 = vld [vmem:[%s1 + $0xe0] sm:$0xff]
    %v3744 = vld [vmem:[%s1 + $0xe8] sm:$0xff]
    %v3745 = vld [vmem:[%s1 + $0xf0] sm:$0xff]
    %v3746 = vld [vmem:[%s1 + $0xf8] sm:$0xff]
    %v3747 = vld [vmem:[%s1 + $0x100] sm:$0xff]
    %v3748 = vld [vmem:[%s1 + $0x108] sm:$0xff]
    %v3749 = vld [vmem:[%s1 + $0x110] sm:$0xff]
    %v3750 = vld [vmem:[%s1 + $0x118] sm:$0xff]
    %v3751 = vld [vmem:[%s1 + $0x120] sm:$0xff]
    %v3752 = vld [vmem:[%s1 + $0x128] sm:$0xff]
    %v3753 = vld [vmem:[%s1 + $0x130] sm:$0xff]
    %v3754 = vld [vmem:[%s1 + $0x138] sm:$0xff]
    %v3755 = vld [vmem:[%s1 + $0x140] sm:$0xff]
    %v3756 = vld [vmem:[%s1 + $0x148] sm:$0xff]
    %v3757 = vld [vmem:[%s1 + $0x150] sm:$0xff]
    %v3758 = vld [vmem:[%s1 + $0x158] sm:$0xff]
    %v3759 = vld [vmem:[%s1 + $0x160] sm:$0xff]
    %v3760 = vld [vmem:[%s1 + $0x168] sm:$0xff]
    %v3761 = vld [vmem:[%s1 + $0x170] sm:$0xff]
    %v3762 = vld [vmem:[%s1 + $0x178] sm:$0xff]
    %v3764 = vcombine.high %v3714, %v3714
    %v3766 = vsel %vm70, %v3715, 0
    %v3769 = vsel %vm70, %v3716, 0
    %v3772 = vsel %vm70, %v3717, 0
    %v3775 = vsel %vm70, %v3718, 0
    %v3778 = vsel %vm70, %v3719, 0
    %v3781 = vsel %vm70, %v3720, 0
    %v3784 = vsel %vm70, %v3721, 0
    %v3787 = vsel %vm70, %v3722, 0
    %v3790 = vsel %vm70, %v3723, 0
    %v3793 = vsel %vm70, %v3724, 0
    %v3796 = vsel %vm70, %v3725, 0
    %v3799 = vsel %vm70, %v3726, 0
    %v3802 = vsel %vm70, %v3727, 0
    %v3805 = vsel %vm70, %v3728, 0
    %v3808 = vsel %vm70, %v3729, 0
    %v3811 = vsel %vm70, %v3730, 0
    %v3814 = vsel %vm70, %v3731, 0
    %v3817 = vsel %vm70, %v3732, 0
    %v3820 = vsel %vm70, %v3733, 0
    %v3823 = vsel %vm70, %v3734, 0
    %v3826 = vsel %vm70, %v3735, 0
    %v3829 = vsel %vm70, %v3736, 0
    %v3832 = vsel %vm70, %v3737, 0
    %v3835 = vsel %vm70, %v3738, 0
    %v3838 = vsel %vm70, %v3739, 0
    %v3841 = vsel %vm70, %v3740, 0
    %v3844 = vsel %vm70, %v3741, 0
    %v3847 = vsel %vm70, %v3742, 0
    %v3850 = vsel %vm70, %v3743, 0
    %v3853 = vsel %vm70, %v3744, 0
    %v3856 = vsel %vm70, %v3745, 0
    %v3859 = vsel %vm70, %v3746, 0
    %v3862 = vsel %vm70, %v3747, 0
    %v3865 = vsel %vm70, %v3748, 0
    %v3868 = vsel %vm70, %v3749, 0
    %v3871 = vsel %vm70, %v3750, 0
    %v3874 = vsel %vm70, %v3751, 0
    %v3877 = vsel %vm70, %v3752, 0
    %v3880 = vsel %vm70, %v3753, 0
    %v3883 = vsel %vm70, %v3754, 0
    %v3886 = vsel %vm70, %v3755, 0
    %v3889 = vsel %vm70, %v3756, 0
    %v3892 = vsel %vm70, %v3757, 0
    %v3895 = vsel %vm70, %v3758, 0
    %v3898 = vsel %vm70, %v3759, 0
    %v3901 = vsel %vm70, %v3760, 0
    %v3904 = vsel %vm70, %v3761, 0
    %v3907 = vsel %vm70, %v3762, 0
    %v3909 = vsel %vm215, %v3714, 0
    %v3911 = vsel %vm215, %v3764, 0
    %3913 = vmatprep.subr.mxu0 %v3911
    %3914 = vmatpush1.msra.mxu0 %v3909
    %3915 = vmatprep.subr.mxu0 0.0
    %3916 = vmatpush1.msra.mxu0 0.0
    %3917 = vmatprep.subr.mxu0 0.0
    %3918 = vmatpush1.msra.mxu0 0.0
    %3919 = vmatprep.subr.mxu0 0.0
    %3920 = vmatpush1.msra.mxu0 0.0
    %3921 = vmatprep.subr.mxu0 0.0
    %3922 = vmatpush1.msra.mxu0 0.0
    %3923 = vmatprep.subr.mxu0 0.0
    %3924 = vmatpush1.msra.mxu0 0.0
    %3925 = vmatprep.subr.mxu0 0.0
    %3926 = vmatpush1.msra.mxu0 0.0
    %3927 = vmatprep.subr.mxu0 0.0
    %3928 = vmatpush1.msra.mxu0 0.0
    %3929 = vmatprep.subr.mxu0 0.0
    %3930 = vmatpush1.msra.mxu0 0.0
    %3931 = vmatprep.subr.mxu0 0.0
    %3932 = vmatpush1.msra.mxu0 0.0
    %3933 = vmatprep.subr.mxu0 0.0
    %3934 = vmatpush1.msra.mxu0 0.0
    %3935 = vmatprep.subr.mxu0 0.0
    %3936 = vmatpush1.msra.mxu0 0.0
    %3937 = vmatprep.subr.mxu0 0.0
    %3938 = vmatpush1.msra.mxu0 0.0
    %3939 = vmatprep.subr.mxu0 0.0
    %3940 = vmatpush1.msra.mxu0 0.0
    %3941 = vmatprep.subr.mxu0 0.0
    %3942 = vmatpush1.msra.mxu0 0.0
    %3943 = vmatprep.subr.mxu0 0.0
    %3944 = vmatpush1.msra.mxu0 0.0
    %3945 = vmatprep.subr.mxu0 0.0
    %3946 = vmatpush1.msra.mxu0 0.0
    %3947 = vmatprep.subr.mxu0 0.0
    %3948 = vmatpush1.msra.mxu0 0.0
    %3949 = vmatprep.subr.mxu0 0.0
    %3950 = vmatpush1.msra.mxu0 0.0
    %3951 = vmatprep.subr.mxu0 0.0
    %3952 = vmatpush1.msra.mxu0 0.0
    %3953 = vmatprep.subr.mxu0 0.0
    %3954 = vmatpush1.msra.mxu0 0.0
    %3955 = vmatprep.subr.mxu0 0.0
    %3956 = vmatpush1.msra.mxu0 0.0
    %3957 = vmatprep.subr.mxu0 0.0
    %3958 = vmatpush1.msra.mxu0 0.0
    %3959 = vmatprep.subr.mxu0 0.0
    %3960 = vmatpush1.msra.mxu0 0.0
    %3961 = vmatprep.subr.mxu0 0.0
    %3962 = vmatpush1.msra.mxu0 0.0
    %3963 = vmatprep.subr.mxu0 0.0
    %3964 = vmatpush1.msra.mxu0 0.0
    %3965 = vmatprep.subr.mxu0 0.0
    %3966 = vmatpush1.msra.mxu0 0.0
    %3967 = vmatprep.subr.mxu0 0.0
    %3968 = vmatpush1.msra.mxu0 0.0
    %3969 = vmatprep.subr.mxu0 0.0
    %3970 = vmatpush1.msra.mxu0 0.0
    %3971 = vmatprep.subr.mxu0 0.0
    %3972 = vmatpush1.msra.mxu0 0.0
    %3973 = vmatprep.subr.mxu0 0.0
    %3974 = vmatpush1.msra.mxu0 0.0
    %3975 = vmatprep.subr.mxu0 0.0
    %3976 = vmatpush1.msra.mxu0 0.0
    %3977 = vmatprep.mubr.f32.mxu0 0.0
    %3978 = vmatmul.mubr.f32.gmra.mrb[0].mxu0 %v3766
    %v3979 = vpop.f32.mrb[0].mxu0
    %v3980 = vadd.f32 0.0, %v3979
    %v3981 = vpop.f32.mrb[0].mxu0
    %v3982 = vadd.f32 0.0, %v3981
    %3983 = vmatprep.mubr.f32.mxu0 0.0
    %3984 = vmatmul.mubr.f32.gmra.mrb[0].mxu0 %v3769
    %v3985 = vpop.f32.mrb[0].mxu0
    %v3986 = vadd.f32 0.0, %v3985
    %v3987 = vpop.f32.mrb[0].mxu0
    %v3988 = vadd.f32 0.0, %v3987
    %3989 = vmatprep.mubr.f32.mxu0 0.0
    %3990 = vmatmul.mubr.f32.gmra.mrb[0].mxu0 %v3772
    %v3991 = vpop.f32.mrb[0].mxu0
    %v3992 = vadd.f32 0.0, %v3991
    %v3993 = vpop.f32.mrb[0].mxu0
    %v3994 = vadd.f32 0.0, %v3993
    %3995 = vmatprep.mubr.f32.mxu0 0.0
    %3996 = vmatmul.mubr.f32.gmra.mrb[0].mxu0 %v3775
    %v3997 = vpop.f32.mrb[0].mxu0
    %v3998 = vadd.f32 0.0, %v3997
    %v3999 = vpop.f32.mrb[0].mxu0
    %v4000 = vadd.f32 0.0, %v3999
    %4001 = vmatprep.mubr.f32.mxu0 0.0
    %4002 = vmatmul.mubr.f32.gmra.mrb[0].mxu0 %v3778
    %v4003 = vpop.f32.mrb[0].mxu0
    %v4004 = vadd.f32 0.0, %v4003
    %v4005 = vpop.f32.mrb[0].mxu0
    %v4006 = vadd.f32 0.0, %v4005
    %4007 = vmatprep.mubr.f32.mxu0 0.0
    %4008 = vmatmul.mubr.f32.gmra.mrb[0].mxu0 %v3781
    %v4009 = vpop.f32.mrb[0].mxu0
    %v4010 = vadd.f32 0.0, %v4009
    %v4011 = vpop.f32.mrb[0].mxu0
    %v4012 = vadd.f32 0.0, %v4011
    %4013 = vmatprep.mubr.f32.mxu0 0.0
    %4014 = vmatmul.mubr.f32.gmra.mrb[0].mxu0 %v3784
    %v4015 = vpop.f32.mrb[0].mxu0
    %v4016 = vadd.f32 0.0, %v4015
    %v4017 = vpop.f32.mrb[0].mxu0
    %v4018 = vadd.f32 0.0, %v4017
    %4019 = vmatprep.mubr.f32.mxu0 0.0
    %4020 = vmatmul.mubr.f32.gmra.mrb[0].mxu0 %v3787
    %v4021 = vpop.f32.mrb[0].mxu0
    %v4022 = vadd.f32 0.0, %v4021
    %v4023 = vpop.f32.mrb[0].mxu0
    %v4024 = vadd.f32 0.0, %v4023
    %4025 = vmatprep.mubr.f32.mxu0 0.0
    %4026 = vmatmul.mubr.f32.gmra.mrb[0].mxu0 %v3790
    %v4027 = vpop.f32.mrb[0].mxu0
    %v4028 = vadd.f32 0.0, %v4027
    %v4029 = vpop.f32.mrb[0].mxu0
    %v4030 = vadd.f32 0.0, %v4029
    %4031 = vmatprep.mubr.f32.mxu0 0.0
    %4032 = vmatmul.mubr.f32.gmra.mrb[0].mxu0 %v3793
    %v4033 = vpop.f32.mrb[0].mxu0
    %v4034 = vadd.f32 0.0, %v4033
    %v4035 = vpop.f32.mrb[0].mxu0
    %v4036 = vadd.f32 0.0, %v4035
    %4037 = vmatprep.mubr.f32.mxu0 0.0
    %4038 = vmatmul.mubr.f32.gmra.mrb[0].mxu0 %v3796
    %v4039 = vpop.f32.mrb[0].mxu0
    %v4040 = vadd.f32 0.0, %v4039
    %v4041 = vpop.f32.mrb[0].mxu0
    %v4042 = vadd.f32 0.0, %v4041
    %4043 = vmatprep.mubr.f32.mxu0 0.0
    %4044 = vmatmul.mubr.f32.gmra.mrb[0].mxu0 %v3799
    %v4045 = vpop.f32.mrb[0].mxu0
    %v4046 = vadd.f32 0.0, %v4045
    %v4047 = vpop.f32.mrb[0].mxu0
    %v4048 = vadd.f32 0.0, %v4047
    %4049 = vmatprep.mubr.f32.mxu0 0.0
    %4050 = vmatmul.mubr.f32.gmra.mrb[0].mxu0 %v3802
    %v4051 = vpop.f32.mrb[0].mxu0
    %v4052 = vadd.f32 0.0, %v4051
    %v4053 = vpop.f32.mrb[0].mxu0
    %v4054 = vadd.f32 0.0, %v4053
    %4055 = vmatprep.mubr.f32.mxu0 0.0
    %4056 = vmatmul.mubr.f32.gmra.mrb[0].mxu0 %v3805
    %v4057 = vpop.f32.mrb[0].mxu0
    %v4058 = vadd.f32 0.0, %v4057
    %v4059 = vpop.f32.mrb[0].mxu0
    %v4060 = vadd.f32 0.0, %v4059
    %4061 = vmatprep.mubr.f32.mxu0 0.0
    %4062 = vmatmul.mubr.f32.gmra.mrb[0].mxu0 %v3808
    %v4063 = vpop.f32.mrb[0].mxu0
    %v4064 = vadd.f32 0.0, %v4063
    %v4065 = vpop.f32.mrb[0].mxu0
    %v4066 = vadd.f32 0.0, %v4065
    %4067 = vmatprep.mubr.f32.mxu0 0.0
    %4068 = vmatmul.mubr.f32.gmra.mrb[0].mxu0 %v3811
    %v4069 = vpop.f32.mrb[0].mxu0
    %v4070 = vadd.f32 0.0, %v4069
    %v4071 = vpop.f32.mrb[0].mxu0
    %v4072 = vadd.f32 0.0, %v4071
    %4073 = vmatprep.mubr.f32.mxu0 0.0
    %4074 = vmatmul.mubr.f32.gmra.mrb[0].mxu0 %v3814
    %v4075 = vpop.f32.mrb[0].mxu0
    %v4076 = vadd.f32 0.0, %v4075
    %v4077 = vpop.f32.mrb[0].mxu0
    %v4078 = vadd.f32 0.0, %v4077
    %4079 = vmatprep.mubr.f32.mxu0 0.0
    %4080 = vmatmul.mubr.f32.gmra.mrb[0].mxu0 %v3817
    %v4081 = vpop.f32.mrb[0].mxu0
    %v4082 = vadd.f32 0.0, %v4081
    %v4083 = vpop.f32.mrb[0].mxu0
    %v4084 = vadd.f32 0.0, %v4083
    %4085 = vmatprep.mubr.f32.mxu0 0.0
    %4086 = vmatmul.mubr.f32.gmra.mrb[0].mxu0 %v3820
    %v4087 = vpop.f32.mrb[0].mxu0
    %v4088 = vadd.f32 0.0, %v4087
    %v4089 = vpop.f32.mrb[0].mxu0
    %v4090 = vadd.f32 0.0, %v4089
    %4091 = vmatprep.mubr.f32.mxu0 0.0
    %4092 = vmatmul.mubr.f32.gmra.mrb[0].mxu0 %v3823
    %v4093 = vpop.f32.mrb[0].mxu0
    %v4094 = vadd.f32 0.0, %v4093
    %v4095 = vpop.f32.mrb[0].mxu0
    %v4096 = vadd.f32 0.0, %v4095
    %4097 = vmatprep.mubr.f32.mxu0 0.0
    %4098 = vmatmul.mubr.f32.gmra.mrb[0].mxu0 %v3826
    %v4099 = vpop.f32.mrb[0].mxu0
    %v4100 = vadd.f32 0.0, %v4099
    %v4101 = vpop.f32.mrb[0].mxu0
    %v4102 = vadd.f32 0.0, %v4101
    %4103 = vmatprep.mubr.f32.mxu0 0.0
    %4104 = vmatmul.mubr.f32.gmra.mrb[0].mxu0 %v3829
    %v4105 = vpop.f32.mrb[0].mxu0
    %v4106 = vadd.f32 0.0, %v4105
    %v4107 = vpop.f32.mrb[0].mxu0
    %v4108 = vadd.f32 0.0, %v4107
    %4109 = vmatprep.mubr.f32.mxu0 0.0
    %4110 = vmatmul.mubr.f32.gmra.mrb[0].mxu0 %v3832
    %v4111 = vpop.f32.mrb[0].mxu0
    %v4112 = vadd.f32 0.0, %v4111
    %v4113 = vpop.f32.mrb[0].mxu0
    %v4114 = vadd.f32 0.0, %v4113
    %4115 = vmatprep.mubr.f32.mxu0 0.0
    %4116 = vmatmul.mubr.f32.gmra.mrb[0].mxu0 %v3835
    %v4117 = vpop.f32.mrb[0].mxu0
    %v4118 = vadd.f32 0.0, %v4117
    %v4119 = vpop.f32.mrb[0].mxu0
    %v4120 = vadd.f32 0.0, %v4119
    %4121 = vmatprep.mubr.f32.mxu0 0.0
    %4122 = vmatmul.mubr.f32.gmra.mrb[0].mxu0 %v3838
    %v4123 = vpop.f32.mrb[0].mxu0
    %v4124 = vadd.f32 0.0, %v4123
    %v4125 = vpop.f32.mrb[0].mxu0
    %v4126 = vadd.f32 0.0, %v4125
    %4127 = vmatprep.mubr.f32.mxu0 0.0
    %4128 = vmatmul.mubr.f32.gmra.mrb[0].mxu0 %v3841
    %v4129 = vpop.f32.mrb[0].mxu0
    %v4130 = vadd.f32 0.0, %v4129
    %v4131 = vpop.f32.mrb[0].mxu0
    %v4132 = vadd.f32 0.0, %v4131
    %4133 = vmatprep.mubr.f32.mxu0 0.0
    %4134 = vmatmul.mubr.f32.gmra.mrb[0].mxu0 %v3844
    %v4135 = vpop.f32.mrb[0].mxu0
    %v4136 = vadd.f32 0.0, %v4135
    %v4137 = vpop.f32.mrb[0].mxu0
    %v4138 = vadd.f32 0.0, %v4137
    %4139 = vmatprep.mubr.f32.mxu0 0.0
    %4140 = vmatmul.mubr.f32.gmra.mrb[0].mxu0 %v3847
    %v4141 = vpop.f32.mrb[0].mxu0
    %v4142 = vadd.f32 0.0, %v4141
    %v4143 = vpop.f32.mrb[0].mxu0
    %v4144 = vadd.f32 0.0, %v4143
    %4145 = vmatprep.mubr.f32.mxu0 0.0
    %4146 = vmatmul.mubr.f32.gmra.mrb[0].mxu0 %v3850
    %v4147 = vpop.f32.mrb[0].mxu0
    %v4148 = vadd.f32 0.0, %v4147
    %v4149 = vpop.f32.mrb[0].mxu0
    %v4150 = vadd.f32 0.0, %v4149
    %4151 = vmatprep.mubr.f32.mxu0 0.0
    %4152 = vmatmul.mubr.f32.gmra.mrb[0].mxu0 %v3853
    %v4153 = vpop.f32.mrb[0].mxu0
    %v4154 = vadd.f32 0.0, %v4153
    %v4155 = vpop.f32.mrb[0].mxu0
    %v4156 = vadd.f32 0.0, %v4155
    %4157 = vmatprep.mubr.f32.mxu0 0.0
    %4158 = vmatmul.mubr.f32.gmra.mrb[0].mxu0 %v3856
    %v4159 = vpop.f32.mrb[0].mxu0
    %v4160 = vadd.f32 0.0, %v4159
    %v4161 = vpop.f32.mrb[0].mxu0
    %v4162 = vadd.f32 0.0, %v4161
    %4163 = vmatprep.mubr.f32.mxu0 0.0
    %4164 = vmatmul.mubr.f32.gmra.mrb[0].mxu0 %v3859
    %v4165 = vpop.f32.mrb[0].mxu0
    %v4166 = vadd.f32 0.0, %v4165
    %v4167 = vpop.f32.mrb[0].mxu0
    %v4168 = vadd.f32 0.0, %v4167
    %4169 = vmatprep.mubr.f32.mxu0 0.0
    %4170 = vmatmul.mubr.f32.gmra.mrb[0].mxu0 %v3862
    %v4171 = vpop.f32.mrb[0].mxu0
    %v4172 = vadd.f32 0.0, %v4171
    %v4173 = vpop.f32.mrb[0].mxu0
    %v4174 = vadd.f32 0.0, %v4173
    %4175 = vmatprep.mubr.f32.mxu0 0.0
    %4176 = vmatmul.mubr.f32.gmra.mrb[0].mxu0 %v3865
    %v4177 = vpop.f32.mrb[0].mxu0
    %v4178 = vadd.f32 0.0, %v4177
    %v4179 = vpop.f32.mrb[0].mxu0
    %v4180 = vadd.f32 0.0, %v4179
    %4181 = vmatprep.mubr.f32.mxu0 0.0
    %4182 = vmatmul.mubr.f32.gmra.mrb[0].mxu0 %v3868
    %v4183 = vpop.f32.mrb[0].mxu0
    %v4184 = vadd.f32 0.0, %v4183
    %v4185 = vpop.f32.mrb[0].mxu0
    %v4186 = vadd.f32 0.0, %v4185
    %4187 = vmatprep.mubr.f32.mxu0 0.0
    %4188 = vmatmul.mubr.f32.gmra.mrb[0].mxu0 %v3871
    %v4189 = vpop.f32.mrb[0].mxu0
    %v4190 = vadd.f32 0.0, %v4189
    %v4191 = vpop.f32.mrb[0].mxu0
    %v4192 = vadd.f32 0.0, %v4191
    %4193 = vmatprep.mubr.f32.mxu0 0.0
    %4194 = vmatmul.mubr.f32.gmra.mrb[0].mxu0 %v3874
    %v4195 = vpop.f32.mrb[0].mxu0
    %v4196 = vadd.f32 0.0, %v4195
    %v4197 = vpop.f32.mrb[0].mxu0
    %v4198 = vadd.f32 0.0, %v4197
    %4199 = vmatprep.mubr.f32.mxu0 0.0
    %4200 = vmatmul.mubr.f32.gmra.mrb[0].mxu0 %v3877
    %v4201 = vpop.f32.mrb[0].mxu0
    %v4202 = vadd.f32 0.0, %v4201
    %v4203 = vpop.f32.mrb[0].mxu0
    %v4204 = vadd.f32 0.0, %v4203
    %4205 = vmatprep.mubr.f32.mxu0 0.0
    %4206 = vmatmul.mubr.f32.gmra.mrb[0].mxu0 %v3880
    %v4207 = vpop.f32.mrb[0].mxu0
    %v4208 = vadd.f32 0.0, %v4207
    %v4209 = vpop.f32.mrb[0].mxu0
    %v4210 = vadd.f32 0.0, %v4209
    %4211 = vmatprep.mubr.f32.mxu0 0.0
    %4212 = vmatmul.mubr.f32.gmra.mrb[0].mxu0 %v3883
    %v4213 = vpop.f32.mrb[0].mxu0
    %v4214 = vadd.f32 0.0, %v4213
    %v4215 = vpop.f32.mrb[0].mxu0
    %v4216 = vadd.f32 0.0, %v4215
    %4217 = vmatprep.mubr.f32.mxu0 0.0
    %4218 = vmatmul.mubr.f32.gmra.mrb[0].mxu0 %v3886
    %v4219 = vpop.f32.mrb[0].mxu0
    %v4220 = vadd.f32 0.0, %v4219
    %v4221 = vpop.f32.mrb[0].mxu0
    %v4222 = vadd.f32 0.0, %v4221
    %4223 = vmatprep.mubr.f32.mxu0 0.0
    %4224 = vmatmul.mubr.f32.gmra.mrb[0].mxu0 %v3889
    %v4225 = vpop.f32.mrb[0].mxu0
    %v4226 = vadd.f32 0.0, %v4225
    %v4227 = vpop.f32.mrb[0].mxu0
    %v4228 = vadd.f32 0.0, %v4227
    %4229 = vmatprep.mubr.f32.mxu0 0.0
    %4230 = vmatmul.mubr.f32.gmra.mrb[0].mxu0 %v3892
    %v4231 = vpop.f32.mrb[0].mxu0
    %v4232 = vadd.f32 0.0, %v4231
    %v4233 = vpop.f32.mrb[0].mxu0
    %v4234 = vadd.f32 0.0, %v4233
    %4235 = vmatprep.mubr.f32.mxu0 0.0
    %4236 = vmatmul.mubr.f32.gmra.mrb[0].mxu0 %v3895
    %v4237 = vpop.f32.mrb[0].mxu0
    %v4238 = vadd.f32 0.0, %v4237
    %v4239 = vpop.f32.mrb[0].mxu0
    %v4240 = vadd.f32 0.0, %v4239
    %4241 = vmatprep.mubr.f32.mxu0 0.0
    %4242 = vmatmul.mubr.f32.gmra.mrb[0].mxu0 %v3898
    %v4243 = vpop.f32.mrb[0].mxu0
    %v4244 = vadd.f32 0.0, %v4243
    %v4245 = vpop.f32.mrb[0].mxu0
    %v4246 = vadd.f32 0.0, %v4245
    %4247 = vmatprep.mubr.f32.mxu0 0.0
    %4248 = vmatmul.mubr.f32.gmra.mrb[0].mxu0 %v3901
    %v4249 = vpop.f32.mrb[0].mxu0
    %v4250 = vadd.f32 0.0, %v4249
    %v4251 = vpop.f32.mrb[0].mxu0
    %v4252 = vadd.f32 0.0, %v4251
    %4253 = vmatprep.mubr.f32.mxu0 0.0
    %4254 = vmatmul.mubr.f32.gmra.mrb[0].mxu0 %v3904
    %v4255 = vpop.f32.mrb[0].mxu0
    %v4256 = vadd.f32 0.0, %v4255
    %v4257 = vpop.f32.mrb[0].mxu0
    %v4258 = vadd.f32 0.0, %v4257
    %4259 = vmatprep.mubr.f32.mxu0 0.0
    %4260 = vmatmul.mubr.f32.gmra.mrb[0].mxu0 %v3907
    %v4261 = vpop.f32.mrb[0].mxu0
    %v4262 = vadd.f32 0.0, %v4261
    %v4263 = vpop.f32.mrb[0].mxu0
    %v4264 = vadd.f32 0.0, %v4263
    %4265 = vdwg.mxu0
    %4266 = vxpose.xlu0.b32.start [1/16] %v4076, 128
    %4267 = vxpose.xlu0.b32.cont [2/16] %v4082, 128
    %4268 = vxpose.xlu0.b32.cont [3/16] %v4088, 128
    %4269 = vxpose.xlu0.b32.cont [4/16] %v4094, 128
    %4270 = vxpose.xlu0.b32.cont [5/16] 0.0, 128
    %4271 = vxpose.xlu0.b32.cont [6/16] 0.0, 128
    %4272 = vxpose.xlu0.b32.cont [7/16] 0.0, 128
    %4273 = vxpose.xlu0.b32.cont [8/16] 0.0, 128
    %4274 = vxpose.xlu0.b32.cont [9/16] 0.0, 128
    %4275 = vxpose.xlu0.b32.cont [10/16] 0.0, 128
    %4276 = vxpose.xlu0.b32.cont [11/16] 0.0, 128
    %4277 = vxpose.xlu0.b32.cont [12/16] 0.0, 128
    %4278 = vxpose.xlu0.b32.cont [13/16] 0.0, 128
    %4279 = vxpose.xlu0.b32.cont [14/16] 0.0, 128
    %4280 = vxpose.xlu0.b32.cont [15/16] 0.0, 128
    %4281 = vxpose.xlu0.b32.end [16/16] 0.0, 128
    %v4282 = vpop.trf.xlu0
    %v4283 = vpop.trf.xlu0
    %v4284 = vpop.trf.xlu0
    %v4285 = vpop.trf.xlu0
    %v4286 = vpop.trf.xlu0
    %v4287 = vpop.trf.xlu0
    %v4288 = vpop.trf.xlu0
    %v4289 = vpop.trf.xlu0
    %v4290 = vpop.trf.xlu0
    %v4291 = vpop.trf.xlu0
    %v4292 = vpop.trf.xlu0
    %v4293 = vpop.trf.xlu0
    %v4294 = vpop.trf.xlu0
    %v4295 = vpop.trf.xlu0
    %v4296 = vpop.trf.xlu0
    %v4297 = vpop.trf.xlu0
    %4298 = vxpose.xlu0.b32.start [1/16] %v4078, 128
    %4299 = vxpose.xlu0.b32.cont [2/16] %v4084, 128
    %4300 = vxpose.xlu0.b32.cont [3/16] %v4090, 128
    %4301 = vxpose.xlu0.b32.cont [4/16] %v4096, 128
    %4302 = vxpose.xlu0.b32.cont [5/16] 0.0, 128
    %4303 = vxpose.xlu0.b32.cont [6/16] 0.0, 128
    %4304 = vxpose.xlu0.b32.cont [7/16] 0.0, 128
    %4305 = vxpose.xlu0.b32.cont [8/16] 0.0, 128
    %4306 = vxpose.xlu0.b32.cont [9/16] 0.0, 128
    %4307 = vxpose.xlu0.b32.cont [10/16] 0.0, 128
    %4308 = vxpose.xlu0.b32.cont [11/16] 0.0, 128
    %4309 = vxpose.xlu0.b32.cont [12/16] 0.0, 128
    %4310 = vxpose.xlu0.b32.cont [13/16] 0.0, 128
    %4311 = vxpose.xlu0.b32.cont [14/16] 0.0, 128
    %4312 = vxpose.xlu0.b32.cont [15/16] 0.0, 128
    %4313 = vxpose.xlu0.b32.end [16/16] 0.0, 128
    %v4314 = vpop.trf.xlu0
    %v4315 = vpop.trf.xlu0
    %v4316 = vpop.trf.xlu0
    %v4317 = vpop.trf.xlu0
    %v4318 = vpop.trf.xlu0
    %v4319 = vpop.trf.xlu0
    %v4320 = vpop.trf.xlu0
    %v4321 = vpop.trf.xlu0
    %v4322 = vpop.trf.xlu0
    %v4323 = vpop.trf.xlu0
    %v4324 = vpop.trf.xlu0
    %v4325 = vpop.trf.xlu0
    %v4326 = vpop.trf.xlu0
    %v4327 = vpop.trf.xlu0
    %v4328 = vpop.trf.xlu0
    %v4329 = vpop.trf.xlu0
    %4330 = vxpose.xlu0.b32.start [1/16] %v4100, 128
    %4331 = vxpose.xlu0.b32.cont [2/16] %v4106, 128
    %4332 = vxpose.xlu0.b32.cont [3/16] %v4112, 128
    %4333 = vxpose.xlu0.b32.cont [4/16] %v4118, 128
    %4334 = vxpose.xlu0.b32.cont [5/16] 0.0, 128
    %4335 = vxpose.xlu0.b32.cont [6/16] 0.0, 128
    %4336 = vxpose.xlu0.b32.cont [7/16] 0.0, 128
    %4337 = vxpose.xlu0.b32.cont [8/16] 0.0, 128
    %4338 = vxpose.xlu0.b32.cont [9/16] 0.0, 128
    %4339 = vxpose.xlu0.b32.cont [10/16] 0.0, 128
    %4340 = vxpose.xlu0.b32.cont [11/16] 0.0, 128
    %4341 = vxpose.xlu0.b32.cont [12/16] 0.0, 128
    %4342 = vxpose.xlu0.b32.cont [13/16] 0.0, 128
    %4343 = vxpose.xlu0.b32.cont [14/16] 0.0, 128
    %4344 = vxpose.xlu0.b32.cont [15/16] 0.0, 128
    %4345 = vxpose.xlu0.b32.end [16/16] 0.0, 128
    %v4346 = vpop.trf.xlu0
    %v4347 = vpop.trf.xlu0
    %v4348 = vpop.trf.xlu0
    %v4349 = vpop.trf.xlu0
    %v4350 = vpop.trf.xlu0
    %v4351 = vpop.trf.xlu0
    %v4352 = vpop.trf.xlu0
    %v4353 = vpop.trf.xlu0
    %v4354 = vpop.trf.xlu0
    %v4355 = vpop.trf.xlu0
    %v4356 = vpop.trf.xlu0
    %v4357 = vpop.trf.xlu0
    %v4358 = vpop.trf.xlu0
    %v4359 = vpop.trf.xlu0
    %v4360 = vpop.trf.xlu0
    %v4361 = vpop.trf.xlu0
    %4362 = vxpose.xlu0.b32.start [1/16] %v4102, 128
    %4363 = vxpose.xlu0.b32.cont [2/16] %v4108, 128
    %4364 = vxpose.xlu0.b32.cont [3/16] %v4114, 128
    %4365 = vxpose.xlu0.b32.cont [4/16] %v4120, 128
    %4366 = vxpose.xlu0.b32.cont [5/16] 0.0, 128
    %4367 = vxpose.xlu0.b32.cont [6/16] 0.0, 128
    %4368 = vxpose.xlu0.b32.cont [7/16] 0.0, 128
    %4369 = vxpose.xlu0.b32.cont [8/16] 0.0, 128
    %4370 = vxpose.xlu0.b32.cont [9/16] 0.0, 128
    %4371 = vxpose.xlu0.b32.cont [10/16] 0.0, 128
    %4372 = vxpose.xlu0.b32.cont [11/16] 0.0, 128
    %4373 = vxpose.xlu0.b32.cont [12/16] 0.0, 128
    %4374 = vxpose.xlu0.b32.cont [13/16] 0.0, 128
    %4375 = vxpose.xlu0.b32.cont [14/16] 0.0, 128
    %4376 = vxpose.xlu0.b32.cont [15/16] 0.0, 128
    %4377 = vxpose.xlu0.b32.end [16/16] 0.0, 128
    %v4378 = vpop.trf.xlu0
    %v4379 = vpop.trf.xlu0
    %v4380 = vpop.trf.xlu0
    %v4381 = vpop.trf.xlu0
    %v4382 = vpop.trf.xlu0
    %v4383 = vpop.trf.xlu0
    %v4384 = vpop.trf.xlu0
    %v4385 = vpop.trf.xlu0
    %v4386 = vpop.trf.xlu0
    %v4387 = vpop.trf.xlu0
    %v4388 = vpop.trf.xlu0
    %v4389 = vpop.trf.xlu0
    %v4390 = vpop.trf.xlu0
    %v4391 = vpop.trf.xlu0
    %v4392 = vpop.trf.xlu0
    %v4393 = vpop.trf.xlu0
    %4394 = vxpose.xlu0.b32.start [1/16] %v4124, 128
    %4395 = vxpose.xlu0.b32.cont [2/16] %v4130, 128
    %4396 = vxpose.xlu0.b32.cont [3/16] %v4136, 128
    %4397 = vxpose.xlu0.b32.cont [4/16] %v4142, 128
    %4398 = vxpose.xlu0.b32.cont [5/16] 0.0, 128
    %4399 = vxpose.xlu0.b32.cont [6/16] 0.0, 128
    %4400 = vxpose.xlu0.b32.cont [7/16] 0.0, 128
    %4401 = vxpose.xlu0.b32.cont [8/16] 0.0, 128
    %4402 = vxpose.xlu0.b32.cont [9/16] 0.0, 128
    %4403 = vxpose.xlu0.b32.cont [10/16] 0.0, 128
    %4404 = vxpose.xlu0.b32.cont [11/16] 0.0, 128
    %4405 = vxpose.xlu0.b32.cont [12/16] 0.0, 128
    %4406 = vxpose.xlu0.b32.cont [13/16] 0.0, 128
    %4407 = vxpose.xlu0.b32.cont [14/16] 0.0, 128
    %4408 = vxpose.xlu0.b32.cont [15/16] 0.0, 128
    %4409 = vxpose.xlu0.b32.end [16/16] 0.0, 128
    %v4410 = vpop.trf.xlu0
    %v4411 = vpop.trf.xlu0
    %v4412 = vpop.trf.xlu0
    %v4413 = vpop.trf.xlu0
    %v4414 = vpop.trf.xlu0
    %v4415 = vpop.trf.xlu0
    %v4416 = vpop.trf.xlu0
    %v4417 = vpop.trf.xlu0
    %v4418 = vpop.trf.xlu0
    %v4419 = vpop.trf.xlu0
    %v4420 = vpop.trf.xlu0
    %v4421 = vpop.trf.xlu0
    %v4422 = vpop.trf.xlu0
    %v4423 = vpop.trf.xlu0
    %v4424 = vpop.trf.xlu0
    %v4425 = vpop.trf.xlu0
    %4426 = vxpose.xlu0.b32.start [1/16] %v4126, 128
    %4427 = vxpose.xlu0.b32.cont [2/16] %v4132, 128
    %4428 = vxpose.xlu0.b32.cont [3/16] %v4138, 128
    %4429 = vxpose.xlu0.b32.cont [4/16] %v4144, 128
    %4430 = vxpose.xlu0.b32.cont [5/16] 0.0, 128
    %4431 = vxpose.xlu0.b32.cont [6/16] 0.0, 128
    %4432 = vxpose.xlu0.b32.cont [7/16] 0.0, 128
    %4433 = vxpose.xlu0.b32.cont [8/16] 0.0, 128
    %4434 = vxpose.xlu0.b32.cont [9/16] 0.0, 128
    %4435 = vxpose.xlu0.b32.cont [10/16] 0.0, 128
    %4436 = vxpose.xlu0.b32.cont [11/16] 0.0, 128
    %4437 = vxpose.xlu0.b32.cont [12/16] 0.0, 128
    %4438 = vxpose.xlu0.b32.cont [13/16] 0.0, 128
    %4439 = vxpose.xlu0.b32.cont [14/16] 0.0, 128
    %4440 = vxpose.xlu0.b32.cont [15/16] 0.0, 128
    %4441 = vxpose.xlu0.b32.end [16/16] 0.0, 128
    %v4442 = vpop.trf.xlu0
    %v4443 = vpop.trf.xlu0
    %v4444 = vpop.trf.xlu0
    %v4445 = vpop.trf.xlu0
    %v4446 = vpop.trf.xlu0
    %v4447 = vpop.trf.xlu0
    %v4448 = vpop.trf.xlu0
    %v4449 = vpop.trf.xlu0
    %v4450 = vpop.trf.xlu0
    %v4451 = vpop.trf.xlu0
    %v4452 = vpop.trf.xlu0
    %v4453 = vpop.trf.xlu0
    %v4454 = vpop.trf.xlu0
    %v4455 = vpop.trf.xlu0
    %v4456 = vpop.trf.xlu0
    %v4457 = vpop.trf.xlu0
    %4458 = vxpose.xlu0.b32.start [1/16] %v4148, 128
    %4459 = vxpose.xlu0.b32.cont [2/16] %v4154, 128
    %4460 = vxpose.xlu0.b32.cont [3/16] %v4160, 128
    %4461 = vxpose.xlu0.b32.cont [4/16] %v4166, 128
    %4462 = vxpose.xlu0.b32.cont [5/16] 0.0, 128
    %4463 = vxpose.xlu0.b32.cont [6/16] 0.0, 128
    %4464 = vxpose.xlu0.b32.cont [7/16] 0.0, 128
    %4465 = vxpose.xlu0.b32.cont [8/16] 0.0, 128
    %4466 = vxpose.xlu0.b32.cont [9/16] 0.0, 128
    %4467 = vxpose.xlu0.b32.cont [10/16] 0.0, 128
    %4468 = vxpose.xlu0.b32.cont [11/16] 0.0, 128
    %4469 = vxpose.xlu0.b32.cont [12/16] 0.0, 128
    %4470 = vxpose.xlu0.b32.cont [13/16] 0.0, 128
    %4471 = vxpose.xlu0.b32.cont [14/16] 0.0, 128
    %4472 = vxpose.xlu0.b32.cont [15/16] 0.0, 128
    %4473 = vxpose.xlu0.b32.end [16/16] 0.0, 128
    %v4474 = vpop.trf.xlu0
    %v4475 = vpop.trf.xlu0
    %v4476 = vpop.trf.xlu0
    %v4477 = vpop.trf.xlu0
    %v4478 = vpop.trf.xlu0
    %v4479 = vpop.trf.xlu0
    %v4480 = vpop.trf.xlu0
    %v4481 = vpop.trf.xlu0
    %v4482 = vpop.trf.xlu0
    %v4483 = vpop.trf.xlu0
    %v4484 = vpop.trf.xlu0
    %v4485 = vpop.trf.xlu0
    %v4486 = vpop.trf.xlu0
    %v4487 = vpop.trf.xlu0
    %v4488 = vpop.trf.xlu0
    %v4489 = vpop.trf.xlu0
    %4490 = vxpose.xlu0.b32.start [1/16] %v4150, 128
    %4491 = vxpose.xlu0.b32.cont [2/16] %v4156, 128
    %4492 = vxpose.xlu0.b32.cont [3/16] %v4162, 128
    %4493 = vxpose.xlu0.b32.cont [4/16] %v4168, 128
    %4494 = vxpose.xlu0.b32.cont [5/16] 0.0, 128
    %4495 = vxpose.xlu0.b32.cont [6/16] 0.0, 128
    %4496 = vxpose.xlu0.b32.cont [7/16] 0.0, 128
    %4497 = vxpose.xlu0.b32.cont [8/16] 0.0, 128
    %4498 = vxpose.xlu0.b32.cont [9/16] 0.0, 128
    %4499 = vxpose.xlu0.b32.cont [10/16] 0.0, 128
    %4500 = vxpose.xlu0.b32.cont [11/16] 0.0, 128
    %4501 = vxpose.xlu0.b32.cont [12/16] 0.0, 128
    %4502 = vxpose.xlu0.b32.cont [13/16] 0.0, 128
    %4503 = vxpose.xlu0.b32.cont [14/16] 0.0, 128
    %4504 = vxpose.xlu0.b32.cont [15/16] 0.0, 128
    %4505 = vxpose.xlu0.b32.end [16/16] 0.0, 128
    %v4506 = vpop.trf.xlu0
    %v4507 = vpop.trf.xlu0
    %v4508 = vpop.trf.xlu0
    %v4509 = vpop.trf.xlu0
    %v4510 = vpop.trf.xlu0
    %v4511 = vpop.trf.xlu0
    %v4512 = vpop.trf.xlu0
    %v4513 = vpop.trf.xlu0
    %v4514 = vpop.trf.xlu0
    %v4515 = vpop.trf.xlu0
    %v4516 = vpop.trf.xlu0
    %v4517 = vpop.trf.xlu0
    %v4518 = vpop.trf.xlu0
    %v4519 = vpop.trf.xlu0
    %v4520 = vpop.trf.xlu0
    %v4521 = vpop.trf.xlu0
    %v4522 = vpack.c.bf16 %v4283, %v4282
    %v4523 = vpack.c.bf16 %v4285, %v4284
    %v4524 = vpack.c.bf16 %v4287, %v4286
    %v4525 = vpack.c.bf16 %v4289, %v4288
    %v4526 = vpack.c.bf16 %v4291, %v4290
    %v4527 = vpack.c.bf16 %v4293, %v4292
    %v4528 = vpack.c.bf16 %v4295, %v4294
    %v4529 = vpack.c.bf16 %v4297, %v4296
    %v4530 = vpack.c.bf16 %v4315, %v4314
    %v4531 = vpack.c.bf16 %v4317, %v4316
    %v4532 = vpack.c.bf16 %v4319, %v4318
    %v4533 = vpack.c.bf16 %v4321, %v4320
    %v4534 = vpack.c.bf16 %v4323, %v4322
    %v4535 = vpack.c.bf16 %v4325, %v4324
    %v4536 = vpack.c.bf16 %v4327, %v4326
    %v4537 = vpack.c.bf16 %v4329, %v4328
    %v4538 = vpack.c.bf16 %v4347, %v4346
    %v4539 = vpack.c.bf16 %v4349, %v4348
    %v4540 = vpack.c.bf16 %v4351, %v4350
    %v4541 = vpack.c.bf16 %v4353, %v4352
    %v4542 = vpack.c.bf16 %v4355, %v4354
    %v4543 = vpack.c.bf16 %v4357, %v4356
    %v4544 = vpack.c.bf16 %v4359, %v4358
    %v4545 = vpack.c.bf16 %v4361, %v4360
    %v4546 = vpack.c.bf16 %v4379, %v4378
    %v4547 = vpack.c.bf16 %v4381, %v4380
    %v4548 = vpack.c.bf16 %v4383, %v4382
    %v4549 = vpack.c.bf16 %v4385, %v4384
    %v4550 = vpack.c.bf16 %v4387, %v4386
    %v4551 = vpack.c.bf16 %v4389, %v4388
    %v4552 = vpack.c.bf16 %v4391, %v4390
    %v4553 = vpack.c.bf16 %v4393, %v4392
    %v4554 = vpack.c.bf16 %v4411, %v4410
    %v4555 = vpack.c.bf16 %v4413, %v4412
    %v4556 = vpack.c.bf16 %v4415, %v4414
    %v4557 = vpack.c.bf16 %v4417, %v4416
    %v4558 = vpack.c.bf16 %v4419, %v4418
    %v4559 = vpack.c.bf16 %v4421, %v4420
    %v4560 = vpack.c.bf16 %v4423, %v4422
    %v4561 = vpack.c.bf16 %v4425, %v4424
    %v4562 = vpack.c.bf16 %v4443, %v4442
    %v4563 = vpack.c.bf16 %v4445, %v4444
    %v4564 = vpack.c.bf16 %v4447, %v4446
    %v4565 = vpack.c.bf16 %v4449, %v4448
    %v4566 = vpack.c.bf16 %v4451, %v4450
    %v4567 = vpack.c.bf16 %v4453, %v4452
    %v4568 = vpack.c.bf16 %v4455, %v4454
    %v4569 = vpack.c.bf16 %v4457, %v4456
    %v4570 = vpack.c.bf16 %v4475, %v4474
    %v4571 = vpack.c.bf16 %v4477, %v4476
    %v4572 = vpack.c.bf16 %v4479, %v4478
    %v4573 = vpack.c.bf16 %v4481, %v4480
    %v4574 = vpack.c.bf16 %v4483, %v4482
    %v4575 = vpack.c.bf16 %v4485, %v4484
    %v4576 = vpack.c.bf16 %v4487, %v4486
    %v4577 = vpack.c.bf16 %v4489, %v4488
    %v4578 = vpack.c.bf16 %v4507, %v4506
    %v4579 = vpack.c.bf16 %v4509, %v4508
    %v4580 = vpack.c.bf16 %v4511, %v4510
    %v4581 = vpack.c.bf16 %v4513, %v4512
    %v4582 = vpack.c.bf16 %v4515, %v4514
    %v4583 = vpack.c.bf16 %v4517, %v4516
    %v4584 = vpack.c.bf16 %v4519, %v4518
    %v4585 = vpack.c.bf16 %v4521, %v4520
    %v4586 = vpack.c.bf16 %v3986, %v3980
    %v4587 = vpack.c.bf16 %v3988, %v3982
    %v4588 = vpack.c.bf16 %v3998, %v3992
    %v4589 = vpack.c.bf16 %v4000, %v3994
    %v4590 = vpack.c.bf16 %v4010, %v4004
    %v4591 = vpack.c.bf16 %v4012, %v4006
    %v4592 = vpack.c.bf16 %v4022, %v4016
    %v4593 = vpack.c.bf16 %v4024, %v4018
    %v4594 = vpack.c.bf16 %v4034, %v4028
    %v4595 = vpack.c.bf16 %v4036, %v4030
    %v4596 = vpack.c.bf16 %v4046, %v4040
    %v4597 = vpack.c.bf16 %v4048, %v4042
    %v4598 = vpack.c.bf16 %v4058, %v4052
    %v4599 = vpack.c.bf16 %v4060, %v4054
    %v4600 = vpack.c.bf16 %v4070, %v4064
    %v4601 = vpack.c.bf16 %v4072, %v4066
    %v4603 = vsel %vm909, %v4522, 0
    %v4606 = vsel %vm909, %v4523, 0
    %v4609 = vsel %vm909, %v4524, 0
    %v4612 = vsel %vm909, %v4525, 0
    %v4615 = vsel %vm909, %v4526, 0
    %v4618 = vsel %vm909, %v4527, 0
    %v4621 = vsel %vm909, %v4528, 0
    %v4624 = vsel %vm909, %v4529, 0
    %v4627 = vsel %vm909, %v4530, 0
    %v4630 = vsel %vm909, %v4531, 0
    %v4633 = vsel %vm909, %v4532, 0
    %v4636 = vsel %vm909, %v4533, 0
    %v4639 = vsel %vm909, %v4534, 0
    %v4642 = vsel %vm909, %v4535, 0
    %v4645 = vsel %vm909, %v4536, 0
    %v4648 = vsel %vm909, %v4537, 0
    %4650 = vmatprep.subr.bf16.mxu0 %v4587
    %4651 = vmatpush1.bf16.msra.mxu0 %v4586
    %4652 = vmatprep.subr.bf16.mxu0 %v4589
    %4653 = vmatpush1.bf16.msra.mxu0 %v4588
    %4654 = vmatprep.subr.bf16.mxu0 0
    %4655 = vmatpush1.bf16.msra.mxu0 0
    %4656 = vmatprep.subr.bf16.mxu0 0
    %4657 = vmatpush1.bf16.msra.mxu0 0
    %4658 = vmatprep.subr.bf16.mxu0 0
    %4659 = vmatpush1.bf16.msra.mxu0 0
    %4660 = vmatprep.subr.bf16.mxu0 0
    %4661 = vmatpush1.bf16.msra.mxu0 0
    %4662 = vmatprep.subr.bf16.mxu0 0
    %4663 = vmatpush1.bf16.msra.mxu0 0
    %4664 = vmatprep.subr.bf16.mxu0 0
    %4665 = vmatpush1.bf16.msra.mxu0 0
    %4666 = vmatprep.subr.bf16.mxu0 0
    %4667 = vmatpush1.bf16.msra.mxu0 0
    %4668 = vmatprep.subr.bf16.mxu0 0
    %4669 = vmatpush1.bf16.msra.mxu0 0
    %4670 = vmatprep.subr.bf16.mxu0 0
    %4671 = vmatpush1.bf16.msra.mxu0 0
    %4672 = vmatprep.subr.bf16.mxu0 0
    %4673 = vmatpush1.bf16.msra.mxu0 0
    %4674 = vmatprep.subr.bf16.mxu0 0
    %4675 = vmatpush1.bf16.msra.mxu0 0
    %4676 = vmatprep.subr.bf16.mxu0 0
    %4677 = vmatpush1.bf16.msra.mxu0 0
    %4678 = vmatprep.subr.bf16.mxu0 0
    %4679 = vmatpush1.bf16.msra.mxu0 0
    %4680 = vmatprep.subr.bf16.mxu0 0
    %4681 = vmatpush1.bf16.msra.mxu0 0
    %4682 = vmatprep.mubr.bf16.mxu0 0
    %4683 = vmatmul.mubr.bf16.gmra.mrb[0].mxu0 %v4603
    %v4684 = vpop.f32.mrb[0].mxu0
    %v4685 = vadd.f32 0.0, %v4684
    %v4686 = vpop.f32.mrb[0].mxu0
    %v4687 = vadd.f32 0.0, %v4686
    %v4688 = vpop.f32.mrb[0].mxu0
    %v4689 = vadd.f32 0.0, %v4688
    %v4690 = vpop.f32.mrb[0].mxu0
    %v4691 = vadd.f32 0.0, %v4690
    %4692 = vmatprep.mubr.bf16.mxu0 0
    %4693 = vmatmul.mubr.bf16.gmra.mrb[0].mxu0 %v4606
    %v4694 = vpop.f32.mrb[0].mxu0
    %v4695 = vadd.f32 0.0, %v4694
    %v4696 = vpop.f32.mrb[0].mxu0
    %v4697 = vadd.f32 0.0, %v4696
    %v4698 = vpop.f32.mrb[0].mxu0
    %v4699 = vadd.f32 0.0, %v4698
    %v4700 = vpop.f32.mrb[0].mxu0
    %v4701 = vadd.f32 0.0, %v4700
    %4702 = vmatprep.mubr.bf16.mxu0 0
    %4703 = vmatmul.mubr.bf16.gmra.mrb[0].mxu0 %v4609
    %v4704 = vpop.f32.mrb[0].mxu0
    %v4705 = vadd.f32 0.0, %v4704
    %v4706 = vpop.f32.mrb[0].mxu0
    %v4707 = vadd.f32 0.0, %v4706
    %v4708 = vpop.f32.mrb[0].mxu0
    %v4709 = vadd.f32 0.0, %v4708
    %v4710 = vpop.f32.mrb[0].mxu0
    %v4711 = vadd.f32 0.0, %v4710
    %4712 = vmatprep.mubr.bf16.mxu0 0
    %4713 = vmatmul.mubr.bf16.gmra.mrb[0].mxu0 %v4612
    %v4714 = vpop.f32.mrb[0].mxu0
    %v4715 = vadd.f32 0.0, %v4714
    %v4716 = vpop.f32.mrb[0].mxu0
    %v4717 = vadd.f32 0.0, %v4716
    %v4718 = vpop.f32.mrb[0].mxu0
    %v4719 = vadd.f32 0.0, %v4718
    %v4720 = vpop.f32.mrb[0].mxu0
    %v4721 = vadd.f32 0.0, %v4720
    %4722 = vmatprep.mubr.bf16.mxu0 0
    %4723 = vmatmul.mubr.bf16.gmra.mrb[0].mxu0 %v4615
    %v4724 = vpop.f32.mrb[0].mxu0
    %v4725 = vadd.f32 0.0, %v4724
    %v4726 = vpop.f32.mrb[0].mxu0
    %v4727 = vadd.f32 0.0, %v4726
    %v4728 = vpop.f32.mrb[0].mxu0
    %v4729 = vadd.f32 0.0, %v4728
    %v4730 = vpop.f32.mrb[0].mxu0
    %v4731 = vadd.f32 0.0, %v4730
    %4732 = vmatprep.mubr.bf16.mxu0 0
    %4733 = vmatmul.mubr.bf16.gmra.mrb[0].mxu0 %v4618
    %v4734 = vpop.f32.mrb[0].mxu0
    %v4735 = vadd.f32 0.0, %v4734
    %v4736 = vpop.f32.mrb[0].mxu0
    %v4737 = vadd.f32 0.0, %v4736
    %v4738 = vpop.f32.mrb[0].mxu0
    %v4739 = vadd.f32 0.0, %v4738
    %v4740 = vpop.f32.mrb[0].mxu0
    %v4741 = vadd.f32 0.0, %v4740
    %4742 = vmatprep.mubr.bf16.mxu0 0
    %4743 = vmatmul.mubr.bf16.gmra.mrb[0].mxu0 %v4621
    %v4744 = vpop.f32.mrb[0].mxu0
    %v4745 = vadd.f32 0.0, %v4744
    %v4746 = vpop.f32.mrb[0].mxu0
    %v4747 = vadd.f32 0.0, %v4746
    %v4748 = vpop.f32.mrb[0].mxu0
    %v4749 = vadd.f32 0.0, %v4748
    %v4750 = vpop.f32.mrb[0].mxu0
    %v4751 = vadd.f32 0.0, %v4750
    %4752 = vmatprep.mubr.bf16.mxu0 0
    %4753 = vmatmul.mubr.bf16.gmra.mrb[0].mxu0 %v4624
    %v4754 = vpop.f32.mrb[0].mxu0
    %v4755 = vadd.f32 0.0, %v4754
    %v4756 = vpop.f32.mrb[0].mxu0
    %v4757 = vadd.f32 0.0, %v4756
    %v4758 = vpop.f32.mrb[0].mxu0
    %v4759 = vadd.f32 0.0, %v4758
    %v4760 = vpop.f32.mrb[0].mxu0
    %v4761 = vadd.f32 0.0, %v4760
    %4762 = vmatprep.mubr.bf16.mxu0 0
    %4763 = vmatmul.mubr.bf16.gmra.mrb[0].mxu0 %v4627
    %v4764 = vpop.f32.mrb[0].mxu0
    %v4765 = vadd.f32 0.0, %v4764
    %v4766 = vpop.f32.mrb[0].mxu0
    %v4767 = vadd.f32 0.0, %v4766
    %v4768 = vpop.f32.mrb[0].mxu0
    %v4769 = vadd.f32 0.0, %v4768
    %v4770 = vpop.f32.mrb[0].mxu0
    %v4771 = vadd.f32 0.0, %v4770
    %4772 = vmatprep.mubr.bf16.mxu0 0
    %4773 = vmatmul.mubr.bf16.gmra.mrb[0].mxu0 %v4630
    %v4774 = vpop.f32.mrb[0].mxu0
    %v4775 = vadd.f32 0.0, %v4774
    %v4776 = vpop.f32.mrb[0].mxu0
    %v4777 = vadd.f32 0.0, %v4776
    %v4778 = vpop.f32.mrb[0].mxu0
    %v4779 = vadd.f32 0.0, %v4778
    %v4780 = vpop.f32.mrb[0].mxu0
    %v4781 = vadd.f32 0.0, %v4780
    %4782 = vmatprep.mubr.bf16.mxu0 0
    %4783 = vmatmul.mubr.bf16.gmra.mrb[0].mxu0 %v4633
    %v4784 = vpop.f32.mrb[0].mxu0
    %v4785 = vadd.f32 0.0, %v4784
    %v4786 = vpop.f32.mrb[0].mxu0
    %v4787 = vadd.f32 0.0, %v4786
    %v4788 = vpop.f32.mrb[0].mxu0
    %v4789 = vadd.f32 0.0, %v4788
    %v4790 = vpop.f32.mrb[0].mxu0
    %v4791 = vadd.f32 0.0, %v4790
    %4792 = vmatprep.mubr.bf16.mxu0 0
    %4793 = vmatmul.mubr.bf16.gmra.mrb[0].mxu0 %v4636
    %v4794 = vpop.f32.mrb[0].mxu0
    %v4795 = vadd.f32 0.0, %v4794
    %v4796 = vpop.f32.mrb[0].mxu0
    %v4797 = vadd.f32 0.0, %v4796
    %v4798 = vpop.f32.mrb[0].mxu0
    %v4799 = vadd.f32 0.0, %v4798
    %v4800 = vpop.f32.mrb[0].mxu0
    %v4801 = vadd.f32 0.0, %v4800
    %4802 = vmatprep.mubr.bf16.mxu0 0
    %4803 = vmatmul.mubr.bf16.gmra.mrb[0].mxu0 %v4639
    %v4804 = vpop.f32.mrb[0].mxu0
    %v4805 = vadd.f32 0.0, %v4804
    %v4806 = vpop.f32.mrb[0].mxu0
    %v4807 = vadd.f32 0.0, %v4806
    %v4808 = vpop.f32.mrb[0].mxu0
    %v4809 = vadd.f32 0.0, %v4808
    %v4810 = vpop.f32.mrb[0].mxu0
    %v4811 = vadd.f32 0.0, %v4810
    %4812 = vmatprep.mubr.bf16.mxu0 0
    %4813 = vmatmul.mubr.bf16.gmra.mrb[0].mxu0 %v4642
    %v4814 = vpop.f32.mrb[0].mxu0
    %v4815 = vadd.f32 0.0, %v4814
    %v4816 = vpop.f32.mrb[0].mxu0
    %v4817 = vadd.f32 0.0, %v4816
    %v4818 = vpop.f32.mrb[0].mxu0
    %v4819 = vadd.f32 0.0, %v4818
    %v4820 = vpop.f32.mrb[0].mxu0
    %v4821 = vadd.f32 0.0, %v4820
    %4822 = vmatprep.mubr.bf16.mxu0 0
    %4823 = vmatmul.mubr.bf16.gmra.mrb[0].mxu0 %v4645
    %v4824 = vpop.f32.mrb[0].mxu0
    %v4825 = vadd.f32 0.0, %v4824
    %v4826 = vpop.f32.mrb[0].mxu0
    %v4827 = vadd.f32 0.0, %v4826
    %v4828 = vpop.f32.mrb[0].mxu0
    %v4829 = vadd.f32 0.0, %v4828
    %v4830 = vpop.f32.mrb[0].mxu0
    %v4831 = vadd.f32 0.0, %v4830
    %4832 = vmatprep.mubr.bf16.mxu0 0
    %4833 = vmatmul.mubr.bf16.gmra.mrb[0].mxu0 %v4648
    %v4834 = vpop.f32.mrb[0].mxu0
    %v4835 = vadd.f32 0.0, %v4834
    %v4836 = vpop.f32.mrb[0].mxu0
    %v4837 = vadd.f32 0.0, %v4836
    %v4838 = vpop.f32.mrb[0].mxu0
    %v4839 = vadd.f32 0.0, %v4838
    %v4840 = vpop.f32.mrb[0].mxu0
    %v4841 = vadd.f32 0.0, %v4840
    %4842 = vdwg.mxu0
    %v4844 = vsel %vm909, %v4538, 0
    %v4847 = vsel %vm909, %v4539, 0
    %v4850 = vsel %vm909, %v4540, 0
    %v4853 = vsel %vm909, %v4541, 0
    %v4856 = vsel %vm909, %v4542, 0
    %v4859 = vsel %vm909, %v4543, 0
    %v4862 = vsel %vm909, %v4544, 0
    %v4865 = vsel %vm909, %v4545, 0
    %v4868 = vsel %vm909, %v4546, 0
    %v4871 = vsel %vm909, %v4547, 0
    %v4874 = vsel %vm909, %v4548, 0
    %v4877 = vsel %vm909, %v4549, 0
    %v4880 = vsel %vm909, %v4550, 0
    %v4883 = vsel %vm909, %v4551, 0
    %v4886 = vsel %vm909, %v4552, 0
    %v4889 = vsel %vm909, %v4553, 0
    %4891 = vmatprep.subr.bf16.mxu0 %v4591
    %4892 = vmatpush1.bf16.msra.mxu0 %v4590
    %4893 = vmatprep.subr.bf16.mxu0 %v4593
    %4894 = vmatpush1.bf16.msra.mxu0 %v4592
    %4895 = vmatprep.subr.bf16.mxu0 0
    %4896 = vmatpush1.bf16.msra.mxu0 0
    %4897 = vmatprep.subr.bf16.mxu0 0
    %4898 = vmatpush1.bf16.msra.mxu0 0
    %4899 = vmatprep.subr.bf16.mxu0 0
    %4900 = vmatpush1.bf16.msra.mxu0 0
    %4901 = vmatprep.subr.bf16.mxu0 0
    %4902 = vmatpush1.bf16.msra.mxu0 0
    %4903 = vmatprep.subr.bf16.mxu0 0
    %4904 = vmatpush1.bf16.msra.mxu0 0
    %4905 = vmatprep.subr.bf16.mxu0 0
    %4906 = vmatpush1.bf16.msra.mxu0 0
    %4907 = vmatprep.subr.bf16.mxu0 0
    %4908 = vmatpush1.bf16.msra.mxu0 0
    %4909 = vmatprep.subr.bf16.mxu0 0
    %4910 = vmatpush1.bf16.msra.mxu0 0
    %4911 = vmatprep.subr.bf16.mxu0 0
    %4912 = vmatpush1.bf16.msra.mxu0 0
    %4913 = vmatprep.subr.bf16.mxu0 0
    %4914 = vmatpush1.bf16.msra.mxu0 0
    %4915 = vmatprep.subr.bf16.mxu0 0
    %4916 = vmatpush1.bf16.msra.mxu0 0
    %4917 = vmatprep.subr.bf16.mxu0 0
    %4918 = vmatpush1.bf16.msra.mxu0 0
    %4919 = vmatprep.subr.bf16.mxu0 0
    %4920 = vmatpush1.bf16.msra.mxu0 0
    %4921 = vmatprep.subr.bf16.mxu0 0
    %4922 = vmatpush1.bf16.msra.mxu0 0
    %4923 = vmatprep.mubr.bf16.mxu0 0
    %4924 = vmatmul.mubr.bf16.gmra.mrb[0].mxu0 %v4844
    %v4925 = vpop.f32.mrb[0].mxu0
    %v4926 = vadd.f32 0.0, %v4925
    %v4927 = vpop.f32.mrb[0].mxu0
    %v4928 = vadd.f32 0.0, %v4927
    %v4929 = vpop.f32.mrb[0].mxu0
    %v4930 = vadd.f32 0.0, %v4929
    %v4931 = vpop.f32.mrb[0].mxu0
    %v4932 = vadd.f32 0.0, %v4931
    %4933 = vmatprep.mubr.bf16.mxu0 0
    %4934 = vmatmul.mubr.bf16.gmra.mrb[0].mxu0 %v4847
    %v4935 = vpop.f32.mrb[0].mxu0
    %v4936 = vadd.f32 0.0, %v4935
    %v4937 = vpop.f32.mrb[0].mxu0
    %v4938 = vadd.f32 0.0, %v4937
    %v4939 = vpop.f32.mrb[0].mxu0
    %v4940 = vadd.f32 0.0, %v4939
    %v4941 = vpop.f32.mrb[0].mxu0
    %v4942 = vadd.f32 0.0, %v4941
    %4943 = vmatprep.mubr.bf16.mxu0 0
    %4944 = vmatmul.mubr.bf16.gmra.mrb[0].mxu0 %v4850
    %v4945 = vpop.f32.mrb[0].mxu0
    %v4946 = vadd.f32 0.0, %v4945
    %v4947 = vpop.f32.mrb[0].mxu0
    %v4948 = vadd.f32 0.0, %v4947
    %v4949 = vpop.f32.mrb[0].mxu0
    %v4950 = vadd.f32 0.0, %v4949
    %v4951 = vpop.f32.mrb[0].mxu0
    %v4952 = vadd.f32 0.0, %v4951
    %4953 = vmatprep.mubr.bf16.mxu0 0
    %4954 = vmatmul.mubr.bf16.gmra.mrb[0].mxu0 %v4853
    %v4955 = vpop.f32.mrb[0].mxu0
    %v4956 = vadd.f32 0.0, %v4955
    %v4957 = vpop.f32.mrb[0].mxu0
    %v4958 = vadd.f32 0.0, %v4957
    %v4959 = vpop.f32.mrb[0].mxu0
    %v4960 = vadd.f32 0.0, %v4959
    %v4961 = vpop.f32.mrb[0].mxu0
    %v4962 = vadd.f32 0.0, %v4961
    %4963 = vmatprep.mubr.bf16.mxu0 0
    %4964 = vmatmul.mubr.bf16.gmra.mrb[0].mxu0 %v4856
    %v4965 = vpop.f32.mrb[0].mxu0
    %v4966 = vadd.f32 0.0, %v4965
    %v4967 = vpop.f32.mrb[0].mxu0
    %v4968 = vadd.f32 0.0, %v4967
    %v4969 = vpop.f32.mrb[0].mxu0
    %v4970 = vadd.f32 0.0, %v4969
    %v4971 = vpop.f32.mrb[0].mxu0
    %v4972 = vadd.f32 0.0, %v4971
    %4973 = vmatprep.mubr.bf16.mxu0 0
    %4974 = vmatmul.mubr.bf16.gmra.mrb[0].mxu0 %v4859
    %v4975 = vpop.f32.mrb[0].mxu0
    %v4976 = vadd.f32 0.0, %v4975
    %v4977 = vpop.f32.mrb[0].mxu0
    %v4978 = vadd.f32 0.0, %v4977
    %v4979 = vpop.f32.mrb[0].mxu0
    %v4980 = vadd.f32 0.0, %v4979
    %v4981 = vpop.f32.mrb[0].mxu0
    %v4982 = vadd.f32 0.0, %v4981
    %4983 = vmatprep.mubr.bf16.mxu0 0
    %4984 = vmatmul.mubr.bf16.gmra.mrb[0].mxu0 %v4862
    %v4985 = vpop.f32.mrb[0].mxu0
    %v4986 = vadd.f32 0.0, %v4985
    %v4987 = vpop.f32.mrb[0].mxu0
    %v4988 = vadd.f32 0.0, %v4987
    %v4989 = vpop.f32.mrb[0].mxu0
    %v4990 = vadd.f32 0.0, %v4989
    %v4991 = vpop.f32.mrb[0].mxu0
    %v4992 = vadd.f32 0.0, %v4991
    %4993 = vmatprep.mubr.bf16.mxu0 0
    %4994 = vmatmul.mubr.bf16.gmra.mrb[0].mxu0 %v4865
    %v4995 = vpop.f32.mrb[0].mxu0
    %v4996 = vadd.f32 0.0, %v4995
    %v4997 = vpop.f32.mrb[0].mxu0
    %v4998 = vadd.f32 0.0, %v4997
    %v4999 = vpop.f32.mrb[0].mxu0
    %v5000 = vadd.f32 0.0, %v4999
    %v5001 = vpop.f32.mrb[0].mxu0
    %v5002 = vadd.f32 0.0, %v5001
    %5003 = vmatprep.mubr.bf16.mxu0 0
    %5004 = vmatmul.mubr.bf16.gmra.mrb[0].mxu0 %v4868
    %v5005 = vpop.f32.mrb[0].mxu0
    %v5006 = vadd.f32 0.0, %v5005
    %v5007 = vpop.f32.mrb[0].mxu0
    %v5008 = vadd.f32 0.0, %v5007
    %v5009 = vpop.f32.mrb[0].mxu0
    %v5010 = vadd.f32 0.0, %v5009
    %v5011 = vpop.f32.mrb[0].mxu0
    %v5012 = vadd.f32 0.0, %v5011
    %5013 = vmatprep.mubr.bf16.mxu0 0
    %5014 = vmatmul.mubr.bf16.gmra.mrb[0].mxu0 %v4871
    %v5015 = vpop.f32.mrb[0].mxu0
    %v5016 = vadd.f32 0.0, %v5015
    %v5017 = vpop.f32.mrb[0].mxu0
    %v5018 = vadd.f32 0.0, %v5017
    %v5019 = vpop.f32.mrb[0].mxu0
    %v5020 = vadd.f32 0.0, %v5019
    %v5021 = vpop.f32.mrb[0].mxu0
    %v5022 = vadd.f32 0.0, %v5021
    %5023 = vmatprep.mubr.bf16.mxu0 0
    %5024 = vmatmul.mubr.bf16.gmra.mrb[0].mxu0 %v4874
    %v5025 = vpop.f32.mrb[0].mxu0
    %v5026 = vadd.f32 0.0, %v5025
    %v5027 = vpop.f32.mrb[0].mxu0
    %v5028 = vadd.f32 0.0, %v5027
    %v5029 = vpop.f32.mrb[0].mxu0
    %v5030 = vadd.f32 0.0, %v5029
    %v5031 = vpop.f32.mrb[0].mxu0
    %v5032 = vadd.f32 0.0, %v5031
    %5033 = vmatprep.mubr.bf16.mxu0 0
    %5034 = vmatmul.mubr.bf16.gmra.mrb[0].mxu0 %v4877
    %v5035 = vpop.f32.mrb[0].mxu0
    %v5036 = vadd.f32 0.0, %v5035
    %v5037 = vpop.f32.mrb[0].mxu0
    %v5038 = vadd.f32 0.0, %v5037
    %v5039 = vpop.f32.mrb[0].mxu0
    %v5040 = vadd.f32 0.0, %v5039
    %v5041 = vpop.f32.mrb[0].mxu0
    %v5042 = vadd.f32 0.0, %v5041
    %5043 = vmatprep.mubr.bf16.mxu0 0
    %5044 = vmatmul.mubr.bf16.gmra.mrb[0].mxu0 %v4880
    %v5045 = vpop.f32.mrb[0].mxu0
    %v5046 = vadd.f32 0.0, %v5045
    %v5047 = vpop.f32.mrb[0].mxu0
    %v5048 = vadd.f32 0.0, %v5047
    %v5049 = vpop.f32.mrb[0].mxu0
    %v5050 = vadd.f32 0.0, %v5049
    %v5051 = vpop.f32.mrb[0].mxu0
    %v5052 = vadd.f32 0.0, %v5051
    %5053 = vmatprep.mubr.bf16.mxu0 0
    %5054 = vmatmul.mubr.bf16.gmra.mrb[0].mxu0 %v4883
    %v5055 = vpop.f32.mrb[0].mxu0
    %v5056 = vadd.f32 0.0, %v5055
    %v5057 = vpop.f32.mrb[0].mxu0
    %v5058 = vadd.f32 0.0, %v5057
    %v5059 = vpop.f32.mrb[0].mxu0
    %v5060 = vadd.f32 0.0, %v5059
    %v5061 = vpop.f32.mrb[0].mxu0
    %v5062 = vadd.f32 0.0, %v5061
    %5063 = vmatprep.mubr.bf16.mxu0 0
    %5064 = vmatmul.mubr.bf16.gmra.mrb[0].mxu0 %v4886
    %v5065 = vpop.f32.mrb[0].mxu0
    %v5066 = vadd.f32 0.0, %v5065
    %v5067 = vpop.f32.mrb[0].mxu0
    %v5068 = vadd.f32 0.0, %v5067
    %v5069 = vpop.f32.mrb[0].mxu0
    %v5070 = vadd.f32 0.0, %v5069
    %v5071 = vpop.f32.mrb[0].mxu0
    %v5072 = vadd.f32 0.0, %v5071
    %5073 = vmatprep.mubr.bf16.mxu0 0
    %5074 = vmatmul.mubr.bf16.gmra.mrb[0].mxu0 %v4889
    %v5075 = vpop.f32.mrb[0].mxu0
    %v5076 = vadd.f32 0.0, %v5075
    %v5077 = vpop.f32.mrb[0].mxu0
    %v5078 = vadd.f32 0.0, %v5077
    %v5079 = vpop.f32.mrb[0].mxu0
    %v5080 = vadd.f32 0.0, %v5079
    %v5081 = vpop.f32.mrb[0].mxu0
    %v5082 = vadd.f32 0.0, %v5081
    %5083 = vdwg.mxu0
    %v5085 = vsel %vm909, %v4554, 0
    %v5088 = vsel %vm909, %v4555, 0
    %v5091 = vsel %vm909, %v4556, 0
    %v5094 = vsel %vm909, %v4557, 0
    %v5097 = vsel %vm909, %v4558, 0
    %v5100 = vsel %vm909, %v4559, 0
    %v5103 = vsel %vm909, %v4560, 0
    %v5106 = vsel %vm909, %v4561, 0
    %v5109 = vsel %vm909, %v4562, 0
    %v5112 = vsel %vm909, %v4563, 0
    %v5115 = vsel %vm909, %v4564, 0
    %v5118 = vsel %vm909, %v4565, 0
    %v5121 = vsel %vm909, %v4566, 0
    %v5124 = vsel %vm909, %v4567, 0
    %v5127 = vsel %vm909, %v4568, 0
    %v5130 = vsel %vm909, %v4569, 0
    %5132 = vmatprep.subr.bf16.mxu0 %v4595
    %5133 = vmatpush1.bf16.msra.mxu0 %v4594
    %5134 = vmatprep.subr.bf16.mxu0 %v4597
    %5135 = vmatpush1.bf16.msra.mxu0 %v4596
    %5136 = vmatprep.subr.bf16.mxu0 0
    %5137 = vmatpush1.bf16.msra.mxu0 0
    %5138 = vmatprep.subr.bf16.mxu0 0
    %5139 = vmatpush1.bf16.msra.mxu0 0
    %5140 = vmatprep.subr.bf16.mxu0 0
    %5141 = vmatpush1.bf16.msra.mxu0 0
    %5142 = vmatprep.subr.bf16.mxu0 0
    %5143 = vmatpush1.bf16.msra.mxu0 0
    %5144 = vmatprep.subr.bf16.mxu0 0
    %5145 = vmatpush1.bf16.msra.mxu0 0
    %5146 = vmatprep.subr.bf16.mxu0 0
    %5147 = vmatpush1.bf16.msra.mxu0 0
    %5148 = vmatprep.subr.bf16.mxu0 0
    %5149 = vmatpush1.bf16.msra.mxu0 0
    %5150 = vmatprep.subr.bf16.mxu0 0
    %5151 = vmatpush1.bf16.msra.mxu0 0
    %5152 = vmatprep.subr.bf16.mxu0 0
    %5153 = vmatpush1.bf16.msra.mxu0 0
    %5154 = vmatprep.subr.bf16.mxu0 0
    %5155 = vmatpush1.bf16.msra.mxu0 0
    %5156 = vmatprep.subr.bf16.mxu0 0
    %5157 = vmatpush1.bf16.msra.mxu0 0
    %5158 = vmatprep.subr.bf16.mxu0 0
    %5159 = vmatpush1.bf16.msra.mxu0 0
    %5160 = vmatprep.subr.bf16.mxu0 0
    %5161 = vmatpush1.bf16.msra.mxu0 0
    %5162 = vmatprep.subr.bf16.mxu0 0
    %5163 = vmatpush1.bf16.msra.mxu0 0
    %5164 = vmatprep.mubr.bf16.mxu0 0
    %5165 = vmatmul.mubr.bf16.gmra.mrb[0].mxu0 %v5085
    %v5166 = vpop.f32.mrb[0].mxu0
    %v5167 = vadd.f32 0.0, %v5166
    %v5168 = vpop.f32.mrb[0].mxu0
    %v5169 = vadd.f32 0.0, %v5168
    %v5170 = vpop.f32.mrb[0].mxu0
    %v5171 = vadd.f32 0.0, %v5170
    %v5172 = vpop.f32.mrb[0].mxu0
    %v5173 = vadd.f32 0.0, %v5172
    %5174 = vmatprep.mubr.bf16.mxu0 0
    %5175 = vmatmul.mubr.bf16.gmra.mrb[0].mxu0 %v5088
    %v5176 = vpop.f32.mrb[0].mxu0
    %v5177 = vadd.f32 0.0, %v5176
    %v5178 = vpop.f32.mrb[0].mxu0
    %v5179 = vadd.f32 0.0, %v5178
    %v5180 = vpop.f32.mrb[0].mxu0
    %v5181 = vadd.f32 0.0, %v5180
    %v5182 = vpop.f32.mrb[0].mxu0
    %v5183 = vadd.f32 0.0, %v5182
    %5184 = vmatprep.mubr.bf16.mxu0 0
    %5185 = vmatmul.mubr.bf16.gmra.mrb[0].mxu0 %v5091
    %v5186 = vpop.f32.mrb[0].mxu0
    %v5187 = vadd.f32 0.0, %v5186
    %v5188 = vpop.f32.mrb[0].mxu0
    %v5189 = vadd.f32 0.0, %v5188
    %v5190 = vpop.f32.mrb[0].mxu0
    %v5191 = vadd.f32 0.0, %v5190
    %v5192 = vpop.f32.mrb[0].mxu0
    %v5193 = vadd.f32 0.0, %v5192
    %5194 = vmatprep.mubr.bf16.mxu0 0
    %5195 = vmatmul.mubr.bf16.gmra.mrb[0].mxu0 %v5094
    %v5196 = vpop.f32.mrb[0].mxu0
    %v5197 = vadd.f32 0.0, %v5196
    %v5198 = vpop.f32.mrb[0].mxu0
    %v5199 = vadd.f32 0.0, %v5198
    %v5200 = vpop.f32.mrb[0].mxu0
    %v5201 = vadd.f32 0.0, %v5200
    %v5202 = vpop.f32.mrb[0].mxu0
    %v5203 = vadd.f32 0.0, %v5202
    %5204 = vmatprep.mubr.bf16.mxu0 0
    %5205 = vmatmul.mubr.bf16.gmra.mrb[0].mxu0 %v5097
    %v5206 = vpop.f32.mrb[0].mxu0
    %v5207 = vadd.f32 0.0, %v5206
    %v5208 = vpop.f32.mrb[0].mxu0
    %v5209 = vadd.f32 0.0, %v5208
    %v5210 = vpop.f32.mrb[0].mxu0
    %v5211 = vadd.f32 0.0, %v5210
    %v5212 = vpop.f32.mrb[0].mxu0
    %v5213 = vadd.f32 0.0, %v5212
    %5214 = vmatprep.mubr.bf16.mxu0 0
    %5215 = vmatmul.mubr.bf16.gmra.mrb[0].mxu0 %v5100
    %v5216 = vpop.f32.mrb[0].mxu0
    %v5217 = vadd.f32 0.0, %v5216
    %v5218 = vpop.f32.mrb[0].mxu0
    %v5219 = vadd.f32 0.0, %v5218
    %v5220 = vpop.f32.mrb[0].mxu0
    %v5221 = vadd.f32 0.0, %v5220
    %v5222 = vpop.f32.mrb[0].mxu0
    %v5223 = vadd.f32 0.0, %v5222
    %5224 = vmatprep.mubr.bf16.mxu0 0
    %5225 = vmatmul.mubr.bf16.gmra.mrb[0].mxu0 %v5103
    %v5226 = vpop.f32.mrb[0].mxu0
    %v5227 = vadd.f32 0.0, %v5226
    %v5228 = vpop.f32.mrb[0].mxu0
    %v5229 = vadd.f32 0.0, %v5228
    %v5230 = vpop.f32.mrb[0].mxu0
    %v5231 = vadd.f32 0.0, %v5230
    %v5232 = vpop.f32.mrb[0].mxu0
    %v5233 = vadd.f32 0.0, %v5232
    %5234 = vmatprep.mubr.bf16.mxu0 0
    %5235 = vmatmul.mubr.bf16.gmra.mrb[0].mxu0 %v5106
    %v5236 = vpop.f32.mrb[0].mxu0
    %v5237 = vadd.f32 0.0, %v5236
    %v5238 = vpop.f32.mrb[0].mxu0
    %v5239 = vadd.f32 0.0, %v5238
    %v5240 = vpop.f32.mrb[0].mxu0
    %v5241 = vadd.f32 0.0, %v5240
    %v5242 = vpop.f32.mrb[0].mxu0
    %v5243 = vadd.f32 0.0, %v5242
    %5244 = vmatprep.mubr.bf16.mxu0 0
    %5245 = vmatmul.mubr.bf16.gmra.mrb[0].mxu0 %v5109
    %v5246 = vpop.f32.mrb[0].mxu0
    %v5247 = vadd.f32 0.0, %v5246
    %v5248 = vpop.f32.mrb[0].mxu0
    %v5249 = vadd.f32 0.0, %v5248
    %v5250 = vpop.f32.mrb[0].mxu0
    %v5251 = vadd.f32 0.0, %v5250
    %v5252 = vpop.f32.mrb[0].mxu0
    %v5253 = vadd.f32 0.0, %v5252
    %5254 = vmatprep.mubr.bf16.mxu0 0
    %5255 = vmatmul.mubr.bf16.gmra.mrb[0].mxu0 %v5112
    %v5256 = vpop.f32.mrb[0].mxu0
    %v5257 = vadd.f32 0.0, %v5256
    %v5258 = vpop.f32.mrb[0].mxu0
    %v5259 = vadd.f32 0.0, %v5258
    %v5260 = vpop.f32.mrb[0].mxu0
    %v5261 = vadd.f32 0.0, %v5260
    %v5262 = vpop.f32.mrb[0].mxu0
    %v5263 = vadd.f32 0.0, %v5262
    %5264 = vmatprep.mubr.bf16.mxu0 0
    %5265 = vmatmul.mubr.bf16.gmra.mrb[0].mxu0 %v5115
    %v5266 = vpop.f32.mrb[0].mxu0
    %v5267 = vadd.f32 0.0, %v5266
    %v5268 = vpop.f32.mrb[0].mxu0
    %v5269 = vadd.f32 0.0, %v5268
    %v5270 = vpop.f32.mrb[0].mxu0
    %v5271 = vadd.f32 0.0, %v5270
    %v5272 = vpop.f32.mrb[0].mxu0
    %v5273 = vadd.f32 0.0, %v5272
    %5274 = vmatprep.mubr.bf16.mxu0 0
    %5275 = vmatmul.mubr.bf16.gmra.mrb[0].mxu0 %v5118
    %v5276 = vpop.f32.mrb[0].mxu0
    %v5277 = vadd.f32 0.0, %v5276
    %v5278 = vpop.f32.mrb[0].mxu0
    %v5279 = vadd.f32 0.0, %v5278
    %v5280 = vpop.f32.mrb[0].mxu0
    %v5281 = vadd.f32 0.0, %v5280
    %v5282 = vpop.f32.mrb[0].mxu0
    %v5283 = vadd.f32 0.0, %v5282
    %5284 = vmatprep.mubr.bf16.mxu0 0
    %5285 = vmatmul.mubr.bf16.gmra.mrb[0].mxu0 %v5121
    %v5286 = vpop.f32.mrb[0].mxu0
    %v5287 = vadd.f32 0.0, %v5286
    %v5288 = vpop.f32.mrb[0].mxu0
    %v5289 = vadd.f32 0.0, %v5288
    %v5290 = vpop.f32.mrb[0].mxu0
    %v5291 = vadd.f32 0.0, %v5290
    %v5292 = vpop.f32.mrb[0].mxu0
    %v5293 = vadd.f32 0.0, %v5292
    %5294 = vmatprep.mubr.bf16.mxu0 0
    %5295 = vmatmul.mubr.bf16.gmra.mrb[0].mxu0 %v5124
    %v5296 = vpop.f32.mrb[0].mxu0
    %v5297 = vadd.f32 0.0, %v5296
    %v5298 = vpop.f32.mrb[0].mxu0
    %v5299 = vadd.f32 0.0, %v5298
    %v5300 = vpop.f32.mrb[0].mxu0
    %v5301 = vadd.f32 0.0, %v5300
    %v5302 = vpop.f32.mrb[0].mxu0
    %v5303 = vadd.f32 0.0, %v5302
    %5304 = vmatprep.mubr.bf16.mxu0 0
    %5305 = vmatmul.mubr.bf16.gmra.mrb[0].mxu0 %v5127
    %v5306 = vpop.f32.mrb[0].mxu0
    %v5307 = vadd.f32 0.0, %v5306
    %v5308 = vpop.f32.mrb[0].mxu0
    %v5309 = vadd.f32 0.0, %v5308
    %v5310 = vpop.f32.mrb[0].mxu0
    %v5311 = vadd.f32 0.0, %v5310
    %v5312 = vpop.f32.mrb[0].mxu0
    %v5313 = vadd.f32 0.0, %v5312
    %5314 = vmatprep.mubr.bf16.mxu0 0
    %5315 = vmatmul.mubr.bf16.gmra.mrb[0].mxu0 %v5130
    %v5316 = vpop.f32.mrb[0].mxu0
    %v5317 = vadd.f32 0.0, %v5316
    %v5318 = vpop.f32.mrb[0].mxu0
    %v5319 = vadd.f32 0.0, %v5318
    %v5320 = vpop.f32.mrb[0].mxu0
    %v5321 = vadd.f32 0.0, %v5320
    %v5322 = vpop.f32.mrb[0].mxu0
    %v5323 = vadd.f32 0.0, %v5322
    %5324 = vdwg.mxu0
    %v5326 = vsel %vm909, %v4570, 0
    %v5329 = vsel %vm909, %v4571, 0
    %v5332 = vsel %vm909, %v4572, 0
    %v5335 = vsel %vm909, %v4573, 0
    %v5338 = vsel %vm909, %v4574, 0
    %v5341 = vsel %vm909, %v4575, 0
    %v5344 = vsel %vm909, %v4576, 0
    %v5347 = vsel %vm909, %v4577, 0
    %v5350 = vsel %vm909, %v4578, 0
    %v5353 = vsel %vm909, %v4579, 0
    %v5356 = vsel %vm909, %v4580, 0
    %v5359 = vsel %vm909, %v4581, 0
    %v5362 = vsel %vm909, %v4582, 0
    %v5365 = vsel %vm909, %v4583, 0
    %v5368 = vsel %vm909, %v4584, 0
    %v5371 = vsel %vm909, %v4585, 0
    %5373 = vmatprep.subr.bf16.mxu0 %v4599
    %5374 = vmatpush1.bf16.msra.mxu0 %v4598
    %5375 = vmatprep.subr.bf16.mxu0 %v4601
    %5376 = vmatpush1.bf16.msra.mxu0 %v4600
    %5377 = vmatprep.subr.bf16.mxu0 0
    %5378 = vmatpush1.bf16.msra.mxu0 0
    %5379 = vmatprep.subr.bf16.mxu0 0
    %5380 = vmatpush1.bf16.msra.mxu0 0
    %5381 = vmatprep.subr.bf16.mxu0 0
    %5382 = vmatpush1.bf16.msra.mxu0 0
    %5383 = vmatprep.subr.bf16.mxu0 0
    %5384 = vmatpush1.bf16.msra.mxu0 0
    %5385 = vmatprep.subr.bf16.mxu0 0
    %5386 = vmatpush1.bf16.msra.mxu0 0
    %5387 = vmatprep.subr.bf16.mxu0 0
    %5388 = vmatpush1.bf16.msra.mxu0 0
    %5389 = vmatprep.subr.bf16.mxu0 0
    %5390 = vmatpush1.bf16.msra.mxu0 0
    %5391 = vmatprep.subr.bf16.mxu0 0
    %5392 = vmatpush1.bf16.msra.mxu0 0
    %5393 = vmatprep.subr.bf16.mxu0 0
    %5394 = vmatpush1.bf16.msra.mxu0 0
    %5395 = vmatprep.subr.bf16.mxu0 0
    %5396 = vmatpush1.bf16.msra.mxu0 0
    %5397 = vmatprep.subr.bf16.mxu0 0
    %5398 = vmatpush1.bf16.msra.mxu0 0
    %5399 = vmatprep.subr.bf16.mxu0 0
    %5400 = vmatpush1.bf16.msra.mxu0 0
    %5401 = vmatprep.subr.bf16.mxu0 0
    %5402 = vmatpush1.bf16.msra.mxu0 0
    %5403 = vmatprep.subr.bf16.mxu0 0
    %5404 = vmatpush1.bf16.msra.mxu0 0
    %5405 = vmatprep.mubr.bf16.mxu0 0
    %5406 = vmatmul.mubr.bf16.gmra.mrb[0].mxu0 %v5326
    %v5407 = vpop.f32.mrb[0].mxu0
    %v5408 = vadd.f32 0.0, %v5407
    %v5409 = vpop.f32.mrb[0].mxu0
    %v5410 = vadd.f32 0.0, %v5409
    %v5411 = vpop.f32.mrb[0].mxu0
    %v5412 = vadd.f32 0.0, %v5411
    %v5413 = vpop.f32.mrb[0].mxu0
    %v5414 = vadd.f32 0.0, %v5413
    %5415 = vmatprep.mubr.bf16.mxu0 0
    %5416 = vmatmul.mubr.bf16.gmra.mrb[0].mxu0 %v5329
    %v5417 = vpop.f32.mrb[0].mxu0
    %v5418 = vadd.f32 0.0, %v5417
    %v5419 = vpop.f32.mrb[0].mxu0
    %v5420 = vadd.f32 0.0, %v5419
    %v5421 = vpop.f32.mrb[0].mxu0
    %v5422 = vadd.f32 0.0, %v5421
    %v5423 = vpop.f32.mrb[0].mxu0
    %v5424 = vadd.f32 0.0, %v5423
    %5425 = vmatprep.mubr.bf16.mxu0 0
    %5426 = vmatmul.mubr.bf16.gmra.mrb[0].mxu0 %v5332
    %v5427 = vpop.f32.mrb[0].mxu0
    %v5428 = vadd.f32 0.0, %v5427
    %v5429 = vpop.f32.mrb[0].mxu0
    %v5430 = vadd.f32 0.0, %v5429
    %v5431 = vpop.f32.mrb[0].mxu0
    %v5432 = vadd.f32 0.0, %v5431
    %v5433 = vpop.f32.mrb[0].mxu0
    %v5434 = vadd.f32 0.0, %v5433
    %5435 = vmatprep.mubr.bf16.mxu0 0
    %5436 = vmatmul.mubr.bf16.gmra.mrb[0].mxu0 %v5335
    %v5437 = vpop.f32.mrb[0].mxu0
    %v5438 = vadd.f32 0.0, %v5437
    %v5439 = vpop.f32.mrb[0].mxu0
    %v5440 = vadd.f32 0.0, %v5439
    %v5441 = vpop.f32.mrb[0].mxu0
    %v5442 = vadd.f32 0.0, %v5441
    %v5443 = vpop.f32.mrb[0].mxu0
    %v5444 = vadd.f32 0.0, %v5443
    %5445 = vmatprep.mubr.bf16.mxu0 0
    %5446 = vmatmul.mubr.bf16.gmra.mrb[0].mxu0 %v5338
    %v5447 = vpop.f32.mrb[0].mxu0
    %v5448 = vadd.f32 0.0, %v5447
    %v5449 = vpop.f32.mrb[0].mxu0
    %v5450 = vadd.f32 0.0, %v5449
    %v5451 = vpop.f32.mrb[0].mxu0
    %v5452 = vadd.f32 0.0, %v5451
    %v5453 = vpop.f32.mrb[0].mxu0
    %v5454 = vadd.f32 0.0, %v5453
    %5455 = vmatprep.mubr.bf16.mxu0 0
    %5456 = vmatmul.mubr.bf16.gmra.mrb[0].mxu0 %v5341
    %v5457 = vpop.f32.mrb[0].mxu0
    %v5458 = vadd.f32 0.0, %v5457
    %v5459 = vpop.f32.mrb[0].mxu0
    %v5460 = vadd.f32 0.0, %v5459
    %v5461 = vpop.f32.mrb[0].mxu0
    %v5462 = vadd.f32 0.0, %v5461
    %v5463 = vpop.f32.mrb[0].mxu0
    %v5464 = vadd.f32 0.0, %v5463
    %5465 = vmatprep.mubr.bf16.mxu0 0
    %5466 = vmatmul.mubr.bf16.gmra.mrb[0].mxu0 %v5344
    %v5467 = vpop.f32.mrb[0].mxu0
    %v5468 = vadd.f32 0.0, %v5467
    %v5469 = vpop.f32.mrb[0].mxu0
    %v5470 = vadd.f32 0.0, %v5469
    %v5471 = vpop.f32.mrb[0].mxu0
    %v5472 = vadd.f32 0.0, %v5471
    %v5473 = vpop.f32.mrb[0].mxu0
    %v5474 = vadd.f32 0.0, %v5473
    %5475 = vmatprep.mubr.bf16.mxu0 0
    %5476 = vmatmul.mubr.bf16.gmra.mrb[0].mxu0 %v5347
    %v5477 = vpop.f32.mrb[0].mxu0
    %v5478 = vadd.f32 0.0, %v5477
    %v5479 = vpop.f32.mrb[0].mxu0
    %v5480 = vadd.f32 0.0, %v5479
    %v5481 = vpop.f32.mrb[0].mxu0
    %v5482 = vadd.f32 0.0, %v5481
    %v5483 = vpop.f32.mrb[0].mxu0
    %v5484 = vadd.f32 0.0, %v5483
    %5485 = vmatprep.mubr.bf16.mxu0 0
    %5486 = vmatmul.mubr.bf16.gmra.mrb[0].mxu0 %v5350
    %v5487 = vpop.f32.mrb[0].mxu0
    %v5488 = vadd.f32 0.0, %v5487
    %v5489 = vpop.f32.mrb[0].mxu0
    %v5490 = vadd.f32 0.0, %v5489
    %v5491 = vpop.f32.mrb[0].mxu0
    %v5492 = vadd.f32 0.0, %v5491
    %v5493 = vpop.f32.mrb[0].mxu0
    %v5494 = vadd.f32 0.0, %v5493
    %5495 = vmatprep.mubr.bf16.mxu0 0
    %5496 = vmatmul.mubr.bf16.gmra.mrb[0].mxu0 %v5353
    %v5497 = vpop.f32.mrb[0].mxu0
    %v5498 = vadd.f32 0.0, %v5497
    %v5499 = vpop.f32.mrb[0].mxu0
    %v5500 = vadd.f32 0.0, %v5499
    %v5501 = vpop.f32.mrb[0].mxu0
    %v5502 = vadd.f32 0.0, %v5501
    %v5503 = vpop.f32.mrb[0].mxu0
    %v5504 = vadd.f32 0.0, %v5503
    %5505 = vmatprep.mubr.bf16.mxu0 0
    %5506 = vmatmul.mubr.bf16.gmra.mrb[0].mxu0 %v5356
    %v5507 = vpop.f32.mrb[0].mxu0
    %v5508 = vadd.f32 0.0, %v5507
    %v5509 = vpop.f32.mrb[0].mxu0
    %v5510 = vadd.f32 0.0, %v5509
    %v5511 = vpop.f32.mrb[0].mxu0
    %v5512 = vadd.f32 0.0, %v5511
    %v5513 = vpop.f32.mrb[0].mxu0
    %v5514 = vadd.f32 0.0, %v5513
    %5515 = vmatprep.mubr.bf16.mxu0 0
    %5516 = vmatmul.mubr.bf16.gmra.mrb[0].mxu0 %v5359
    %v5517 = vpop.f32.mrb[0].mxu0
    %v5518 = vadd.f32 0.0, %v5517
    %v5519 = vpop.f32.mrb[0].mxu0
    %v5520 = vadd.f32 0.0, %v5519
    %v5521 = vpop.f32.mrb[0].mxu0
    %v5522 = vadd.f32 0.0, %v5521
    %v5523 = vpop.f32.mrb[0].mxu0
    %v5524 = vadd.f32 0.0, %v5523
    %5525 = vmatprep.mubr.bf16.mxu0 0
    %5526 = vmatmul.mubr.bf16.gmra.mrb[0].mxu0 %v5362
    %v5527 = vpop.f32.mrb[0].mxu0
    %v5528 = vadd.f32 0.0, %v5527
    %v5529 = vpop.f32.mrb[0].mxu0
    %v5530 = vadd.f32 0.0, %v5529
    %v5531 = vpop.f32.mrb[0].mxu0
    %v5532 = vadd.f32 0.0, %v5531
    %v5533 = vpop.f32.mrb[0].mxu0
    %v5534 = vadd.f32 0.0, %v5533
    %5535 = vmatprep.mubr.bf16.mxu0 0
    %5536 = vmatmul.mubr.bf16.gmra.mrb[0].mxu0 %v5365
    %v5537 = vpop.f32.mrb[0].mxu0
    %v5538 = vadd.f32 0.0, %v5537
    %v5539 = vpop.f32.mrb[0].mxu0
    %v5540 = vadd.f32 0.0, %v5539
    %v5541 = vpop.f32.mrb[0].mxu0
    %v5542 = vadd.f32 0.0, %v5541
    %v5543 = vpop.f32.mrb[0].mxu0
    %v5544 = vadd.f32 0.0, %v5543
    %5545 = vmatprep.mubr.bf16.mxu0 0
    %5546 = vmatmul.mubr.bf16.gmra.mrb[0].mxu0 %v5368
    %v5547 = vpop.f32.mrb[0].mxu0
    %v5548 = vadd.f32 0.0, %v5547
    %v5549 = vpop.f32.mrb[0].mxu0
    %v5550 = vadd.f32 0.0, %v5549
    %v5551 = vpop.f32.mrb[0].mxu0
    %v5552 = vadd.f32 0.0, %v5551
    %v5553 = vpop.f32.mrb[0].mxu0
    %v5554 = vadd.f32 0.0, %v5553
    %5555 = vmatprep.mubr.bf16.mxu0 0
    %5556 = vmatmul.mubr.bf16.gmra.mrb[0].mxu0 %v5371
    %v5557 = vpop.f32.mrb[0].mxu0
    %v5558 = vadd.f32 0.0, %v5557
    %v5559 = vpop.f32.mrb[0].mxu0
    %v5560 = vadd.f32 0.0, %v5559
    %v5561 = vpop.f32.mrb[0].mxu0
    %v5562 = vadd.f32 0.0, %v5561
    %v5563 = vpop.f32.mrb[0].mxu0
    %v5564 = vadd.f32 0.0, %v5563
    %5565 = vdwg.mxu0
    %v5566 = vmax.f32 %v4685, %v4689
    %v5567 = vmax.f32 %v5566, %v4695
    %v5568 = vmax.f32 %v5567, %v4699
    %v5569 = vmax.f32 %v5568, %v4705
    %v5570 = vmax.f32 %v5569, %v4709
    %v5571 = vmax.f32 %v5570, %v4715
    %v5572 = vmax.f32 %v5571, %v4719
    %v5573 = vmax.f32 %v5572, %v4725
    %v5574 = vmax.f32 %v5573, %v4729
    %v5575 = vmax.f32 %v5574, %v4735
    %v5576 = vmax.f32 %v5575, %v4739
    %v5577 = vmax.f32 %v5576, %v4745
    %v5578 = vmax.f32 %v5577, %v4749
    %v5579 = vmax.f32 %v5578, %v4755
    %v5580 = vmax.f32 %v5579, %v4759
    %v5581 = vmax.f32 %v5580, %v4765
    %v5582 = vmax.f32 %v5581, %v4769
    %v5583 = vmax.f32 %v5582, %v4775
    %v5584 = vmax.f32 %v5583, %v4779
    %v5585 = vmax.f32 %v5584, %v4785
    %v5586 = vmax.f32 %v5585, %v4789
    %v5587 = vmax.f32 %v5586, %v4795
    %v5588 = vmax.f32 %v5587, %v4799
    %v5589 = vmax.f32 %v5588, %v4805
    %v5590 = vmax.f32 %v5589, %v4809
    %v5591 = vmax.f32 %v5590, %v4815
    %v5592 = vmax.f32 %v5591, %v4819
    %v5593 = vmax.f32 %v5592, %v4825
    %v5594 = vmax.f32 %v5593, %v4829
    %v5595 = vmax.f32 %v5594, %v4835
    %v5596 = vmax.f32 %v5595, %v4839
    %v5597 = vrot.slane %v5596, 4
    %v5598 = vmax.f32 %v5596, %v5597
    %v5599 = vrot.slane %v5598, 2
    %v5600 = vmax.f32 %v5598, %v5599
    %v5601 = vrot.slane %v5600, 1
    %v5602 = vmax.f32 %v5600, %v5601
    %v5603 = vmax.f32 %v4687, %v4691
    %v5604 = vmax.f32 %v5603, %v4697
    %v5605 = vmax.f32 %v5604, %v4701
    %v5606 = vmax.f32 %v5605, %v4707
    %v5607 = vmax.f32 %v5606, %v4711
    %v5608 = vmax.f32 %v5607, %v4717
    %v5609 = vmax.f32 %v5608, %v4721
    %v5610 = vmax.f32 %v5609, %v4727
    %v5611 = vmax.f32 %v5610, %v4731
    %v5612 = vmax.f32 %v5611, %v4737
    %v5613 = vmax.f32 %v5612, %v4741
    %v5614 = vmax.f32 %v5613, %v4747
    %v5615 = vmax.f32 %v5614, %v4751
    %v5616 = vmax.f32 %v5615, %v4757
    %v5617 = vmax.f32 %v5616, %v4761
    %v5618 = vmax.f32 %v5617, %v4767
    %v5619 = vmax.f32 %v5618, %v4771
    %v5620 = vmax.f32 %v5619, %v4777
    %v5621 = vmax.f32 %v5620, %v4781
    %v5622 = vmax.f32 %v5621, %v4787
    %v5623 = vmax.f32 %v5622, %v4791
    %v5624 = vmax.f32 %v5623, %v4797
    %v5625 = vmax.f32 %v5624, %v4801
    %v5626 = vmax.f32 %v5625, %v4807
    %v5627 = vmax.f32 %v5626, %v4811
    %v5628 = vmax.f32 %v5627, %v4817
    %v5629 = vmax.f32 %v5628, %v4821
    %v5630 = vmax.f32 %v5629, %v4827
    %v5631 = vmax.f32 %v5630, %v4831
    %v5632 = vmax.f32 %v5631, %v4837
    %v5633 = vmax.f32 %v5632, %v4841
    %v5634 = vrot.slane %v5633, 4
    %v5635 = vmax.f32 %v5633, %v5634
    %v5636 = vrot.slane %v5635, 2
    %v5637 = vmax.f32 %v5635, %v5636
    %v5638 = vrot.slane %v5637, 1
    %v5639 = vmax.f32 %v5637, %v5638
    %v5640 = vmax.f32 %v4926, %v4930
    %v5641 = vmax.f32 %v5640, %v4936
    %v5642 = vmax.f32 %v5641, %v4940
    %v5643 = vmax.f32 %v5642, %v4946
    %v5644 = vmax.f32 %v5643, %v4950
    %v5645 = vmax.f32 %v5644, %v4956
    %v5646 = vmax.f32 %v5645, %v4960
    %v5647 = vmax.f32 %v5646, %v4966
    %v5648 = vmax.f32 %v5647, %v4970
    %v5649 = vmax.f32 %v5648, %v4976
    %v5650 = vmax.f32 %v5649, %v4980
    %v5651 = vmax.f32 %v5650, %v4986
    %v5652 = vmax.f32 %v5651, %v4990
    %v5653 = vmax.f32 %v5652, %v4996
    %v5654 = vmax.f32 %v5653, %v5000
    %v5655 = vmax.f32 %v5654, %v5006
    %v5656 = vmax.f32 %v5655, %v5010
    %v5657 = vmax.f32 %v5656, %v5016
    %v5658 = vmax.f32 %v5657, %v5020
    %v5659 = vmax.f32 %v5658, %v5026
    %v5660 = vmax.f32 %v5659, %v5030
    %v5661 = vmax.f32 %v5660, %v5036
    %v5662 = vmax.f32 %v5661, %v5040
    %v5663 = vmax.f32 %v5662, %v5046
    %v5664 = vmax.f32 %v5663, %v5050
    %v5665 = vmax.f32 %v5664, %v5056
    %v5666 = vmax.f32 %v5665, %v5060
    %v5667 = vmax.f32 %v5666, %v5066
    %v5668 = vmax.f32 %v5667, %v5070
    %v5669 = vmax.f32 %v5668, %v5076
    %v5670 = vmax.f32 %v5669, %v5080
    %v5671 = vrot.slane %v5670, 4
    %v5672 = vmax.f32 %v5670, %v5671
    %v5673 = vrot.slane %v5672, 2
    %v5674 = vmax.f32 %v5672, %v5673
    %v5675 = vrot.slane %v5674, 1
    %v5676 = vmax.f32 %v5674, %v5675
    %v5677 = vmax.f32 %v4928, %v4932
    %v5678 = vmax.f32 %v5677, %v4938
    %v5679 = vmax.f32 %v5678, %v4942
    %v5680 = vmax.f32 %v5679, %v4948
    %v5681 = vmax.f32 %v5680, %v4952
    %v5682 = vmax.f32 %v5681, %v4958
    %v5683 = vmax.f32 %v5682, %v4962
    %v5684 = vmax.f32 %v5683, %v4968
    %v5685 = vmax.f32 %v5684, %v4972
    %v5686 = vmax.f32 %v5685, %v4978
    %v5687 = vmax.f32 %v5686, %v4982
    %v5688 = vmax.f32 %v5687, %v4988
    %v5689 = vmax.f32 %v5688, %v4992
    %v5690 = vmax.f32 %v5689, %v4998
    %v5691 = vmax.f32 %v5690, %v5002
    %v5692 = vmax.f32 %v5691, %v5008
    %v5693 = vmax.f32 %v5692, %v5012
    %v5694 = vmax.f32 %v5693, %v5018
    %v5695 = vmax.f32 %v5694, %v5022
    %v5696 = vmax.f32 %v5695, %v5028
    %v5697 = vmax.f32 %v5696, %v5032
    %v5698 = vmax.f32 %v5697, %v5038
    %v5699 = vmax.f32 %v5698, %v5042
    %v5700 = vmax.f32 %v5699, %v5048
    %v5701 = vmax.f32 %v5700, %v5052
    %v5702 = vmax.f32 %v5701, %v5058
    %v5703 = vmax.f32 %v5702, %v5062
    %v5704 = vmax.f32 %v5703, %v5068
    %v5705 = vmax.f32 %v5704, %v5072
    %v5706 = vmax.f32 %v5705, %v5078
    %v5707 = vmax.f32 %v5706, %v5082
    %v5708 = vrot.slane %v5707, 4
    %v5709 = vmax.f32 %v5707, %v5708
    %v5710 = vrot.slane %v5709, 2
    %v5711 = vmax.f32 %v5709, %v5710
    %v5712 = vrot.slane %v5711, 1
    %v5713 = vmax.f32 %v5711, %v5712
    %v5714 = vmax.f32 %v5167, %v5171
    %v5715 = vmax.f32 %v5714, %v5177
    %v5716 = vmax.f32 %v5715, %v5181
    %v5717 = vmax.f32 %v5716, %v5187
    %v5718 = vmax.f32 %v5717, %v5191
    %v5719 = vmax.f32 %v5718, %v5197
    %v5720 = vmax.f32 %v5719, %v5201
    %v5721 = vmax.f32 %v5720, %v5207
    %v5722 = vmax.f32 %v5721, %v5211
    %v5723 = vmax.f32 %v5722, %v5217
    %v5724 = vmax.f32 %v5723, %v5221
    %v5725 = vmax.f32 %v5724, %v5227
    %v5726 = vmax.f32 %v5725, %v5231
    %v5727 = vmax.f32 %v5726, %v5237
    %v5728 = vmax.f32 %v5727, %v5241
    %v5729 = vmax.f32 %v5728, %v5247
    %v5730 = vmax.f32 %v5729, %v5251
    %v5731 = vmax.f32 %v5730, %v5257
    %v5732 = vmax.f32 %v5731, %v5261
    %v5733 = vmax.f32 %v5732, %v5267
    %v5734 = vmax.f32 %v5733, %v5271
    %v5735 = vmax.f32 %v5734, %v5277
    %v5736 = vmax.f32 %v5735, %v5281
    %v5737 = vmax.f32 %v5736, %v5287
    %v5738 = vmax.f32 %v5737, %v5291
    %v5739 = vmax.f32 %v5738, %v5297
    %v5740 = vmax.f32 %v5739, %v5301
    %v5741 = vmax.f32 %v5740, %v5307
    %v5742 = vmax.f32 %v5741, %v5311
    %v5743 = vmax.f32 %v5742, %v5317
    %v5744 = vmax.f32 %v5743, %v5321
    %v5745 = vrot.slane %v5744, 4
    %v5746 = vmax.f32 %v5744, %v5745
    %v5747 = vrot.slane %v5746, 2
    %v5748 = vmax.f32 %v5746, %v5747
    %v5749 = vrot.slane %v5748, 1
    %v5750 = vmax.f32 %v5748, %v5749
    %v5751 = vmax.f32 %v5169, %v5173
    %v5752 = vmax.f32 %v5751, %v5179
    %v5753 = vmax.f32 %v5752, %v5183
    %v5754 = vmax.f32 %v5753, %v5189
    %v5755 = vmax.f32 %v5754, %v5193
    %v5756 = vmax.f32 %v5755, %v5199
    %v5757 = vmax.f32 %v5756, %v5203
    %v5758 = vmax.f32 %v5757, %v5209
    %v5759 = vmax.f32 %v5758, %v5213
    %v5760 = vmax.f32 %v5759, %v5219
    %v5761 = vmax.f32 %v5760, %v5223
    %v5762 = vmax.f32 %v5761, %v5229
    %v5763 = vmax.f32 %v5762, %v5233
    %v5764 = vmax.f32 %v5763, %v5239
    %v5765 = vmax.f32 %v5764, %v5243
    %v5766 = vmax.f32 %v5765, %v5249
    %v5767 = vmax.f32 %v5766, %v5253
    %v5768 = vmax.f32 %v5767, %v5259
    %v5769 = vmax.f32 %v5768, %v5263
    %v5770 = vmax.f32 %v5769, %v5269
    %v5771 = vmax.f32 %v5770, %v5273
    %v5772 = vmax.f32 %v5771, %v5279
    %v5773 = vmax.f32 %v5772, %v5283
    %v5774 = vmax.f32 %v5773, %v5289
    %v5775 = vmax.f32 %v5774, %v5293
    %v5776 = vmax.f32 %v5775, %v5299
    %v5777 = vmax.f32 %v5776, %v5303
    %v5778 = vmax.f32 %v5777, %v5309
    %v5779 = vmax.f32 %v5778, %v5313
    %v5780 = vmax.f32 %v5779, %v5319
    %v5781 = vmax.f32 %v5780, %v5323
    %v5782 = vrot.slane %v5781, 4
    %v5783 = vmax.f32 %v5781, %v5782
    %v5784 = vrot.slane %v5783, 2
    %v5785 = vmax.f32 %v5783, %v5784
    %v5786 = vrot.slane %v5785, 1
    %v5787 = vmax.f32 %v5785, %v5786
    %v5788 = vmax.f32 %v5408, %v5412
    %v5789 = vmax.f32 %v5788, %v5418
    %v5790 = vmax.f32 %v5789, %v5422
    %v5791 = vmax.f32 %v5790, %v5428
    %v5792 = vmax.f32 %v5791, %v5432
    %v5793 = vmax.f32 %v5792, %v5438
    %v5794 = vmax.f32 %v5793, %v5442
    %v5795 = vmax.f32 %v5794, %v5448
    %v5796 = vmax.f32 %v5795, %v5452
    %v5797 = vmax.f32 %v5796, %v5458
    %v5798 = vmax.f32 %v5797, %v5462
    %v5799 = vmax.f32 %v5798, %v5468
    %v5800 = vmax.f32 %v5799, %v5472
    %v5801 = vmax.f32 %v5800, %v5478
    %v5802 = vmax.f32 %v5801, %v5482
    %v5803 = vmax.f32 %v5802, %v5488
    %v5804 = vmax.f32 %v5803, %v5492
    %v5805 = vmax.f32 %v5804, %v5498
    %v5806 = vmax.f32 %v5805, %v5502
    %v5807 = vmax.f32 %v5806, %v5508
    %v5808 = vmax.f32 %v5807, %v5512
    %v5809 = vmax.f32 %v5808, %v5518
    %v5810 = vmax.f32 %v5809, %v5522
    %v5811 = vmax.f32 %v5810, %v5528
    %v5812 = vmax.f32 %v5811, %v5532
    %v5813 = vmax.f32 %v5812, %v5538
    %v5814 = vmax.f32 %v5813, %v5542
    %v5815 = vmax.f32 %v5814, %v5548
    %v5816 = vmax.f32 %v5815, %v5552
    %v5817 = vmax.f32 %v5816, %v5558
    %v5818 = vmax.f32 %v5817, %v5562
    %v5819 = vrot.slane %v5818, 4
    %v5820 = vmax.f32 %v5818, %v5819
    %v5821 = vrot.slane %v5820, 2
    %v5822 = vmax.f32 %v5820, %v5821
    %v5823 = vrot.slane %v5822, 1
    %v5824 = vmax.f32 %v5822, %v5823
    %v5825 = vmax.f32 %v5410, %v5414
    %v5826 = vmax.f32 %v5825, %v5420
    %v5827 = vmax.f32 %v5826, %v5424
    %v5828 = vmax.f32 %v5827, %v5430
    %v5829 = vmax.f32 %v5828, %v5434
    %v5830 = vmax.f32 %v5829, %v5440
    %v5831 = vmax.f32 %v5830, %v5444
    %v5832 = vmax.f32 %v5831, %v5450
    %v5833 = vmax.f32 %v5832, %v5454
    %v5834 = vmax.f32 %v5833, %v5460
    %v5835 = vmax.f32 %v5834, %v5464
    %v5836 = vmax.f32 %v5835, %v5470
    %v5837 = vmax.f32 %v5836, %v5474
    %v5838 = vmax.f32 %v5837, %v5480
    %v5839 = vmax.f32 %v5838, %v5484
    %v5840 = vmax.f32 %v5839, %v5490
    %v5841 = vmax.f32 %v5840, %v5494
    %v5842 = vmax.f32 %v5841, %v5500
    %v5843 = vmax.f32 %v5842, %v5504
    %v5844 = vmax.f32 %v5843, %v5510
    %v5845 = vmax.f32 %v5844, %v5514
    %v5846 = vmax.f32 %v5845, %v5520
    %v5847 = vmax.f32 %v5846, %v5524
    %v5848 = vmax.f32 %v5847, %v5530
    %v5849 = vmax.f32 %v5848, %v5534
    %v5850 = vmax.f32 %v5849, %v5540
    %v5851 = vmax.f32 %v5850, %v5544
    %v5852 = vmax.f32 %v5851, %v5550
    %v5853 = vmax.f32 %v5852, %v5554
    %v5854 = vmax.f32 %v5853, %v5560
    %v5855 = vmax.f32 %v5854, %v5564
    %v5856 = vrot.slane %v5855, 4
    %v5857 = vmax.f32 %v5855, %v5856
    %v5858 = vrot.slane %v5857, 2
    %v5859 = vmax.f32 %v5857, %v5858
    %v5860 = vrot.slane %v5859, 1
    %v5861 = vmax.f32 %v5859, %v5860
    %v5862 = vsub.f32 %v4685, %v5602
    %v5863 = vsub.f32 %v4687, %v5639
    %v5864 = vsub.f32 %v4689, %v5602
    %v5865 = vsub.f32 %v4691, %v5639
    %v5866 = vsub.f32 %v4695, %v5602
    %v5867 = vsub.f32 %v4697, %v5639
    %v5868 = vsub.f32 %v4699, %v5602
    %v5869 = vsub.f32 %v4701, %v5639
    %v5870 = vsub.f32 %v4705, %v5602
    %v5871 = vsub.f32 %v4707, %v5639
    %v5872 = vsub.f32 %v4709, %v5602
    %v5873 = vsub.f32 %v4711, %v5639
    %v5874 = vsub.f32 %v4715, %v5602
    %v5875 = vsub.f32 %v4717, %v5639
    %v5876 = vsub.f32 %v4719, %v5602
    %v5877 = vsub.f32 %v4721, %v5639
    %v5878 = vsub.f32 %v4725, %v5602
    %v5879 = vsub.f32 %v4727, %v5639
    %v5880 = vsub.f32 %v4729, %v5602
    %v5881 = vsub.f32 %v4731, %v5639
    %v5882 = vsub.f32 %v4735, %v5602
    %v5883 = vsub.f32 %v4737, %v5639
    %v5884 = vsub.f32 %v4739, %v5602
    %v5885 = vsub.f32 %v4741, %v5639
    %v5886 = vsub.f32 %v4745, %v5602
    %v5887 = vsub.f32 %v4747, %v5639
    %v5888 = vsub.f32 %v4749, %v5602
    %v5889 = vsub.f32 %v4751, %v5639
    %v5890 = vsub.f32 %v4755, %v5602
    %v5891 = vsub.f32 %v4757, %v5639
    %v5892 = vsub.f32 %v4759, %v5602
    %v5893 = vsub.f32 %v4761, %v5639
    %v5894 = vsub.f32 %v4765, %v5602
    %v5895 = vsub.f32 %v4767, %v5639
    %v5896 = vsub.f32 %v4769, %v5602
    %v5897 = vsub.f32 %v4771, %v5639
    %v5898 = vsub.f32 %v4775, %v5602
    %v5899 = vsub.f32 %v4777, %v5639
    %v5900 = vsub.f32 %v4779, %v5602
    %v5901 = vsub.f32 %v4781, %v5639
    %v5902 = vsub.f32 %v4785, %v5602
    %v5903 = vsub.f32 %v4787, %v5639
    %v5904 = vsub.f32 %v4789, %v5602
    %v5905 = vsub.f32 %v4791, %v5639
    %v5906 = vsub.f32 %v4795, %v5602
    %v5907 = vsub.f32 %v4797, %v5639
    %v5908 = vsub.f32 %v4799, %v5602
    %v5909 = vsub.f32 %v4801, %v5639
    %v5910 = vsub.f32 %v4805, %v5602
    %v5911 = vsub.f32 %v4807, %v5639
    %v5912 = vsub.f32 %v4809, %v5602
    %v5913 = vsub.f32 %v4811, %v5639
    %v5914 = vsub.f32 %v4815, %v5602
    %v5915 = vsub.f32 %v4817, %v5639
    %v5916 = vsub.f32 %v4819, %v5602
    %v5917 = vsub.f32 %v4821, %v5639
    %v5918 = vsub.f32 %v4825, %v5602
    %v5919 = vsub.f32 %v4827, %v5639
    %v5920 = vsub.f32 %v4829, %v5602
    %v5921 = vsub.f32 %v4831, %v5639
    %v5922 = vsub.f32 %v4835, %v5602
    %v5923 = vsub.f32 %v4837, %v5639
    %v5924 = vsub.f32 %v4839, %v5602
    %v5925 = vsub.f32 %v4841, %v5639
    %v5926 = vsub.f32 %v4926, %v5676
    %v5927 = vsub.f32 %v4928, %v5713
    %v5928 = vsub.f32 %v4930, %v5676
    %v5929 = vsub.f32 %v4932, %v5713
    %v5930 = vsub.f32 %v4936, %v5676
    %v5931 = vsub.f32 %v4938, %v5713
    %v5932 = vsub.f32 %v4940, %v5676
    %v5933 = vsub.f32 %v4942, %v5713
    %v5934 = vsub.f32 %v4946, %v5676
    %v5935 = vsub.f32 %v4948, %v5713
    %v5936 = vsub.f32 %v4950, %v5676
    %v5937 = vsub.f32 %v4952, %v5713
    %v5938 = vsub.f32 %v4956, %v5676
    %v5939 = vsub.f32 %v4958, %v5713
    %v5940 = vsub.f32 %v4960, %v5676
    %v5941 = vsub.f32 %v4962, %v5713
    %v5942 = vsub.f32 %v4966, %v5676
    %v5943 = vsub.f32 %v4968, %v5713
    %v5944 = vsub.f32 %v4970, %v5676
    %v5945 = vsub.f32 %v4972, %v5713
    %v5946 = vsub.f32 %v4976, %v5676
    %v5947 = vsub.f32 %v4978, %v5713
    %v5948 = vsub.f32 %v4980, %v5676
    %v5949 = vsub.f32 %v4982, %v5713
    %v5950 = vsub.f32 %v4986, %v5676
    %v5951 = vsub.f32 %v4988, %v5713
    %v5952 = vsub.f32 %v4990, %v5676
    %v5953 = vsub.f32 %v4992, %v5713
    %v5954 = vsub.f32 %v4996, %v5676
    %v5955 = vsub.f32 %v4998, %v5713
    %v5956 = vsub.f32 %v5000, %v5676
    %v5957 = vsub.f32 %v5002, %v5713
    %v5958 = vsub.f32 %v5006, %v5676
    %v5959 = vsub.f32 %v5008, %v5713
    %v5960 = vsub.f32 %v5010, %v5676
    %v5961 = vsub.f32 %v5012, %v5713
    %v5962 = vsub.f32 %v5016, %v5676
    %v5963 = vsub.f32 %v5018, %v5713
    %v5964 = vsub.f32 %v5020, %v5676
    %v5965 = vsub.f32 %v5022, %v5713
    %v5966 = vsub.f32 %v5026, %v5676
    %v5967 = vsub.f32 %v5028, %v5713
    %v5968 = vsub.f32 %v5030, %v5676
    %v5969 = vsub.f32 %v5032, %v5713
    %v5970 = vsub.f32 %v5036, %v5676
    %v5971 = vsub.f32 %v5038, %v5713
    %v5972 = vsub.f32 %v5040, %v5676
    %v5973 = vsub.f32 %v5042, %v5713
    %v5974 = vsub.f32 %v5046, %v5676
    %v5975 = vsub.f32 %v5048, %v5713
    %v5976 = vsub.f32 %v5050, %v5676
    %v5977 = vsub.f32 %v5052, %v5713
    %v5978 = vsub.f32 %v5056, %v5676
    %v5979 = vsub.f32 %v5058, %v5713
    %v5980 = vsub.f32 %v5060, %v5676
    %v5981 = vsub.f32 %v5062, %v5713
    %v5982 = vsub.f32 %v5066, %v5676
    %v5983 = vsub.f32 %v5068, %v5713
    %v5984 = vsub.f32 %v5070, %v5676
    %v5985 = vsub.f32 %v5072, %v5713
    %v5986 = vsub.f32 %v5076, %v5676
    %v5987 = vsub.f32 %v5078, %v5713
    %v5988 = vsub.f32 %v5080, %v5676
    %v5989 = vsub.f32 %v5082, %v5713
    %v5990 = vsub.f32 %v5167, %v5750
    %v5991 = vsub.f32 %v5169, %v5787
    %v5992 = vsub.f32 %v5171, %v5750
    %v5993 = vsub.f32 %v5173, %v5787
    %v5994 = vsub.f32 %v5177, %v5750
    %v5995 = vsub.f32 %v5179, %v5787
    %v5996 = vsub.f32 %v5181, %v5750
    %v5997 = vsub.f32 %v5183, %v5787
    %v5998 = vsub.f32 %v5187, %v5750
    %v5999 = vsub.f32 %v5189, %v5787
    %v6000 = vsub.f32 %v5191, %v5750
    %v6001 = vsub.f32 %v5193, %v5787
    %v6002 = vsub.f32 %v5197, %v5750
    %v6003 = vsub.f32 %v5199, %v5787
    %v6004 = vsub.f32 %v5201, %v5750
    %v6005 = vsub.f32 %v5203, %v5787
    %v6006 = vsub.f32 %v5207, %v5750
    %v6007 = vsub.f32 %v5209, %v5787
    %v6008 = vsub.f32 %v5211, %v5750
    %v6009 = vsub.f32 %v5213, %v5787
    %v6010 = vsub.f32 %v5217, %v5750
    %v6011 = vsub.f32 %v5219, %v5787
    %v6012 = vsub.f32 %v5221, %v5750
    %v6013 = vsub.f32 %v5223, %v5787
    %v6014 = vsub.f32 %v5227, %v5750
    %v6015 = vsub.f32 %v5229, %v5787
    %v6016 = vsub.f32 %v5231, %v5750
    %v6017 = vsub.f32 %v5233, %v5787
    %v6018 = vsub.f32 %v5237, %v5750
    %v6019 = vsub.f32 %v5239, %v5787
    %v6020 = vsub.f32 %v5241, %v5750
    %v6021 = vsub.f32 %v5243, %v5787
    %v6022 = vsub.f32 %v5247, %v5750
    %v6023 = vsub.f32 %v5249, %v5787
    %v6024 = vsub.f32 %v5251, %v5750
    %v6025 = vsub.f32 %v5253, %v5787
    %v6026 = vsub.f32 %v5257, %v5750
    %v6027 = vsub.f32 %v5259, %v5787
    %v6028 = vsub.f32 %v5261, %v5750
    %v6029 = vsub.f32 %v5263, %v5787
    %v6030 = vsub.f32 %v5267, %v5750
    %v6031 = vsub.f32 %v5269, %v5787
    %v6032 = vsub.f32 %v5271, %v5750
    %v6033 = vsub.f32 %v5273, %v5787
    %v6034 = vsub.f32 %v5277, %v5750
    %v6035 = vsub.f32 %v5279, %v5787
    %v6036 = vsub.f32 %v5281, %v5750
    %v6037 = vsub.f32 %v5283, %v5787
    %v6038 = vsub.f32 %v5287, %v5750
    %v6039 = vsub.f32 %v5289, %v5787
    %v6040 = vsub.f32 %v5291, %v5750
    %v6041 = vsub.f32 %v5293, %v5787
    %v6042 = vsub.f32 %v5297, %v5750
    %v6043 = vsub.f32 %v5299, %v5787
    %v6044 = vsub.f32 %v5301, %v5750
    %v6045 = vsub.f32 %v5303, %v5787
    %v6046 = vsub.f32 %v5307, %v5750
    %v6047 = vsub.f32 %v5309, %v5787
    %v6048 = vsub.f32 %v5311, %v5750
    %v6049 = vsub.f32 %v5313, %v5787
    %v6050 = vsub.f32 %v5317, %v5750
    %v6051 = vsub.f32 %v5319, %v5787
    %v6052 = vsub.f32 %v5321, %v5750
    %v6053 = vsub.f32 %v5323, %v5787
    %v6054 = vsub.f32 %v5408, %v5824
    %v6055 = vsub.f32 %v5410, %v5861
    %v6056 = vsub.f32 %v5412, %v5824
    %v6057 = vsub.f32 %v5414, %v5861
    %v6058 = vsub.f32 %v5418, %v5824
    %v6059 = vsub.f32 %v5420, %v5861
    %v6060 = vsub.f32 %v5422, %v5824
    %v6061 = vsub.f32 %v5424, %v5861
    %v6062 = vsub.f32 %v5428, %v5824
    %v6063 = vsub.f32 %v5430, %v5861
    %v6064 = vsub.f32 %v5432, %v5824
    %v6065 = vsub.f32 %v5434, %v5861
    %v6066 = vsub.f32 %v5438, %v5824
    %v6067 = vsub.f32 %v5440, %v5861
    %v6068 = vsub.f32 %v5442, %v5824
    %v6069 = vsub.f32 %v5444, %v5861
    %v6070 = vsub.f32 %v5448, %v5824
    %v6071 = vsub.f32 %v5450, %v5861
    %v6072 = vsub.f32 %v5452, %v5824
    %v6073 = vsub.f32 %v5454, %v5861
    %v6074 = vsub.f32 %v5458, %v5824
    %v6075 = vsub.f32 %v5460, %v5861
    %v6076 = vsub.f32 %v5462, %v5824
    %v6077 = vsub.f32 %v5464, %v5861
    %v6078 = vsub.f32 %v5468, %v5824
    %v6079 = vsub.f32 %v5470, %v5861
    %v6080 = vsub.f32 %v5472, %v5824
    %v6081 = vsub.f32 %v5474, %v5861
    %v6082 = vsub.f32 %v5478, %v5824
    %v6083 = vsub.f32 %v5480, %v5861
    %v6084 = vsub.f32 %v5482, %v5824
    %v6085 = vsub.f32 %v5484, %v5861
    %v6086 = vsub.f32 %v5488, %v5824
    %v6087 = vsub.f32 %v5490, %v5861
    %v6088 = vsub.f32 %v5492, %v5824
    %v6089 = vsub.f32 %v5494, %v5861
    %v6090 = vsub.f32 %v5498, %v5824
    %v6091 = vsub.f32 %v5500, %v5861
    %v6092 = vsub.f32 %v5502, %v5824
    %v6093 = vsub.f32 %v5504, %v5861
    %v6094 = vsub.f32 %v5508, %v5824
    %v6095 = vsub.f32 %v5510, %v5861
    %v6096 = vsub.f32 %v5512, %v5824
    %v6097 = vsub.f32 %v5514, %v5861
    %v6098 = vsub.f32 %v5518, %v5824
    %v6099 = vsub.f32 %v5520, %v5861
    %v6100 = vsub.f32 %v5522, %v5824
    %v6101 = vsub.f32 %v5524, %v5861
    %v6102 = vsub.f32 %v5528, %v5824
    %v6103 = vsub.f32 %v5530, %v5861
    %v6104 = vsub.f32 %v5532, %v5824
    %v6105 = vsub.f32 %v5534, %v5861
    %v6106 = vsub.f32 %v5538, %v5824
    %v6107 = vsub.f32 %v5540, %v5861
    %v6108 = vsub.f32 %v5542, %v5824
    %v6109 = vsub.f32 %v5544, %v5861
    %v6110 = vsub.f32 %v5548, %v5824
    %v6111 = vsub.f32 %v5550, %v5861
    %v6112 = vsub.f32 %v5552, %v5824
    %v6113 = vsub.f32 %v5554, %v5861
    %v6114 = vsub.f32 %v5558, %v5824
    %v6115 = vsub.f32 %v5560, %v5861
    %v6116 = vsub.f32 %v5562, %v5824
    %v6117 = vsub.f32 %v5564, %v5861
    %v6118 = vmul.f32 %v5862, 1.442695
    %v6119 = vpow.pop %v6118
    %v6120 = vmul.f32 %v5863, 1.442695
    %v6121 = vpow.pop %v6120
    %v6122 = vmul.f32 %v5864, 1.442695
    %v6123 = vpow.pop %v6122
    %v6124 = vmul.f32 %v5865, 1.442695
    %v6125 = vpow.pop %v6124
    %v6126 = vmul.f32 %v5866, 1.442695
    %v6127 = vpow.pop %v6126
    %v6128 = vmul.f32 %v5867, 1.442695
    %v6129 = vpow.pop %v6128
    %v6130 = vmul.f32 %v5868, 1.442695
    %v6131 = vpow.pop %v6130
    %v6132 = vmul.f32 %v5869, 1.442695
    %v6133 = vpow.pop %v6132
    %v6134 = vmul.f32 %v5870, 1.442695
    %v6135 = vpow.pop %v6134
    %v6136 = vmul.f32 %v5871, 1.442695
    %v6137 = vpow.pop %v6136
    %v6138 = vmul.f32 %v5872, 1.442695
    %v6139 = vpow.pop %v6138
    %v6140 = vmul.f32 %v5873, 1.442695
    %v6141 = vpow.pop %v6140
    %v6142 = vmul.f32 %v5874, 1.442695
    %v6143 = vpow.pop %v6142
    %v6144 = vmul.f32 %v5875, 1.442695
    %v6145 = vpow.pop %v6144
    %v6146 = vmul.f32 %v5876, 1.442695
    %v6147 = vpow.pop %v6146
    %v6148 = vmul.f32 %v5877, 1.442695
    %v6149 = vpow.pop %v6148
    %v6150 = vmul.f32 %v5878, 1.442695
    %v6151 = vpow.pop %v6150
    %v6152 = vmul.f32 %v5879, 1.442695
    %v6153 = vpow.pop %v6152
    %v6154 = vmul.f32 %v5880, 1.442695
    %v6155 = vpow.pop %v6154
    %v6156 = vmul.f32 %v5881, 1.442695
    %v6157 = vpow.pop %v6156
    %v6158 = vmul.f32 %v5882, 1.442695
    %v6159 = vpow.pop %v6158
    %v6160 = vmul.f32 %v5883, 1.442695
    %v6161 = vpow.pop %v6160
    %v6162 = vmul.f32 %v5884, 1.442695
    %v6163 = vpow.pop %v6162
    %v6164 = vmul.f32 %v5885, 1.442695
    %v6165 = vpow.pop %v6164
    %v6166 = vmul.f32 %v5886, 1.442695
    %v6167 = vpow.pop %v6166
    %v6168 = vmul.f32 %v5887, 1.442695
    %v6169 = vpow.pop %v6168
    %v6170 = vmul.f32 %v5888, 1.442695
    %v6171 = vpow.pop %v6170
    %v6172 = vmul.f32 %v5889, 1.442695
    %v6173 = vpow.pop %v6172
    %v6174 = vmul.f32 %v5890, 1.442695
    %v6175 = vpow.pop %v6174
    %v6176 = vmul.f32 %v5891, 1.442695
    %v6177 = vpow.pop %v6176
    %v6178 = vmul.f32 %v5892, 1.442695
    %v6179 = vpow.pop %v6178
    %v6180 = vmul.f32 %v5893, 1.442695
    %v6181 = vpow.pop %v6180
    %v6182 = vmul.f32 %v5894, 1.442695
    %v6183 = vpow.pop %v6182
    %v6184 = vmul.f32 %v5895, 1.442695
    %v6185 = vpow.pop %v6184
    %v6186 = vmul.f32 %v5896, 1.442695
    %v6187 = vpow.pop %v6186
    %v6188 = vmul.f32 %v5897, 1.442695
    %v6189 = vpow.pop %v6188
    %v6190 = vmul.f32 %v5898, 1.442695
    %v6191 = vpow.pop %v6190
    %v6192 = vmul.f32 %v5899, 1.442695
    %v6193 = vpow.pop %v6192
    %v6194 = vmul.f32 %v5900, 1.442695
    %v6195 = vpow.pop %v6194
    %v6196 = vmul.f32 %v5901, 1.442695
    %v6197 = vpow.pop %v6196
    %v6198 = vmul.f32 %v5902, 1.442695
    %v6199 = vpow.pop %v6198
    %v6200 = vmul.f32 %v5903, 1.442695
    %v6201 = vpow.pop %v6200
    %v6202 = vmul.f32 %v5904, 1.442695
    %v6203 = vpow.pop %v6202
    %v6204 = vmul.f32 %v5905, 1.442695
    %v6205 = vpow.pop %v6204
    %v6206 = vmul.f32 %v5906, 1.442695
    %v6207 = vpow.pop %v6206
    %v6208 = vmul.f32 %v5907, 1.442695
    %v6209 = vpow.pop %v6208
    %v6210 = vmul.f32 %v5908, 1.442695
    %v6211 = vpow.pop %v6210
    %v6212 = vmul.f32 %v5909, 1.442695
    %v6213 = vpow.pop %v6212
    %v6214 = vmul.f32 %v5910, 1.442695
    %v6215 = vpow.pop %v6214
    %v6216 = vmul.f32 %v5911, 1.442695
    %v6217 = vpow.pop %v6216
    %v6218 = vmul.f32 %v5912, 1.442695
    %v6219 = vpow.pop %v6218
    %v6220 = vmul.f32 %v5913, 1.442695
    %v6221 = vpow.pop %v6220
    %v6222 = vmul.f32 %v5914, 1.442695
    %v6223 = vpow.pop %v6222
    %v6224 = vmul.f32 %v5915, 1.442695
    %v6225 = vpow.pop %v6224
    %v6226 = vmul.f32 %v5916, 1.442695
    %v6227 = vpow.pop %v6226
    %v6228 = vmul.f32 %v5917, 1.442695
    %v6229 = vpow.pop %v6228
    %v6230 = vmul.f32 %v5918, 1.442695
    %v6231 = vpow.pop %v6230
    %v6232 = vmul.f32 %v5919, 1.442695
    %v6233 = vpow.pop %v6232
    %v6234 = vmul.f32 %v5920, 1.442695
    %v6235 = vpow.pop %v6234
    %v6236 = vmul.f32 %v5921, 1.442695
    %v6237 = vpow.pop %v6236
    %v6238 = vmul.f32 %v5922, 1.442695
    %v6239 = vpow.pop %v6238
    %v6240 = vmul.f32 %v5923, 1.442695
    %v6241 = vpow.pop %v6240
    %v6242 = vmul.f32 %v5924, 1.442695
    %v6243 = vpow.pop %v6242
    %v6244 = vmul.f32 %v5925, 1.442695
    %v6245 = vpow.pop %v6244
    %v6246 = vmul.f32 %v5926, 1.442695
    %v6247 = vpow.pop %v6246
    %v6248 = vmul.f32 %v5927, 1.442695
    %v6249 = vpow.pop %v6248
    %v6250 = vmul.f32 %v5928, 1.442695
    %v6251 = vpow.pop %v6250
    %v6252 = vmul.f32 %v5929, 1.442695
    %v6253 = vpow.pop %v6252
    %v6254 = vmul.f32 %v5930, 1.442695
    %v6255 = vpow.pop %v6254
    %v6256 = vmul.f32 %v5931, 1.442695
    %v6257 = vpow.pop %v6256
    %v6258 = vmul.f32 %v5932, 1.442695
    %v6259 = vpow.pop %v6258
    %v6260 = vmul.f32 %v5933, 1.442695
    %v6261 = vpow.pop %v6260
    %v6262 = vmul.f32 %v5934, 1.442695
    %v6263 = vpow.pop %v6262
    %v6264 = vmul.f32 %v5935, 1.442695
    %v6265 = vpow.pop %v6264
    %v6266 = vmul.f32 %v5936, 1.442695
    %v6267 = vpow.pop %v6266
    %v6268 = vmul.f32 %v5937, 1.442695
    %v6269 = vpow.pop %v6268
    %v6270 = vmul.f32 %v5938, 1.442695
    %v6271 = vpow.pop %v6270
    %v6272 = vmul.f32 %v5939, 1.442695
    %v6273 = vpow.pop %v6272
    %v6274 = vmul.f32 %v5940, 1.442695
    %v6275 = vpow.pop %v6274
    %v6276 = vmul.f32 %v5941, 1.442695
    %v6277 = vpow.pop %v6276
    %v6278 = vmul.f32 %v5942, 1.442695
    %v6279 = vpow.pop %v6278
    %v6280 = vmul.f32 %v5943, 1.442695
    %v6281 = vpow.pop %v6280
    %v6282 = vmul.f32 %v5944, 1.442695
    %v6283 = vpow.pop %v6282
    %v6284 = vmul.f32 %v5945, 1.442695
    %v6285 = vpow.pop %v6284
    %v6286 = vmul.f32 %v5946, 1.442695
    %v6287 = vpow.pop %v6286
    %v6288 = vmul.f32 %v5947, 1.442695
    %v6289 = vpow.pop %v6288
    %v6290 = vmul.f32 %v5948, 1.442695
    %v6291 = vpow.pop %v6290
    %v6292 = vmul.f32 %v5949, 1.442695
    %v6293 = vpow.pop %v6292
    %v6294 = vmul.f32 %v5950, 1.442695
    %v6295 = vpow.pop %v6294
    %v6296 = vmul.f32 %v5951, 1.442695
    %v6297 = vpow.pop %v6296
    %v6298 = vmul.f32 %v5952, 1.442695
    %v6299 = vpow.pop %v6298
    %v6300 = vmul.f32 %v5953, 1.442695
    %v6301 = vpow.pop %v6300
    %v6302 = vmul.f32 %v5954, 1.442695
    %v6303 = vpow.pop %v6302
    %v6304 = vmul.f32 %v5955, 1.442695
    %v6305 = vpow.pop %v6304
    %v6306 = vmul.f32 %v5956, 1.442695
    %v6307 = vpow.pop %v6306
    %v6308 = vmul.f32 %v5957, 1.442695
    %v6309 = vpow.pop %v6308
    %v6310 = vmul.f32 %v5958, 1.442695
    %v6311 = vpow.pop %v6310
    %v6312 = vmul.f32 %v5959, 1.442695
    %v6313 = vpow.pop %v6312
    %v6314 = vmul.f32 %v5960, 1.442695
    %v6315 = vpow.pop %v6314
    %v6316 = vmul.f32 %v5961, 1.442695
    %v6317 = vpow.pop %v6316
    %v6318 = vmul.f32 %v5962, 1.442695
    %v6319 = vpow.pop %v6318
    %v6320 = vmul.f32 %v5963, 1.442695
    %v6321 = vpow.pop %v6320
    %v6322 = vmul.f32 %v5964, 1.442695
    %v6323 = vpow.pop %v6322
    %v6324 = vmul.f32 %v5965, 1.442695
    %v6325 = vpow.pop %v6324
    %v6326 = vmul.f32 %v5966, 1.442695
    %v6327 = vpow.pop %v6326
    %v6328 = vmul.f32 %v5967, 1.442695
    %v6329 = vpow.pop %v6328
    %v6330 = vmul.f32 %v5968, 1.442695
    %v6331 = vpow.pop %v6330
    %v6332 = vmul.f32 %v5969, 1.442695
    %v6333 = vpow.pop %v6332
    %v6334 = vmul.f32 %v5970, 1.442695
    %v6335 = vpow.pop %v6334
    %v6336 = vmul.f32 %v5971, 1.442695
    %v6337 = vpow.pop %v6336
    %v6338 = vmul.f32 %v5972, 1.442695
    %v6339 = vpow.pop %v6338
    %v6340 = vmul.f32 %v5973, 1.442695
    %v6341 = vpow.pop %v6340
    %v6342 = vmul.f32 %v5974, 1.442695
    %v6343 = vpow.pop %v6342
    %v6344 = vmul.f32 %v5975, 1.442695
    %v6345 = vpow.pop %v6344
    %v6346 = vmul.f32 %v5976, 1.442695
    %v6347 = vpow.pop %v6346
    %v6348 = vmul.f32 %v5977, 1.442695
    %v6349 = vpow.pop %v6348
    %v6350 = vmul.f32 %v5978, 1.442695
    %v6351 = vpow.pop %v6350
    %v6352 = vmul.f32 %v5979, 1.442695
    %v6353 = vpow.pop %v6352
    %v6354 = vmul.f32 %v5980, 1.442695
    %v6355 = vpow.pop %v6354
    %v6356 = vmul.f32 %v5981, 1.442695
    %v6357 = vpow.pop %v6356
    %v6358 = vmul.f32 %v5982, 1.442695
    %v6359 = vpow.pop %v6358
    %v6360 = vmul.f32 %v5983, 1.442695
    %v6361 = vpow.pop %v6360
    %v6362 = vmul.f32 %v5984, 1.442695
    %v6363 = vpow.pop %v6362
    %v6364 = vmul.f32 %v5985, 1.442695
    %v6365 = vpow.pop %v6364
    %v6366 = vmul.f32 %v5986, 1.442695
    %v6367 = vpow.pop %v6366
    %v6368 = vmul.f32 %v5987, 1.442695
    %v6369 = vpow.pop %v6368
    %v6370 = vmul.f32 %v5988, 1.442695
    %v6371 = vpow.pop %v6370
    %v6372 = vmul.f32 %v5989, 1.442695
    %v6373 = vpow.pop %v6372
    %v6374 = vmul.f32 %v5990, 1.442695
    %v6375 = vpow.pop %v6374
    %v6376 = vmul.f32 %v5991, 1.442695
    %v6377 = vpow.pop %v6376
    %v6378 = vmul.f32 %v5992, 1.442695
    %v6379 = vpow.pop %v6378
    %v6380 = vmul.f32 %v5993, 1.442695
    %v6381 = vpow.pop %v6380
    %v6382 = vmul.f32 %v5994, 1.442695
    %v6383 = vpow.pop %v6382
    %v6384 = vmul.f32 %v5995, 1.442695
    %v6385 = vpow.pop %v6384
    %v6386 = vmul.f32 %v5996, 1.442695
    %v6387 = vpow.pop %v6386
    %v6388 = vmul.f32 %v5997, 1.442695
    %v6389 = vpow.pop %v6388
    %v6390 = vmul.f32 %v5998, 1.442695
    %v6391 = vpow.pop %v6390
    %v6392 = vmul.f32 %v5999, 1.442695
    %v6393 = vpow.pop %v6392
    %v6394 = vmul.f32 %v6000, 1.442695
    %v6395 = vpow.pop %v6394
    %v6396 = vmul.f32 %v6001, 1.442695
    %v6397 = vpow.pop %v6396
    %v6398 = vmul.f32 %v6002, 1.442695
    %v6399 = vpow.pop %v6398
    %v6400 = vmul.f32 %v6003, 1.442695
    %v6401 = vpow.pop %v6400
    %v6402 = vmul.f32 %v6004, 1.442695
    %v6403 = vpow.pop %v6402
    %v6404 = vmul.f32 %v6005, 1.442695
    %v6405 = vpow.pop %v6404
    %v6406 = vmul.f32 %v6006, 1.442695
    %v6407 = vpow.pop %v6406
    %v6408 = vmul.f32 %v6007, 1.442695
    %v6409 = vpow.pop %v6408
    %v6410 = vmul.f32 %v6008, 1.442695
    %v6411 = vpow.pop %v6410
    %v6412 = vmul.f32 %v6009, 1.442695
    %v6413 = vpow.pop %v6412
    %v6414 = vmul.f32 %v6010, 1.442695
    %v6415 = vpow.pop %v6414
    %v6416 = vmul.f32 %v6011, 1.442695
    %v6417 = vpow.pop %v6416
    %v6418 = vmul.f32 %v6012, 1.442695
    %v6419 = vpow.pop %v6418
    %v6420 = vmul.f32 %v6013, 1.442695
    %v6421 = vpow.pop %v6420
    %v6422 = vmul.f32 %v6014, 1.442695
    %v6423 = vpow.pop %v6422
    %v6424 = vmul.f32 %v6015, 1.442695
    %v6425 = vpow.pop %v6424
    %v6426 = vmul.f32 %v6016, 1.442695
    %v6427 = vpow.pop %v6426
    %v6428 = vmul.f32 %v6017, 1.442695
    %v6429 = vpow.pop %v6428
    %v6430 = vmul.f32 %v6018, 1.442695
    %v6431 = vpow.pop %v6430
    %v6432 = vmul.f32 %v6019, 1.442695
    %v6433 = vpow.pop %v6432
    %v6434 = vmul.f32 %v6020, 1.442695
    %v6435 = vpow.pop %v6434
    %v6436 = vmul.f32 %v6021, 1.442695
    %v6437 = vpow.pop %v6436
    %v6438 = vmul.f32 %v6022, 1.442695
    %v6439 = vpow.pop %v6438
    %v6440 = vmul.f32 %v6023, 1.442695
    %v6441 = vpow.pop %v6440
    %v6442 = vmul.f32 %v6024, 1.442695
    %v6443 = vpow.pop %v6442
    %v6444 = vmul.f32 %v6025, 1.442695
    %v6445 = vpow.pop %v6444
    %v6446 = vmul.f32 %v6026, 1.442695
    %v6447 = vpow.pop %v6446
    %v6448 = vmul.f32 %v6027, 1.442695
    %v6449 = vpow.pop %v6448
    %v6450 = vmul.f32 %v6028, 1.442695
    %v6451 = vpow.pop %v6450
    %v6452 = vmul.f32 %v6029, 1.442695
    %v6453 = vpow.pop %v6452
    %v6454 = vmul.f32 %v6030, 1.442695
    %v6455 = vpow.pop %v6454
    %v6456 = vmul.f32 %v6031, 1.442695
    %v6457 = vpow.pop %v6456
    %v6458 = vmul.f32 %v6032, 1.442695
    %v6459 = vpow.pop %v6458
    %v6460 = vmul.f32 %v6033, 1.442695
    %v6461 = vpow.pop %v6460
    %v6462 = vmul.f32 %v6034, 1.442695
    %v6463 = vpow.pop %v6462
    %v6464 = vmul.f32 %v6035, 1.442695
    %v6465 = vpow.pop %v6464
    %v6466 = vmul.f32 %v6036, 1.442695
    %v6467 = vpow.pop %v6466
    %v6468 = vmul.f32 %v6037, 1.442695
    %v6469 = vpow.pop %v6468
    %v6470 = vmul.f32 %v6038, 1.442695
    %v6471 = vpow.pop %v6470
    %v6472 = vmul.f32 %v6039, 1.442695
    %v6473 = vpow.pop %v6472
    %v6474 = vmul.f32 %v6040, 1.442695
    %v6475 = vpow.pop %v6474
    %v6476 = vmul.f32 %v6041, 1.442695
    %v6477 = vpow.pop %v6476
    %v6478 = vmul.f32 %v6042, 1.442695
    %v6479 = vpow.pop %v6478
    %v6480 = vmul.f32 %v6043, 1.442695
    %v6481 = vpow.pop %v6480
    %v6482 = vmul.f32 %v6044, 1.442695
    %v6483 = vpow.pop %v6482
    %v6484 = vmul.f32 %v6045, 1.442695
    %v6485 = vpow.pop %v6484
    %v6486 = vmul.f32 %v6046, 1.442695
    %v6487 = vpow.pop %v6486
    %v6488 = vmul.f32 %v6047, 1.442695
    %v6489 = vpow.pop %v6488
    %v6490 = vmul.f32 %v6048, 1.442695
    %v6491 = vpow.pop %v6490
    %v6492 = vmul.f32 %v6049, 1.442695
    %v6493 = vpow.pop %v6492
    %v6494 = vmul.f32 %v6050, 1.442695
    %v6495 = vpow.pop %v6494
    %v6496 = vmul.f32 %v6051, 1.442695
    %v6497 = vpow.pop %v6496
    %v6498 = vmul.f32 %v6052, 1.442695
    %v6499 = vpow.pop %v6498
    %v6500 = vmul.f32 %v6053, 1.442695
    %v6501 = vpow.pop %v6500
    %v6502 = vmul.f32 %v6054, 1.442695
    %v6503 = vpow.pop %v6502
    %v6504 = vmul.f32 %v6055, 1.442695
    %v6505 = vpow.pop %v6504
    %v6506 = vmul.f32 %v6056, 1.442695
    %v6507 = vpow.pop %v6506
    %v6508 = vmul.f32 %v6057, 1.442695
    %v6509 = vpow.pop %v6508
    %v6510 = vmul.f32 %v6058, 1.442695
    %v6511 = vpow.pop %v6510
    %v6512 = vmul.f32 %v6059, 1.442695
    %v6513 = vpow.pop %v6512
    %v6514 = vmul.f32 %v6060, 1.442695
    %v6515 = vpow.pop %v6514
    %v6516 = vmul.f32 %v6061, 1.442695
    %v6517 = vpow.pop %v6516
    %v6518 = vmul.f32 %v6062, 1.442695
    %v6519 = vpow.pop %v6518
    %v6520 = vmul.f32 %v6063, 1.442695
    %v6521 = vpow.pop %v6520
    %v6522 = vmul.f32 %v6064, 1.442695
    %v6523 = vpow.pop %v6522
    %v6524 = vmul.f32 %v6065, 1.442695
    %v6525 = vpow.pop %v6524
    %v6526 = vmul.f32 %v6066, 1.442695
    %v6527 = vpow.pop %v6526
    %v6528 = vmul.f32 %v6067, 1.442695
    %v6529 = vpow.pop %v6528
    %v6530 = vmul.f32 %v6068, 1.442695
    %v6531 = vpow.pop %v6530
    %v6532 = vmul.f32 %v6069, 1.442695
    %v6533 = vpow.pop %v6532
    %v6534 = vmul.f32 %v6070, 1.442695
    %v6535 = vpow.pop %v6534
    %v6536 = vmul.f32 %v6071, 1.442695
    %v6537 = vpow.pop %v6536
    %v6538 = vmul.f32 %v6072, 1.442695
    %v6539 = vpow.pop %v6538
    %v6540 = vmul.f32 %v6073, 1.442695
    %v6541 = vpow.pop %v6540
    %v6542 = vmul.f32 %v6074, 1.442695
    %v6543 = vpow.pop %v6542
    %v6544 = vmul.f32 %v6075, 1.442695
    %v6545 = vpow.pop %v6544
    %v6546 = vmul.f32 %v6076, 1.442695
    %v6547 = vpow.pop %v6546
    %v6548 = vmul.f32 %v6077, 1.442695
    %v6549 = vpow.pop %v6548
    %v6550 = vmul.f32 %v6078, 1.442695
    %v6551 = vpow.pop %v6550
    %v6552 = vmul.f32 %v6079, 1.442695
    %v6553 = vpow.pop %v6552
    %v6554 = vmul.f32 %v6080, 1.442695
    %v6555 = vpow.pop %v6554
    %v6556 = vmul.f32 %v6081, 1.442695
    %v6557 = vpow.pop %v6556
    %v6558 = vmul.f32 %v6082, 1.442695
    %v6559 = vpow.pop %v6558
    %v6560 = vmul.f32 %v6083, 1.442695
    %v6561 = vpow.pop %v6560
    %v6562 = vmul.f32 %v6084, 1.442695
    %v6563 = vpow.pop %v6562
    %v6564 = vmul.f32 %v6085, 1.442695
    %v6565 = vpow.pop %v6564
    %v6566 = vmul.f32 %v6086, 1.442695
    %v6567 = vpow.pop %v6566
    %v6568 = vmul.f32 %v6087, 1.442695
    %v6569 = vpow.pop %v6568
    %v6570 = vmul.f32 %v6088, 1.442695
    %v6571 = vpow.pop %v6570
    %v6572 = vmul.f32 %v6089, 1.442695
    %v6573 = vpow.pop %v6572
    %v6574 = vmul.f32 %v6090, 1.442695
    %v6575 = vpow.pop %v6574
    %v6576 = vmul.f32 %v6091, 1.442695
    %v6577 = vpow.pop %v6576
    %v6578 = vmul.f32 %v6092, 1.442695
    %v6579 = vpow.pop %v6578
    %v6580 = vmul.f32 %v6093, 1.442695
    %v6581 = vpow.pop %v6580
    %v6582 = vmul.f32 %v6094, 1.442695
    %v6583 = vpow.pop %v6582
    %v6584 = vmul.f32 %v6095, 1.442695
    %v6585 = vpow.pop %v6584
    %v6586 = vmul.f32 %v6096, 1.442695
    %v6587 = vpow.pop %v6586
    %v6588 = vmul.f32 %v6097, 1.442695
    %v6589 = vpow.pop %v6588
    %v6590 = vmul.f32 %v6098, 1.442695
    %v6591 = vpow.pop %v6590
    %v6592 = vmul.f32 %v6099, 1.442695
    %v6593 = vpow.pop %v6592
    %v6594 = vmul.f32 %v6100, 1.442695
    %v6595 = vpow.pop %v6594
    %v6596 = vmul.f32 %v6101, 1.442695
    %v6597 = vpow.pop %v6596
    %v6598 = vmul.f32 %v6102, 1.442695
    %v6599 = vpow.pop %v6598
    %v6600 = vmul.f32 %v6103, 1.442695
    %v6601 = vpow.pop %v6600
    %v6602 = vmul.f32 %v6104, 1.442695
    %v6603 = vpow.pop %v6602
    %v6604 = vmul.f32 %v6105, 1.442695
    %v6605 = vpow.pop %v6604
    %v6606 = vmul.f32 %v6106, 1.442695
    %v6607 = vpow.pop %v6606
    %v6608 = vmul.f32 %v6107, 1.442695
    %v6609 = vpow.pop %v6608
    %v6610 = vmul.f32 %v6108, 1.442695
    %v6611 = vpow.pop %v6610
    %v6612 = vmul.f32 %v6109, 1.442695
    %v6613 = vpow.pop %v6612
    %v6614 = vmul.f32 %v6110, 1.442695
    %v6615 = vpow.pop %v6614
    %v6616 = vmul.f32 %v6111, 1.442695
    %v6617 = vpow.pop %v6616
    %v6618 = vmul.f32 %v6112, 1.442695
    %v6619 = vpow.pop %v6618
    %v6620 = vmul.f32 %v6113, 1.442695
    %v6621 = vpow.pop %v6620
    %v6622 = vmul.f32 %v6114, 1.442695
    %v6623 = vpow.pop %v6622
    %v6624 = vmul.f32 %v6115, 1.442695
    %v6625 = vpow.pop %v6624
    %v6626 = vmul.f32 %v6116, 1.442695
    %v6627 = vpow.pop %v6626
    %v6628 = vmul.f32 %v6117, 1.442695
    %v6629 = vpow.pop %v6628
    %v6630 = vadd.f32 %v6119, %v6123
    %v6631 = vadd.f32 %v6630, %v6127
    %v6632 = vadd.f32 %v6631, %v6131
    %v6633 = vadd.f32 %v6632, %v6135
    %v6634 = vadd.f32 %v6633, %v6139
    %v6635 = vadd.f32 %v6634, %v6143
    %v6636 = vadd.f32 %v6635, %v6147
    %v6637 = vadd.f32 %v6636, %v6151
    %v6638 = vadd.f32 %v6637, %v6155
    %v6639 = vadd.f32 %v6638, %v6159
    %v6640 = vadd.f32 %v6639, %v6163
    %v6641 = vadd.f32 %v6640, %v6167
    %v6642 = vadd.f32 %v6641, %v6171
    %v6643 = vadd.f32 %v6642, %v6175
    %v6644 = vadd.f32 %v6643, %v6179
    %v6645 = vadd.f32 %v6644, %v6183
    %v6646 = vadd.f32 %v6645, %v6187
    %v6647 = vadd.f32 %v6646, %v6191
    %v6648 = vadd.f32 %v6647, %v6195
    %v6649 = vadd.f32 %v6648, %v6199
    %v6650 = vadd.f32 %v6649, %v6203
    %v6651 = vadd.f32 %v6650, %v6207
    %v6652 = vadd.f32 %v6651, %v6211
    %v6653 = vadd.f32 %v6652, %v6215
    %v6654 = vadd.f32 %v6653, %v6219
    %v6655 = vadd.f32 %v6654, %v6223
    %v6656 = vadd.f32 %v6655, %v6227
    %v6657 = vadd.f32 %v6656, %v6231
    %v6658 = vadd.f32 %v6657, %v6235
    %v6659 = vadd.f32 %v6658, %v6239
    %v6660 = vadd.f32 %v6659, %v6243
    %v6661 = vrot.slane %v6660, 4
    %v6662 = vadd.f32 %v6660, %v6661
    %v6663 = vrot.slane %v6662, 2
    %v6664 = vadd.f32 %v6662, %v6663
    %v6665 = vrot.slane %v6664, 1
    %v6666 = vadd.f32 %v6664, %v6665
    %v6667 = vadd.f32 %v6121, %v6125
    %v6668 = vadd.f32 %v6667, %v6129
    %v6669 = vadd.f32 %v6668, %v6133
    %v6670 = vadd.f32 %v6669, %v6137
    %v6671 = vadd.f32 %v6670, %v6141
    %v6672 = vadd.f32 %v6671, %v6145
    %v6673 = vadd.f32 %v6672, %v6149
    %v6674 = vadd.f32 %v6673, %v6153
    %v6675 = vadd.f32 %v6674, %v6157
    %v6676 = vadd.f32 %v6675, %v6161
    %v6677 = vadd.f32 %v6676, %v6165
    %v6678 = vadd.f32 %v6677, %v6169
    %v6679 = vadd.f32 %v6678, %v6173
    %v6680 = vadd.f32 %v6679, %v6177
    %v6681 = vadd.f32 %v6680, %v6181
    %v6682 = vadd.f32 %v6681, %v6185
    %v6683 = vadd.f32 %v6682, %v6189
    %v6684 = vadd.f32 %v6683, %v6193
    %v6685 = vadd.f32 %v6684, %v6197
    %v6686 = vadd.f32 %v6685, %v6201
    %v6687 = vadd.f32 %v6686, %v6205
    %v6688 = vadd.f32 %v6687, %v6209
    %v6689 = vadd.f32 %v6688, %v6213
    %v6690 = vadd.f32 %v6689, %v6217
    %v6691 = vadd.f32 %v6690, %v6221
    %v6692 = vadd.f32 %v6691, %v6225
    %v6693 = vadd.f32 %v6692, %v6229
    %v6694 = vadd.f32 %v6693, %v6233
    %v6695 = vadd.f32 %v6694, %v6237
    %v6696 = vadd.f32 %v6695, %v6241
    %v6697 = vadd.f32 %v6696, %v6245
    %v6698 = vrot.slane %v6697, 4
    %v6699 = vadd.f32 %v6697, %v6698
    %v6700 = vrot.slane %v6699, 2
    %v6701 = vadd.f32 %v6699, %v6700
    %v6702 = vrot.slane %v6701, 1
    %v6703 = vadd.f32 %v6701, %v6702
    %v6704 = vadd.f32 %v6247, %v6251
    %v6705 = vadd.f32 %v6704, %v6255
    %v6706 = vadd.f32 %v6705, %v6259
    %v6707 = vadd.f32 %v6706, %v6263
    %v6708 = vadd.f32 %v6707, %v6267
    %v6709 = vadd.f32 %v6708, %v6271
    %v6710 = vadd.f32 %v6709, %v6275
    %v6711 = vadd.f32 %v6710, %v6279
    %v6712 = vadd.f32 %v6711, %v6283
    %v6713 = vadd.f32 %v6712, %v6287
    %v6714 = vadd.f32 %v6713, %v6291
    %v6715 = vadd.f32 %v6714, %v6295
    %v6716 = vadd.f32 %v6715, %v6299
    %v6717 = vadd.f32 %v6716, %v6303
    %v6718 = vadd.f32 %v6717, %v6307
    %v6719 = vadd.f32 %v6718, %v6311
    %v6720 = vadd.f32 %v6719, %v6315
    %v6721 = vadd.f32 %v6720, %v6319
    %v6722 = vadd.f32 %v6721, %v6323
    %v6723 = vadd.f32 %v6722, %v6327
    %v6724 = vadd.f32 %v6723, %v6331
    %v6725 = vadd.f32 %v6724, %v6335
    %v6726 = vadd.f32 %v6725, %v6339
    %v6727 = vadd.f32 %v6726, %v6343
    %v6728 = vadd.f32 %v6727, %v6347
    %v6729 = vadd.f32 %v6728, %v6351
    %v6730 = vadd.f32 %v6729, %v6355
    %v6731 = vadd.f32 %v6730, %v6359
    %v6732 = vadd.f32 %v6731, %v6363
    %v6733 = vadd.f32 %v6732, %v6367
    %v6734 = vadd.f32 %v6733, %v6371
    %v6735 = vrot.slane %v6734, 4
    %v6736 = vadd.f32 %v6734, %v6735
    %v6737 = vrot.slane %v6736, 2
    %v6738 = vadd.f32 %v6736, %v6737
    %v6739 = vrot.slane %v6738, 1
    %v6740 = vadd.f32 %v6738, %v6739
    %v6741 = vadd.f32 %v6249, %v6253
    %v6742 = vadd.f32 %v6741, %v6257
    %v6743 = vadd.f32 %v6742, %v6261
    %v6744 = vadd.f32 %v6743, %v6265
    %v6745 = vadd.f32 %v6744, %v6269
    %v6746 = vadd.f32 %v6745, %v6273
    %v6747 = vadd.f32 %v6746, %v6277
    %v6748 = vadd.f32 %v6747, %v6281
    %v6749 = vadd.f32 %v6748, %v6285
    %v6750 = vadd.f32 %v6749, %v6289
    %v6751 = vadd.f32 %v6750, %v6293
    %v6752 = vadd.f32 %v6751, %v6297
    %v6753 = vadd.f32 %v6752, %v6301
    %v6754 = vadd.f32 %v6753, %v6305
    %v6755 = vadd.f32 %v6754, %v6309
    %v6756 = vadd.f32 %v6755, %v6313
    %v6757 = vadd.f32 %v6756, %v6317
    %v6758 = vadd.f32 %v6757, %v6321
    %v6759 = vadd.f32 %v6758, %v6325
    %v6760 = vadd.f32 %v6759, %v6329
    %v6761 = vadd.f32 %v6760, %v6333
    %v6762 = vadd.f32 %v6761, %v6337
    %v6763 = vadd.f32 %v6762, %v6341
    %v6764 = vadd.f32 %v6763, %v6345
    %v6765 = vadd.f32 %v6764, %v6349
    %v6766 = vadd.f32 %v6765, %v6353
    %v6767 = vadd.f32 %v6766, %v6357
    %v6768 = vadd.f32 %v6767, %v6361
    %v6769 = vadd.f32 %v6768, %v6365
    %v6770 = vadd.f32 %v6769, %v6369
    %v6771 = vadd.f32 %v6770, %v6373
    %v6772 = vrot.slane %v6771, 4
    %v6773 = vadd.f32 %v6771, %v6772
    %v6774 = vrot.slane %v6773, 2
    %v6775 = vadd.f32 %v6773, %v6774
    %v6776 = vrot.slane %v6775, 1
    %v6777 = vadd.f32 %v6775, %v6776
    %v6778 = vadd.f32 %v6375, %v6379
    %v6779 = vadd.f32 %v6778, %v6383
    %v6780 = vadd.f32 %v6779, %v6387
    %v6781 = vadd.f32 %v6780, %v6391
    %v6782 = vadd.f32 %v6781, %v6395
    %v6783 = vadd.f32 %v6782, %v6399
    %v6784 = vadd.f32 %v6783, %v6403
    %v6785 = vadd.f32 %v6784, %v6407
    %v6786 = vadd.f32 %v6785, %v6411
    %v6787 = vadd.f32 %v6786, %v6415
    %v6788 = vadd.f32 %v6787, %v6419
    %v6789 = vadd.f32 %v6788, %v6423
    %v6790 = vadd.f32 %v6789, %v6427
    %v6791 = vadd.f32 %v6790, %v6431
    %v6792 = vadd.f32 %v6791, %v6435
    %v6793 = vadd.f32 %v6792, %v6439
    %v6794 = vadd.f32 %v6793, %v6443
    %v6795 = vadd.f32 %v6794, %v6447
    %v6796 = vadd.f32 %v6795, %v6451
    %v6797 = vadd.f32 %v6796, %v6455
    %v6798 = vadd.f32 %v6797, %v6459
    %v6799 = vadd.f32 %v6798, %v6463
    %v6800 = vadd.f32 %v6799, %v6467
    %v6801 = vadd.f32 %v6800, %v6471
    %v6802 = vadd.f32 %v6801, %v6475
    %v6803 = vadd.f32 %v6802, %v6479
    %v6804 = vadd.f32 %v6803, %v6483
    %v6805 = vadd.f32 %v6804, %v6487
    %v6806 = vadd.f32 %v6805, %v6491
    %v6807 = vadd.f32 %v6806, %v6495
    %v6808 = vadd.f32 %v6807, %v6499
    %v6809 = vrot.slane %v6808, 4
    %v6810 = vadd.f32 %v6808, %v6809
    %v6811 = vrot.slane %v6810, 2
    %v6812 = vadd.f32 %v6810, %v6811
    %v6813 = vrot.slane %v6812, 1
    %v6814 = vadd.f32 %v6812, %v6813
    %v6815 = vadd.f32 %v6377, %v6381
    %v6816 = vadd.f32 %v6815, %v6385
    %v6817 = vadd.f32 %v6816, %v6389
    %v6818 = vadd.f32 %v6817, %v6393
    %v6819 = vadd.f32 %v6818, %v6397
    %v6820 = vadd.f32 %v6819, %v6401
    %v6821 = vadd.f32 %v6820, %v6405
    %v6822 = vadd.f32 %v6821, %v6409
    %v6823 = vadd.f32 %v6822, %v6413
    %v6824 = vadd.f32 %v6823, %v6417
    %v6825 = vadd.f32 %v6824, %v6421
    %v6826 = vadd.f32 %v6825, %v6425
    %v6827 = vadd.f32 %v6826, %v6429
    %v6828 = vadd.f32 %v6827, %v6433
    %v6829 = vadd.f32 %v6828, %v6437
    %v6830 = vadd.f32 %v6829, %v6441
    %v6831 = vadd.f32 %v6830, %v6445
    %v6832 = vadd.f32 %v6831, %v6449
    %v6833 = vadd.f32 %v6832, %v6453
    %v6834 = vadd.f32 %v6833, %v6457
    %v6835 = vadd.f32 %v6834, %v6461
    %v6836 = vadd.f32 %v6835, %v6465
    %v6837 = vadd.f32 %v6836, %v6469
    %v6838 = vadd.f32 %v6837, %v6473
    %v6839 = vadd.f32 %v6838, %v6477
    %v6840 = vadd.f32 %v6839, %v6481
    %v6841 = vadd.f32 %v6840, %v6485
    %v6842 = vadd.f32 %v6841, %v6489
    %v6843 = vadd.f32 %v6842, %v6493
    %v6844 = vadd.f32 %v6843, %v6497
    %v6845 = vadd.f32 %v6844, %v6501
    %v6846 = vrot.slane %v6845, 4
    %v6847 = vadd.f32 %v6845, %v6846
    %v6848 = vrot.slane %v6847, 2
    %v6849 = vadd.f32 %v6847, %v6848
    %v6850 = vrot.slane %v6849, 1
    %v6851 = vadd.f32 %v6849, %v6850
    %v6852 = vadd.f32 %v6503, %v6507
    %v6853 = vadd.f32 %v6852, %v6511
    %v6854 = vadd.f32 %v6853, %v6515
    %v6855 = vadd.f32 %v6854, %v6519
    %v6856 = vadd.f32 %v6855, %v6523
    %v6857 = vadd.f32 %v6856, %v6527
    %v6858 = vadd.f32 %v6857, %v6531
    %v6859 = vadd.f32 %v6858, %v6535
    %v6860 = vadd.f32 %v6859, %v6539
    %v6861 = vadd.f32 %v6860, %v6543
    %v6862 = vadd.f32 %v6861, %v6547
    %v6863 = vadd.f32 %v6862, %v6551
    %v6864 = vadd.f32 %v6863, %v6555
    %v6865 = vadd.f32 %v6864, %v6559
    %v6866 = vadd.f32 %v6865, %v6563
    %v6867 = vadd.f32 %v6866, %v6567
    %v6868 = vadd.f32 %v6867, %v6571
    %v6869 = vadd.f32 %v6868, %v6575
    %v6870 = vadd.f32 %v6869, %v6579
    %v6871 = vadd.f32 %v6870, %v6583
    %v6872 = vadd.f32 %v6871, %v6587
    %v6873 = vadd.f32 %v6872, %v6591
    %v6874 = vadd.f32 %v6873, %v6595
    %v6875 = vadd.f32 %v6874, %v6599
    %v6876 = vadd.f32 %v6875, %v6603
    %v6877 = vadd.f32 %v6876, %v6607
    %v6878 = vadd.f32 %v6877, %v6611
    %v6879 = vadd.f32 %v6878, %v6615
    %v6880 = vadd.f32 %v6879, %v6619
    %v6881 = vadd.f32 %v6880, %v6623
    %v6882 = vadd.f32 %v6881, %v6627
    %v6883 = vrot.slane %v6882, 4
    %v6884 = vadd.f32 %v6882, %v6883
    %v6885 = vrot.slane %v6884, 2
    %v6886 = vadd.f32 %v6884, %v6885
    %v6887 = vrot.slane %v6886, 1
    %v6888 = vadd.f32 %v6886, %v6887
    %v6889 = vadd.f32 %v6505, %v6509
    %v6890 = vadd.f32 %v6889, %v6513
    %v6891 = vadd.f32 %v6890, %v6517
    %v6892 = vadd.f32 %v6891, %v6521
    %v6893 = vadd.f32 %v6892, %v6525
    %v6894 = vadd.f32 %v6893, %v6529
    %v6895 = vadd.f32 %v6894, %v6533
    %v6896 = vadd.f32 %v6895, %v6537
    %v6897 = vadd.f32 %v6896, %v6541
    %v6898 = vadd.f32 %v6897, %v6545
    %v6899 = vadd.f32 %v6898, %v6549
    %v6900 = vadd.f32 %v6899, %v6553
    %v6901 = vadd.f32 %v6900, %v6557
    %v6902 = vadd.f32 %v6901, %v6561
    %v6903 = vadd.f32 %v6902, %v6565
    %v6904 = vadd.f32 %v6903, %v6569
    %v6905 = vadd.f32 %v6904, %v6573
    %v6906 = vadd.f32 %v6905, %v6577
    %v6907 = vadd.f32 %v6906, %v6581
    %v6908 = vadd.f32 %v6907, %v6585
    %v6909 = vadd.f32 %v6908, %v6589
    %v6910 = vadd.f32 %v6909, %v6593
    %v6911 = vadd.f32 %v6910, %v6597
    %v6912 = vadd.f32 %v6911, %v6601
    %v6913 = vadd.f32 %v6912, %v6605
    %v6914 = vadd.f32 %v6913, %v6609
    %v6915 = vadd.f32 %v6914, %v6613
    %v6916 = vadd.f32 %v6915, %v6617
    %v6917 = vadd.f32 %v6916, %v6621
    %v6918 = vadd.f32 %v6917, %v6625
    %v6919 = vadd.f32 %v6918, %v6629
    %v6920 = vrot.slane %v6919, 4
    %v6921 = vadd.f32 %v6919, %v6920
    %v6922 = vrot.slane %v6921, 2
    %v6923 = vadd.f32 %v6921, %v6922
    %v6924 = vrot.slane %v6923, 1
    %v6925 = vadd.f32 %v6923, %v6924
    %v6926 = vpack.c.bf16 %v4178, %v4172
    %v6927 = vpack.c.bf16 %v4180, %v4174
    %v6928 = vpack.c.bf16 %v4190, %v4184
    %v6929 = vpack.c.bf16 %v4192, %v4186
    %v6930 = vpack.c.bf16 %v4202, %v4196
    %v6931 = vpack.c.bf16 %v4204, %v4198
    %v6932 = vpack.c.bf16 %v4214, %v4208
    %v6933 = vpack.c.bf16 %v4216, %v4210
    %v6934 = vpack.c.bf16 %v4226, %v4220
    %v6935 = vpack.c.bf16 %v4228, %v4222
    %v6936 = vpack.c.bf16 %v4238, %v4232
    %v6937 = vpack.c.bf16 %v4240, %v4234
    %v6938 = vpack.c.bf16 %v4250, %v4244
    %v6939 = vpack.c.bf16 %v4252, %v4246
    %v6940 = vpack.c.bf16 %v4262, %v4256
    %v6941 = vpack.c.bf16 %v4264, %v4258
    %v6942 = vpack.c.bf16 %v6123, %v6119
    %v6943 = vpack.c.bf16 %v6125, %v6121
    %v6944 = vpack.c.bf16 %v6131, %v6127
    %v6945 = vpack.c.bf16 %v6133, %v6129
    %v6946 = vpack.c.bf16 %v6139, %v6135
    %v6947 = vpack.c.bf16 %v6141, %v6137
    %v6948 = vpack.c.bf16 %v6147, %v6143
    %v6949 = vpack.c.bf16 %v6149, %v6145
    %v6950 = vpack.c.bf16 %v6155, %v6151
    %v6951 = vpack.c.bf16 %v6157, %v6153
    %v6952 = vpack.c.bf16 %v6163, %v6159
    %v6953 = vpack.c.bf16 %v6165, %v6161
    %v6954 = vpack.c.bf16 %v6171, %v6167
    %v6955 = vpack.c.bf16 %v6173, %v6169
    %v6956 = vpack.c.bf16 %v6179, %v6175
    %v6957 = vpack.c.bf16 %v6181, %v6177
    %v6958 = vpack.c.bf16 %v6187, %v6183
    %v6959 = vpack.c.bf16 %v6189, %v6185
    %v6960 = vpack.c.bf16 %v6195, %v6191
    %v6961 = vpack.c.bf16 %v6197, %v6193
    %v6962 = vpack.c.bf16 %v6203, %v6199
    %v6963 = vpack.c.bf16 %v6205, %v6201
    %v6964 = vpack.c.bf16 %v6211, %v6207
    %v6965 = vpack.c.bf16 %v6213, %v6209
    %v6966 = vpack.c.bf16 %v6219, %v6215
    %v6967 = vpack.c.bf16 %v6221, %v6217
    %v6968 = vpack.c.bf16 %v6227, %v6223
    %v6969 = vpack.c.bf16 %v6229, %v6225
    %v6970 = vpack.c.bf16 %v6235, %v6231
    %v6971 = vpack.c.bf16 %v6237, %v6233
    %v6972 = vpack.c.bf16 %v6243, %v6239
    %v6973 = vpack.c.bf16 %v6245, %v6241
    %v6974 = vpack.c.bf16 %v6251, %v6247
    %v6975 = vpack.c.bf16 %v6253, %v6249
    %v6976 = vpack.c.bf16 %v6259, %v6255
    %v6977 = vpack.c.bf16 %v6261, %v6257
    %v6978 = vpack.c.bf16 %v6267, %v6263
    %v6979 = vpack.c.bf16 %v6269, %v6265
    %v6980 = vpack.c.bf16 %v6275, %v6271
    %v6981 = vpack.c.bf16 %v6277, %v6273
    %v6982 = vpack.c.bf16 %v6283, %v6279
    %v6983 = vpack.c.bf16 %v6285, %v6281
    %v6984 = vpack.c.bf16 %v6291, %v6287
    %v6985 = vpack.c.bf16 %v6293, %v6289
    %v6986 = vpack.c.bf16 %v6299, %v6295
    %v6987 = vpack.c.bf16 %v6301, %v6297
    %v6988 = vpack.c.bf16 %v6307, %v6303
    %v6989 = vpack.c.bf16 %v6309, %v6305
    %v6990 = vpack.c.bf16 %v6315, %v6311
    %v6991 = vpack.c.bf16 %v6317, %v6313
    %v6992 = vpack.c.bf16 %v6323, %v6319
    %v6993 = vpack.c.bf16 %v6325, %v6321
    %v6994 = vpack.c.bf16 %v6331, %v6327
    %v6995 = vpack.c.bf16 %v6333, %v6329
    %v6996 = vpack.c.bf16 %v6339, %v6335
    %v6997 = vpack.c.bf16 %v6341, %v6337
    %v6998 = vpack.c.bf16 %v6347, %v6343
    %v6999 = vpack.c.bf16 %v6349, %v6345
    %v7000 = vpack.c.bf16 %v6355, %v6351
    %v7001 = vpack.c.bf16 %v6357, %v6353
    %v7002 = vpack.c.bf16 %v6363, %v6359
    %v7003 = vpack.c.bf16 %v6365, %v6361
    %v7004 = vpack.c.bf16 %v6371, %v6367
    %v7005 = vpack.c.bf16 %v6373, %v6369
    %v7006 = vpack.c.bf16 %v6379, %v6375
    %v7007 = vpack.c.bf16 %v6381, %v6377
    %v7008 = vpack.c.bf16 %v6387, %v6383
    %v7009 = vpack.c.bf16 %v6389, %v6385
    %v7010 = vpack.c.bf16 %v6395, %v6391
    %v7011 = vpack.c.bf16 %v6397, %v6393
    %v7012 = vpack.c.bf16 %v6403, %v6399
    %v7013 = vpack.c.bf16 %v6405, %v6401
    %v7014 = vpack.c.bf16 %v6411, %v6407
    %v7015 = vpack.c.bf16 %v6413, %v6409
    %v7016 = vpack.c.bf16 %v6419, %v6415
    %v7017 = vpack.c.bf16 %v6421, %v6417
    %v7018 = vpack.c.bf16 %v6427, %v6423
    %v7019 = vpack.c.bf16 %v6429, %v6425
    %v7020 = vpack.c.bf16 %v6435, %v6431
    %v7021 = vpack.c.bf16 %v6437, %v6433
    %v7022 = vpack.c.bf16 %v6443, %v6439
    %v7023 = vpack.c.bf16 %v6445, %v6441
    %v7024 = vpack.c.bf16 %v6451, %v6447
    %v7025 = vpack.c.bf16 %v6453, %v6449
    %v7026 = vpack.c.bf16 %v6459, %v6455
    %v7027 = vpack.c.bf16 %v6461, %v6457
    %v7028 = vpack.c.bf16 %v6467, %v6463
    %v7029 = vpack.c.bf16 %v6469, %v6465
    %v7030 = vpack.c.bf16 %v6475, %v6471
    %v7031 = vpack.c.bf16 %v6477, %v6473
    %v7032 = vpack.c.bf16 %v6483, %v6479
    %v7033 = vpack.c.bf16 %v6485, %v6481
    %v7034 = vpack.c.bf16 %v6491, %v6487
    %v7035 = vpack.c.bf16 %v6493, %v6489
    %v7036 = vpack.c.bf16 %v6499, %v6495
    %v7037 = vpack.c.bf16 %v6501, %v6497
    %v7038 = vpack.c.bf16 %v6507, %v6503
    %v7039 = vpack.c.bf16 %v6509, %v6505
    %v7040 = vpack.c.bf16 %v6515, %v6511
    %v7041 = vpack.c.bf16 %v6517, %v6513
    %v7042 = vpack.c.bf16 %v6523, %v6519
    %v7043 = vpack.c.bf16 %v6525, %v6521
    %v7044 = vpack.c.bf16 %v6531, %v6527
    %v7045 = vpack.c.bf16 %v6533, %v6529
    %v7046 = vpack.c.bf16 %v6539, %v6535
    %v7047 = vpack.c.bf16 %v6541, %v6537
    %v7048 = vpack.c.bf16 %v6547, %v6543
    %v7049 = vpack.c.bf16 %v6549, %v6545
    %v7050 = vpack.c.bf16 %v6555, %v6551
    %v7051 = vpack.c.bf16 %v6557, %v6553
    %v7052 = vpack.c.bf16 %v6563, %v6559
    %v7053 = vpack.c.bf16 %v6565, %v6561
    %v7054 = vpack.c.bf16 %v6571, %v6567
    %v7055 = vpack.c.bf16 %v6573, %v6569
    %v7056 = vpack.c.bf16 %v6579, %v6575
    %v7057 = vpack.c.bf16 %v6581, %v6577
    %v7058 = vpack.c.bf16 %v6587, %v6583
    %v7059 = vpack.c.bf16 %v6589, %v6585
    %v7060 = vpack.c.bf16 %v6595, %v6591
    %v7061 = vpack.c.bf16 %v6597, %v6593
    %v7062 = vpack.c.bf16 %v6603, %v6599
    %v7063 = vpack.c.bf16 %v6605, %v6601
    %v7064 = vpack.c.bf16 %v6611, %v6607
    %v7065 = vpack.c.bf16 %v6613, %v6609
    %v7066 = vpack.c.bf16 %v6619, %v6615
    %v7067 = vpack.c.bf16 %v6621, %v6617
    %v7068 = vpack.c.bf16 %v6627, %v6623
    %v7069 = vpack.c.bf16 %v6629, %v6625
    %7070 = vmatprep.subr.bf16.mxu0 %v6943
    %7071 = vmatpush1.bf16.msra.mxu0 %v6942
    %7072 = vmatprep.subr.bf16.mxu0 %v6945
    %7073 = vmatpush1.bf16.msra.mxu0 %v6944
    %7074 = vmatprep.subr.bf16.mxu0 %v6947
    %7075 = vmatpush1.bf16.msra.mxu0 %v6946
    %7076 = vmatprep.subr.bf16.mxu0 %v6949
    %7077 = vmatpush1.bf16.msra.mxu0 %v6948
    %7078 = vmatprep.subr.bf16.mxu0 %v6951
    %7079 = vmatpush1.bf16.msra.mxu0 %v6950
    %7080 = vmatprep.subr.bf16.mxu0 %v6953
    %7081 = vmatpush1.bf16.msra.mxu0 %v6952
    %7082 = vmatprep.subr.bf16.mxu0 %v6955
    %7083 = vmatpush1.bf16.msra.mxu0 %v6954
    %7084 = vmatprep.subr.bf16.mxu0 %v6957
    %7085 = vmatpush1.bf16.msra.mxu0 %v6956
    %7086 = vmatprep.subr.bf16.mxu0 %v6959
    %7087 = vmatpush1.bf16.msra.mxu0 %v6958
    %7088 = vmatprep.subr.bf16.mxu0 %v6961
    %7089 = vmatpush1.bf16.msra.mxu0 %v6960
    %7090 = vmatprep.subr.bf16.mxu0 %v6963
    %7091 = vmatpush1.bf16.msra.mxu0 %v6962
    %7092 = vmatprep.subr.bf16.mxu0 %v6965
    %7093 = vmatpush1.bf16.msra.mxu0 %v6964
    %7094 = vmatprep.subr.bf16.mxu0 %v6967
    %7095 = vmatpush1.bf16.msra.mxu0 %v6966
    %7096 = vmatprep.subr.bf16.mxu0 %v6969
    %7097 = vmatpush1.bf16.msra.mxu0 %v6968
    %7098 = vmatprep.subr.bf16.mxu0 %v6971
    %7099 = vmatpush1.bf16.msra.mxu0 %v6970
    %7100 = vmatprep.subr.bf16.mxu0 %v6973
    %7101 = vmatpush1.bf16.msra.mxu0 %v6972
    %7102 = vmatprep.mubr.bf16.mxu0 %v6927
    %7103 = vmatmul.mubr.bf16.gmra.mrb[0].mxu0 %v6926
    %v7104 = vpop.f32.mrb[0].mxu0
    %v7105 = vadd.f32 0.0, %v7104
    %v7106 = vpop.f32.mrb[0].mxu0
    %v7107 = vadd.f32 0.0, %v7106
    %v7108 = vpop.f32.mrb[0].mxu0
    %v7109 = vadd.f32 0.0, %v7108
    %v7110 = vpop.f32.mrb[0].mxu0
    %v7111 = vadd.f32 0.0, %v7110
    %7112 = vmatprep.mubr.bf16.mxu0 %v6929
    %7113 = vmatmul.mubr.bf16.gmra.mrb[0].mxu0 %v6928
    %v7114 = vpop.f32.mrb[0].mxu0
    %v7115 = vadd.f32 0.0, %v7114
    %v7116 = vpop.f32.mrb[0].mxu0
    %v7117 = vadd.f32 0.0, %v7116
    %v7118 = vpop.f32.mrb[0].mxu0
    %v7119 = vadd.f32 0.0, %v7118
    %v7120 = vpop.f32.mrb[0].mxu0
    %v7121 = vadd.f32 0.0, %v7120
    %7122 = vdwg.mxu0
    %7123 = vmatprep.subr.bf16.mxu0 %v6975
    %7124 = vmatpush1.bf16.msra.mxu0 %v6974
    %7125 = vmatprep.subr.bf16.mxu0 %v6977
    %7126 = vmatpush1.bf16.msra.mxu0 %v6976
    %7127 = vmatprep.subr.bf16.mxu0 %v6979
    %7128 = vmatpush1.bf16.msra.mxu0 %v6978
    %7129 = vmatprep.subr.bf16.mxu0 %v6981
    %7130 = vmatpush1.bf16.msra.mxu0 %v6980
    %7131 = vmatprep.subr.bf16.mxu0 %v6983
    %7132 = vmatpush1.bf16.msra.mxu0 %v6982
    %7133 = vmatprep.subr.bf16.mxu0 %v6985
    %7134 = vmatpush1.bf16.msra.mxu0 %v6984
    %7135 = vmatprep.subr.bf16.mxu0 %v6987
    %7136 = vmatpush1.bf16.msra.mxu0 %v6986
    %7137 = vmatprep.subr.bf16.mxu0 %v6989
    %7138 = vmatpush1.bf16.msra.mxu0 %v6988
    %7139 = vmatprep.subr.bf16.mxu0 %v6991
    %7140 = vmatpush1.bf16.msra.mxu0 %v6990
    %7141 = vmatprep.subr.bf16.mxu0 %v6993
    %7142 = vmatpush1.bf16.msra.mxu0 %v6992
    %7143 = vmatprep.subr.bf16.mxu0 %v6995
    %7144 = vmatpush1.bf16.msra.mxu0 %v6994
    %7145 = vmatprep.subr.bf16.mxu0 %v6997
    %7146 = vmatpush1.bf16.msra.mxu0 %v6996
    %7147 = vmatprep.subr.bf16.mxu0 %v6999
    %7148 = vmatpush1.bf16.msra.mxu0 %v6998
    %7149 = vmatprep.subr.bf16.mxu0 %v7001
    %7150 = vmatpush1.bf16.msra.mxu0 %v7000
    %7151 = vmatprep.subr.bf16.mxu0 %v7003
    %7152 = vmatpush1.bf16.msra.mxu0 %v7002
    %7153 = vmatprep.subr.bf16.mxu0 %v7005
    %7154 = vmatpush1.bf16.msra.mxu0 %v7004
    %7155 = vmatprep.mubr.bf16.mxu0 %v6931
    %7156 = vmatmul.mubr.bf16.gmra.mrb[0].mxu0 %v6930
    %v7157 = vpop.f32.mrb[0].mxu0
    %v7158 = vadd.f32 0.0, %v7157
    %v7159 = vpop.f32.mrb[0].mxu0
    %v7160 = vadd.f32 0.0, %v7159
    %v7161 = vpop.f32.mrb[0].mxu0
    %v7162 = vadd.f32 0.0, %v7161
    %v7163 = vpop.f32.mrb[0].mxu0
    %v7164 = vadd.f32 0.0, %v7163
    %7165 = vmatprep.mubr.bf16.mxu0 %v6933
    %7166 = vmatmul.mubr.bf16.gmra.mrb[0].mxu0 %v6932
    %v7167 = vpop.f32.mrb[0].mxu0
    %v7168 = vadd.f32 0.0, %v7167
    %v7169 = vpop.f32.mrb[0].mxu0
    %v7170 = vadd.f32 0.0, %v7169
    %v7171 = vpop.f32.mrb[0].mxu0
    %v7172 = vadd.f32 0.0, %v7171
    %v7173 = vpop.f32.mrb[0].mxu0
    %v7174 = vadd.f32 0.0, %v7173
    %7175 = vdwg.mxu0
    %7176 = vmatprep.subr.bf16.mxu0 %v7007
    %7177 = vmatpush1.bf16.msra.mxu0 %v7006
    %7178 = vmatprep.subr.bf16.mxu0 %v7009
    %7179 = vmatpush1.bf16.msra.mxu0 %v7008
    %7180 = vmatprep.subr.bf16.mxu0 %v7011
    %7181 = vmatpush1.bf16.msra.mxu0 %v7010
    %7182 = vmatprep.subr.bf16.mxu0 %v7013
    %7183 = vmatpush1.bf16.msra.mxu0 %v7012
    %7184 = vmatprep.subr.bf16.mxu0 %v7015
    %7185 = vmatpush1.bf16.msra.mxu0 %v7014
    %7186 = vmatprep.subr.bf16.mxu0 %v7017
    %7187 = vmatpush1.bf16.msra.mxu0 %v7016
    %7188 = vmatprep.subr.bf16.mxu0 %v7019
    %7189 = vmatpush1.bf16.msra.mxu0 %v7018
    %7190 = vmatprep.subr.bf16.mxu0 %v7021
    %7191 = vmatpush1.bf16.msra.mxu0 %v7020
    %7192 = vmatprep.subr.bf16.mxu0 %v7023
    %7193 = vmatpush1.bf16.msra.mxu0 %v7022
    %7194 = vmatprep.subr.bf16.mxu0 %v7025
    %7195 = vmatpush1.bf16.msra.mxu0 %v7024
    %7196 = vmatprep.subr.bf16.mxu0 %v7027
    %7197 = vmatpush1.bf16.msra.mxu0 %v7026
    %7198 = vmatprep.subr.bf16.mxu0 %v7029
    %7199 = vmatpush1.bf16.msra.mxu0 %v7028
    %7200 = vmatprep.subr.bf16.mxu0 %v7031
    %7201 = vmatpush1.bf16.msra.mxu0 %v7030
    %7202 = vmatprep.subr.bf16.mxu0 %v7033
    %7203 = vmatpush1.bf16.msra.mxu0 %v7032
    %7204 = vmatprep.subr.bf16.mxu0 %v7035
    %7205 = vmatpush1.bf16.msra.mxu0 %v7034
    %7206 = vmatprep.subr.bf16.mxu0 %v7037
    %7207 = vmatpush1.bf16.msra.mxu0 %v7036
    %7208 = vmatprep.mubr.bf16.mxu0 %v6935
    %7209 = vmatmul.mubr.bf16.gmra.mrb[0].mxu0 %v6934
    %v7210 = vpop.f32.mrb[0].mxu0
    %v7211 = vadd.f32 0.0, %v7210
    %v7212 = vpop.f32.mrb[0].mxu0
    %v7213 = vadd.f32 0.0, %v7212
    %v7214 = vpop.f32.mrb[0].mxu0
    %v7215 = vadd.f32 0.0, %v7214
    %v7216 = vpop.f32.mrb[0].mxu0
    %v7217 = vadd.f32 0.0, %v7216
    %7218 = vmatprep.mubr.bf16.mxu0 %v6937
    %7219 = vmatmul.mubr.bf16.gmra.mrb[0].mxu0 %v6936
    %v7220 = vpop.f32.mrb[0].mxu0
    %v7221 = vadd.f32 0.0, %v7220
    %v7222 = vpop.f32.mrb[0].mxu0
    %v7223 = vadd.f32 0.0, %v7222
    %v7224 = vpop.f32.mrb[0].mxu0
    %v7225 = vadd.f32 0.0, %v7224
    %v7226 = vpop.f32.mrb[0].mxu0
    %v7227 = vadd.f32 0.0, %v7226
    %7228 = vdwg.mxu0
    %7229 = vmatprep.subr.bf16.mxu0 %v7039
    %7230 = vmatpush1.bf16.msra.mxu0 %v7038
    %7231 = vmatprep.subr.bf16.mxu0 %v7041
    %7232 = vmatpush1.bf16.msra.mxu0 %v7040
    %7233 = vmatprep.subr.bf16.mxu0 %v7043
    %7234 = vmatpush1.bf16.msra.mxu0 %v7042
    %7235 = vmatprep.subr.bf16.mxu0 %v7045
    %7236 = vmatpush1.bf16.msra.mxu0 %v7044
    %7237 = vmatprep.subr.bf16.mxu0 %v7047
    %7238 = vmatpush1.bf16.msra.mxu0 %v7046
    %7239 = vmatprep.subr.bf16.mxu0 %v7049
    %7240 = vmatpush1.bf16.msra.mxu0 %v7048
    %7241 = vmatprep.subr.bf16.mxu0 %v7051
    %7242 = vmatpush1.bf16.msra.mxu0 %v7050
    %7243 = vmatprep.subr.bf16.mxu0 %v7053
    %7244 = vmatpush1.bf16.msra.mxu0 %v7052
    %7245 = vmatprep.subr.bf16.mxu0 %v7055
    %7246 = vmatpush1.bf16.msra.mxu0 %v7054
    %7247 = vmatprep.subr.bf16.mxu0 %v7057
    %7248 = vmatpush1.bf16.msra.mxu0 %v7056
    %7249 = vmatprep.subr.bf16.mxu0 %v7059
    %7250 = vmatpush1.bf16.msra.mxu0 %v7058
    %7251 = vmatprep.subr.bf16.mxu0 %v7061
    %7252 = vmatpush1.bf16.msra.mxu0 %v7060
    %7253 = vmatprep.subr.bf16.mxu0 %v7063
    %7254 = vmatpush1.bf16.msra.mxu0 %v7062
    %7255 = vmatprep.subr.bf16.mxu0 %v7065
    %7256 = vmatpush1.bf16.msra.mxu0 %v7064
    %7257 = vmatprep.subr.bf16.mxu0 %v7067
    %7258 = vmatpush1.bf16.msra.mxu0 %v7066
    %7259 = vmatprep.subr.bf16.mxu0 %v7069
    %7260 = vmatpush1.bf16.msra.mxu0 %v7068
    %7261 = vmatprep.mubr.bf16.mxu0 %v6939
    %7262 = vmatmul.mubr.bf16.gmra.mrb[0].mxu0 %v6938
    %v7263 = vpop.f32.mrb[0].mxu0
    %v7264 = vadd.f32 0.0, %v7263
    %v7265 = vpop.f32.mrb[0].mxu0
    %v7266 = vadd.f32 0.0, %v7265
    %v7267 = vpop.f32.mrb[0].mxu0
    %v7268 = vadd.f32 0.0, %v7267
    %v7269 = vpop.f32.mrb[0].mxu0
    %v7270 = vadd.f32 0.0, %v7269
    %7271 = vmatprep.mubr.bf16.mxu0 %v6941
    %7272 = vmatmul.mubr.bf16.gmra.mrb[0].mxu0 %v6940
    %v7273 = vpop.f32.mrb[0].mxu0
    %v7274 = vadd.f32 0.0, %v7273
    %v7275 = vpop.f32.mrb[0].mxu0
    %v7276 = vadd.f32 0.0, %v7275
    %v7277 = vpop.f32.mrb[0].mxu0
    %v7278 = vadd.f32 0.0, %v7277
    %v7279 = vpop.f32.mrb[0].mxu0
    %v7280 = vadd.f32 0.0, %v7279
    %7281 = vdwg.mxu0
    %v7282 = vrcp.pop %v6666
    %v7283 = vrcp.pop %v6703
    %v7284 = vrcp.pop %v6740
    %v7285 = vrcp.pop %v6777
    %v7286 = vrcp.pop %v6814
    %v7287 = vrcp.pop %v6851
    %v7288 = vrcp.pop %v6888
    %v7289 = vrcp.pop %v6925
    %v7290 = vmul.f32 %v7105, %v7282
    %v7291 = vmul.f32 %v7107, %v7283
    %v7292 = vmul.f32 %v7109, %v7282
    %v7293 = vmul.f32 %v7111, %v7283
    %v7294 = vmul.f32 %v7115, %v7282
    %v7295 = vmul.f32 %v7117, %v7283
    %v7296 = vmul.f32 %v7119, %v7282
    %v7297 = vmul.f32 %v7121, %v7283
    %v7298 = vmul.f32 %v7158, %v7284
    %v7299 = vmul.f32 %v7160, %v7285
    %v7300 = vmul.f32 %v7162, %v7284
    %v7301 = vmul.f32 %v7164, %v7285
    %v7302 = vmul.f32 %v7168, %v7284
    %v7303 = vmul.f32 %v7170, %v7285
    %v7304 = vmul.f32 %v7172, %v7284
    %v7305 = vmul.f32 %v7174, %v7285
    %v7306 = vmul.f32 %v7211, %v7286
    %v7307 = vmul.f32 %v7213, %v7287
    %v7308 = vmul.f32 %v7215, %v7286
    %v7309 = vmul.f32 %v7217, %v7287
    %v7310 = vmul.f32 %v7221, %v7286
    %v7311 = vmul.f32 %v7223, %v7287
    %v7312 = vmul.f32 %v7225, %v7286
    %v7313 = vmul.f32 %v7227, %v7287
    %v7314 = vmul.f32 %v7264, %v7288
    %v7315 = vmul.f32 %v7266, %v7289
    %v7316 = vmul.f32 %v7268, %v7288
    %v7317 = vmul.f32 %v7270, %v7289
    %v7318 = vmul.f32 %v7274, %v7288
    %v7319 = vmul.f32 %v7276, %v7289
    %v7320 = vmul.f32 %v7278, %v7288
    %v7321 = vmul.f32 %v7280, %v7289
    %v7322 = vld [vmem:[%s2] sm:$0xf]
    %v7323 = vld [vmem:[%s3] sm:$0xf]
    %7325 = vset.pattern.permute.xlu0 0
    %7326 = vperm.xlu0 %7325, %v7323
    %v7327 = vpop.permute.xlu0 %7326
    %7329 = vmatprep.subr.mxu0 %v7291
    %7330 = vmatpush1.msra.mxu0 %v7290
    %7331 = vmatprep.subr.mxu0 %v7293
    %7332 = vmatpush1.msra.mxu0 %v7292
    %7333 = vmatprep.subr.mxu0 %v7295
    %7334 = vmatpush1.msra.mxu0 %v7294
    %7335 = vmatprep.subr.mxu0 %v7297
    %7336 = vmatpush1.msra.mxu0 %v7296
    %7337 = vmatprep.subr.mxu0 %v7299
    %7338 = vmatpush1.msra.mxu0 %v7298
    %7339 = vmatprep.subr.mxu0 %v7301
    %7340 = vmatpush1.msra.mxu0 %v7300
    %7341 = vmatprep.subr.mxu0 %v7303
    %7342 = vmatpush1.msra.mxu0 %v7302
    %7343 = vmatprep.subr.mxu0 %v7305
    %7344 = vmatpush1.msra.mxu0 %v7304
    %7345 = vmatprep.subr.mxu0 %v7307
    %7346 = vmatpush1.msra.mxu0 %v7306
    %7347 = vmatprep.subr.mxu0 %v7309
    %7348 = vmatpush1.msra.mxu0 %v7308
    %7349 = vmatprep.subr.mxu0 %v7311
    %7350 = vmatpush1.msra.mxu0 %v7310
    %7351 = vmatprep.subr.mxu0 %v7313
    %7352 = vmatpush1.msra.mxu0 %v7312
    %7353 = vmatprep.subr.mxu0 %v7315
    %7354 = vmatpush1.msra.mxu0 %v7314
    %7355 = vmatprep.subr.mxu0 %v7317
    %7356 = vmatpush1.msra.mxu0 %v7316
    %7357 = vmatprep.subr.mxu0 %v7319
    %7358 = vmatpush1.msra.mxu0 %v7318
    %7359 = vmatprep.subr.mxu0 %v7321
    %7360 = vmatpush1.msra.mxu0 %v7320
    %7361 = vmatprep.subr.mxu0 0.0
    %7362 = vmatpush1.msra.mxu0 0.0
    %7363 = vmatprep.subr.mxu0 0.0
    %7364 = vmatpush1.msra.mxu0 0.0
    %7365 = vmatprep.subr.mxu0 0.0
    %7366 = vmatpush1.msra.mxu0 0.0
    %7367 = vmatprep.subr.mxu0 0.0
    %7368 = vmatpush1.msra.mxu0 0.0
    %7369 = vmatprep.subr.mxu0 0.0
    %7370 = vmatpush1.msra.mxu0 0.0
    %7371 = vmatprep.subr.mxu0 0.0
    %7372 = vmatpush1.msra.mxu0 0.0
    %7373 = vmatprep.subr.mxu0 0.0
    %7374 = vmatpush1.msra.mxu0 0.0
    %7375 = vmatprep.subr.mxu0 0.0
    %7376 = vmatpush1.msra.mxu0 0.0
    %7377 = vmatprep.subr.mxu0 0.0
    %7378 = vmatpush1.msra.mxu0 0.0
    %7379 = vmatprep.subr.mxu0 0.0
    %7380 = vmatpush1.msra.mxu0 0.0
    %7381 = vmatprep.subr.mxu0 0.0
    %7382 = vmatpush1.msra.mxu0 0.0
    %7383 = vmatprep.subr.mxu0 0.0
    %7384 = vmatpush1.msra.mxu0 0.0
    %7385 = vmatprep.subr.mxu0 0.0
    %7386 = vmatpush1.msra.mxu0 0.0
    %7387 = vmatprep.subr.mxu0 0.0
    %7388 = vmatpush1.msra.mxu0 0.0
    %7389 = vmatprep.subr.mxu0 0.0
    %7390 = vmatpush1.msra.mxu0 0.0
    %7391 = vmatprep.subr.mxu0 0.0
    %7392 = vmatpush1.msra.mxu0 0.0
    %7393 = vmatprep.mubr.f32.mxu0 0.0
    %7394 = vmatmul.mubr.f32.gmra.mrb[0].mxu0 %v7322
    %v7395 = vpop.f32.mrb[0].mxu0
    %v7396 = vadd.f32 %v7327, %v7395
    %v7397 = vpop.f32.mrb[0].mxu0
    %v7398 = vadd.f32 %v7327, %v7397
    %7399 = vdwg.mxu0
    %v7402 = vcombine.low %v7396, %v7398
    %s7404 = scalar_lea.vmem [#allocation2], 8
    %7405 = vst [vmem:[%s7404] sm:$0xff] %v7402
    // Predicated region
    $region18: #{tpu_custom_call.1} parent=1 // pred_check
      _
    $region19: #{tpu_custom_call.1} parent=1 // pred_check_branch
      %7407 = sbr.rel (0) target = $region21
    $region20: #{tpu_custom_call.1} parent=1 // pred_region
      %s7409 = ssub.s32 256, 256
      %7410 = vsyncadd [#allocation3], %s7409
      %s7411 = sshll.u32 [#allocation2], 4
      %s7412 = int_to_ptr.vmem [resolvable:$true] %s7411
      %7417 = dma.vmem_to_hbm [thread:$0]  %s7412, 256, %s4, [#allocation3], 128, 128, 8
    $region21: #{tpu_custom_call.1} parent=1 // pred_fallthru
      _
    // Predicated region
    $region22: #{tpu_custom_call.1} parent=1 // pred_check
      _
    $region23: #{tpu_custom_call.1} parent=1 // pred_check_branch
      %7419 = sbr.rel (0) target = $region25
    $region24: #{tpu_custom_call.1} parent=1 // pred_region
      %7420 = dma.done [#allocation3], 256
    $region25: #{tpu_custom_call.1} parent=1 // pred_fallthru
      _
    %7421 = vsyncpa [#allocation3], 1

</llo_original>
